<compile_context>
chip_gen: v7x
topology: tpu7x:2x2x1
jax: 0.10.0
libtpu: 0.0.40
codegen_flags: <defaults>
</compile_context>

<pallas_src>
import functools

import jax
import jax.numpy as jnp
import numpy as np
from jax import lax
from jax.experimental import pallas as pl
from jax.experimental.pallas import tpu as pltpu

# The pure-JAX reference keeps its matmuls in full f32.
jax.config.update("jax_default_matmul_precision", "highest")

_BF16 = jnp.bfloat16
_MM_PREC = lax.Precision.DEFAULT  # native bf16 MXU path inside the kernel


# --------------------------- Pallas kernel ----------------------------------
def _layer_kernel(*refs, heads, dim_head, project_out, mlp_chunk):
    if project_out:
        (x_ref, ln1w_ref, ln1b_ref, wqkv_ref, wo_ref, bo_ref,
         ln2w_ref, ln2b_ref, w1_ref, b1_ref, w2_ref, b2_ref,
         o_ref, attn_ref) = refs
    else:
        (x_ref, ln1w_ref, ln1b_ref, wqkv_ref,
         ln2w_ref, ln2b_ref, w1_ref, b1_ref, w2_ref, b2_ref, o_ref) = refs
        wo_ref = bo_ref = attn_ref = None

    x = x_ref[...].astype(jnp.float32)                       # (G, n, dim)
    G, n, dim = x.shape
    inner = heads * dim_head
    R = G * n
    eps = 1e-5

    # ---------------- PreNorm 1 (f32) + fused QKV projection -----------------
    mu = jnp.mean(x, axis=-1, keepdims=True)
    xc = x - mu
    var = jnp.mean(xc * xc, axis=-1, keepdims=True)
    xn = xc * lax.rsqrt(var + eps) * ln1w_ref[...] + ln1b_ref[...]

    # One (R, dim) @ (dim, 3*inner) MXU dot.  The 1/sqrt(dim_head) scale is
    # pre-folded into the Q columns of wqkv by the wrapper.
    qkv = jnp.dot(xn.reshape(R, dim).astype(_BF16), wqkv_ref[...],
                  preferred_element_type=jnp.float32,
                  precision=_MM_PREC)                         # (R, 3*inner) f32

    # ---------------- batched multi-head attention ---------------------------
    # Head split: cheap lane slices re-stacked along a NEW leading axis (no
    # minor-axis concatenate), then leading reshapes to a (heads*G) batch.
    def to_heads(base):                                       # -> (heads*G, n, dh) bf16
        parts = [qkv[:, base + h * dim_head: base + (h + 1) * dim_head]
                 .reshape(G, n, dim_head) for h in range(heads)]
        th = jnp.stack(parts, axis=0)                         # (heads, G, n, dh)
        return th.reshape(heads * G, n, dim_head).astype(_BF16)

    qh = to_heads(0)
    kh = to_heads(inner)
    vh = to_heads(2 * inner)

    dots = jnp.einsum('bnd,bmd->bnm', qh, kh,
                      preferred_element_type=jnp.float32,
                      precision=_MM_PREC)                     # (heads*G, n, n) f32
    dots = dots - jnp.max(dots, axis=-1, keepdims=True)
    p = jnp.exp(dots)
    attn = p * pl.reciprocal(jnp.sum(p, axis=-1, keepdims=True), approx=True)
    out_b = jnp.einsum('bnm,bmd->bnd', attn.astype(_BF16), vh,
                       preferred_element_type=jnp.float32,
                       precision=_MM_PREC)                    # (heads*G, n, dh) f32

    if project_out:
        # Write head outputs into a VMEM scratch slab (bounded live ranges,
        # no concatenate), then one lane-dense (R, inner) @ (inner, dim) dot.
        for h in range(heads):
            oh = out_b[h * G:(h + 1) * G].reshape(R, dim_head).astype(_BF16)
            attn_ref[:, h * dim_head:(h + 1) * dim_head] = oh
        proj = jnp.dot(attn_ref[...], wo_ref[...],
                       preferred_element_type=jnp.float32,
                       precision=_MM_PREC) + bo_ref[...]
        attn_out = proj.reshape(G, n, dim)
    else:
        attn_out = out_b.reshape(G, n, dim)                   # heads==1, dh==dim

    x = x + attn_out                                          # residual 1 (f32)

    # ---------------- PreNorm 2 (f32) + FeedForward ---------------------------
    mu2 = jnp.mean(x, axis=-1, keepdims=True)
    xc2 = x - mu2
    var2 = jnp.mean(xc2 * xc2, axis=-1, keepdims=True)
    xn2 = (xc2 * lax.rsqrt(var2 + eps) * ln2w_ref[...] + ln2b_ref[...])
    xn2 = xn2.reshape(R, dim).astype(_BF16)

    # Chunk mlp_dim so the f32 hidden slab stays bounded (v7x VMEM budget).
    mlp_dim = w1_ref.shape[1]
    ff = None
    for lo in range(0, mlp_dim, mlp_chunk):
        hi = lo + mlp_chunk
        h_t = jnp.dot(xn2, w1_ref[:, lo:hi],
                      preferred_element_type=jnp.float32, precision=_MM_PREC)
        h_t = jnp.maximum(h_t + b1_ref[:, lo:hi], 0.0).astype(_BF16)  # ReLU
        c_t = jnp.dot(h_t, w2_ref[lo:hi, :],
                      preferred_element_type=jnp.float32, precision=_MM_PREC)
        ff = c_t if ff is None else ff + c_t
    ff = ff + b2_ref[...]

    o_ref[...] = (x + ff.reshape(G, n, dim)).astype(o_ref.dtype)      # residual 2


# --------------------------- wrapper -----------------------------------------
def _weight_spec(a, single_buffer):
    nd = a.ndim
    if single_buffer:
        # Constant-index weights do not need double-buffering; this halves
        # their VMEM residency at real ViT dims.
        return pl.BlockSpec(a.shape, lambda i, _nd=nd: (0,) * _nd,
                            pipeline_mode=pl.Buffered(1))
    return pl.BlockSpec(a.shape, lambda i, _nd=nd: (0,) * _nd)


def _pick_group(B, n, dim):
    """Largest divisor of B whose (G, n, dim) f32 block is <= ~2 MiB and
    <= 1024 rows (fills the MXU M dimension); prefer >= 4 grid steps when that
    still leaves >= 256 rows per block (pipelining / megacore)."""
    divs = [g for g in range(1, B + 1) if B % g == 0]
    ok = [g for g in divs if g * n <= 1024 and g * n * dim * 4 <= (2 << 20)] or [1]
    g = max(ok)
    if B // g < 4:
        piped = [d for d in ok if B // d >= 4 and d * n >= 256]
        if piped:
            g = max(piped)
    return g


def _layer_call(x2, params, *, heads, dim_head, project_out, G, mlp_chunk,
                single_buffer_weights):
    B, n, dim = x2.shape
    R, inner = G * n, heads * dim_head
    kernel = functools.partial(_layer_kernel, heads=heads, dim_head=dim_head,
                               project_out=project_out, mlp_chunk=mlp_chunk)

    in_specs = [pl.BlockSpec((G, n, dim), lambda i: (i, 0, 0))]
    in_specs += [_weight_spec(a, single_buffer_weights) for a in params]
    scratch = ([pltpu.VMEM((R, inner), _BF16)] if project_out else [])

    # Explicit scoped-VMEM budget: pipelined x/out blocks + weights + a bound
    # on the in-kernel intermediates, with headroom (floor 32 MiB, cap 64 MiB).
    blk = G * n * dim * 4
    wbytes = sum(int(np.prod(a.shape)) * a.dtype.itemsize for a in params)
    wbytes *= 1 if single_buffer_weights else 2
    interm = 4 * R * (6 * inner + 2 * dim + 2 * mlp_chunk) + 8 * heads * G * n * n
    vmem_bytes = int(min(64 << 20, max(32 << 20, 2 * (4 * blk + wbytes + interm))))

    return pl.pallas_call(
        kernel,
        out_shape=jax.ShapeDtypeStruct((B, n, dim), x2.dtype),
        grid=(B // G,),
        in_specs=in_specs,
        out_specs=pl.BlockSpec((G, n, dim), lambda i: (i, 0, 0)),
        scratch_shapes=scratch,
        compiler_params=pltpu.CompilerParams(
            dimension_semantics=("parallel",),
            vmem_limit_bytes=vmem_bytes),
    )(x2, *params)


def prepare_kernel_params(layer_params, *, heads, dim_head, project_out):
    """Zero-cost (wrapper-time) reorders/casts of the f32 module parameters:
    attention scale folded into the Q columns of wqkv, matmul weights in bf16;
    LayerNorm params / biases stay f32 (added to f32 accumulators)."""
    inner = heads * dim_head
    scale = dim_head ** (-0.5)
    if project_out:
        ln1w, ln1b, wqkv, wo, bo, ln2w, ln2b, w1, b1, w2, b2 = layer_params
    else:
        ln1w, ln1b, wqkv, ln2w, ln2b, w1, b1, w2, b2 = layer_params
        wo = bo = None
    wqkv = wqkv.at[:, :inner].multiply(scale).astype(_BF16)
    out = [ln1w, ln1b, wqkv]
    if project_out:
        out += [wo.astype(_BF16), bo]
    out += [ln2w, ln2b, w1.astype(_BF16), b1, w2.astype(_BF16), b2]
    return tuple(out)


def transformer(x, layers, *, heads, dim_head):
    """x: (b, p, n, dim) float32.  layers: list of per-layer f32 param tuples
    (module layout, as produced by init_layer_params)."""
    b, p, n, dim = x.shape
    B = b * p
    assert n % 8 == 0, "token count must be a multiple of 8 (sublane tiling)"
    # TODO(synk): mask-aware token padding for n % 8 != 0 (e.g. ViT's n = 197).
    project_out = not (heads == 1 and dim_head == dim)
    G = _pick_group(B, n, dim)

    kparams = [prepare_kernel_params(lp, heads=heads, dim_head=dim_head,
                                     project_out=project_out) for lp in layers]
    mlp_dim = int(kparams[0][-4].shape[1])
    mlp_chunk = mlp_dim if (mlp_dim <= 512 or mlp_dim % 512) else 512

    def run(single_buffer_weights):
        x2 = x.reshape(B, n, dim)
        for kp in kparams:
            x2 = _layer_call(x2, kp, heads=heads, dim_head=dim_head,
                             project_out=project_out, G=G, mlp_chunk=mlp_chunk,
                             single_buffer_weights=single_buffer_weights)
        return x2.reshape(b, p, n, dim)

    try:
        return run(True)     # constant-index weights single-buffered
    except Exception:        # fallback if pipeline_mode=pl.Buffered(1) rejected
        return run(False)


# --------------------------- parameter init ----------------------------------
def init_layer_params(key, dim, heads, dim_head, mlp_dim):
    inner = heads * dim_head
    project_out = not (heads == 1 and dim_head == dim)
    ks = jax.random.split(key, 12)

    def lin(k, fan_in, fan_out):
        return (jax.random.normal(k, (fan_in, fan_out), jnp.float32)
                * (1.0 / np.sqrt(fan_in))).astype(jnp.float32)

    ln1w = (1.0 + 0.1 * jax.random.normal(ks[0], (1, dim))).astype(jnp.float32)
    ln1b = (0.1 * jax.random.normal(ks[1], (1, dim))).astype(jnp.float32)
    wqkv = lin(ks[2], dim, 3 * inner)
    ln2w = (1.0 + 0.1 * jax.random.normal(ks[3], (1, dim))).astype(jnp.float32)
    ln2b = (0.1 * jax.random.normal(ks[4], (1, dim))).astype(jnp.float32)
    w1 = lin(ks[5], dim, mlp_dim)
    b1 = (0.1 * jax.random.normal(ks[6], (1, mlp_dim))).astype(jnp.float32)
    w2 = lin(ks[7], mlp_dim, dim)
    b2 = (0.1 * jax.random.normal(ks[8], (1, dim))).astype(jnp.float32)

    if project_out:
        wo = lin(ks[9], inner, dim)
        bo = (0.1 * jax.random.normal(ks[10], (1, dim))).astype(jnp.float32)
        return (ln1w, ln1b, wqkv, wo, bo, ln2w, ln2b, w1, b1, w2, b2)
    return (ln1w, ln1b, wqkv, ln2w, ln2b, w1, b1, w2, b2)


# --------------------------- pure-JAX reference -------------------------------
def _layernorm(x, w, b, eps=1e-5):
    mu = jnp.mean(x, axis=-1, keepdims=True)
    var = jnp.mean((x - mu) ** 2, axis=-1, keepdims=True)
    return (x - mu) * lax.rsqrt(var + eps) * w + b


def reference(x, layers, *, heads, dim_head):
    b, p, n, dim = x.shape
    inner = heads * dim_head
    project_out = not (heads == 1 and dim_head == dim)
    scale = dim_head ** (-0.5)
    for lp in layers:
        if project_out:
            (ln1w, ln1b, wqkv, wo, bo, ln2w, ln2b, w1, b1, w2, b2) = lp
        else:
            (ln1w, ln1b, wqkv, ln2w, ln2b, w1, b1, w2, b2) = lp
            wo = bo = None

        xn = _layernorm(x, ln1w, ln1b)
        qkv = xn @ wqkv                                       # (b,p,n,3*inner)
        q, k, v = jnp.split(qkv, 3, axis=-1)

        def split_heads(t):
            return t.reshape(b, p, n, heads, dim_head).transpose(0, 1, 3, 2, 4)

        q, k, v = map(split_heads, (q, k, v))                 # (b,p,h,n,d)
        dots = jnp.einsum('bphnd,bphmd->bphnm', q, k) * scale
        attn = jax.nn.softmax(dots, axis=-1)
        out = jnp.einsum('bphnm,bphmd->bphnd', attn, v)
        out = out.transpose(0, 1, 3, 2, 4).reshape(b, p, n, inner)
        if project_out:
            out = out @ wo + bo
        x = x + out

        xn2 = _layernorm(x, ln2w, ln2b)
        h = jnp.maximum(xn2 @ w1 + b1, 0.0)
        x = x + (h @ w2 + b2)
    return x


# --------------------------- main ---------------------------------------------
if __name__ == "__main__":
    key = jax.random.PRNGKey(0)
    kx, kp = jax.random.split(key)

    # small shapes: batch=2, patches=4, seq n=8, dim=32, heads=4, dim_head=16
    b, p, n, dim = 2, 4, 8, 32
    heads, dim_head, mlp_dim, depth = 4, 16, 64, 2

    x = jax.random.normal(kx, (b, p, n, dim), jnp.float32)
    layer_keys = jax.random.split(kp, depth)
    layers = [init_layer_params(k, dim, heads, dim_head, mlp_dim)
              for k in layer_keys]

    out = transformer(x, layers, heads=heads, dim_head=dim_head)
    out = jax.block_until_ready(out)

    ref = reference(x, layers, heads=heads, dim_head=dim_head)
    # Tolerance reflects bf16 MXU operands (f32 accumulation) vs the f32 ref.
    np.testing.assert_allclose(np.asarray(out), np.asarray(ref),
                               rtol=5e-2, atol=5e-2)
    print("KERNEL_OK")
</pallas_src>

<mosaic_0001>
module attributes {stable_mosaic.version = 11 : i64} {
  func.func @_layer_kernel(%arg0: i32, %arg1: memref<8x8x32xf32, #tpu.memory_space<vmem>>, %arg2: memref<1x32xf32, #tpu.memory_space<vmem>>, %arg3: memref<1x32xf32, #tpu.memory_space<vmem>>, %arg4: memref<32x192xbf16, #tpu.memory_space<vmem>>, %arg5: memref<64x32xbf16, #tpu.memory_space<vmem>>, %arg6: memref<1x32xf32, #tpu.memory_space<vmem>>, %arg7: memref<1x32xf32, #tpu.memory_space<vmem>>, %arg8: memref<1x32xf32, #tpu.memory_space<vmem>>, %arg9: memref<32x64xbf16, #tpu.memory_space<vmem>>, %arg10: memref<1x64xf32, #tpu.memory_space<vmem>>, %arg11: memref<64x32xbf16, #tpu.memory_space<vmem>>, %arg12: memref<1x32xf32, #tpu.memory_space<vmem>>, %arg13: memref<8x8x32xf32, #tpu.memory_space<vmem>>, %arg14: memref<64x64xbf16, #tpu.memory_space<vmem>>) attributes {dimension_semantics = [#tpu.dimension_semantics<parallel>], iteration_bounds = array<i64: 1>, scalar_prefetch = 0 : i64, scratch_operands = 1 : i64, tpu.core_type = #tpu.core_type<tc>, window_params = [{transform_indices = @transform_0, window_bounds = array<i64: 8, 8, 32>}, {pipeline_mode = #tpu.pipeline_mode<synchronous>, transform_indices = @transform_1, window_bounds = array<i64: 1, 32>}, {pipeline_mode = #tpu.pipeline_mode<synchronous>, transform_indices = @transform_2, window_bounds = array<i64: 1, 32>}, {pipeline_mode = #tpu.pipeline_mode<synchronous>, transform_indices = @transform_3, window_bounds = array<i64: 32, 192>}, {pipeline_mode = #tpu.pipeline_mode<synchronous>, transform_indices = @transform_4, window_bounds = array<i64: 64, 32>}, {pipeline_mode = #tpu.pipeline_mode<synchronous>, transform_indices = @transform_5, window_bounds = array<i64: 1, 32>}, {pipeline_mode = #tpu.pipeline_mode<synchronous>, transform_indices = @transform_6, window_bounds = array<i64: 1, 32>}, {pipeline_mode = #tpu.pipeline_mode<synchronous>, transform_indices = @transform_7, window_bounds = array<i64: 1, 32>}, {pipeline_mode = #tpu.pipeline_mode<synchronous>, transform_indices = @transform_8, window_bounds = array<i64: 32, 64>}, {pipeline_mode = #tpu.pipeline_mode<synchronous>, transform_indices = @transform_9, window_bounds = array<i64: 1, 64>}, {pipeline_mode = #tpu.pipeline_mode<synchronous>, transform_indices = @transform_10, window_bounds = array<i64: 64, 32>}, {pipeline_mode = #tpu.pipeline_mode<synchronous>, transform_indices = @transform_11, window_bounds = array<i64: 1, 32>}, {transform_indices = @transform_12, window_bounds = array<i64: 8, 8, 32>}]} {
    %c0 = arith.constant 0 : index
    %c0_0 = arith.constant 0 : index
    %c0_1 = arith.constant 0 : index
    %0 = vector.load %arg1[%c0, %c0_0, %c0_1] : memref<8x8x32xf32, #tpu.memory_space<vmem>>, vector<8x8x32xf32>
    %cst = arith.constant dense<0.000000e+00> : vector<8x8xf32>
    %1 = vector.multi_reduction <add>, %0, %cst [2] : vector<8x8x32xf32> to vector<8x8xf32>
    %2 = vector.shape_cast %1 : vector<8x8xf32> to vector<8x8x1xf32>
    %cst_2 = arith.constant 3.200000e+01 : f32
    %3 = vector.broadcast %cst_2 : f32 to vector<8x8x1xf32>
    %4 = arith.divf %2, %3 : vector<8x8x1xf32>
    %5 = vector.broadcast %4 : vector<8x8x1xf32> to vector<8x8x32xf32>
    %6 = arith.subf %0, %5 : vector<8x8x32xf32>
    %7 = arith.mulf %6, %6 : vector<8x8x32xf32>
    %cst_3 = arith.constant dense<0.000000e+00> : vector<8x8xf32>
    %8 = vector.multi_reduction <add>, %7, %cst_3 [2] : vector<8x8x32xf32> to vector<8x8xf32>
    %9 = vector.shape_cast %8 : vector<8x8xf32> to vector<8x8x1xf32>
    %cst_4 = arith.constant 3.200000e+01 : f32
    %10 = vector.broadcast %cst_4 : f32 to vector<8x8x1xf32>
    %11 = arith.divf %9, %10 : vector<8x8x1xf32>
    %cst_5 = arith.constant 9.99999974E-6 : f32
    %12 = vector.broadcast %cst_5 : f32 to vector<8x8x1xf32>
    %13 = arith.addf %11, %12 : vector<8x8x1xf32>
    %14 = math.rsqrt %13 : vector<8x8x1xf32>
    %15 = vector.broadcast %14 : vector<8x8x1xf32> to vector<8x8x32xf32>
    %16 = arith.mulf %6, %15 : vector<8x8x32xf32>
    %c0_6 = arith.constant 0 : index
    %c0_7 = arith.constant 0 : index
    %17 = vector.load %arg2[%c0_6, %c0_7] : memref<1x32xf32, #tpu.memory_space<vmem>>, vector<1x32xf32>
    %18 = vector.shape_cast %17 : vector<1x32xf32> to vector<1x1x32xf32>
    %19 = vector.broadcast %18 : vector<1x1x32xf32> to vector<8x8x32xf32>
    %20 = arith.mulf %16, %19 : vector<8x8x32xf32>
    %c0_8 = arith.constant 0 : index
    %c0_9 = arith.constant 0 : index
    %21 = vector.load %arg3[%c0_8, %c0_9] : memref<1x32xf32, #tpu.memory_space<vmem>>, vector<1x32xf32>
    %22 = vector.shape_cast %21 : vector<1x32xf32> to vector<1x1x32xf32>
    %23 = vector.broadcast %22 : vector<1x1x32xf32> to vector<8x8x32xf32>
    %24 = arith.addf %20, %23 : vector<8x8x32xf32>
    %25 = vector.shape_cast %24 : vector<8x8x32xf32> to vector<64x32xf32>
    %26 = arith.truncf %25 : vector<64x32xf32> to vector<64x32xbf16>
    %c0_10 = arith.constant 0 : index
    %c0_11 = arith.constant 0 : index
    %27 = vector.load %arg4[%c0_10, %c0_11] : memref<32x192xbf16, #tpu.memory_space<vmem>>, vector<32x192xbf16>
    %cst_12 = arith.constant dense<0.000000e+00> : vector<64x192xf32>
    %28 = tpu.matmul %26, %27, %cst_12 {dimension_numbers = #tpu.dot_dimension_numbers<[1], [0], [0], [1], [0, 0, 1, 1], [], []>} : vector<64x32xbf16>, vector<32x192xbf16>, vector<64x192xf32> -> vector<64x192xf32>
    %29 = vector.extract_strided_slice %28 {offsets = [0, 0], sizes = [64, 16], strides = [1, 1]} : vector<64x192xf32> to vector<64x16xf32>
    %30 = vector.shape_cast %29 : vector<64x16xf32> to vector<8x8x16xf32>
    %31 = vector.extract_strided_slice %28 {offsets = [0, 16], sizes = [64, 16], strides = [1, 1]} : vector<64x192xf32> to vector<64x16xf32>
    %32 = vector.shape_cast %31 : vector<64x16xf32> to vector<8x8x16xf32>
    %33 = vector.extract_strided_slice %28 {offsets = [0, 32], sizes = [64, 16], strides = [1, 1]} : vector<64x192xf32> to vector<64x16xf32>
    %34 = vector.shape_cast %33 : vector<64x16xf32> to vector<8x8x16xf32>
    %35 = vector.extract_strided_slice %28 {offsets = [0, 48], sizes = [64, 16], strides = [1, 1]} : vector<64x192xf32> to vector<64x16xf32>
    %36 = vector.shape_cast %35 : vector<64x16xf32> to vector<8x8x16xf32>
    %37 = vector.shape_cast %30 : vector<8x8x16xf32> to vector<1x8x8x16xf32>
    %38 = vector.shape_cast %32 : vector<8x8x16xf32> to vector<1x8x8x16xf32>
    %39 = vector.shape_cast %34 : vector<8x8x16xf32> to vector<1x8x8x16xf32>
    %40 = vector.shape_cast %36 : vector<8x8x16xf32> to vector<1x8x8x16xf32>
    %41 = tpu.concatenate %37, %38, %39, %40 in 0 : vector<1x8x8x16xf32>, vector<1x8x8x16xf32>, vector<1x8x8x16xf32>, vector<1x8x8x16xf32> -> vector<4x8x8x16xf32>
    %42 = vector.shape_cast %41 : vector<4x8x8x16xf32> to vector<32x8x16xf32>
    %43 = arith.truncf %42 : vector<32x8x16xf32> to vector<32x8x16xbf16>
    %44 = vector.extract_strided_slice %28 {offsets = [0, 64], sizes = [64, 16], strides = [1, 1]} : vector<64x192xf32> to vector<64x16xf32>
    %45 = vector.shape_cast %44 : vector<64x16xf32> to vector<8x8x16xf32>
    %46 = vector.extract_strided_slice %28 {offsets = [0, 80], sizes = [64, 16], strides = [1, 1]} : vector<64x192xf32> to vector<64x16xf32>
    %47 = vector.shape_cast %46 : vector<64x16xf32> to vector<8x8x16xf32>
    %48 = vector.extract_strided_slice %28 {offsets = [0, 96], sizes = [64, 16], strides = [1, 1]} : vector<64x192xf32> to vector<64x16xf32>
    %49 = vector.shape_cast %48 : vector<64x16xf32> to vector<8x8x16xf32>
    %50 = vector.extract_strided_slice %28 {offsets = [0, 112], sizes = [64, 16], strides = [1, 1]} : vector<64x192xf32> to vector<64x16xf32>
    %51 = vector.shape_cast %50 : vector<64x16xf32> to vector<8x8x16xf32>
    %52 = vector.shape_cast %45 : vector<8x8x16xf32> to vector<1x8x8x16xf32>
    %53 = vector.shape_cast %47 : vector<8x8x16xf32> to vector<1x8x8x16xf32>
    %54 = vector.shape_cast %49 : vector<8x8x16xf32> to vector<1x8x8x16xf32>
    %55 = vector.shape_cast %51 : vector<8x8x16xf32> to vector<1x8x8x16xf32>
    %56 = tpu.concatenate %52, %53, %54, %55 in 0 : vector<1x8x8x16xf32>, vector<1x8x8x16xf32>, vector<1x8x8x16xf32>, vector<1x8x8x16xf32> -> vector<4x8x8x16xf32>
    %57 = vector.shape_cast %56 : vector<4x8x8x16xf32> to vector<32x8x16xf32>
    %58 = arith.truncf %57 : vector<32x8x16xf32> to vector<32x8x16xbf16>
    %59 = vector.extract_strided_slice %28 {offsets = [0, 128], sizes = [64, 16], strides = [1, 1]} : vector<64x192xf32> to vector<64x16xf32>
    %60 = vector.shape_cast %59 : vector<64x16xf32> to vector<8x8x16xf32>
    %61 = vector.extract_strided_slice %28 {offsets = [0, 144], sizes = [64, 16], strides = [1, 1]} : vector<64x192xf32> to vector<64x16xf32>
    %62 = vector.shape_cast %61 : vector<64x16xf32> to vector<8x8x16xf32>
    %63 = vector.extract_strided_slice %28 {offsets = [0, 160], sizes = [64, 16], strides = [1, 1]} : vector<64x192xf32> to vector<64x16xf32>
    %64 = vector.shape_cast %63 : vector<64x16xf32> to vector<8x8x16xf32>
    %65 = vector.extract_strided_slice %28 {offsets = [0, 176], sizes = [64, 16], strides = [1, 1]} : vector<64x192xf32> to vector<64x16xf32>
    %66 = vector.shape_cast %65 : vector<64x16xf32> to vector<8x8x16xf32>
    %67 = vector.shape_cast %60 : vector<8x8x16xf32> to vector<1x8x8x16xf32>
    %68 = vector.shape_cast %62 : vector<8x8x16xf32> to vector<1x8x8x16xf32>
    %69 = vector.shape_cast %64 : vector<8x8x16xf32> to vector<1x8x8x16xf32>
    %70 = vector.shape_cast %66 : vector<8x8x16xf32> to vector<1x8x8x16xf32>
    %71 = tpu.concatenate %67, %68, %69, %70 in 0 : vector<1x8x8x16xf32>, vector<1x8x8x16xf32>, vector<1x8x8x16xf32>, vector<1x8x8x16xf32> -> vector<4x8x8x16xf32>
    %72 = vector.shape_cast %71 : vector<4x8x8x16xf32> to vector<32x8x16xf32>
    %73 = arith.truncf %72 : vector<32x8x16xf32> to vector<32x8x16xbf16>
    "tpu.trace_start"() <{level = 10 : i32, message = "bnd,bmd->bnm"}> : () -> ()
    %cst_13 = arith.constant dense<0.000000e+00> : vector<32x8x8xf32>
    %74 = tpu.matmul %43, %58, %cst_13 {dimension_numbers = #tpu.dot_dimension_numbers<[2], [2], [1], [1], [0, 0, 0, 1, 1, 1], [0], [0]>} : vector<32x8x16xbf16>, vector<32x8x16xbf16>, vector<32x8x8xf32> -> vector<32x8x8xf32>
    "tpu.trace_stop"() : () -> ()
    %cst_14 = arith.constant dense<0xFF800000> : vector<32x8xf32>
    %75 = vector.multi_reduction <maximumf>, %74, %cst_14 [2] : vector<32x8x8xf32> to vector<32x8xf32>
    %76 = vector.shape_cast %75 : vector<32x8xf32> to vector<32x8x1xf32>
    %77 = vector.broadcast %76 : vector<32x8x1xf32> to vector<32x8x8xf32>
    %78 = arith.subf %74, %77 : vector<32x8x8xf32>
    %79 = math.exp %78 : vector<32x8x8xf32>
    %cst_15 = arith.constant dense<0.000000e+00> : vector<32x8xf32>
    %80 = vector.multi_reduction <add>, %79, %cst_15 [2] : vector<32x8x8xf32> to vector<32x8xf32>
    %81 = vector.shape_cast %80 : vector<32x8xf32> to vector<32x8x1xf32>
    %82 = tpu.reciprocal %81 {approx = true} : vector<32x8x1xf32> -> vector<32x8x1xf32>
    %83 = vector.broadcast %82 : vector<32x8x1xf32> to vector<32x8x8xf32>
    %84 = arith.mulf %79, %83 : vector<32x8x8xf32>
    %85 = arith.truncf %84 : vector<32x8x8xf32> to vector<32x8x8xbf16>
    "tpu.trace_start"() <{level = 10 : i32, message = "bnm,bmd->bnd"}> : () -> ()
    %cst_16 = arith.constant dense<0.000000e+00> : vector<32x8x16xf32>
    %86 = tpu.matmul %85, %73, %cst_16 {dimension_numbers = #tpu.dot_dimension_numbers<[2], [1], [1], [2], [0, 0, 0, 1, 1, 2], [0], [0]>} : vector<32x8x8xbf16>, vector<32x8x16xbf16>, vector<32x8x16xf32> -> vector<32x8x16xf32>
    "tpu.trace_stop"() : () -> ()
    %87 = vector.extract_strided_slice %86 {offsets = [0, 0, 0], sizes = [8, 8, 16], strides = [1, 1, 1]} : vector<32x8x16xf32> to vector<8x8x16xf32>
    %88 = vector.shape_cast %87 : vector<8x8x16xf32> to vector<64x16xf32>
    %89 = arith.truncf %88 : vector<64x16xf32> to vector<64x16xbf16>
    %c0_17 = arith.constant 0 : index
    %c0_18 = arith.constant 0 : index
    %90 = vector.load %arg14[%c0_17, %c0_18] : memref<64x64xbf16, #tpu.memory_space<vmem>>, vector<64x16xbf16>
    tpu.vector_store %arg14[%c0_17, %c0_18], %89 {strides = array<i32>} : memref<64x64xbf16, #tpu.memory_space<vmem>>, vector<64x16xbf16>,
    %91 = vector.extract_strided_slice %86 {offsets = [8, 0, 0], sizes = [8, 8, 16], strides = [1, 1, 1]} : vector<32x8x16xf32> to vector<8x8x16xf32>
    %92 = vector.shape_cast %91 : vector<8x8x16xf32> to vector<64x16xf32>
    %93 = arith.truncf %92 : vector<64x16xf32> to vector<64x16xbf16>
    %c0_19 = arith.constant 0 : index
    %c16 = arith.constant 16 : index
    %94 = vector.load %arg14[%c0_19, %c16] : memref<64x64xbf16, #tpu.memory_space<vmem>>, vector<64x16xbf16>
    tpu.vector_store %arg14[%c0_19, %c16], %93 {strides = array<i32>} : memref<64x64xbf16, #tpu.memory_space<vmem>>, vector<64x16xbf16>,
    %95 = vector.extract_strided_slice %86 {offsets = [16, 0, 0], sizes = [8, 8, 16], strides = [1, 1, 1]} : vector<32x8x16xf32> to vector<8x8x16xf32>
    %96 = vector.shape_cast %95 : vector<8x8x16xf32> to vector<64x16xf32>
    %97 = arith.truncf %96 : vector<64x16xf32> to vector<64x16xbf16>
    %c0_20 = arith.constant 0 : index
    %c32 = arith.constant 32 : index
    %98 = vector.load %arg14[%c0_20, %c32] : memref<64x64xbf16, #tpu.memory_space<vmem>>, vector<64x16xbf16>
    tpu.vector_store %arg14[%c0_20, %c32], %97 {strides = array<i32>} : memref<64x64xbf16, #tpu.memory_space<vmem>>, vector<64x16xbf16>,
    %99 = vector.extract_strided_slice %86 {offsets = [24, 0, 0], sizes = [8, 8, 16], strides = [1, 1, 1]} : vector<32x8x16xf32> to vector<8x8x16xf32>
    %100 = vector.shape_cast %99 : vector<8x8x16xf32> to vector<64x16xf32>
    %101 = arith.truncf %100 : vector<64x16xf32> to vector<64x16xbf16>
    %c0_21 = arith.constant 0 : index
    %c48 = arith.constant 48 : index
    %102 = vector.load %arg14[%c0_21, %c48] : memref<64x64xbf16, #tpu.memory_space<vmem>>, vector<64x16xbf16>
    tpu.vector_store %arg14[%c0_21, %c48], %101 {strides = array<i32>} : memref<64x64xbf16, #tpu.memory_space<vmem>>, vector<64x16xbf16>,
    %c0_22 = arith.constant 0 : index
    %c0_23 = arith.constant 0 : index
    %103 = vector.load %arg14[%c0_22, %c0_23] : memref<64x64xbf16, #tpu.memory_space<vmem>>, vector<64x64xbf16>
    %c0_24 = arith.constant 0 : index
    %c0_25 = arith.constant 0 : index
    %104 = vector.load %arg5[%c0_24, %c0_25] : memref<64x32xbf16, #tpu.memory_space<vmem>>, vector<64x32xbf16>
    %cst_26 = arith.constant dense<0.000000e+00> : vector<64x32xf32>
    %105 = tpu.matmul %103, %104, %cst_26 {dimension_numbers = #tpu.dot_dimension_numbers<[1], [0], [0], [1], [0, 0, 1, 1], [], []>} : vector<64x64xbf16>, vector<64x32xbf16>, vector<64x32xf32> -> vector<64x32xf32>
    %c0_27 = arith.constant 0 : index
    %c0_28 = arith.constant 0 : index
    %106 = vector.load %arg6[%c0_27, %c0_28] : memref<1x32xf32, #tpu.memory_space<vmem>>, vector<1x32xf32>
    %107 = vector.broadcast %106 : vector<1x32xf32> to vector<64x32xf32>
    %108 = arith.addf %105, %107 : vector<64x32xf32>
    %109 = vector.shape_cast %108 : vector<64x32xf32> to vector<8x8x32xf32>
    %110 = arith.addf %0, %109 : vector<8x8x32xf32>
    %cst_29 = arith.constant dense<0.000000e+00> : vector<8x8xf32>
    %111 = vector.multi_reduction <add>, %110, %cst_29 [2] : vector<8x8x32xf32> to vector<8x8xf32>
    %112 = vector.shape_cast %111 : vector<8x8xf32> to vector<8x8x1xf32>
    %cst_30 = arith.constant 3.200000e+01 : f32
    %113 = vector.broadcast %cst_30 : f32 to vector<8x8x1xf32>
    %114 = arith.divf %112, %113 : vector<8x8x1xf32>
    %115 = vector.broadcast %114 : vector<8x8x1xf32> to vector<8x8x32xf32>
    %116 = arith.subf %110, %115 : vector<8x8x32xf32>
    %117 = arith.mulf %116, %116 : vector<8x8x32xf32>
    %cst_31 = arith.constant dense<0.000000e+00> : vector<8x8xf32>
    %118 = vector.multi_reduction <add>, %117, %cst_31 [2] : vector<8x8x32xf32> to vector<8x8xf32>
    %119 = vector.shape_cast %118 : vector<8x8xf32> to vector<8x8x1xf32>
    %cst_32 = arith.constant 3.200000e+01 : f32
    %120 = vector.broadcast %cst_32 : f32 to vector<8x8x1xf32>
    %121 = arith.divf %119, %120 : vector<8x8x1xf32>
    %cst_33 = arith.constant 9.99999974E-6 : f32
    %122 = vector.broadcast %cst_33 : f32 to vector<8x8x1xf32>
    %123 = arith.addf %121, %122 : vector<8x8x1xf32>
    %124 = math.rsqrt %123 : vector<8x8x1xf32>
    %125 = vector.broadcast %124 : vector<8x8x1xf32> to vector<8x8x32xf32>
    %126 = arith.mulf %116, %125 : vector<8x8x32xf32>
    %c0_34 = arith.constant 0 : index
    %c0_35 = arith.constant 0 : index
    %127 = vector.load %arg7[%c0_34, %c0_35] : memref<1x32xf32, #tpu.memory_space<vmem>>, vector<1x32xf32>
    %128 = vector.shape_cast %127 : vector<1x32xf32> to vector<1x1x32xf32>
    %129 = vector.broadcast %128 : vector<1x1x32xf32> to vector<8x8x32xf32>
    %130 = arith.mulf %126, %129 : vector<8x8x32xf32>
    %c0_36 = arith.constant 0 : index
    %c0_37 = arith.constant 0 : index
    %131 = vector.load %arg8[%c0_36, %c0_37] : memref<1x32xf32, #tpu.memory_space<vmem>>, vector<1x32xf32>
    %132 = vector.shape_cast %131 : vector<1x32xf32> to vector<1x1x32xf32>
    %133 = vector.broadcast %132 : vector<1x1x32xf32> to vector<8x8x32xf32>
    %134 = arith.addf %130, %133 : vector<8x8x32xf32>
    %135 = vector.shape_cast %134 : vector<8x8x32xf32> to vector<64x32xf32>
    %136 = arith.truncf %135 : vector<64x32xf32> to vector<64x32xbf16>
    %c0_38 = arith.constant 0 : index
    %c0_39 = arith.constant 0 : index
    %137 = vector.load %arg9[%c0_38, %c0_39] : memref<32x64xbf16, #tpu.memory_space<vmem>>, vector<32x64xbf16>
    %cst_40 = arith.constant dense<0.000000e+00> : vector<64x64xf32>
    %138 = tpu.matmul %136, %137, %cst_40 {dimension_numbers = #tpu.dot_dimension_numbers<[1], [0], [0], [1], [0, 0, 1, 1], [], []>} : vector<64x32xbf16>, vector<32x64xbf16>, vector<64x64xf32> -> vector<64x64xf32>
    %c0_41 = arith.constant 0 : index
    %c0_42 = arith.constant 0 : index
    %139 = vector.load %arg10[%c0_41, %c0_42] : memref<1x64xf32, #tpu.memory_space<vmem>>, vector<1x64xf32>
    %140 = vector.broadcast %139 : vector<1x64xf32> to vector<64x64xf32>
    %141 = arith.addf %138, %140 : vector<64x64xf32>
    %cst_43 = arith.constant 0.000000e+00 : f32
    %142 = vector.broadcast %cst_43 : f32 to vector<64x64xf32>
    %143 = arith.maximumf %141, %142 : vector<64x64xf32>
    %144 = arith.truncf %143 : vector<64x64xf32> to vector<64x64xbf16>
    %c0_44 = arith.constant 0 : index
    %c0_45 = arith.constant 0 : index
    %145 = vector.load %arg11[%c0_44, %c0_45] : memref<64x32xbf16, #tpu.memory_space<vmem>>, vector<64x32xbf16>
    %cst_46 = arith.constant dense<0.000000e+00> : vector<64x32xf32>
    %146 = tpu.matmul %144, %145, %cst_46 {dimension_numbers = #tpu.dot_dimension_numbers<[1], [0], [0], [1], [0, 0, 1, 1], [], []>} : vector<64x64xbf16>, vector<64x32xbf16>, vector<64x32xf32> -> vector<64x32xf32>
    %c0_47 = arith.constant 0 : index
    %c0_48 = arith.constant 0 : index
    %147 = vector.load %arg12[%c0_47, %c0_48] : memref<1x32xf32, #tpu.memory_space<vmem>>, vector<1x32xf32>
    %148 = vector.broadcast %147 : vector<1x32xf32> to vector<64x32xf32>
    %149 = arith.addf %146, %148 : vector<64x32xf32>
    %150 = vector.shape_cast %149 : vector<64x32xf32> to vector<8x8x32xf32>
    %151 = arith.addf %110, %150 : vector<8x8x32xf32>
    %c0_49 = arith.constant 0 : index
    %c0_50 = arith.constant 0 : index
    %c0_51 = arith.constant 0 : index
    %152 = vector.load %arg13[%c0_49, %c0_50, %c0_51] : memref<8x8x32xf32, #tpu.memory_space<vmem>>, vector<8x8x32xf32>
    tpu.vector_store %arg13[%c0_49, %c0_50, %c0_51], %151 {strides = array<i32>} : memref<8x8x32xf32, #tpu.memory_space<vmem>>, vector<8x8x32xf32>,
    return
  }
  func.func @transform_0(%arg0: i32) -> (i32, i32, i32) {
    %c0_i32 = arith.constant 0 : i32
    %c0_i32_0 = arith.constant 0 : i32
    %c0_i32_1 = arith.constant 0 : i32
    return %arg0, %c0_i32, %c0_i32_0 : i32, i32, i32
  }
  func.func @transform_1(%arg0: i32) -> (i32, i32) {
    %c0_i32 = arith.constant 0 : i32
    %c0_i32_0 = arith.constant 0 : i32
    %c0_i32_1 = arith.constant 0 : i32
    return %c0_i32, %c0_i32_0 : i32, i32
  }
  func.func @transform_2(%arg0: i32) -> (i32, i32) {
    %c0_i32 = arith.constant 0 : i32
    %c0_i32_0 = arith.constant 0 : i32
    %c0_i32_1 = arith.constant 0 : i32
    return %c0_i32, %c0_i32_0 : i32, i32
  }
  func.func @transform_3(%arg0: i32) -> (i32, i32) {
    %c0_i32 = arith.constant 0 : i32
    %c0_i32_0 = arith.constant 0 : i32
    %c0_i32_1 = arith.constant 0 : i32
    return %c0_i32, %c0_i32_0 : i32, i32
  }
  func.func @transform_4(%arg0: i32) -> (i32, i32) {
    %c0_i32 = arith.constant 0 : i32
    %c0_i32_0 = arith.constant 0 : i32
    %c0_i32_1 = arith.constant 0 : i32
    return %c0_i32, %c0_i32_0 : i32, i32
  }
  func.func @transform_5(%arg0: i32) -> (i32, i32) {
    %c0_i32 = arith.constant 0 : i32
    %c0_i32_0 = arith.constant 0 : i32
    %c0_i32_1 = arith.constant 0 : i32
    return %c0_i32, %c0_i32_0 : i32, i32
  }
  func.func @transform_6(%arg0: i32) -> (i32, i32) {
    %c0_i32 = arith.constant 0 : i32
    %c0_i32_0 = arith.constant 0 : i32
    %c0_i32_1 = arith.constant 0 : i32
    return %c0_i32, %c0_i32_0 : i32, i32
  }
  func.func @transform_7(%arg0: i32) -> (i32, i32) {
    %c0_i32 = arith.constant 0 : i32
    %c0_i32_0 = arith.constant 0 : i32
    %c0_i32_1 = arith.constant 0 : i32
    return %c0_i32, %c0_i32_0 : i32, i32
  }
  func.func @transform_8(%arg0: i32) -> (i32, i32) {
    %c0_i32 = arith.constant 0 : i32
    %c0_i32_0 = arith.constant 0 : i32
    %c0_i32_1 = arith.constant 0 : i32
    return %c0_i32, %c0_i32_0 : i32, i32
  }
  func.func @transform_9(%arg0: i32) -> (i32, i32) {
    %c0_i32 = arith.constant 0 : i32
    %c0_i32_0 = arith.constant 0 : i32
    %c0_i32_1 = arith.constant 0 : i32
    return %c0_i32, %c0_i32_0 : i32, i32
  }
  func.func @transform_10(%arg0: i32) -> (i32, i32) {
    %c0_i32 = arith.constant 0 : i32
    %c0_i32_0 = arith.constant 0 : i32
    %c0_i32_1 = arith.constant 0 : i32
    return %c0_i32, %c0_i32_0 : i32, i32
  }
  func.func @transform_11(%arg0: i32) -> (i32, i32) {
    %c0_i32 = arith.constant 0 : i32
    %c0_i32_0 = arith.constant 0 : i32
    %c0_i32_1 = arith.constant 0 : i32
    return %c0_i32, %c0_i32_0 : i32, i32
  }
  func.func @transform_12(%arg0: i32) -> (i32, i32, i32) {
    %c0_i32 = arith.constant 0 : i32
    %c0_i32_0 = arith.constant 0 : i32
    %c0_i32_1 = arith.constant 0 : i32
    return %arg0, %c0_i32, %c0_i32_0 : i32, i32, i32
  }
}

module attributes {stable_mosaic.version = 11 : i64} {
  func.func @_layer_kernel(%arg0: i32, %arg1: memref<8x8x32xf32, #tpu.memory_space<vmem>>, %arg2: memref<1x32xf32, #tpu.memory_space<vmem>>, %arg3: memref<1x32xf32, #tpu.memory_space<vmem>>, %arg4: memref<32x192xbf16, #tpu.memory_space<vmem>>, %arg5: memref<64x32xbf16, #tpu.memory_space<vmem>>, %arg6: memref<1x32xf32, #tpu.memory_space<vmem>>, %arg7: memref<1x32xf32, #tpu.memory_space<vmem>>, %arg8: memref<1x32xf32, #tpu.memory_space<vmem>>, %arg9: memref<32x64xbf16, #tpu.memory_space<vmem>>, %arg10: memref<1x64xf32, #tpu.memory_space<vmem>>, %arg11: memref<64x32xbf16, #tpu.memory_space<vmem>>, %arg12: memref<1x32xf32, #tpu.memory_space<vmem>>, %arg13: memref<8x8x32xf32, #tpu.memory_space<vmem>>, %arg14: memref<64x64xbf16, #tpu.memory_space<vmem>>) attributes {dimension_semantics = [#tpu.dimension_semantics<parallel>], iteration_bounds = array<i64: 1>, scalar_prefetch = 0 : i64, scratch_operands = 1 : i64, tpu.core_type = #tpu.core_type<tc>, window_params = [{transform_indices = @transform_0, window_bounds = array<i64: 8, 8, 32>}, {pipeline_mode = #tpu.pipeline_mode<synchronous>, transform_indices = @transform_1, window_bounds = array<i64: 1, 32>}, {pipeline_mode = #tpu.pipeline_mode<synchronous>, transform_indices = @transform_2, window_bounds = array<i64: 1, 32>}, {pipeline_mode = #tpu.pipeline_mode<synchronous>, transform_indices = @transform_3, window_bounds = array<i64: 32, 192>}, {pipeline_mode = #tpu.pipeline_mode<synchronous>, transform_indices = @transform_4, window_bounds = array<i64: 64, 32>}, {pipeline_mode = #tpu.pipeline_mode<synchronous>, transform_indices = @transform_5, window_bounds = array<i64: 1, 32>}, {pipeline_mode = #tpu.pipeline_mode<synchronous>, transform_indices = @transform_6, window_bounds = array<i64: 1, 32>}, {pipeline_mode = #tpu.pipeline_mode<synchronous>, transform_indices = @transform_7, window_bounds = array<i64: 1, 32>}, {pipeline_mode = #tpu.pipeline_mode<synchronous>, transform_indices = @transform_8, window_bounds = array<i64: 32, 64>}, {pipeline_mode = #tpu.pipeline_mode<synchronous>, transform_indices = @transform_9, window_bounds = array<i64: 1, 64>}, {pipeline_mode = #tpu.pipeline_mode<synchronous>, transform_indices = @transform_10, window_bounds = array<i64: 64, 32>}, {pipeline_mode = #tpu.pipeline_mode<synchronous>, transform_indices = @transform_11, window_bounds = array<i64: 1, 32>}, {transform_indices = @transform_12, window_bounds = array<i64: 8, 8, 32>}]} {
    %c0 = arith.constant 0 : index
    %c0_0 = arith.constant 0 : index
    %c0_1 = arith.constant 0 : index
    %0 = vector.load %arg1[%c0, %c0_0, %c0_1] : memref<8x8x32xf32, #tpu.memory_space<vmem>>, vector<8x8x32xf32>
    %cst = arith.constant dense<0.000000e+00> : vector<8x8xf32>
    %1 = vector.multi_reduction <add>, %0, %cst [2] : vector<8x8x32xf32> to vector<8x8xf32>
    %2 = vector.shape_cast %1 : vector<8x8xf32> to vector<8x8x1xf32>
    %cst_2 = arith.constant 3.200000e+01 : f32
    %3 = vector.broadcast %cst_2 : f32 to vector<8x8x1xf32>
    %4 = arith.divf %2, %3 : vector<8x8x1xf32>
    %5 = vector.broadcast %4 : vector<8x8x1xf32> to vector<8x8x32xf32>
    %6 = arith.subf %0, %5 : vector<8x8x32xf32>
    %7 = arith.mulf %6, %6 : vector<8x8x32xf32>
    %cst_3 = arith.constant dense<0.000000e+00> : vector<8x8xf32>
    %8 = vector.multi_reduction <add>, %7, %cst_3 [2] : vector<8x8x32xf32> to vector<8x8xf32>
    %9 = vector.shape_cast %8 : vector<8x8xf32> to vector<8x8x1xf32>
    %cst_4 = arith.constant 3.200000e+01 : f32
    %10 = vector.broadcast %cst_4 : f32 to vector<8x8x1xf32>
    %11 = arith.divf %9, %10 : vector<8x8x1xf32>
    %cst_5 = arith.constant 9.99999974E-6 : f32
    %12 = vector.broadcast %cst_5 : f32 to vector<8x8x1xf32>
    %13 = arith.addf %11, %12 : vector<8x8x1xf32>
    %14 = math.rsqrt %13 : vector<8x8x1xf32>
    %15 = vector.broadcast %14 : vector<8x8x1xf32> to vector<8x8x32xf32>
    %16 = arith.mulf %6, %15 : vector<8x8x32xf32>
    %c0_6 = arith.constant 0 : index
    %c0_7 = arith.constant 0 : index
    %17 = vector.load %arg2[%c0_6, %c0_7] : memref<1x32xf32, #tpu.memory_space<vmem>>, vector<1x32xf32>
    %18 = vector.shape_cast %17 : vector<1x32xf32> to vector<1x1x32xf32>
    %19 = vector.broadcast %18 : vector<1x1x32xf32> to vector<8x8x32xf32>
    %20 = arith.mulf %16, %19 : vector<8x8x32xf32>
    %c0_8 = arith.constant 0 : index
    %c0_9 = arith.constant 0 : index
    %21 = vector.load %arg3[%c0_8, %c0_9] : memref<1x32xf32, #tpu.memory_space<vmem>>, vector<1x32xf32>
    %22 = vector.shape_cast %21 : vector<1x32xf32> to vector<1x1x32xf32>
    %23 = vector.broadcast %22 : vector<1x1x32xf32> to vector<8x8x32xf32>
    %24 = arith.addf %20, %23 : vector<8x8x32xf32>
    %25 = vector.shape_cast %24 : vector<8x8x32xf32> to vector<64x32xf32>
    %26 = arith.truncf %25 : vector<64x32xf32> to vector<64x32xbf16>
    %c0_10 = arith.constant 0 : index
    %c0_11 = arith.constant 0 : index
    %27 = vector.load %arg4[%c0_10, %c0_11] : memref<32x192xbf16, #tpu.memory_space<vmem>>, vector<32x192xbf16>
    %cst_12 = arith.constant dense<0.000000e+00> : vector<64x192xf32>
    %28 = tpu.matmul %26, %27, %cst_12 {dimension_numbers = #tpu.dot_dimension_numbers<[1], [0], [0], [1], [0, 0, 1, 1], [], []>} : vector<64x32xbf16>, vector<32x192xbf16>, vector<64x192xf32> -> vector<64x192xf32>
    %29 = vector.extract_strided_slice %28 {offsets = [0, 0], sizes = [64, 16], strides = [1, 1]} : vector<64x192xf32> to vector<64x16xf32>
    %30 = vector.shape_cast %29 : vector<64x16xf32> to vector<8x8x16xf32>
    %31 = vector.extract_strided_slice %28 {offsets = [0, 16], sizes = [64, 16], strides = [1, 1]} : vector<64x192xf32> to vector<64x16xf32>
    %32 = vector.shape_cast %31 : vector<64x16xf32> to vector<8x8x16xf32>
    %33 = vector.extract_strided_slice %28 {offsets = [0, 32], sizes = [64, 16], strides = [1, 1]} : vector<64x192xf32> to vector<64x16xf32>
    %34 = vector.shape_cast %33 : vector<64x16xf32> to vector<8x8x16xf32>
    %35 = vector.extract_strided_slice %28 {offsets = [0, 48], sizes = [64, 16], strides = [1, 1]} : vector<64x192xf32> to vector<64x16xf32>
    %36 = vector.shape_cast %35 : vector<64x16xf32> to vector<8x8x16xf32>
    %37 = vector.shape_cast %30 : vector<8x8x16xf32> to vector<1x8x8x16xf32>
    %38 = vector.shape_cast %32 : vector<8x8x16xf32> to vector<1x8x8x16xf32>
    %39 = vector.shape_cast %34 : vector<8x8x16xf32> to vector<1x8x8x16xf32>
    %40 = vector.shape_cast %36 : vector<8x8x16xf32> to vector<1x8x8x16xf32>
    %41 = tpu.concatenate %37, %38, %39, %40 in 0 : vector<1x8x8x16xf32>, vector<1x8x8x16xf32>, vector<1x8x8x16xf32>, vector<1x8x8x16xf32> -> vector<4x8x8x16xf32>
    %42 = vector.shape_cast %41 : vector<4x8x8x16xf32> to vector<32x8x16xf32>
    %43 = arith.truncf %42 : vector<32x8x16xf32> to vector<32x8x16xbf16>
    %44 = vector.extract_strided_slice %28 {offsets = [0, 64], sizes = [64, 16], strides = [1, 1]} : vector<64x192xf32> to vector<64x16xf32>
    %45 = vector.shape_cast %44 : vector<64x16xf32> to vector<8x8x16xf32>
    %46 = vector.extract_strided_slice %28 {offsets = [0, 80], sizes = [64, 16], strides = [1, 1]} : vector<64x192xf32> to vector<64x16xf32>
    %47 = vector.shape_cast %46 : vector<64x16xf32> to vector<8x8x16xf32>
    %48 = vector.extract_strided_slice %28 {offsets = [0, 96], sizes = [64, 16], strides = [1, 1]} : vector<64x192xf32> to vector<64x16xf32>
    %49 = vector.shape_cast %48 : vector<64x16xf32> to vector<8x8x16xf32>
    %50 = vector.extract_strided_slice %28 {offsets = [0, 112], sizes = [64, 16], strides = [1, 1]} : vector<64x192xf32> to vector<64x16xf32>
    %51 = vector.shape_cast %50 : vector<64x16xf32> to vector<8x8x16xf32>
    %52 = vector.shape_cast %45 : vector<8x8x16xf32> to vector<1x8x8x16xf32>
    %53 = vector.shape_cast %47 : vector<8x8x16xf32> to vector<1x8x8x16xf32>
    %54 = vector.shape_cast %49 : vector<8x8x16xf32> to vector<1x8x8x16xf32>
    %55 = vector.shape_cast %51 : vector<8x8x16xf32> to vector<1x8x8x16xf32>
    %56 = tpu.concatenate %52, %53, %54, %55 in 0 : vector<1x8x8x16xf32>, vector<1x8x8x16xf32>, vector<1x8x8x16xf32>, vector<1x8x8x16xf32> -> vector<4x8x8x16xf32>
    %57 = vector.shape_cast %56 : vector<4x8x8x16xf32> to vector<32x8x16xf32>
    %58 = arith.truncf %57 : vector<32x8x16xf32> to vector<32x8x16xbf16>
    %59 = vector.extract_strided_slice %28 {offsets = [0, 128], sizes = [64, 16], strides = [1, 1]} : vector<64x192xf32> to vector<64x16xf32>
    %60 = vector.shape_cast %59 : vector<64x16xf32> to vector<8x8x16xf32>
    %61 = vector.extract_strided_slice %28 {offsets = [0, 144], sizes = [64, 16], strides = [1, 1]} : vector<64x192xf32> to vector<64x16xf32>
    %62 = vector.shape_cast %61 : vector<64x16xf32> to vector<8x8x16xf32>
    %63 = vector.extract_strided_slice %28 {offsets = [0, 160], sizes = [64, 16], strides = [1, 1]} : vector<64x192xf32> to vector<64x16xf32>
    %64 = vector.shape_cast %63 : vector<64x16xf32> to vector<8x8x16xf32>
    %65 = vector.extract_strided_slice %28 {offsets = [0, 176], sizes = [64, 16], strides = [1, 1]} : vector<64x192xf32> to vector<64x16xf32>
    %66 = vector.shape_cast %65 : vector<64x16xf32> to vector<8x8x16xf32>
    %67 = vector.shape_cast %60 : vector<8x8x16xf32> to vector<1x8x8x16xf32>
    %68 = vector.shape_cast %62 : vector<8x8x16xf32> to vector<1x8x8x16xf32>
    %69 = vector.shape_cast %64 : vector<8x8x16xf32> to vector<1x8x8x16xf32>
    %70 = vector.shape_cast %66 : vector<8x8x16xf32> to vector<1x8x8x16xf32>
    %71 = tpu.concatenate %67, %68, %69, %70 in 0 : vector<1x8x8x16xf32>, vector<1x8x8x16xf32>, vector<1x8x8x16xf32>, vector<1x8x8x16xf32> -> vector<4x8x8x16xf32>
    %72 = vector.shape_cast %71 : vector<4x8x8x16xf32> to vector<32x8x16xf32>
    %73 = arith.truncf %72 : vector<32x8x16xf32> to vector<32x8x16xbf16>
    "tpu.trace_start"() <{level = 10 : i32, message = "bnd,bmd->bnm"}> : () -> ()
    %cst_13 = arith.constant dense<0.000000e+00> : vector<32x8x8xf32>
    %74 = tpu.matmul %43, %58, %cst_13 {dimension_numbers = #tpu.dot_dimension_numbers<[2], [2], [1], [1], [0, 0, 0, 1, 1, 1], [0], [0]>} : vector<32x8x16xbf16>, vector<32x8x16xbf16>, vector<32x8x8xf32> -> vector<32x8x8xf32>
    "tpu.trace_stop"() : () -> ()
    %cst_14 = arith.constant dense<0xFF800000> : vector<32x8xf32>
    %75 = vector.multi_reduction <maximumf>, %74, %cst_14 [2] : vector<32x8x8xf32> to vector<32x8xf32>
    %76 = vector.shape_cast %75 : vector<32x8xf32> to vector<32x8x1xf32>
    %77 = vector.broadcast %76 : vector<32x8x1xf32> to vector<32x8x8xf32>
    %78 = arith.subf %74, %77 : vector<32x8x8xf32>
    %79 = math.exp %78 : vector<32x8x8xf32>
    %cst_15 = arith.constant dense<0.000000e+00> : vector<32x8xf32>
    %80 = vector.multi_reduction <add>, %79, %cst_15 [2] : vector<32x8x8xf32> to vector<32x8xf32>
    %81 = vector.shape_cast %80 : vector<32x8xf32> to vector<32x8x1xf32>
    %82 = tpu.reciprocal %81 {approx = true} : vector<32x8x1xf32> -> vector<32x8x1xf32>
    %83 = vector.broadcast %82 : vector<32x8x1xf32> to vector<32x8x8xf32>
    %84 = arith.mulf %79, %83 : vector<32x8x8xf32>
    %85 = arith.truncf %84 : vector<32x8x8xf32> to vector<32x8x8xbf16>
    "tpu.trace_start"() <{level = 10 : i32, message = "bnm,bmd->bnd"}> : () -> ()
    %cst_16 = arith.constant dense<0.000000e+00> : vector<32x8x16xf32>
    %86 = tpu.matmul %85, %73, %cst_16 {dimension_numbers = #tpu.dot_dimension_numbers<[2], [1], [1], [2], [0, 0, 0, 1, 1, 2], [0], [0]>} : vector<32x8x8xbf16>, vector<32x8x16xbf16>, vector<32x8x16xf32> -> vector<32x8x16xf32>
    "tpu.trace_stop"() : () -> ()
    %87 = vector.extract_strided_slice %86 {offsets = [0, 0, 0], sizes = [8, 8, 16], strides = [1, 1, 1]} : vector<32x8x16xf32> to vector<8x8x16xf32>
    %88 = vector.shape_cast %87 : vector<8x8x16xf32> to vector<64x16xf32>
    %89 = arith.truncf %88 : vector<64x16xf32> to vector<64x16xbf16>
    %c0_17 = arith.constant 0 : index
    %c0_18 = arith.constant 0 : index
    %90 = vector.load %arg14[%c0_17, %c0_18] : memref<64x64xbf16, #tpu.memory_space<vmem>>, vector<64x16xbf16>
    tpu.vector_store %arg14[%c0_17, %c0_18], %89 {strides = array<i32>} : memref<64x64xbf16, #tpu.memory_space<vmem>>, vector<64x16xbf16>,
    %91 = vector.extract_strided_slice %86 {offsets = [8, 0, 0], sizes = [8, 8, 16], strides = [1, 1, 1]} : vector<32x8x16xf32> to vector<8x8x16xf32>
    %92 = vector.shape_cast %91 : vector<8x8x16xf32> to vector<64x16xf32>
    %93 = arith.truncf %92 : vector<64x16xf32> to vector<64x16xbf16>
    %c0_19 = arith.constant 0 : index
    %c16 = arith.constant 16 : index
    %94 = vector.load %arg14[%c0_19, %c16] : memref<64x64xbf16, #tpu.memory_space<vmem>>, vector<64x16xbf16>
    tpu.vector_store %arg14[%c0_19, %c16], %93 {strides = array<i32>} : memref<64x64xbf16, #tpu.memory_space<vmem>>, vector<64x16xbf16>,
    %95 = vector.extract_strided_slice %86 {offsets = [16, 0, 0], sizes = [8, 8, 16], strides = [1, 1, 1]} : vector<32x8x16xf32> to vector<8x8x16xf32>
    %96 = vector.shape_cast %95 : vector<8x8x16xf32> to vector<64x16xf32>
    %97 = arith.truncf %96 : vector<64x16xf32> to vector<64x16xbf16>
    %c0_20 = arith.constant 0 : index
    %c32 = arith.constant 32 : index
    %98 = vector.load %arg14[%c0_20, %c32] : memref<64x64xbf16, #tpu.memory_space<vmem>>, vector<64x16xbf16>
    tpu.vector_store %arg14[%c0_20, %c32], %97 {strides = array<i32>} : memref<64x64xbf16, #tpu.memory_space<vmem>>, vector<64x16xbf16>,
    %99 = vector.extract_strided_slice %86 {offsets = [24, 0, 0], sizes = [8, 8, 16], strides = [1, 1, 1]} : vector<32x8x16xf32> to vector<8x8x16xf32>
    %100 = vector.shape_cast %99 : vector<8x8x16xf32> to vector<64x16xf32>
    %101 = arith.truncf %100 : vector<64x16xf32> to vector<64x16xbf16>
    %c0_21 = arith.constant 0 : index
    %c48 = arith.constant 48 : index
    %102 = vector.load %arg14[%c0_21, %c48] : memref<64x64xbf16, #tpu.memory_space<vmem>>, vector<64x16xbf16>
    tpu.vector_store %arg14[%c0_21, %c48], %101 {strides = array<i32>} : memref<64x64xbf16, #tpu.memory_space<vmem>>, vector<64x16xbf16>,
    %c0_22 = arith.constant 0 : index
    %c0_23 = arith.constant 0 : index
    %103 = vector.load %arg14[%c0_22, %c0_23] : memref<64x64xbf16, #tpu.memory_space<vmem>>, vector<64x64xbf16>
    %c0_24 = arith.constant 0 : index
    %c0_25 = arith.constant 0 : index
    %104 = vector.load %arg5[%c0_24, %c0_25] : memref<64x32xbf16, #tpu.memory_space<vmem>>, vector<64x32xbf16>
    %cst_26 = arith.constant dense<0.000000e+00> : vector<64x32xf32>
    %105 = tpu.matmul %103, %104, %cst_26 {dimension_numbers = #tpu.dot_dimension_numbers<[1], [0], [0], [1], [0, 0, 1, 1], [], []>} : vector<64x64xbf16>, vector<64x32xbf16>, vector<64x32xf32> -> vector<64x32xf32>
    %c0_27 = arith.constant 0 : index
    %c0_28 = arith.constant 0 : index
    %106 = vector.load %arg6[%c0_27, %c0_28] : memref<1x32xf32, #tpu.memory_space<vmem>>, vector<1x32xf32>
    %107 = vector.broadcast %106 : vector<1x32xf32> to vector<64x32xf32>
    %108 = arith.addf %105, %107 : vector<64x32xf32>
    %109 = vector.shape_cast %108 : vector<64x32xf32> to vector<8x8x32xf32>
    %110 = arith.addf %0, %109 : vector<8x8x32xf32>
    %cst_29 = arith.constant dense<0.000000e+00> : vector<8x8xf32>
    %111 = vector.multi_reduction <add>, %110, %cst_29 [2] : vector<8x8x32xf32> to vector<8x8xf32>
    %112 = vector.shape_cast %111 : vector<8x8xf32> to vector<8x8x1xf32>
    %cst_30 = arith.constant 3.200000e+01 : f32
    %113 = vector.broadcast %cst_30 : f32 to vector<8x8x1xf32>
    %114 = arith.divf %112, %113 : vector<8x8x1xf32>
    %115 = vector.broadcast %114 : vector<8x8x1xf32> to vector<8x8x32xf32>
    %116 = arith.subf %110, %115 : vector<8x8x32xf32>
    %117 = arith.mulf %116, %116 : vector<8x8x32xf32>
    %cst_31 = arith.constant dense<0.000000e+00> : vector<8x8xf32>
    %118 = vector.multi_reduction <add>, %117, %cst_31 [2] : vector<8x8x32xf32> to vector<8x8xf32>
    %119 = vector.shape_cast %118 : vector<8x8xf32> to vector<8x8x1xf32>
    %cst_32 = arith.constant 3.200000e+01 : f32
    %120 = vector.broadcast %cst_32 : f32 to vector<8x8x1xf32>
    %121 = arith.divf %119, %120 : vector<8x8x1xf32>
    %cst_33 = arith.constant 9.99999974E-6 : f32
    %122 = vector.broadcast %cst_33 : f32 to vector<8x8x1xf32>
    %123 = arith.addf %121, %122 : vector<8x8x1xf32>
    %124 = math.rsqrt %123 : vector<8x8x1xf32>
    %125 = vector.broadcast %124 : vector<8x8x1xf32> to vector<8x8x32xf32>
    %126 = arith.mulf %116, %125 : vector<8x8x32xf32>
    %c0_34 = arith.constant 0 : index
    %c0_35 = arith.constant 0 : index
    %127 = vector.load %arg7[%c0_34, %c0_35] : memref<1x32xf32, #tpu.memory_space<vmem>>, vector<1x32xf32>
    %128 = vector.shape_cast %127 : vector<1x32xf32> to vector<1x1x32xf32>
    %129 = vector.broadcast %128 : vector<1x1x32xf32> to vector<8x8x32xf32>
    %130 = arith.mulf %126, %129 : vector<8x8x32xf32>
    %c0_36 = arith.constant 0 : index
    %c0_37 = arith.constant 0 : index
    %131 = vector.load %arg8[%c0_36, %c0_37] : memref<1x32xf32, #tpu.memory_space<vmem>>, vector<1x32xf32>
    %132 = vector.shape_cast %131 : vector<1x32xf32> to vector<1x1x32xf32>
    %133 = vector.broadcast %132 : vector<1x1x32xf32> to vector<8x8x32xf32>
    %134 = arith.addf %130, %133 : vector<8x8x32xf32>
    %135 = vector.shape_cast %134 : vector<8x8x32xf32> to vector<64x32xf32>
    %136 = arith.truncf %135 : vector<64x32xf32> to vector<64x32xbf16>
    %c0_38 = arith.constant 0 : index
    %c0_39 = arith.constant 0 : index
    %137 = vector.load %arg9[%c0_38, %c0_39] : memref<32x64xbf16, #tpu.memory_space<vmem>>, vector<32x64xbf16>
    %cst_40 = arith.constant dense<0.000000e+00> : vector<64x64xf32>
    %138 = tpu.matmul %136, %137, %cst_40 {dimension_numbers = #tpu.dot_dimension_numbers<[1], [0], [0], [1], [0, 0, 1, 1], [], []>} : vector<64x32xbf16>, vector<32x64xbf16>, vector<64x64xf32> -> vector<64x64xf32>
    %c0_41 = arith.constant 0 : index
    %c0_42 = arith.constant 0 : index
    %139 = vector.load %arg10[%c0_41, %c0_42] : memref<1x64xf32, #tpu.memory_space<vmem>>, vector<1x64xf32>
    %140 = vector.broadcast %139 : vector<1x64xf32> to vector<64x64xf32>
    %141 = arith.addf %138, %140 : vector<64x64xf32>
    %cst_43 = arith.constant 0.000000e+00 : f32
    %142 = vector.broadcast %cst_43 : f32 to vector<64x64xf32>
    %143 = arith.maximumf %141, %142 : vector<64x64xf32>
    %144 = arith.truncf %143 : vector<64x64xf32> to vector<64x64xbf16>
    %c0_44 = arith.constant 0 : index
    %c0_45 = arith.constant 0 : index
    %145 = vector.load %arg11[%c0_44, %c0_45] : memref<64x32xbf16, #tpu.memory_space<vmem>>, vector<64x32xbf16>
    %cst_46 = arith.constant dense<0.000000e+00> : vector<64x32xf32>
    %146 = tpu.matmul %144, %145, %cst_46 {dimension_numbers = #tpu.dot_dimension_numbers<[1], [0], [0], [1], [0, 0, 1, 1], [], []>} : vector<64x64xbf16>, vector<64x32xbf16>, vector<64x32xf32> -> vector<64x32xf32>
    %c0_47 = arith.constant 0 : index
    %c0_48 = arith.constant 0 : index
    %147 = vector.load %arg12[%c0_47, %c0_48] : memref<1x32xf32, #tpu.memory_space<vmem>>, vector<1x32xf32>
    %148 = vector.broadcast %147 : vector<1x32xf32> to vector<64x32xf32>
    %149 = arith.addf %146, %148 : vector<64x32xf32>
    %150 = vector.shape_cast %149 : vector<64x32xf32> to vector<8x8x32xf32>
    %151 = arith.addf %110, %150 : vector<8x8x32xf32>
    %c0_49 = arith.constant 0 : index
    %c0_50 = arith.constant 0 : index
    %c0_51 = arith.constant 0 : index
    %152 = vector.load %arg13[%c0_49, %c0_50, %c0_51] : memref<8x8x32xf32, #tpu.memory_space<vmem>>, vector<8x8x32xf32>
    tpu.vector_store %arg13[%c0_49, %c0_50, %c0_51], %151 {strides = array<i32>} : memref<8x8x32xf32, #tpu.memory_space<vmem>>, vector<8x8x32xf32>,
    return
  }
  func.func @transform_0(%arg0: i32) -> (i32, i32, i32) {
    %c0_i32 = arith.constant 0 : i32
    %c0_i32_0 = arith.constant 0 : i32
    %c0_i32_1 = arith.constant 0 : i32
    return %arg0, %c0_i32, %c0_i32_0 : i32, i32, i32
  }
  func.func @transform_1(%arg0: i32) -> (i32, i32) {
    %c0_i32 = arith.constant 0 : i32
    %c0_i32_0 = arith.constant 0 : i32
    %c0_i32_1 = arith.constant 0 : i32
    return %c0_i32, %c0_i32_0 : i32, i32
  }
  func.func @transform_2(%arg0: i32) -> (i32, i32) {
    %c0_i32 = arith.constant 0 : i32
    %c0_i32_0 = arith.constant 0 : i32
    %c0_i32_1 = arith.constant 0 : i32
    return %c0_i32, %c0_i32_0 : i32, i32
  }
  func.func @transform_3(%arg0: i32) -> (i32, i32) {
    %c0_i32 = arith.constant 0 : i32
    %c0_i32_0 = arith.constant 0 : i32
    %c0_i32_1 = arith.constant 0 : i32
    return %c0_i32, %c0_i32_0 : i32, i32
  }
  func.func @transform_4(%arg0: i32) -> (i32, i32) {
    %c0_i32 = arith.constant 0 : i32
    %c0_i32_0 = arith.constant 0 : i32
    %c0_i32_1 = arith.constant 0 : i32
    return %c0_i32, %c0_i32_0 : i32, i32
  }
  func.func @transform_5(%arg0: i32) -> (i32, i32) {
    %c0_i32 = arith.constant 0 : i32
    %c0_i32_0 = arith.constant 0 : i32
    %c0_i32_1 = arith.constant 0 : i32
    return %c0_i32, %c0_i32_0 : i32, i32
  }
  func.func @transform_6(%arg0: i32) -> (i32, i32) {
    %c0_i32 = arith.constant 0 : i32
    %c0_i32_0 = arith.constant 0 : i32
    %c0_i32_1 = arith.constant 0 : i32
    return %c0_i32, %c0_i32_0 : i32, i32
  }
  func.func @transform_7(%arg0: i32) -> (i32, i32) {
    %c0_i32 = arith.constant 0 : i32
    %c0_i32_0 = arith.constant 0 : i32
    %c0_i32_1 = arith.constant 0 : i32
    return %c0_i32, %c0_i32_0 : i32, i32
  }
  func.func @transform_8(%arg0: i32) -> (i32, i32) {
    %c0_i32 = arith.constant 0 : i32
    %c0_i32_0 = arith.constant 0 : i32
    %c0_i32_1 = arith.constant 0 : i32
    return %c0_i32, %c0_i32_0 : i32, i32
  }
  func.func @transform_9(%arg0: i32) -> (i32, i32) {
    %c0_i32 = arith.constant 0 : i32
    %c0_i32_0 = arith.constant 0 : i32
    %c0_i32_1 = arith.constant 0 : i32
    return %c0_i32, %c0_i32_0 : i32, i32
  }
  func.func @transform_10(%arg0: i32) -> (i32, i32) {
    %c0_i32 = arith.constant 0 : i32
    %c0_i32_0 = arith.constant 0 : i32
    %c0_i32_1 = arith.constant 0 : i32
    return %c0_i32, %c0_i32_0 : i32, i32
  }
  func.func @transform_11(%arg0: i32) -> (i32, i32) {
    %c0_i32 = arith.constant 0 : i32
    %c0_i32_0 = arith.constant 0 : i32
    %c0_i32_1 = arith.constant 0 : i32
    return %c0_i32, %c0_i32_0 : i32, i32
  }
  func.func @transform_12(%arg0: i32) -> (i32, i32, i32) {
    %c0_i32 = arith.constant 0 : i32
    %c0_i32_0 = arith.constant 0 : i32
    %c0_i32_1 = arith.constant 0 : i32
    return %arg0, %c0_i32, %c0_i32_0 : i32, i32, i32
  }
}

</mosaic_0001>

<llo_original>
// kernel: tpu_custom_call.1
$region0: #{tpu_custom_call.1}
  #allocation0 [shape = 'u32[]', space=smem, size = 0x4, offset = 0x4, fixed_abs, tag = 'smem constant byte address 0x4 - core index']
  #allocation1 [shape = 'u32[144,128]{1,0:T(1,128)}', space=vmem, size = 0x12000, scoped, tag = 'internal scratch']
  #allocation2 [shape = 'bf16[64,64]{1,0:T(16,128)(2,1)}', space=vmem, size = 0x4000, scoped, tag = 'scratch operand']
  %s0 = inlined_call_operand.vmem [shape: f32[8,8,32], index: 0, kind: input, shape index: {}]
  %s1 = inlined_call_operand.vmem [shape: f32[1,32], index: 1, kind: input, shape index: {}]
  %s2 = inlined_call_operand.vmem [shape: f32[1,32], index: 2, kind: input, shape index: {}]
  %s3 = inlined_call_operand.vmem [shape: bf16[32,192], index: 3, kind: input, shape index: {}]
  %s4 = inlined_call_operand.vmem [shape: bf16[64,32], index: 4, kind: input, shape index: {}]
  %s5 = inlined_call_operand.hbm [shape: f32[1,32], index: 5, kind: input, shape index: {}]
  %s6 = inlined_call_operand.vmem [shape: f32[1,32], index: 6, kind: input, shape index: {}]
  %s7 = inlined_call_operand.vmem [shape: f32[1,32], index: 7, kind: input, shape index: {}]
  %s8 = inlined_call_operand.hbm [shape: bf16[32,64], index: 8, kind: input, shape index: {}]
  %s9 = inlined_call_operand.vmem [shape: f32[1,64], index: 9, kind: input, shape index: {}]
  %s10 = inlined_call_operand.vmem [shape: bf16[64,32], index: 10, kind: input, shape index: {}]
  %s11 = inlined_call_operand.vmem [shape: f32[1,32], index: 11, kind: input, shape index: {}]
  %s12 = inlined_call_operand.hbm [shape: f32[8,8,32], index: 12, kind: output, shape index: {}]
  %s13 = sld [smem:[#allocation0]]
  $region66: #{tpu_custom_call.1} parent=0
    _
  %s15 = ssub.s32 1, %s13
  %s16 = scalar_select 0, %s15, %s13
  $region1: #{tpu_custom_call.1} parent=0
    #allocation3 [shape = 'u8[512]{0}', space=vmem, size = 0x400, scoped, tag = 'input window, operand 5, single buffered']
    #allocation4 [shape = 's32[1]{0}', space=sflag, size = 0x4, scoped, tag = 'scoped memory for tpu_custom_call.1']
    #allocation5 [shape = 's32[1]{0}', space=sflag, size = 0x4, scoped, tag = 'scoped memory for tpu_custom_call.1']
    #allocation6 [shape = 'u8[8192]{0}', space=vmem, size = 0x2000, scoped, tag = 'input window, operand 8, single buffered']
    #allocation7 [shape = 's32[1]{0}', space=sflag, size = 0x4, scoped, tag = 'scoped memory for tpu_custom_call.1']
    #allocation8 [shape = 'u8[32768]{0}', space=vmem, size = 0x8000, scoped, tag = 'output window, operand 0, single buffered']
    %17 = vsyncpa [#allocation4], 0
    %18 = vsyncpa [#allocation7], 0
    %19 = vsyncpa [#allocation5], 0
    // Predicated region
    $region2: #{tpu_custom_call.1} parent=1 // pred_check
      _
    $region3: #{tpu_custom_call.1} parent=1 // pred_check_branch
      %21 = sbr.rel (0) target = $region5
    $region4: #{tpu_custom_call.1} parent=1 // pred_region
      _
    $region5: #{tpu_custom_call.1} parent=1 // pred_fallthru
      _
    // Predicated region
    $region6: #{tpu_custom_call.1} parent=1 // pred_check
      _
    $region7: #{tpu_custom_call.1} parent=1 // pred_check_branch
      %23 = sbr.rel (0) target = $region9
    $region8: #{tpu_custom_call.1} parent=1 // pred_region
      _
    $region9: #{tpu_custom_call.1} parent=1 // pred_fallthru
      _
    // Predicated region
    $region10: #{tpu_custom_call.1} parent=1 // pred_check
      _
    $region11: #{tpu_custom_call.1} parent=1 // pred_check_branch
      %25 = sbr.rel (0) target = $region13
    $region12: #{tpu_custom_call.1} parent=1 // pred_region
      _
    $region13: #{tpu_custom_call.1} parent=1 // pred_fallthru
      _
    // Predicated region
    $region14: #{tpu_custom_call.1} parent=1 // pred_check
      _
    $region15: #{tpu_custom_call.1} parent=1 // pred_check_branch
      %27 = sbr.rel (0) target = $region17
    $region16: #{tpu_custom_call.1} parent=1 // pred_region
      _
    $region17: #{tpu_custom_call.1} parent=1 // pred_fallthru
      _
    // Predicated region
    $region18: #{tpu_custom_call.1} parent=1 // pred_check
      _
    $region19: #{tpu_custom_call.1} parent=1 // pred_check_branch
      %29 = sbr.rel (0) target = $region21
    $region20: #{tpu_custom_call.1} parent=1 // pred_region
      _
    $region21: #{tpu_custom_call.1} parent=1 // pred_fallthru
      _
    // Predicated region
    $region22: #{tpu_custom_call.1} parent=1 // pred_check
      _
    $region23: #{tpu_custom_call.1} parent=1 // pred_check_branch
      %31 = sbr.rel (0) target = $region25
    $region24: #{tpu_custom_call.1} parent=1 // pred_region
      %s33 = ssub.s32 16, 16
      %34 = vsyncadd [#allocation4], %s33
      %s36 = sshll.u32 [#allocation3], 4
      %s37 = int_to_ptr.vmem [resolvable:$true] %s36
      %39 = dma.hbm_to_vmem [thread:$0]  %s5, 16, %s37, [#allocation4]
    $region25: #{tpu_custom_call.1} parent=1 // pred_fallthru
      _
    // Predicated region
    $region26: #{tpu_custom_call.1} parent=1 // pred_check
      _
    $region27: #{tpu_custom_call.1} parent=1 // pred_check_branch
      %41 = sbr.rel (0) target = $region29
    $region28: #{tpu_custom_call.1} parent=1 // pred_region
      _
    $region29: #{tpu_custom_call.1} parent=1 // pred_fallthru
      _
    // Predicated region
    $region30: #{tpu_custom_call.1} parent=1 // pred_check
      _
    $region31: #{tpu_custom_call.1} parent=1 // pred_check_branch
      %43 = sbr.rel (0) target = $region33
    $region32: #{tpu_custom_call.1} parent=1 // pred_region
      _
    $region33: #{tpu_custom_call.1} parent=1 // pred_fallthru
      _
    // Predicated region
    $region34: #{tpu_custom_call.1} parent=1 // pred_check
      _
    $region35: #{tpu_custom_call.1} parent=1 // pred_check_branch
      %45 = sbr.rel (0) target = $region37
    $region36: #{tpu_custom_call.1} parent=1 // pred_region
      %s47 = ssub.s32 256, 256
      %48 = vsyncadd [#allocation7], %s47
      %s49 = sshll.u32 [#allocation6], 4
      %s50 = int_to_ptr.vmem [resolvable:$true] %s49
      %55 = dma.hbm_to_vmem [thread:$0]  %s8, 256, %s50, [#allocation7], 64, 64, 4
    $region37: #{tpu_custom_call.1} parent=1 // pred_fallthru
      _
    // Predicated region
    $region38: #{tpu_custom_call.1} parent=1 // pred_check
      _
    $region39: #{tpu_custom_call.1} parent=1 // pred_check_branch
      %57 = sbr.rel (0) target = $region41
    $region40: #{tpu_custom_call.1} parent=1 // pred_region
      _
    $region41: #{tpu_custom_call.1} parent=1 // pred_fallthru
      _
    // Predicated region
    $region42: #{tpu_custom_call.1} parent=1 // pred_check
      _
    $region43: #{tpu_custom_call.1} parent=1 // pred_check_branch
      %59 = sbr.rel (0) target = $region45
    $region44: #{tpu_custom_call.1} parent=1 // pred_region
      _
    $region45: #{tpu_custom_call.1} parent=1 // pred_fallthru
      _
    // Predicated region
    $region46: #{tpu_custom_call.1} parent=1 // pred_check
      _
    $region47: #{tpu_custom_call.1} parent=1 // pred_check_branch
      %61 = sbr.rel (0) target = $region49
    $region48: #{tpu_custom_call.1} parent=1 // pred_region
      _
    $region49: #{tpu_custom_call.1} parent=1 // pred_fallthru
      _
    // Predicated region
    $region50: #{tpu_custom_call.1} parent=1 // pred_check
      _
    $region51: #{tpu_custom_call.1} parent=1 // pred_check_branch
      %63 = sbr.rel (0) target = $region53
    $region52: #{tpu_custom_call.1} parent=1 // pred_region
      %64 = dma.done [#allocation4], 16
    $region53: #{tpu_custom_call.1} parent=1 // pred_fallthru
      _
    // Predicated region
    $region54: #{tpu_custom_call.1} parent=1 // pred_check
      _
    $region55: #{tpu_custom_call.1} parent=1 // pred_check_branch
      %66 = sbr.rel (0) target = $region57
    $region56: #{tpu_custom_call.1} parent=1 // pred_region
      %67 = dma.done [#allocation7], 256
    $region57: #{tpu_custom_call.1} parent=1 // pred_fallthru
      _
    %v69 = vld [vmem:[%s0] sm:$0xff]
    %v70 = vld [vmem:[%s0 + $0x8] sm:$0xff]
    %v71 = vld [vmem:[%s0 + $0x10] sm:$0xff]
    %v72 = vld [vmem:[%s0 + $0x18] sm:$0xff]
    %v73 = vld [vmem:[%s0 + $0x20] sm:$0xff]
    %v74 = vld [vmem:[%s0 + $0x28] sm:$0xff]
    %v75 = vld [vmem:[%s0 + $0x30] sm:$0xff]
    %v76 = vld [vmem:[%s0 + $0x38] sm:$0xff]
    %vm77 = vcmask 261120
    %v78 = vsel %vm77, %v69, 0.0
    %79 = vadd.xlane.f32.xlu0 %v78
    %v80 = vpop.xlane.xlu0 %79
    %v81 = vsel %vm77, %v70, 0.0
    %82 = vadd.xlane.f32.xlu0 %v81
    %v83 = vpop.xlane.xlu0 %82
    %v84 = vsel %vm77, %v71, 0.0
    %85 = vadd.xlane.f32.xlu0 %v84
    %v86 = vpop.xlane.xlu0 %85
    %v87 = vsel %vm77, %v72, 0.0
    %88 = vadd.xlane.f32.xlu0 %v87
    %v89 = vpop.xlane.xlu0 %88
    %v90 = vsel %vm77, %v73, 0.0
    %91 = vadd.xlane.f32.xlu0 %v90
    %v92 = vpop.xlane.xlu0 %91
    %v93 = vsel %vm77, %v74, 0.0
    %94 = vadd.xlane.f32.xlu0 %v93
    %v95 = vpop.xlane.xlu0 %94
    %v96 = vsel %vm77, %v75, 0.0
    %97 = vadd.xlane.f32.xlu0 %v96
    %v98 = vpop.xlane.xlu0 %97
    %v99 = vsel %vm77, %v76, 0.0
    %100 = vadd.xlane.f32.xlu0 %v99
    %v101 = vpop.xlane.xlu0 %100
    %v102 = vrcp.pop 32.0
    %v103 = vmul.f32 %v80, %v102
    %v104 = vmul.f32 %v83, %v102
    %v105 = vmul.f32 %v86, %v102
    %v106 = vmul.f32 %v89, %v102
    %v107 = vmul.f32 %v92, %v102
    %v108 = vmul.f32 %v95, %v102
    %v109 = vmul.f32 %v98, %v102
    %v110 = vmul.f32 %v101, %v102
    %v111 = vsub.f32 %v69, %v103
    %v112 = vsub.f32 %v70, %v104
    %v113 = vsub.f32 %v71, %v105
    %v114 = vsub.f32 %v72, %v106
    %v115 = vsub.f32 %v73, %v107
    %v116 = vsub.f32 %v74, %v108
    %v117 = vsub.f32 %v75, %v109
    %v118 = vsub.f32 %v76, %v110
    %v119 = vmul.f32 %v111, %v111
    %v120 = vmul.f32 %v112, %v112
    %v121 = vmul.f32 %v113, %v113
    %v122 = vmul.f32 %v114, %v114
    %v123 = vmul.f32 %v115, %v115
    %v124 = vmul.f32 %v116, %v116
    %v125 = vmul.f32 %v117, %v117
    %v126 = vmul.f32 %v118, %v118
    %v127 = vsel %vm77, %v119, 0.0
    %128 = vadd.xlane.f32.xlu0 %v127
    %v129 = vpop.xlane.xlu0 %128
    %v130 = vsel %vm77, %v120, 0.0
    %131 = vadd.xlane.f32.xlu0 %v130
    %v132 = vpop.xlane.xlu0 %131
    %v133 = vsel %vm77, %v121, 0.0
    %134 = vadd.xlane.f32.xlu0 %v133
    %v135 = vpop.xlane.xlu0 %134
    %v136 = vsel %vm77, %v122, 0.0
    %137 = vadd.xlane.f32.xlu0 %v136
    %v138 = vpop.xlane.xlu0 %137
    %v139 = vsel %vm77, %v123, 0.0
    %140 = vadd.xlane.f32.xlu0 %v139
    %v141 = vpop.xlane.xlu0 %140
    %v142 = vsel %vm77, %v124, 0.0
    %143 = vadd.xlane.f32.xlu0 %v142
    %v144 = vpop.xlane.xlu0 %143
    %v145 = vsel %vm77, %v125, 0.0
    %146 = vadd.xlane.f32.xlu0 %v145
    %v147 = vpop.xlane.xlu0 %146
    %v148 = vsel %vm77, %v126, 0.0
    %149 = vadd.xlane.f32.xlu0 %v148
    %v150 = vpop.xlane.xlu0 %149
    %v151 = vmul.f32 %v129, %v102
    %v152 = vmul.f32 %v132, %v102
    %v153 = vmul.f32 %v135, %v102
    %v154 = vmul.f32 %v138, %v102
    %v155 = vmul.f32 %v141, %v102
    %v156 = vmul.f32 %v144, %v102
    %v157 = vmul.f32 %v147, %v102
    %v158 = vmul.f32 %v150, %v102
    %v159 = vadd.f32 %v151, 1e-05
    %v160 = vadd.f32 %v152, 1e-05
    %v161 = vadd.f32 %v153, 1e-05
    %v162 = vadd.f32 %v154, 1e-05
    %v163 = vadd.f32 %v155, 1e-05
    %v164 = vadd.f32 %v156, 1e-05
    %v165 = vadd.f32 %v157, 1e-05
    %v166 = vadd.f32 %v158, 1e-05
    %v167 = vrsqrt.pop %v159
    %v168 = vrsqrt.pop %v160
    %v169 = vrsqrt.pop %v161
    %v170 = vrsqrt.pop %v162
    %v171 = vrsqrt.pop %v163
    %v172 = vrsqrt.pop %v164
    %v173 = vrsqrt.pop %v165
    %v174 = vrsqrt.pop %v166
    %v175 = vmul.f32 %v111, %v167
    %v176 = vmul.f32 %v112, %v168
    %v177 = vmul.f32 %v113, %v169
    %v178 = vmul.f32 %v114, %v170
    %v179 = vmul.f32 %v115, %v171
    %v180 = vmul.f32 %v116, %v172
    %v181 = vmul.f32 %v117, %v173
    %v182 = vmul.f32 %v118, %v174
    %v183 = vld [vmem:[%s1] sm:$0x1]
    %v185 = vlaneseq
    %v186 = vshrl.u32 %v185, 7
    %v187 = vsub.s32 0, %v186
    %v188 = vrot.slane %v183, %v187
    %v190 = vmul.f32 %v175, %v188
    %v191 = vmul.f32 %v176, %v188
    %v192 = vmul.f32 %v177, %v188
    %v193 = vmul.f32 %v178, %v188
    %v194 = vmul.f32 %v179, %v188
    %v195 = vmul.f32 %v180, %v188
    %v196 = vmul.f32 %v181, %v188
    %v197 = vmul.f32 %v182, %v188
    %v198 = vld [vmem:[%s2] sm:$0x1]
    %v200 = vlaneseq
    %v201 = vshrl.u32 %v200, 7
    %v202 = vsub.s32 0, %v201
    %v203 = vrot.slane %v198, %v202
    %v205 = vadd.f32 %v190, %v203
    %v206 = vadd.f32 %v191, %v203
    %v207 = vadd.f32 %v192, %v203
    %v208 = vadd.f32 %v193, %v203
    %v209 = vadd.f32 %v194, %v203
    %v210 = vadd.f32 %v195, %v203
    %v211 = vadd.f32 %v196, %v203
    %v212 = vadd.f32 %v197, %v203
    %v213 = vpack.c.bf16 %v206, %v205
    %v214 = vpack.c.bf16 %v208, %v207
    %v215 = vpack.c.bf16 %v210, %v209
    %v216 = vpack.c.bf16 %v212, %v211
    %v217 = vld [vmem:[%s3] sm:$0xff]
    %v218 = vld [vmem:[%s3 + $0x8] sm:$0xff]
    %v219 = vld [vmem:[%s3 + $0x10] sm:$0xff]
    %v220 = vld [vmem:[%s3 + $0x18] sm:$0xff]
    %v225 = vunpack.c.l.b16 %v217
    %v226 = vunpack.c.h.b16 %v217
    %v227 = vunpack.c.l.b16 %v218
    %v228 = vunpack.c.h.b16 %v218
    %v229 = vunpack.c.l.b16 %v219
    %v230 = vunpack.c.h.b16 %v219
    %v231 = vunpack.c.l.b16 %v220
    %v232 = vunpack.c.h.b16 %v220
    %v233 = vpack.c.b16 %v227, %v225
    %v234 = vpack.c.b16 %v228, %v226
    %v235 = vpack.c.b16 %v231, %v229
    %v236 = vpack.c.b16 %v232, %v230
    %v242 = vsel %vm77, %v213, 0
    %v245 = vsel %vm77, %v214, 0
    %v248 = vsel %vm77, %v215, 0
    %v251 = vsel %vm77, %v216, 0
    %253 = vmatprep.subr.bf16.mxu0 %v234
    %254 = vmatpush1.bf16.msra.mxu0 %v233
    %255 = vmatprep.subr.bf16.mxu0 %v236
    %256 = vmatpush1.bf16.msra.mxu0 %v235
    %257 = vmatprep.subr.bf16.mxu0 0
    %258 = vmatpush1.bf16.msra.mxu0 0
    %259 = vmatprep.subr.bf16.mxu0 0
    %260 = vmatpush1.bf16.msra.mxu0 0
    %261 = vmatprep.subr.bf16.mxu0 0
    %262 = vmatpush1.bf16.msra.mxu0 0
    %263 = vmatprep.subr.bf16.mxu0 0
    %264 = vmatpush1.bf16.msra.mxu0 0
    %265 = vmatprep.subr.bf16.mxu0 0
    %266 = vmatpush1.bf16.msra.mxu0 0
    %267 = vmatprep.subr.bf16.mxu0 0
    %268 = vmatpush1.bf16.msra.mxu0 0
    %269 = vmatprep.subr.bf16.mxu0 0
    %270 = vmatpush1.bf16.msra.mxu0 0
    %271 = vmatprep.subr.bf16.mxu0 0
    %272 = vmatpush1.bf16.msra.mxu0 0
    %273 = vmatprep.subr.bf16.mxu0 0
    %274 = vmatpush1.bf16.msra.mxu0 0
    %275 = vmatprep.subr.bf16.mxu0 0
    %276 = vmatpush1.bf16.msra.mxu0 0
    %277 = vmatprep.subr.bf16.mxu0 0
    %278 = vmatpush1.bf16.msra.mxu0 0
    %279 = vmatprep.subr.bf16.mxu0 0
    %280 = vmatpush1.bf16.msra.mxu0 0
    %281 = vmatprep.subr.bf16.mxu0 0
    %282 = vmatpush1.bf16.msra.mxu0 0
    %283 = vmatprep.subr.bf16.mxu0 0
    %284 = vmatpush1.bf16.msra.mxu0 0
    %285 = vmatprep.mubr.bf16.mxu0 0
    %286 = vmatmul.mubr.bf16.gmra.mrb[0].mxu0 %v242
    %v287 = vpop.f32.mrb[0].mxu0
    %v288 = vadd.f32 0.0, %v287
    %v289 = vpop.f32.mrb[0].mxu0
    %v290 = vadd.f32 0.0, %v289
    %v291 = vpop.f32.mrb[0].mxu0
    %v292 = vadd.f32 0.0, %v291
    %v293 = vpop.f32.mrb[0].mxu0
    %v294 = vadd.f32 0.0, %v293
    %295 = vmatprep.mubr.bf16.mxu0 0
    %296 = vmatmul.mubr.bf16.gmra.mrb[0].mxu0 %v245
    %v297 = vpop.f32.mrb[0].mxu0
    %v298 = vadd.f32 0.0, %v297
    %v299 = vpop.f32.mrb[0].mxu0
    %v300 = vadd.f32 0.0, %v299
    %v301 = vpop.f32.mrb[0].mxu0
    %v302 = vadd.f32 0.0, %v301
    %v303 = vpop.f32.mrb[0].mxu0
    %v304 = vadd.f32 0.0, %v303
    %305 = vmatprep.mubr.bf16.mxu0 0
    %306 = vmatmul.mubr.bf16.gmra.mrb[0].mxu0 %v248
    %v307 = vpop.f32.mrb[0].mxu0
    %v308 = vadd.f32 0.0, %v307
    %v309 = vpop.f32.mrb[0].mxu0
    %v310 = vadd.f32 0.0, %v309
    %v311 = vpop.f32.mrb[0].mxu0
    %v312 = vadd.f32 0.0, %v311
    %v313 = vpop.f32.mrb[0].mxu0
    %v314 = vadd.f32 0.0, %v313
    %315 = vmatprep.mubr.bf16.mxu0 0
    %316 = vmatmul.mubr.bf16.gmra.mrb[0].mxu0 %v251
    %v317 = vpop.f32.mrb[0].mxu0
    %v318 = vadd.f32 0.0, %v317
    %v319 = vpop.f32.mrb[0].mxu0
    %v320 = vadd.f32 0.0, %v319
    %v321 = vpop.f32.mrb[0].mxu0
    %v322 = vadd.f32 0.0, %v321
    %v323 = vpop.f32.mrb[0].mxu0
    %v324 = vadd.f32 0.0, %v323
    %325 = vdwg.mxu0
    %334 = vrot.lane.b32.xlu0 %v288, 112
    %v335 = vpop.permute.xlu0 %334
    %336 = vrot.lane.b32.xlu0 %v292, 112
    %v337 = vpop.permute.xlu0 %336
    %338 = vrot.lane.b32.xlu0 %v298, 112
    %v339 = vpop.permute.xlu0 %338
    %340 = vrot.lane.b32.xlu0 %v302, 112
    %v341 = vpop.permute.xlu0 %340
    %342 = vrot.lane.b32.xlu0 %v308, 112
    %v343 = vpop.permute.xlu0 %342
    %344 = vrot.lane.b32.xlu0 %v312, 112
    %v345 = vpop.permute.xlu0 %344
    %346 = vrot.lane.b32.xlu0 %v318, 112
    %v347 = vpop.permute.xlu0 %346
    %348 = vrot.lane.b32.xlu0 %v322, 112
    %v349 = vpop.permute.xlu0 %348
    %358 = vrot.lane.b32.xlu0 %v288, 96
    %v359 = vpop.permute.xlu0 %358
    %360 = vrot.lane.b32.xlu0 %v292, 96
    %v361 = vpop.permute.xlu0 %360
    %362 = vrot.lane.b32.xlu0 %v298, 96
    %v363 = vpop.permute.xlu0 %362
    %364 = vrot.lane.b32.xlu0 %v302, 96
    %v365 = vpop.permute.xlu0 %364
    %366 = vrot.lane.b32.xlu0 %v308, 96
    %v367 = vpop.permute.xlu0 %366
    %368 = vrot.lane.b32.xlu0 %v312, 96
    %v369 = vpop.permute.xlu0 %368
    %370 = vrot.lane.b32.xlu0 %v318, 96
    %v371 = vpop.permute.xlu0 %370
    %372 = vrot.lane.b32.xlu0 %v322, 96
    %v373 = vpop.permute.xlu0 %372
    %382 = vrot.lane.b32.xlu0 %v288, 80
    %v383 = vpop.permute.xlu0 %382
    %384 = vrot.lane.b32.xlu0 %v292, 80
    %v385 = vpop.permute.xlu0 %384
    %386 = vrot.lane.b32.xlu0 %v298, 80
    %v387 = vpop.permute.xlu0 %386
    %388 = vrot.lane.b32.xlu0 %v302, 80
    %v389 = vpop.permute.xlu0 %388
    %390 = vrot.lane.b32.xlu0 %v308, 80
    %v391 = vpop.permute.xlu0 %390
    %392 = vrot.lane.b32.xlu0 %v312, 80
    %v393 = vpop.permute.xlu0 %392
    %394 = vrot.lane.b32.xlu0 %v318, 80
    %v395 = vpop.permute.xlu0 %394
    %396 = vrot.lane.b32.xlu0 %v322, 80
    %v397 = vpop.permute.xlu0 %396
    %v406 = vpack.c.bf16 %v288, %v288
    %v407 = vpack.c.bf16 %v292, %v292
    %v408 = vpack.c.bf16 %v298, %v298
    %v409 = vpack.c.bf16 %v302, %v302
    %v410 = vpack.c.bf16 %v308, %v308
    %v411 = vpack.c.bf16 %v312, %v312
    %v412 = vpack.c.bf16 %v318, %v318
    %v413 = vpack.c.bf16 %v322, %v322
    %v414 = vpack.c.bf16 %v335, %v335
    %v415 = vpack.c.bf16 %v337, %v337
    %v416 = vpack.c.bf16 %v339, %v339
    %v417 = vpack.c.bf16 %v341, %v341
    %v418 = vpack.c.bf16 %v343, %v343
    %v419 = vpack.c.bf16 %v345, %v345
    %v420 = vpack.c.bf16 %v347, %v347
    %v421 = vpack.c.bf16 %v349, %v349
    %v422 = vpack.c.bf16 %v359, %v359
    %v423 = vpack.c.bf16 %v361, %v361
    %v424 = vpack.c.bf16 %v363, %v363
    %v425 = vpack.c.bf16 %v365, %v365
    %v426 = vpack.c.bf16 %v367, %v367
    %v427 = vpack.c.bf16 %v369, %v369
    %v428 = vpack.c.bf16 %v371, %v371
    %v429 = vpack.c.bf16 %v373, %v373
    %v430 = vpack.c.bf16 %v383, %v383
    %v431 = vpack.c.bf16 %v385, %v385
    %v432 = vpack.c.bf16 %v387, %v387
    %v433 = vpack.c.bf16 %v389, %v389
    %v434 = vpack.c.bf16 %v391, %v391
    %v435 = vpack.c.bf16 %v393, %v393
    %v436 = vpack.c.bf16 %v395, %v395
    %v437 = vpack.c.bf16 %v397, %v397
    %446 = vrot.lane.b32.xlu0 %v290, 112
    %v447 = vpop.permute.xlu0 %446
    %448 = vrot.lane.b32.xlu0 %v294, 112
    %v449 = vpop.permute.xlu0 %448
    %450 = vrot.lane.b32.xlu0 %v300, 112
    %v451 = vpop.permute.xlu0 %450
    %452 = vrot.lane.b32.xlu0 %v304, 112
    %v453 = vpop.permute.xlu0 %452
    %454 = vrot.lane.b32.xlu0 %v310, 112
    %v455 = vpop.permute.xlu0 %454
    %456 = vrot.lane.b32.xlu0 %v314, 112
    %v457 = vpop.permute.xlu0 %456
    %458 = vrot.lane.b32.xlu0 %v320, 112
    %v459 = vpop.permute.xlu0 %458
    %460 = vrot.lane.b32.xlu0 %v324, 112
    %v461 = vpop.permute.xlu0 %460
    %470 = vrot.lane.b32.xlu0 %v290, 96
    %v471 = vpop.permute.xlu0 %470
    %472 = vrot.lane.b32.xlu0 %v294, 96
    %v473 = vpop.permute.xlu0 %472
    %474 = vrot.lane.b32.xlu0 %v300, 96
    %v475 = vpop.permute.xlu0 %474
    %476 = vrot.lane.b32.xlu0 %v304, 96
    %v477 = vpop.permute.xlu0 %476
    %478 = vrot.lane.b32.xlu0 %v310, 96
    %v479 = vpop.permute.xlu0 %478
    %480 = vrot.lane.b32.xlu0 %v314, 96
    %v481 = vpop.permute.xlu0 %480
    %482 = vrot.lane.b32.xlu0 %v320, 96
    %v483 = vpop.permute.xlu0 %482
    %484 = vrot.lane.b32.xlu0 %v324, 96
    %v485 = vpop.permute.xlu0 %484
    %494 = vrot.lane.b32.xlu0 %v290, 80
    %v495 = vpop.permute.xlu0 %494
    %496 = vrot.lane.b32.xlu0 %v294, 80
    %v497 = vpop.permute.xlu0 %496
    %498 = vrot.lane.b32.xlu0 %v300, 80
    %v499 = vpop.permute.xlu0 %498
    %500 = vrot.lane.b32.xlu0 %v304, 80
    %v501 = vpop.permute.xlu0 %500
    %502 = vrot.lane.b32.xlu0 %v310, 80
    %v503 = vpop.permute.xlu0 %502
    %504 = vrot.lane.b32.xlu0 %v314, 80
    %v505 = vpop.permute.xlu0 %504
    %506 = vrot.lane.b32.xlu0 %v320, 80
    %v507 = vpop.permute.xlu0 %506
    %508 = vrot.lane.b32.xlu0 %v324, 80
    %v509 = vpop.permute.xlu0 %508
    %v518 = vpack.c.bf16 %v290, %v290
    %v519 = vpack.c.bf16 %v294, %v294
    %v520 = vpack.c.bf16 %v300, %v300
    %v521 = vpack.c.bf16 %v304, %v304
    %v522 = vpack.c.bf16 %v310, %v310
    %v523 = vpack.c.bf16 %v314, %v314
    %v524 = vpack.c.bf16 %v320, %v320
    %v525 = vpack.c.bf16 %v324, %v324
    %v526 = vpack.c.bf16 %v447, %v447
    %v527 = vpack.c.bf16 %v449, %v449
    %v528 = vpack.c.bf16 %v451, %v451
    %v529 = vpack.c.bf16 %v453, %v453
    %v530 = vpack.c.bf16 %v455, %v455
    %v531 = vpack.c.bf16 %v457, %v457
    %v532 = vpack.c.bf16 %v459, %v459
    %v533 = vpack.c.bf16 %v461, %v461
    %v534 = vpack.c.bf16 %v471, %v471
    %v535 = vpack.c.bf16 %v473, %v473
    %v536 = vpack.c.bf16 %v475, %v475
    %v537 = vpack.c.bf16 %v477, %v477
    %v538 = vpack.c.bf16 %v479, %v479
    %v539 = vpack.c.bf16 %v481, %v481
    %v540 = vpack.c.bf16 %v483, %v483
    %v541 = vpack.c.bf16 %v485, %v485
    %v542 = vpack.c.bf16 %v495, %v495
    %v543 = vpack.c.bf16 %v497, %v497
    %v544 = vpack.c.bf16 %v499, %v499
    %v545 = vpack.c.bf16 %v501, %v501
    %v546 = vpack.c.bf16 %v503, %v503
    %v547 = vpack.c.bf16 %v505, %v505
    %v548 = vpack.c.bf16 %v507, %v507
    %v549 = vpack.c.bf16 %v509, %v509
    %551 = vrot.lane.b32.xlu0 %v406, 64
    %v552 = vpop.permute.xlu0 %551
    %vm553 = vcmask 130048
    %v555 = vsel %vm553, %v406, 0
    %v558 = vsel %vm553, %v552, 0
    %560 = vmatprep.subr.bf16.mxu0 0
    %561 = vmatpush1.bf16.xpose.msra.mxu0 %v558
    %562 = vmatprep.subr.bf16.mxu0 0
    %563 = vmatpush1.bf16.xpose.msra.mxu0 0
    %564 = vmatprep.subr.bf16.mxu0 0
    %565 = vmatpush1.bf16.xpose.msra.mxu0 0
    %566 = vmatprep.subr.bf16.mxu0 0
    %567 = vmatpush1.bf16.xpose.msra.mxu0 0
    %568 = vmatprep.subr.bf16.mxu0 0
    %569 = vmatpush1.bf16.xpose.msra.mxu0 0
    %570 = vmatprep.subr.bf16.mxu0 0
    %571 = vmatpush1.bf16.xpose.msra.mxu0 0
    %572 = vmatprep.subr.bf16.mxu0 0
    %573 = vmatpush1.bf16.xpose.msra.mxu0 0
    %574 = vmatprep.subr.bf16.mxu0 0
    %575 = vmatpush1.bf16.xpose.msra.mxu0 0
    %576 = vmatprep.subr.bf16.mxu0 0
    %577 = vmatpush1.bf16.xpose.msra.mxu0 0
    %578 = vmatprep.subr.bf16.mxu0 0
    %579 = vmatpush1.bf16.xpose.msra.mxu0 0
    %580 = vmatprep.subr.bf16.mxu0 0
    %581 = vmatpush1.bf16.xpose.msra.mxu0 0
    %582 = vmatprep.subr.bf16.mxu0 0
    %583 = vmatpush1.bf16.xpose.msra.mxu0 0
    %584 = vmatprep.subr.bf16.mxu0 0
    %585 = vmatpush1.bf16.xpose.msra.mxu0 0
    %586 = vmatprep.subr.bf16.mxu0 0
    %587 = vmatpush1.bf16.xpose.msra.mxu0 0
    %588 = vmatprep.subr.bf16.mxu0 0
    %589 = vmatpush1.bf16.xpose.msra.mxu0 0
    %590 = vmatprep.subr.bf16.mxu0 0
    %591 = vmatpush1.bf16.xpose.msra.mxu0 0
    %592 = vmatprep.mubr.bf16.mxu0 0
    %593 = vmatmul.mubr.bf16.gmra.mrb[0].mxu0 %v555
    %v594 = vpop.f32.mrb[0].mxu0
    %v595 = vadd.f32 0.0, %v594
    %v596 = vpop.f32.mrb[0].mxu0
    %v597 = vpop.f32.mrb[0].mxu0
    %v598 = vpop.f32.mrb[0].mxu0
    %599 = vdwg.mxu0
    %601 = vrot.lane.b32.xlu0 %v407, 64
    %v602 = vpop.permute.xlu0 %601
    %v604 = vsel %vm553, %v407, 0
    %v607 = vsel %vm553, %v602, 0
    %609 = vmatprep.subr.bf16.mxu0 0
    %610 = vmatpush1.bf16.xpose.msra.mxu0 %v607
    %611 = vmatprep.subr.bf16.mxu0 0
    %612 = vmatpush1.bf16.xpose.msra.mxu0 0
    %613 = vmatprep.subr.bf16.mxu0 0
    %614 = vmatpush1.bf16.xpose.msra.mxu0 0
    %615 = vmatprep.subr.bf16.mxu0 0
    %616 = vmatpush1.bf16.xpose.msra.mxu0 0
    %617 = vmatprep.subr.bf16.mxu0 0
    %618 = vmatpush1.bf16.xpose.msra.mxu0 0
    %619 = vmatprep.subr.bf16.mxu0 0
    %620 = vmatpush1.bf16.xpose.msra.mxu0 0
    %621 = vmatprep.subr.bf16.mxu0 0
    %622 = vmatpush1.bf16.xpose.msra.mxu0 0
    %623 = vmatprep.subr.bf16.mxu0 0
    %624 = vmatpush1.bf16.xpose.msra.mxu0 0
    %625 = vmatprep.subr.bf16.mxu0 0
    %626 = vmatpush1.bf16.xpose.msra.mxu0 0
    %627 = vmatprep.subr.bf16.mxu0 0
    %628 = vmatpush1.bf16.xpose.msra.mxu0 0
    %629 = vmatprep.subr.bf16.mxu0 0
    %630 = vmatpush1.bf16.xpose.msra.mxu0 0
    %631 = vmatprep.subr.bf16.mxu0 0
    %632 = vmatpush1.bf16.xpose.msra.mxu0 0
    %633 = vmatprep.subr.bf16.mxu0 0
    %634 = vmatpush1.bf16.xpose.msra.mxu0 0
    %635 = vmatprep.subr.bf16.mxu0 0
    %636 = vmatpush1.bf16.xpose.msra.mxu0 0
    %637 = vmatprep.subr.bf16.mxu0 0
    %638 = vmatpush1.bf16.xpose.msra.mxu0 0
    %639 = vmatprep.subr.bf16.mxu0 0
    %640 = vmatpush1.bf16.xpose.msra.mxu0 0
    %641 = vmatprep.mubr.bf16.mxu0 0
    %642 = vmatmul.mubr.bf16.gmra.mrb[0].mxu0 %v604
    %v643 = vpop.f32.mrb[0].mxu0
    %v644 = vadd.f32 0.0, %v643
    %v645 = vpop.f32.mrb[0].mxu0
    %v646 = vpop.f32.mrb[0].mxu0
    %v647 = vpop.f32.mrb[0].mxu0
    %648 = vdwg.mxu0
    %650 = vrot.lane.b32.xlu0 %v408, 64
    %v651 = vpop.permute.xlu0 %650
    %v653 = vsel %vm553, %v408, 0
    %v656 = vsel %vm553, %v651, 0
    %658 = vmatprep.subr.bf16.mxu0 0
    %659 = vmatpush1.bf16.xpose.msra.mxu0 %v656
    %660 = vmatprep.subr.bf16.mxu0 0
    %661 = vmatpush1.bf16.xpose.msra.mxu0 0
    %662 = vmatprep.subr.bf16.mxu0 0
    %663 = vmatpush1.bf16.xpose.msra.mxu0 0
    %664 = vmatprep.subr.bf16.mxu0 0
    %665 = vmatpush1.bf16.xpose.msra.mxu0 0
    %666 = vmatprep.subr.bf16.mxu0 0
    %667 = vmatpush1.bf16.xpose.msra.mxu0 0
    %668 = vmatprep.subr.bf16.mxu0 0
    %669 = vmatpush1.bf16.xpose.msra.mxu0 0
    %670 = vmatprep.subr.bf16.mxu0 0
    %671 = vmatpush1.bf16.xpose.msra.mxu0 0
    %672 = vmatprep.subr.bf16.mxu0 0
    %673 = vmatpush1.bf16.xpose.msra.mxu0 0
    %674 = vmatprep.subr.bf16.mxu0 0
    %675 = vmatpush1.bf16.xpose.msra.mxu0 0
    %676 = vmatprep.subr.bf16.mxu0 0
    %677 = vmatpush1.bf16.xpose.msra.mxu0 0
    %678 = vmatprep.subr.bf16.mxu0 0
    %679 = vmatpush1.bf16.xpose.msra.mxu0 0
    %680 = vmatprep.subr.bf16.mxu0 0
    %681 = vmatpush1.bf16.xpose.msra.mxu0 0
    %682 = vmatprep.subr.bf16.mxu0 0
    %683 = vmatpush1.bf16.xpose.msra.mxu0 0
    %684 = vmatprep.subr.bf16.mxu0 0
    %685 = vmatpush1.bf16.xpose.msra.mxu0 0
    %686 = vmatprep.subr.bf16.mxu0 0
    %687 = vmatpush1.bf16.xpose.msra.mxu0 0
    %688 = vmatprep.subr.bf16.mxu0 0
    %689 = vmatpush1.bf16.xpose.msra.mxu0 0
    %690 = vmatprep.mubr.bf16.mxu0 0
    %691 = vmatmul.mubr.bf16.gmra.mrb[0].mxu0 %v653
    %v692 = vpop.f32.mrb[0].mxu0
    %v693 = vadd.f32 0.0, %v692
    %v694 = vpop.f32.mrb[0].mxu0
    %v695 = vpop.f32.mrb[0].mxu0
    %v696 = vpop.f32.mrb[0].mxu0
    %697 = vdwg.mxu0
    %699 = vrot.lane.b32.xlu0 %v409, 64
    %v700 = vpop.permute.xlu0 %699
    %v702 = vsel %vm553, %v409, 0
    %v705 = vsel %vm553, %v700, 0
    %707 = vmatprep.subr.bf16.mxu0 0
    %708 = vmatpush1.bf16.xpose.msra.mxu0 %v705
    %709 = vmatprep.subr.bf16.mxu0 0
    %710 = vmatpush1.bf16.xpose.msra.mxu0 0
    %711 = vmatprep.subr.bf16.mxu0 0
    %712 = vmatpush1.bf16.xpose.msra.mxu0 0
    %713 = vmatprep.subr.bf16.mxu0 0
    %714 = vmatpush1.bf16.xpose.msra.mxu0 0
    %715 = vmatprep.subr.bf16.mxu0 0
    %716 = vmatpush1.bf16.xpose.msra.mxu0 0
    %717 = vmatprep.subr.bf16.mxu0 0
    %718 = vmatpush1.bf16.xpose.msra.mxu0 0
    %719 = vmatprep.subr.bf16.mxu0 0
    %720 = vmatpush1.bf16.xpose.msra.mxu0 0
    %721 = vmatprep.subr.bf16.mxu0 0
    %722 = vmatpush1.bf16.xpose.msra.mxu0 0
    %723 = vmatprep.subr.bf16.mxu0 0
    %724 = vmatpush1.bf16.xpose.msra.mxu0 0
    %725 = vmatprep.subr.bf16.mxu0 0
    %726 = vmatpush1.bf16.xpose.msra.mxu0 0
    %727 = vmatprep.subr.bf16.mxu0 0
    %728 = vmatpush1.bf16.xpose.msra.mxu0 0
    %729 = vmatprep.subr.bf16.mxu0 0
    %730 = vmatpush1.bf16.xpose.msra.mxu0 0
    %731 = vmatprep.subr.bf16.mxu0 0
    %732 = vmatpush1.bf16.xpose.msra.mxu0 0
    %733 = vmatprep.subr.bf16.mxu0 0
    %734 = vmatpush1.bf16.xpose.msra.mxu0 0
    %735 = vmatprep.subr.bf16.mxu0 0
    %736 = vmatpush1.bf16.xpose.msra.mxu0 0
    %737 = vmatprep.subr.bf16.mxu0 0
    %738 = vmatpush1.bf16.xpose.msra.mxu0 0
    %739 = vmatprep.mubr.bf16.mxu0 0
    %740 = vmatmul.mubr.bf16.gmra.mrb[0].mxu0 %v702
    %v741 = vpop.f32.mrb[0].mxu0
    %v742 = vadd.f32 0.0, %v741
    %v743 = vpop.f32.mrb[0].mxu0
    %v744 = vpop.f32.mrb[0].mxu0
    %v745 = vpop.f32.mrb[0].mxu0
    %746 = vdwg.mxu0
    %748 = vrot.lane.b32.xlu0 %v410, 64
    %v749 = vpop.permute.xlu0 %748
    %v751 = vsel %vm553, %v410, 0
    %v754 = vsel %vm553, %v749, 0
    %756 = vmatprep.subr.bf16.mxu0 0
    %757 = vmatpush1.bf16.xpose.msra.mxu0 %v754
    %758 = vmatprep.subr.bf16.mxu0 0
    %759 = vmatpush1.bf16.xpose.msra.mxu0 0
    %760 = vmatprep.subr.bf16.mxu0 0
    %761 = vmatpush1.bf16.xpose.msra.mxu0 0
    %762 = vmatprep.subr.bf16.mxu0 0
    %763 = vmatpush1.bf16.xpose.msra.mxu0 0
    %764 = vmatprep.subr.bf16.mxu0 0
    %765 = vmatpush1.bf16.xpose.msra.mxu0 0
    %766 = vmatprep.subr.bf16.mxu0 0
    %767 = vmatpush1.bf16.xpose.msra.mxu0 0
    %768 = vmatprep.subr.bf16.mxu0 0
    %769 = vmatpush1.bf16.xpose.msra.mxu0 0
    %770 = vmatprep.subr.bf16.mxu0 0
    %771 = vmatpush1.bf16.xpose.msra.mxu0 0
    %772 = vmatprep.subr.bf16.mxu0 0
    %773 = vmatpush1.bf16.xpose.msra.mxu0 0
    %774 = vmatprep.subr.bf16.mxu0 0
    %775 = vmatpush1.bf16.xpose.msra.mxu0 0
    %776 = vmatprep.subr.bf16.mxu0 0
    %777 = vmatpush1.bf16.xpose.msra.mxu0 0
    %778 = vmatprep.subr.bf16.mxu0 0
    %779 = vmatpush1.bf16.xpose.msra.mxu0 0
    %780 = vmatprep.subr.bf16.mxu0 0
    %781 = vmatpush1.bf16.xpose.msra.mxu0 0
    %782 = vmatprep.subr.bf16.mxu0 0
    %783 = vmatpush1.bf16.xpose.msra.mxu0 0
    %784 = vmatprep.subr.bf16.mxu0 0
    %785 = vmatpush1.bf16.xpose.msra.mxu0 0
    %786 = vmatprep.subr.bf16.mxu0 0
    %787 = vmatpush1.bf16.xpose.msra.mxu0 0
    %788 = vmatprep.mubr.bf16.mxu0 0
    %789 = vmatmul.mubr.bf16.gmra.mrb[0].mxu0 %v751
    %v790 = vpop.f32.mrb[0].mxu0
    %v791 = vadd.f32 0.0, %v790
    %v792 = vpop.f32.mrb[0].mxu0
    %v793 = vpop.f32.mrb[0].mxu0
    %v794 = vpop.f32.mrb[0].mxu0
    %795 = vdwg.mxu0
    %797 = vrot.lane.b32.xlu0 %v411, 64
    %v798 = vpop.permute.xlu0 %797
    %v800 = vsel %vm553, %v411, 0
    %v803 = vsel %vm553, %v798, 0
    %805 = vmatprep.subr.bf16.mxu0 0
    %806 = vmatpush1.bf16.xpose.msra.mxu0 %v803
    %807 = vmatprep.subr.bf16.mxu0 0
    %808 = vmatpush1.bf16.xpose.msra.mxu0 0
    %809 = vmatprep.subr.bf16.mxu0 0
    %810 = vmatpush1.bf16.xpose.msra.mxu0 0
    %811 = vmatprep.subr.bf16.mxu0 0
    %812 = vmatpush1.bf16.xpose.msra.mxu0 0
    %813 = vmatprep.subr.bf16.mxu0 0
    %814 = vmatpush1.bf16.xpose.msra.mxu0 0
    %815 = vmatprep.subr.bf16.mxu0 0
    %816 = vmatpush1.bf16.xpose.msra.mxu0 0
    %817 = vmatprep.subr.bf16.mxu0 0
    %818 = vmatpush1.bf16.xpose.msra.mxu0 0
    %819 = vmatprep.subr.bf16.mxu0 0
    %820 = vmatpush1.bf16.xpose.msra.mxu0 0
    %821 = vmatprep.subr.bf16.mxu0 0
    %822 = vmatpush1.bf16.xpose.msra.mxu0 0
    %823 = vmatprep.subr.bf16.mxu0 0
    %824 = vmatpush1.bf16.xpose.msra.mxu0 0
    %825 = vmatprep.subr.bf16.mxu0 0
    %826 = vmatpush1.bf16.xpose.msra.mxu0 0
    %827 = vmatprep.subr.bf16.mxu0 0
    %828 = vmatpush1.bf16.xpose.msra.mxu0 0
    %829 = vmatprep.subr.bf16.mxu0 0
    %830 = vmatpush1.bf16.xpose.msra.mxu0 0
    %831 = vmatprep.subr.bf16.mxu0 0
    %832 = vmatpush1.bf16.xpose.msra.mxu0 0
    %833 = vmatprep.subr.bf16.mxu0 0
    %834 = vmatpush1.bf16.xpose.msra.mxu0 0
    %835 = vmatprep.subr.bf16.mxu0 0
    %836 = vmatpush1.bf16.xpose.msra.mxu0 0
    %837 = vmatprep.mubr.bf16.mxu0 0
    %838 = vmatmul.mubr.bf16.gmra.mrb[0].mxu0 %v800
    %v839 = vpop.f32.mrb[0].mxu0
    %v840 = vadd.f32 0.0, %v839
    %v841 = vpop.f32.mrb[0].mxu0
    %v842 = vpop.f32.mrb[0].mxu0
    %v843 = vpop.f32.mrb[0].mxu0
    %844 = vdwg.mxu0
    %846 = vrot.lane.b32.xlu0 %v412, 64
    %v847 = vpop.permute.xlu0 %846
    %v849 = vsel %vm553, %v412, 0
    %v852 = vsel %vm553, %v847, 0
    %854 = vmatprep.subr.bf16.mxu0 0
    %855 = vmatpush1.bf16.xpose.msra.mxu0 %v852
    %856 = vmatprep.subr.bf16.mxu0 0
    %857 = vmatpush1.bf16.xpose.msra.mxu0 0
    %858 = vmatprep.subr.bf16.mxu0 0
    %859 = vmatpush1.bf16.xpose.msra.mxu0 0
    %860 = vmatprep.subr.bf16.mxu0 0
    %861 = vmatpush1.bf16.xpose.msra.mxu0 0
    %862 = vmatprep.subr.bf16.mxu0 0
    %863 = vmatpush1.bf16.xpose.msra.mxu0 0
    %864 = vmatprep.subr.bf16.mxu0 0
    %865 = vmatpush1.bf16.xpose.msra.mxu0 0
    %866 = vmatprep.subr.bf16.mxu0 0
    %867 = vmatpush1.bf16.xpose.msra.mxu0 0
    %868 = vmatprep.subr.bf16.mxu0 0
    %869 = vmatpush1.bf16.xpose.msra.mxu0 0
    %870 = vmatprep.subr.bf16.mxu0 0
    %871 = vmatpush1.bf16.xpose.msra.mxu0 0
    %872 = vmatprep.subr.bf16.mxu0 0
    %873 = vmatpush1.bf16.xpose.msra.mxu0 0
    %874 = vmatprep.subr.bf16.mxu0 0
    %875 = vmatpush1.bf16.xpose.msra.mxu0 0
    %876 = vmatprep.subr.bf16.mxu0 0
    %877 = vmatpush1.bf16.xpose.msra.mxu0 0
    %878 = vmatprep.subr.bf16.mxu0 0
    %879 = vmatpush1.bf16.xpose.msra.mxu0 0
    %880 = vmatprep.subr.bf16.mxu0 0
    %881 = vmatpush1.bf16.xpose.msra.mxu0 0
    %882 = vmatprep.subr.bf16.mxu0 0
    %883 = vmatpush1.bf16.xpose.msra.mxu0 0
    %884 = vmatprep.subr.bf16.mxu0 0
    %885 = vmatpush1.bf16.xpose.msra.mxu0 0
    %886 = vmatprep.mubr.bf16.mxu0 0
    %887 = vmatmul.mubr.bf16.gmra.mrb[0].mxu0 %v849
    %v888 = vpop.f32.mrb[0].mxu0
    %v889 = vadd.f32 0.0, %v888
    %v890 = vpop.f32.mrb[0].mxu0
    %v891 = vpop.f32.mrb[0].mxu0
    %v892 = vpop.f32.mrb[0].mxu0
    %893 = vdwg.mxu0
    %895 = vrot.lane.b32.xlu0 %v413, 64
    %v896 = vpop.permute.xlu0 %895
    %v898 = vsel %vm553, %v413, 0
    %v901 = vsel %vm553, %v896, 0
    %903 = vmatprep.subr.bf16.mxu0 0
    %904 = vmatpush1.bf16.xpose.msra.mxu0 %v901
    %905 = vmatprep.subr.bf16.mxu0 0
    %906 = vmatpush1.bf16.xpose.msra.mxu0 0
    %907 = vmatprep.subr.bf16.mxu0 0
    %908 = vmatpush1.bf16.xpose.msra.mxu0 0
    %909 = vmatprep.subr.bf16.mxu0 0
    %910 = vmatpush1.bf16.xpose.msra.mxu0 0
    %911 = vmatprep.subr.bf16.mxu0 0
    %912 = vmatpush1.bf16.xpose.msra.mxu0 0
    %913 = vmatprep.subr.bf16.mxu0 0
    %914 = vmatpush1.bf16.xpose.msra.mxu0 0
    %915 = vmatprep.subr.bf16.mxu0 0
    %916 = vmatpush1.bf16.xpose.msra.mxu0 0
    %917 = vmatprep.subr.bf16.mxu0 0
    %918 = vmatpush1.bf16.xpose.msra.mxu0 0
    %919 = vmatprep.subr.bf16.mxu0 0
    %920 = vmatpush1.bf16.xpose.msra.mxu0 0
    %921 = vmatprep.subr.bf16.mxu0 0
    %922 = vmatpush1.bf16.xpose.msra.mxu0 0
    %923 = vmatprep.subr.bf16.mxu0 0
    %924 = vmatpush1.bf16.xpose.msra.mxu0 0
    %925 = vmatprep.subr.bf16.mxu0 0
    %926 = vmatpush1.bf16.xpose.msra.mxu0 0
    %927 = vmatprep.subr.bf16.mxu0 0
    %928 = vmatpush1.bf16.xpose.msra.mxu0 0
    %929 = vmatprep.subr.bf16.mxu0 0
    %930 = vmatpush1.bf16.xpose.msra.mxu0 0
    %931 = vmatprep.subr.bf16.mxu0 0
    %932 = vmatpush1.bf16.xpose.msra.mxu0 0
    %933 = vmatprep.subr.bf16.mxu0 0
    %934 = vmatpush1.bf16.xpose.msra.mxu0 0
    %935 = vmatprep.mubr.bf16.mxu0 0
    %936 = vmatmul.mubr.bf16.gmra.mrb[0].mxu0 %v898
    %v937 = vpop.f32.mrb[0].mxu0
    %v938 = vadd.f32 0.0, %v937
    %v939 = vpop.f32.mrb[0].mxu0
    %v940 = vpop.f32.mrb[0].mxu0
    %v941 = vpop.f32.mrb[0].mxu0
    %942 = vdwg.mxu0
    %944 = vrot.lane.b32.xlu0 %v414, 64
    %v945 = vpop.permute.xlu0 %944
    %v947 = vsel %vm553, %v414, 0
    %v950 = vsel %vm553, %v945, 0
    %952 = vmatprep.subr.bf16.mxu0 0
    %953 = vmatpush1.bf16.xpose.msra.mxu0 %v950
    %954 = vmatprep.subr.bf16.mxu0 0
    %955 = vmatpush1.bf16.xpose.msra.mxu0 0
    %956 = vmatprep.subr.bf16.mxu0 0
    %957 = vmatpush1.bf16.xpose.msra.mxu0 0
    %958 = vmatprep.subr.bf16.mxu0 0
    %959 = vmatpush1.bf16.xpose.msra.mxu0 0
    %960 = vmatprep.subr.bf16.mxu0 0
    %961 = vmatpush1.bf16.xpose.msra.mxu0 0
    %962 = vmatprep.subr.bf16.mxu0 0
    %963 = vmatpush1.bf16.xpose.msra.mxu0 0
    %964 = vmatprep.subr.bf16.mxu0 0
    %965 = vmatpush1.bf16.xpose.msra.mxu0 0
    %966 = vmatprep.subr.bf16.mxu0 0
    %967 = vmatpush1.bf16.xpose.msra.mxu0 0
    %968 = vmatprep.subr.bf16.mxu0 0
    %969 = vmatpush1.bf16.xpose.msra.mxu0 0
    %970 = vmatprep.subr.bf16.mxu0 0
    %971 = vmatpush1.bf16.xpose.msra.mxu0 0
    %972 = vmatprep.subr.bf16.mxu0 0
    %973 = vmatpush1.bf16.xpose.msra.mxu0 0
    %974 = vmatprep.subr.bf16.mxu0 0
    %975 = vmatpush1.bf16.xpose.msra.mxu0 0
    %976 = vmatprep.subr.bf16.mxu0 0
    %977 = vmatpush1.bf16.xpose.msra.mxu0 0
    %978 = vmatprep.subr.bf16.mxu0 0
    %979 = vmatpush1.bf16.xpose.msra.mxu0 0
    %980 = vmatprep.subr.bf16.mxu0 0
    %981 = vmatpush1.bf16.xpose.msra.mxu0 0
    %982 = vmatprep.subr.bf16.mxu0 0
    %983 = vmatpush1.bf16.xpose.msra.mxu0 0
    %984 = vmatprep.mubr.bf16.mxu0 0
    %985 = vmatmul.mubr.bf16.gmra.mrb[0].mxu0 %v947
    %v986 = vpop.f32.mrb[0].mxu0
    %v987 = vadd.f32 0.0, %v986
    %v988 = vpop.f32.mrb[0].mxu0
    %v989 = vpop.f32.mrb[0].mxu0
    %v990 = vpop.f32.mrb[0].mxu0
    %991 = vdwg.mxu0
    %993 = vrot.lane.b32.xlu0 %v415, 64
    %v994 = vpop.permute.xlu0 %993
    %v996 = vsel %vm553, %v415, 0
    %v999 = vsel %vm553, %v994, 0
    %1001 = vmatprep.subr.bf16.mxu0 0
    %1002 = vmatpush1.bf16.xpose.msra.mxu0 %v999
    %1003 = vmatprep.subr.bf16.mxu0 0
    %1004 = vmatpush1.bf16.xpose.msra.mxu0 0
    %1005 = vmatprep.subr.bf16.mxu0 0
    %1006 = vmatpush1.bf16.xpose.msra.mxu0 0
    %1007 = vmatprep.subr.bf16.mxu0 0
    %1008 = vmatpush1.bf16.xpose.msra.mxu0 0
    %1009 = vmatprep.subr.bf16.mxu0 0
    %1010 = vmatpush1.bf16.xpose.msra.mxu0 0
    %1011 = vmatprep.subr.bf16.mxu0 0
    %1012 = vmatpush1.bf16.xpose.msra.mxu0 0
    %1013 = vmatprep.subr.bf16.mxu0 0
    %1014 = vmatpush1.bf16.xpose.msra.mxu0 0
    %1015 = vmatprep.subr.bf16.mxu0 0
    %1016 = vmatpush1.bf16.xpose.msra.mxu0 0
    %1017 = vmatprep.subr.bf16.mxu0 0
    %1018 = vmatpush1.bf16.xpose.msra.mxu0 0
    %1019 = vmatprep.subr.bf16.mxu0 0
    %1020 = vmatpush1.bf16.xpose.msra.mxu0 0
    %1021 = vmatprep.subr.bf16.mxu0 0
    %1022 = vmatpush1.bf16.xpose.msra.mxu0 0
    %1023 = vmatprep.subr.bf16.mxu0 0
    %1024 = vmatpush1.bf16.xpose.msra.mxu0 0
    %1025 = vmatprep.subr.bf16.mxu0 0
    %1026 = vmatpush1.bf16.xpose.msra.mxu0 0
    %1027 = vmatprep.subr.bf16.mxu0 0
    %1028 = vmatpush1.bf16.xpose.msra.mxu0 0
    %1029 = vmatprep.subr.bf16.mxu0 0
    %1030 = vmatpush1.bf16.xpose.msra.mxu0 0
    %1031 = vmatprep.subr.bf16.mxu0 0
    %1032 = vmatpush1.bf16.xpose.msra.mxu0 0
    %1033 = vmatprep.mubr.bf16.mxu0 0
    %1034 = vmatmul.mubr.bf16.gmra.mrb[0].mxu0 %v996
    %v1035 = vpop.f32.mrb[0].mxu0
    %v1036 = vadd.f32 0.0, %v1035
    %v1037 = vpop.f32.mrb[0].mxu0
    %v1038 = vpop.f32.mrb[0].mxu0
    %v1039 = vpop.f32.mrb[0].mxu0
    %1040 = vdwg.mxu0
    %1042 = vrot.lane.b32.xlu0 %v416, 64
    %v1043 = vpop.permute.xlu0 %1042
    %v1045 = vsel %vm553, %v416, 0
    %v1048 = vsel %vm553, %v1043, 0
    %1050 = vmatprep.subr.bf16.mxu0 0
    %1051 = vmatpush1.bf16.xpose.msra.mxu0 %v1048
    %1052 = vmatprep.subr.bf16.mxu0 0
    %1053 = vmatpush1.bf16.xpose.msra.mxu0 0
    %1054 = vmatprep.subr.bf16.mxu0 0
    %1055 = vmatpush1.bf16.xpose.msra.mxu0 0
    %1056 = vmatprep.subr.bf16.mxu0 0
    %1057 = vmatpush1.bf16.xpose.msra.mxu0 0
    %1058 = vmatprep.subr.bf16.mxu0 0
    %1059 = vmatpush1.bf16.xpose.msra.mxu0 0
    %1060 = vmatprep.subr.bf16.mxu0 0
    %1061 = vmatpush1.bf16.xpose.msra.mxu0 0
    %1062 = vmatprep.subr.bf16.mxu0 0
    %1063 = vmatpush1.bf16.xpose.msra.mxu0 0
    %1064 = vmatprep.subr.bf16.mxu0 0
    %1065 = vmatpush1.bf16.xpose.msra.mxu0 0
    %1066 = vmatprep.subr.bf16.mxu0 0
    %1067 = vmatpush1.bf16.xpose.msra.mxu0 0
    %1068 = vmatprep.subr.bf16.mxu0 0
    %1069 = vmatpush1.bf16.xpose.msra.mxu0 0
    %1070 = vmatprep.subr.bf16.mxu0 0
    %1071 = vmatpush1.bf16.xpose.msra.mxu0 0
    %1072 = vmatprep.subr.bf16.mxu0 0
    %1073 = vmatpush1.bf16.xpose.msra.mxu0 0
    %1074 = vmatprep.subr.bf16.mxu0 0
    %1075 = vmatpush1.bf16.xpose.msra.mxu0 0
    %1076 = vmatprep.subr.bf16.mxu0 0
    %1077 = vmatpush1.bf16.xpose.msra.mxu0 0
    %1078 = vmatprep.subr.bf16.mxu0 0
    %1079 = vmatpush1.bf16.xpose.msra.mxu0 0
    %1080 = vmatprep.subr.bf16.mxu0 0
    %1081 = vmatpush1.bf16.xpose.msra.mxu0 0
    %1082 = vmatprep.mubr.bf16.mxu0 0
    %1083 = vmatmul.mubr.bf16.gmra.mrb[0].mxu0 %v1045
    %v1084 = vpop.f32.mrb[0].mxu0
    %v1085 = vadd.f32 0.0, %v1084
    %v1086 = vpop.f32.mrb[0].mxu0
    %v1087 = vpop.f32.mrb[0].mxu0
    %v1088 = vpop.f32.mrb[0].mxu0
    %1089 = vdwg.mxu0
    %1091 = vrot.lane.b32.xlu0 %v417, 64
    %v1092 = vpop.permute.xlu0 %1091
    %v1094 = vsel %vm553, %v417, 0
    %v1097 = vsel %vm553, %v1092, 0
    %1099 = vmatprep.subr.bf16.mxu0 0
    %1100 = vmatpush1.bf16.xpose.msra.mxu0 %v1097
    %1101 = vmatprep.subr.bf16.mxu0 0
    %1102 = vmatpush1.bf16.xpose.msra.mxu0 0
    %1103 = vmatprep.subr.bf16.mxu0 0
    %1104 = vmatpush1.bf16.xpose.msra.mxu0 0
    %1105 = vmatprep.subr.bf16.mxu0 0
    %1106 = vmatpush1.bf16.xpose.msra.mxu0 0
    %1107 = vmatprep.subr.bf16.mxu0 0
    %1108 = vmatpush1.bf16.xpose.msra.mxu0 0
    %1109 = vmatprep.subr.bf16.mxu0 0
    %1110 = vmatpush1.bf16.xpose.msra.mxu0 0
    %1111 = vmatprep.subr.bf16.mxu0 0
    %1112 = vmatpush1.bf16.xpose.msra.mxu0 0
    %1113 = vmatprep.subr.bf16.mxu0 0
    %1114 = vmatpush1.bf16.xpose.msra.mxu0 0
    %1115 = vmatprep.subr.bf16.mxu0 0
    %1116 = vmatpush1.bf16.xpose.msra.mxu0 0
    %1117 = vmatprep.subr.bf16.mxu0 0
    %1118 = vmatpush1.bf16.xpose.msra.mxu0 0
    %1119 = vmatprep.subr.bf16.mxu0 0
    %1120 = vmatpush1.bf16.xpose.msra.mxu0 0
    %1121 = vmatprep.subr.bf16.mxu0 0
    %1122 = vmatpush1.bf16.xpose.msra.mxu0 0
    %1123 = vmatprep.subr.bf16.mxu0 0
    %1124 = vmatpush1.bf16.xpose.msra.mxu0 0
    %1125 = vmatprep.subr.bf16.mxu0 0
    %1126 = vmatpush1.bf16.xpose.msra.mxu0 0
    %1127 = vmatprep.subr.bf16.mxu0 0
    %1128 = vmatpush1.bf16.xpose.msra.mxu0 0
    %1129 = vmatprep.subr.bf16.mxu0 0
    %1130 = vmatpush1.bf16.xpose.msra.mxu0 0
    %1131 = vmatprep.mubr.bf16.mxu0 0
    %1132 = vmatmul.mubr.bf16.gmra.mrb[0].mxu0 %v1094
    %v1133 = vpop.f32.mrb[0].mxu0
    %v1134 = vadd.f32 0.0, %v1133
    %v1135 = vpop.f32.mrb[0].mxu0
    %v1136 = vpop.f32.mrb[0].mxu0
    %v1137 = vpop.f32.mrb[0].mxu0
    %1138 = vdwg.mxu0
    %1140 = vrot.lane.b32.xlu0 %v418, 64
    %v1141 = vpop.permute.xlu0 %1140
    %v1143 = vsel %vm553, %v418, 0
    %v1146 = vsel %vm553, %v1141, 0
    %1148 = vmatprep.subr.bf16.mxu0 0
    %1149 = vmatpush1.bf16.xpose.msra.mxu0 %v1146
    %1150 = vmatprep.subr.bf16.mxu0 0
    %1151 = vmatpush1.bf16.xpose.msra.mxu0 0
    %1152 = vmatprep.subr.bf16.mxu0 0
    %1153 = vmatpush1.bf16.xpose.msra.mxu0 0
    %1154 = vmatprep.subr.bf16.mxu0 0
    %1155 = vmatpush1.bf16.xpose.msra.mxu0 0
    %1156 = vmatprep.subr.bf16.mxu0 0
    %1157 = vmatpush1.bf16.xpose.msra.mxu0 0
    %1158 = vmatprep.subr.bf16.mxu0 0
    %1159 = vmatpush1.bf16.xpose.msra.mxu0 0
    %1160 = vmatprep.subr.bf16.mxu0 0
    %1161 = vmatpush1.bf16.xpose.msra.mxu0 0
    %1162 = vmatprep.subr.bf16.mxu0 0
    %1163 = vmatpush1.bf16.xpose.msra.mxu0 0
    %1164 = vmatprep.subr.bf16.mxu0 0
    %1165 = vmatpush1.bf16.xpose.msra.mxu0 0
    %1166 = vmatprep.subr.bf16.mxu0 0
    %1167 = vmatpush1.bf16.xpose.msra.mxu0 0
    %1168 = vmatprep.subr.bf16.mxu0 0
    %1169 = vmatpush1.bf16.xpose.msra.mxu0 0
    %1170 = vmatprep.subr.bf16.mxu0 0
    %1171 = vmatpush1.bf16.xpose.msra.mxu0 0
    %1172 = vmatprep.subr.bf16.mxu0 0
    %1173 = vmatpush1.bf16.xpose.msra.mxu0 0
    %1174 = vmatprep.subr.bf16.mxu0 0
    %1175 = vmatpush1.bf16.xpose.msra.mxu0 0
    %1176 = vmatprep.subr.bf16.mxu0 0
    %1177 = vmatpush1.bf16.xpose.msra.mxu0 0
    %1178 = vmatprep.subr.bf16.mxu0 0
    %1179 = vmatpush1.bf16.xpose.msra.mxu0 0
    %1180 = vmatprep.mubr.bf16.mxu0 0
    %1181 = vmatmul.mubr.bf16.gmra.mrb[0].mxu0 %v1143
    %v1182 = vpop.f32.mrb[0].mxu0
    %v1183 = vadd.f32 0.0, %v1182
    %v1184 = vpop.f32.mrb[0].mxu0
    %v1185 = vpop.f32.mrb[0].mxu0
    %v1186 = vpop.f32.mrb[0].mxu0
    %1187 = vdwg.mxu0
    %1189 = vrot.lane.b32.xlu0 %v419, 64
    %v1190 = vpop.permute.xlu0 %1189
    %v1192 = vsel %vm553, %v419, 0
    %v1195 = vsel %vm553, %v1190, 0
    %1197 = vmatprep.subr.bf16.mxu0 0
    %1198 = vmatpush1.bf16.xpose.msra.mxu0 %v1195
    %1199 = vmatprep.subr.bf16.mxu0 0
    %1200 = vmatpush1.bf16.xpose.msra.mxu0 0
    %1201 = vmatprep.subr.bf16.mxu0 0
    %1202 = vmatpush1.bf16.xpose.msra.mxu0 0
    %1203 = vmatprep.subr.bf16.mxu0 0
    %1204 = vmatpush1.bf16.xpose.msra.mxu0 0
    %1205 = vmatprep.subr.bf16.mxu0 0
    %1206 = vmatpush1.bf16.xpose.msra.mxu0 0
    %1207 = vmatprep.subr.bf16.mxu0 0
    %1208 = vmatpush1.bf16.xpose.msra.mxu0 0
    %1209 = vmatprep.subr.bf16.mxu0 0
    %1210 = vmatpush1.bf16.xpose.msra.mxu0 0
    %1211 = vmatprep.subr.bf16.mxu0 0
    %1212 = vmatpush1.bf16.xpose.msra.mxu0 0
    %1213 = vmatprep.subr.bf16.mxu0 0
    %1214 = vmatpush1.bf16.xpose.msra.mxu0 0
    %1215 = vmatprep.subr.bf16.mxu0 0
    %1216 = vmatpush1.bf16.xpose.msra.mxu0 0
    %1217 = vmatprep.subr.bf16.mxu0 0
    %1218 = vmatpush1.bf16.xpose.msra.mxu0 0
    %1219 = vmatprep.subr.bf16.mxu0 0
    %1220 = vmatpush1.bf16.xpose.msra.mxu0 0
    %1221 = vmatprep.subr.bf16.mxu0 0
    %1222 = vmatpush1.bf16.xpose.msra.mxu0 0
    %1223 = vmatprep.subr.bf16.mxu0 0
    %1224 = vmatpush1.bf16.xpose.msra.mxu0 0
    %1225 = vmatprep.subr.bf16.mxu0 0
    %1226 = vmatpush1.bf16.xpose.msra.mxu0 0
    %1227 = vmatprep.subr.bf16.mxu0 0
    %1228 = vmatpush1.bf16.xpose.msra.mxu0 0
    %1229 = vmatprep.mubr.bf16.mxu0 0
    %1230 = vmatmul.mubr.bf16.gmra.mrb[0].mxu0 %v1192
    %v1231 = vpop.f32.mrb[0].mxu0
    %v1232 = vadd.f32 0.0, %v1231
    %v1233 = vpop.f32.mrb[0].mxu0
    %v1234 = vpop.f32.mrb[0].mxu0
    %v1235 = vpop.f32.mrb[0].mxu0
    %1236 = vdwg.mxu0
    %1238 = vrot.lane.b32.xlu0 %v420, 64
    %v1239 = vpop.permute.xlu0 %1238
    %v1241 = vsel %vm553, %v420, 0
    %v1244 = vsel %vm553, %v1239, 0
    %1246 = vmatprep.subr.bf16.mxu0 0
    %1247 = vmatpush1.bf16.xpose.msra.mxu0 %v1244
    %1248 = vmatprep.subr.bf16.mxu0 0
    %1249 = vmatpush1.bf16.xpose.msra.mxu0 0
    %1250 = vmatprep.subr.bf16.mxu0 0
    %1251 = vmatpush1.bf16.xpose.msra.mxu0 0
    %1252 = vmatprep.subr.bf16.mxu0 0
    %1253 = vmatpush1.bf16.xpose.msra.mxu0 0
    %1254 = vmatprep.subr.bf16.mxu0 0
    %1255 = vmatpush1.bf16.xpose.msra.mxu0 0
    %1256 = vmatprep.subr.bf16.mxu0 0
    %1257 = vmatpush1.bf16.xpose.msra.mxu0 0
    %1258 = vmatprep.subr.bf16.mxu0 0
    %1259 = vmatpush1.bf16.xpose.msra.mxu0 0
    %1260 = vmatprep.subr.bf16.mxu0 0
    %1261 = vmatpush1.bf16.xpose.msra.mxu0 0
    %1262 = vmatprep.subr.bf16.mxu0 0
    %1263 = vmatpush1.bf16.xpose.msra.mxu0 0
    %1264 = vmatprep.subr.bf16.mxu0 0
    %1265 = vmatpush1.bf16.xpose.msra.mxu0 0
    %1266 = vmatprep.subr.bf16.mxu0 0
    %1267 = vmatpush1.bf16.xpose.msra.mxu0 0
    %1268 = vmatprep.subr.bf16.mxu0 0
    %1269 = vmatpush1.bf16.xpose.msra.mxu0 0
    %1270 = vmatprep.subr.bf16.mxu0 0
    %1271 = vmatpush1.bf16.xpose.msra.mxu0 0
    %1272 = vmatprep.subr.bf16.mxu0 0
    %1273 = vmatpush1.bf16.xpose.msra.mxu0 0
    %1274 = vmatprep.subr.bf16.mxu0 0
    %1275 = vmatpush1.bf16.xpose.msra.mxu0 0
    %1276 = vmatprep.subr.bf16.mxu0 0
    %1277 = vmatpush1.bf16.xpose.msra.mxu0 0
    %1278 = vmatprep.mubr.bf16.mxu0 0
    %1279 = vmatmul.mubr.bf16.gmra.mrb[0].mxu0 %v1241
    %v1280 = vpop.f32.mrb[0].mxu0
    %v1281 = vadd.f32 0.0, %v1280
    %v1282 = vpop.f32.mrb[0].mxu0
    %v1283 = vpop.f32.mrb[0].mxu0
    %v1284 = vpop.f32.mrb[0].mxu0
    %1285 = vdwg.mxu0
    %1287 = vrot.lane.b32.xlu0 %v421, 64
    %v1288 = vpop.permute.xlu0 %1287
    %v1290 = vsel %vm553, %v421, 0
    %v1293 = vsel %vm553, %v1288, 0
    %1295 = vmatprep.subr.bf16.mxu0 0
    %1296 = vmatpush1.bf16.xpose.msra.mxu0 %v1293
    %1297 = vmatprep.subr.bf16.mxu0 0
    %1298 = vmatpush1.bf16.xpose.msra.mxu0 0
    %1299 = vmatprep.subr.bf16.mxu0 0
    %1300 = vmatpush1.bf16.xpose.msra.mxu0 0
    %1301 = vmatprep.subr.bf16.mxu0 0
    %1302 = vmatpush1.bf16.xpose.msra.mxu0 0
    %1303 = vmatprep.subr.bf16.mxu0 0
    %1304 = vmatpush1.bf16.xpose.msra.mxu0 0
    %1305 = vmatprep.subr.bf16.mxu0 0
    %1306 = vmatpush1.bf16.xpose.msra.mxu0 0
    %1307 = vmatprep.subr.bf16.mxu0 0
    %1308 = vmatpush1.bf16.xpose.msra.mxu0 0
    %1309 = vmatprep.subr.bf16.mxu0 0
    %1310 = vmatpush1.bf16.xpose.msra.mxu0 0
    %1311 = vmatprep.subr.bf16.mxu0 0
    %1312 = vmatpush1.bf16.xpose.msra.mxu0 0
    %1313 = vmatprep.subr.bf16.mxu0 0
    %1314 = vmatpush1.bf16.xpose.msra.mxu0 0
    %1315 = vmatprep.subr.bf16.mxu0 0
    %1316 = vmatpush1.bf16.xpose.msra.mxu0 0
    %1317 = vmatprep.subr.bf16.mxu0 0
    %1318 = vmatpush1.bf16.xpose.msra.mxu0 0
    %1319 = vmatprep.subr.bf16.mxu0 0
    %1320 = vmatpush1.bf16.xpose.msra.mxu0 0
    %1321 = vmatprep.subr.bf16.mxu0 0
    %1322 = vmatpush1.bf16.xpose.msra.mxu0 0
    %1323 = vmatprep.subr.bf16.mxu0 0
    %1324 = vmatpush1.bf16.xpose.msra.mxu0 0
    %1325 = vmatprep.subr.bf16.mxu0 0
    %1326 = vmatpush1.bf16.xpose.msra.mxu0 0
    %1327 = vmatprep.mubr.bf16.mxu0 0
    %1328 = vmatmul.mubr.bf16.gmra.mrb[0].mxu0 %v1290
    %v1329 = vpop.f32.mrb[0].mxu0
    %v1330 = vadd.f32 0.0, %v1329
    %v1331 = vpop.f32.mrb[0].mxu0
    %v1332 = vpop.f32.mrb[0].mxu0
    %v1333 = vpop.f32.mrb[0].mxu0
    %1334 = vdwg.mxu0
    %1336 = vrot.lane.b32.xlu0 %v422, 64
    %v1337 = vpop.permute.xlu0 %1336
    %v1339 = vsel %vm553, %v422, 0
    %v1342 = vsel %vm553, %v1337, 0
    %1344 = vmatprep.subr.bf16.mxu0 0
    %1345 = vmatpush1.bf16.xpose.msra.mxu0 %v1342
    %1346 = vmatprep.subr.bf16.mxu0 0
    %1347 = vmatpush1.bf16.xpose.msra.mxu0 0
    %1348 = vmatprep.subr.bf16.mxu0 0
    %1349 = vmatpush1.bf16.xpose.msra.mxu0 0
    %1350 = vmatprep.subr.bf16.mxu0 0
    %1351 = vmatpush1.bf16.xpose.msra.mxu0 0
    %1352 = vmatprep.subr.bf16.mxu0 0
    %1353 = vmatpush1.bf16.xpose.msra.mxu0 0
    %1354 = vmatprep.subr.bf16.mxu0 0
    %1355 = vmatpush1.bf16.xpose.msra.mxu0 0
    %1356 = vmatprep.subr.bf16.mxu0 0
    %1357 = vmatpush1.bf16.xpose.msra.mxu0 0
    %1358 = vmatprep.subr.bf16.mxu0 0
    %1359 = vmatpush1.bf16.xpose.msra.mxu0 0
    %1360 = vmatprep.subr.bf16.mxu0 0
    %1361 = vmatpush1.bf16.xpose.msra.mxu0 0
    %1362 = vmatprep.subr.bf16.mxu0 0
    %1363 = vmatpush1.bf16.xpose.msra.mxu0 0
    %1364 = vmatprep.subr.bf16.mxu0 0
    %1365 = vmatpush1.bf16.xpose.msra.mxu0 0
    %1366 = vmatprep.subr.bf16.mxu0 0
    %1367 = vmatpush1.bf16.xpose.msra.mxu0 0
    %1368 = vmatprep.subr.bf16.mxu0 0
    %1369 = vmatpush1.bf16.xpose.msra.mxu0 0
    %1370 = vmatprep.subr.bf16.mxu0 0
    %1371 = vmatpush1.bf16.xpose.msra.mxu0 0
    %1372 = vmatprep.subr.bf16.mxu0 0
    %1373 = vmatpush1.bf16.xpose.msra.mxu0 0
    %1374 = vmatprep.subr.bf16.mxu0 0
    %1375 = vmatpush1.bf16.xpose.msra.mxu0 0
    %1376 = vmatprep.mubr.bf16.mxu0 0
    %1377 = vmatmul.mubr.bf16.gmra.mrb[0].mxu0 %v1339
    %v1378 = vpop.f32.mrb[0].mxu0
    %v1379 = vadd.f32 0.0, %v1378
    %v1380 = vpop.f32.mrb[0].mxu0
    %v1381 = vpop.f32.mrb[0].mxu0
    %v1382 = vpop.f32.mrb[0].mxu0
    %1383 = vdwg.mxu0
    %1385 = vrot.lane.b32.xlu0 %v423, 64
    %v1386 = vpop.permute.xlu0 %1385
    %v1388 = vsel %vm553, %v423, 0
    %v1391 = vsel %vm553, %v1386, 0
    %1393 = vmatprep.subr.bf16.mxu0 0
    %1394 = vmatpush1.bf16.xpose.msra.mxu0 %v1391
    %1395 = vmatprep.subr.bf16.mxu0 0
    %1396 = vmatpush1.bf16.xpose.msra.mxu0 0
    %1397 = vmatprep.subr.bf16.mxu0 0
    %1398 = vmatpush1.bf16.xpose.msra.mxu0 0
    %1399 = vmatprep.subr.bf16.mxu0 0
    %1400 = vmatpush1.bf16.xpose.msra.mxu0 0
    %1401 = vmatprep.subr.bf16.mxu0 0
    %1402 = vmatpush1.bf16.xpose.msra.mxu0 0
    %1403 = vmatprep.subr.bf16.mxu0 0
    %1404 = vmatpush1.bf16.xpose.msra.mxu0 0
    %1405 = vmatprep.subr.bf16.mxu0 0
    %1406 = vmatpush1.bf16.xpose.msra.mxu0 0
    %1407 = vmatprep.subr.bf16.mxu0 0
    %1408 = vmatpush1.bf16.xpose.msra.mxu0 0
    %1409 = vmatprep.subr.bf16.mxu0 0
    %1410 = vmatpush1.bf16.xpose.msra.mxu0 0
    %1411 = vmatprep.subr.bf16.mxu0 0
    %1412 = vmatpush1.bf16.xpose.msra.mxu0 0
    %1413 = vmatprep.subr.bf16.mxu0 0
    %1414 = vmatpush1.bf16.xpose.msra.mxu0 0
    %1415 = vmatprep.subr.bf16.mxu0 0
    %1416 = vmatpush1.bf16.xpose.msra.mxu0 0
    %1417 = vmatprep.subr.bf16.mxu0 0
    %1418 = vmatpush1.bf16.xpose.msra.mxu0 0
    %1419 = vmatprep.subr.bf16.mxu0 0
    %1420 = vmatpush1.bf16.xpose.msra.mxu0 0
    %1421 = vmatprep.subr.bf16.mxu0 0
    %1422 = vmatpush1.bf16.xpose.msra.mxu0 0
    %1423 = vmatprep.subr.bf16.mxu0 0
    %1424 = vmatpush1.bf16.xpose.msra.mxu0 0
    %1425 = vmatprep.mubr.bf16.mxu0 0
    %1426 = vmatmul.mubr.bf16.gmra.mrb[0].mxu0 %v1388
    %v1427 = vpop.f32.mrb[0].mxu0
    %v1428 = vadd.f32 0.0, %v1427
    %v1429 = vpop.f32.mrb[0].mxu0
    %v1430 = vpop.f32.mrb[0].mxu0
    %v1431 = vpop.f32.mrb[0].mxu0
    %1432 = vdwg.mxu0
    %1434 = vrot.lane.b32.xlu0 %v424, 64
    %v1435 = vpop.permute.xlu0 %1434
    %v1437 = vsel %vm553, %v424, 0
    %v1440 = vsel %vm553, %v1435, 0
    %1442 = vmatprep.subr.bf16.mxu0 0
    %1443 = vmatpush1.bf16.xpose.msra.mxu0 %v1440
    %1444 = vmatprep.subr.bf16.mxu0 0
    %1445 = vmatpush1.bf16.xpose.msra.mxu0 0
    %1446 = vmatprep.subr.bf16.mxu0 0
    %1447 = vmatpush1.bf16.xpose.msra.mxu0 0
    %1448 = vmatprep.subr.bf16.mxu0 0
    %1449 = vmatpush1.bf16.xpose.msra.mxu0 0
    %1450 = vmatprep.subr.bf16.mxu0 0
    %1451 = vmatpush1.bf16.xpose.msra.mxu0 0
    %1452 = vmatprep.subr.bf16.mxu0 0
    %1453 = vmatpush1.bf16.xpose.msra.mxu0 0
    %1454 = vmatprep.subr.bf16.mxu0 0
    %1455 = vmatpush1.bf16.xpose.msra.mxu0 0
    %1456 = vmatprep.subr.bf16.mxu0 0
    %1457 = vmatpush1.bf16.xpose.msra.mxu0 0
    %1458 = vmatprep.subr.bf16.mxu0 0
    %1459 = vmatpush1.bf16.xpose.msra.mxu0 0
    %1460 = vmatprep.subr.bf16.mxu0 0
    %1461 = vmatpush1.bf16.xpose.msra.mxu0 0
    %1462 = vmatprep.subr.bf16.mxu0 0
    %1463 = vmatpush1.bf16.xpose.msra.mxu0 0
    %1464 = vmatprep.subr.bf16.mxu0 0
    %1465 = vmatpush1.bf16.xpose.msra.mxu0 0
    %1466 = vmatprep.subr.bf16.mxu0 0
    %1467 = vmatpush1.bf16.xpose.msra.mxu0 0
    %1468 = vmatprep.subr.bf16.mxu0 0
    %1469 = vmatpush1.bf16.xpose.msra.mxu0 0
    %1470 = vmatprep.subr.bf16.mxu0 0
    %1471 = vmatpush1.bf16.xpose.msra.mxu0 0
    %1472 = vmatprep.subr.bf16.mxu0 0
    %1473 = vmatpush1.bf16.xpose.msra.mxu0 0
    %1474 = vmatprep.mubr.bf16.mxu0 0
    %1475 = vmatmul.mubr.bf16.gmra.mrb[0].mxu0 %v1437
    %v1476 = vpop.f32.mrb[0].mxu0
    %v1477 = vadd.f32 0.0, %v1476
    %v1478 = vpop.f32.mrb[0].mxu0
    %v1479 = vpop.f32.mrb[0].mxu0
    %v1480 = vpop.f32.mrb[0].mxu0
    %1481 = vdwg.mxu0
    %1483 = vrot.lane.b32.xlu0 %v425, 64
    %v1484 = vpop.permute.xlu0 %1483
    %v1486 = vsel %vm553, %v425, 0
    %v1489 = vsel %vm553, %v1484, 0
    %1491 = vmatprep.subr.bf16.mxu0 0
    %1492 = vmatpush1.bf16.xpose.msra.mxu0 %v1489
    %1493 = vmatprep.subr.bf16.mxu0 0
    %1494 = vmatpush1.bf16.xpose.msra.mxu0 0
    %1495 = vmatprep.subr.bf16.mxu0 0
    %1496 = vmatpush1.bf16.xpose.msra.mxu0 0
    %1497 = vmatprep.subr.bf16.mxu0 0
    %1498 = vmatpush1.bf16.xpose.msra.mxu0 0
    %1499 = vmatprep.subr.bf16.mxu0 0
    %1500 = vmatpush1.bf16.xpose.msra.mxu0 0
    %1501 = vmatprep.subr.bf16.mxu0 0
    %1502 = vmatpush1.bf16.xpose.msra.mxu0 0
    %1503 = vmatprep.subr.bf16.mxu0 0
    %1504 = vmatpush1.bf16.xpose.msra.mxu0 0
    %1505 = vmatprep.subr.bf16.mxu0 0
    %1506 = vmatpush1.bf16.xpose.msra.mxu0 0
    %1507 = vmatprep.subr.bf16.mxu0 0
    %1508 = vmatpush1.bf16.xpose.msra.mxu0 0
    %1509 = vmatprep.subr.bf16.mxu0 0
    %1510 = vmatpush1.bf16.xpose.msra.mxu0 0
    %1511 = vmatprep.subr.bf16.mxu0 0
    %1512 = vmatpush1.bf16.xpose.msra.mxu0 0
    %1513 = vmatprep.subr.bf16.mxu0 0
    %1514 = vmatpush1.bf16.xpose.msra.mxu0 0
    %1515 = vmatprep.subr.bf16.mxu0 0
    %1516 = vmatpush1.bf16.xpose.msra.mxu0 0
    %1517 = vmatprep.subr.bf16.mxu0 0
    %1518 = vmatpush1.bf16.xpose.msra.mxu0 0
    %1519 = vmatprep.subr.bf16.mxu0 0
    %1520 = vmatpush1.bf16.xpose.msra.mxu0 0
    %1521 = vmatprep.subr.bf16.mxu0 0
    %1522 = vmatpush1.bf16.xpose.msra.mxu0 0
    %1523 = vmatprep.mubr.bf16.mxu0 0
    %1524 = vmatmul.mubr.bf16.gmra.mrb[0].mxu0 %v1486
    %v1525 = vpop.f32.mrb[0].mxu0
    %v1526 = vadd.f32 0.0, %v1525
    %v1527 = vpop.f32.mrb[0].mxu0
    %v1528 = vpop.f32.mrb[0].mxu0
    %v1529 = vpop.f32.mrb[0].mxu0
    %1530 = vdwg.mxu0
    %1532 = vrot.lane.b32.xlu0 %v426, 64
    %v1533 = vpop.permute.xlu0 %1532
    %v1535 = vsel %vm553, %v426, 0
    %v1538 = vsel %vm553, %v1533, 0
    %1540 = vmatprep.subr.bf16.mxu0 0
    %1541 = vmatpush1.bf16.xpose.msra.mxu0 %v1538
    %1542 = vmatprep.subr.bf16.mxu0 0
    %1543 = vmatpush1.bf16.xpose.msra.mxu0 0
    %1544 = vmatprep.subr.bf16.mxu0 0
    %1545 = vmatpush1.bf16.xpose.msra.mxu0 0
    %1546 = vmatprep.subr.bf16.mxu0 0
    %1547 = vmatpush1.bf16.xpose.msra.mxu0 0
    %1548 = vmatprep.subr.bf16.mxu0 0
    %1549 = vmatpush1.bf16.xpose.msra.mxu0 0
    %1550 = vmatprep.subr.bf16.mxu0 0
    %1551 = vmatpush1.bf16.xpose.msra.mxu0 0
    %1552 = vmatprep.subr.bf16.mxu0 0
    %1553 = vmatpush1.bf16.xpose.msra.mxu0 0
    %1554 = vmatprep.subr.bf16.mxu0 0
    %1555 = vmatpush1.bf16.xpose.msra.mxu0 0
    %1556 = vmatprep.subr.bf16.mxu0 0
    %1557 = vmatpush1.bf16.xpose.msra.mxu0 0
    %1558 = vmatprep.subr.bf16.mxu0 0
    %1559 = vmatpush1.bf16.xpose.msra.mxu0 0
    %1560 = vmatprep.subr.bf16.mxu0 0
    %1561 = vmatpush1.bf16.xpose.msra.mxu0 0
    %1562 = vmatprep.subr.bf16.mxu0 0
    %1563 = vmatpush1.bf16.xpose.msra.mxu0 0
    %1564 = vmatprep.subr.bf16.mxu0 0
    %1565 = vmatpush1.bf16.xpose.msra.mxu0 0
    %1566 = vmatprep.subr.bf16.mxu0 0
    %1567 = vmatpush1.bf16.xpose.msra.mxu0 0
    %1568 = vmatprep.subr.bf16.mxu0 0
    %1569 = vmatpush1.bf16.xpose.msra.mxu0 0
    %1570 = vmatprep.subr.bf16.mxu0 0
    %1571 = vmatpush1.bf16.xpose.msra.mxu0 0
    %1572 = vmatprep.mubr.bf16.mxu0 0
    %1573 = vmatmul.mubr.bf16.gmra.mrb[0].mxu0 %v1535
    %v1574 = vpop.f32.mrb[0].mxu0
    %v1575 = vadd.f32 0.0, %v1574
    %v1576 = vpop.f32.mrb[0].mxu0
    %v1577 = vpop.f32.mrb[0].mxu0
    %v1578 = vpop.f32.mrb[0].mxu0
    %1579 = vdwg.mxu0
    %1581 = vrot.lane.b32.xlu0 %v427, 64
    %v1582 = vpop.permute.xlu0 %1581
    %v1584 = vsel %vm553, %v427, 0
    %v1587 = vsel %vm553, %v1582, 0
    %1589 = vmatprep.subr.bf16.mxu0 0
    %1590 = vmatpush1.bf16.xpose.msra.mxu0 %v1587
    %1591 = vmatprep.subr.bf16.mxu0 0
    %1592 = vmatpush1.bf16.xpose.msra.mxu0 0
    %1593 = vmatprep.subr.bf16.mxu0 0
    %1594 = vmatpush1.bf16.xpose.msra.mxu0 0
    %1595 = vmatprep.subr.bf16.mxu0 0
    %1596 = vmatpush1.bf16.xpose.msra.mxu0 0
    %1597 = vmatprep.subr.bf16.mxu0 0
    %1598 = vmatpush1.bf16.xpose.msra.mxu0 0
    %1599 = vmatprep.subr.bf16.mxu0 0
    %1600 = vmatpush1.bf16.xpose.msra.mxu0 0
    %1601 = vmatprep.subr.bf16.mxu0 0
    %1602 = vmatpush1.bf16.xpose.msra.mxu0 0
    %1603 = vmatprep.subr.bf16.mxu0 0
    %1604 = vmatpush1.bf16.xpose.msra.mxu0 0
    %1605 = vmatprep.subr.bf16.mxu0 0
    %1606 = vmatpush1.bf16.xpose.msra.mxu0 0
    %1607 = vmatprep.subr.bf16.mxu0 0
    %1608 = vmatpush1.bf16.xpose.msra.mxu0 0
    %1609 = vmatprep.subr.bf16.mxu0 0
    %1610 = vmatpush1.bf16.xpose.msra.mxu0 0
    %1611 = vmatprep.subr.bf16.mxu0 0
    %1612 = vmatpush1.bf16.xpose.msra.mxu0 0
    %1613 = vmatprep.subr.bf16.mxu0 0
    %1614 = vmatpush1.bf16.xpose.msra.mxu0 0
    %1615 = vmatprep.subr.bf16.mxu0 0
    %1616 = vmatpush1.bf16.xpose.msra.mxu0 0
    %1617 = vmatprep.subr.bf16.mxu0 0
    %1618 = vmatpush1.bf16.xpose.msra.mxu0 0
    %1619 = vmatprep.subr.bf16.mxu0 0
    %1620 = vmatpush1.bf16.xpose.msra.mxu0 0
    %1621 = vmatprep.mubr.bf16.mxu0 0
    %1622 = vmatmul.mubr.bf16.gmra.mrb[0].mxu0 %v1584
    %v1623 = vpop.f32.mrb[0].mxu0
    %v1624 = vadd.f32 0.0, %v1623
    %v1625 = vpop.f32.mrb[0].mxu0
    %v1626 = vpop.f32.mrb[0].mxu0
    %v1627 = vpop.f32.mrb[0].mxu0
    %1628 = vdwg.mxu0
    %1630 = vrot.lane.b32.xlu0 %v428, 64
    %v1631 = vpop.permute.xlu0 %1630
    %v1633 = vsel %vm553, %v428, 0
    %v1636 = vsel %vm553, %v1631, 0
    %1638 = vmatprep.subr.bf16.mxu0 0
    %1639 = vmatpush1.bf16.xpose.msra.mxu0 %v1636
    %1640 = vmatprep.subr.bf16.mxu0 0
    %1641 = vmatpush1.bf16.xpose.msra.mxu0 0
    %1642 = vmatprep.subr.bf16.mxu0 0
    %1643 = vmatpush1.bf16.xpose.msra.mxu0 0
    %1644 = vmatprep.subr.bf16.mxu0 0
    %1645 = vmatpush1.bf16.xpose.msra.mxu0 0
    %1646 = vmatprep.subr.bf16.mxu0 0
    %1647 = vmatpush1.bf16.xpose.msra.mxu0 0
    %1648 = vmatprep.subr.bf16.mxu0 0
    %1649 = vmatpush1.bf16.xpose.msra.mxu0 0
    %1650 = vmatprep.subr.bf16.mxu0 0
    %1651 = vmatpush1.bf16.xpose.msra.mxu0 0
    %1652 = vmatprep.subr.bf16.mxu0 0
    %1653 = vmatpush1.bf16.xpose.msra.mxu0 0
    %1654 = vmatprep.subr.bf16.mxu0 0
    %1655 = vmatpush1.bf16.xpose.msra.mxu0 0
    %1656 = vmatprep.subr.bf16.mxu0 0
    %1657 = vmatpush1.bf16.xpose.msra.mxu0 0
    %1658 = vmatprep.subr.bf16.mxu0 0
    %1659 = vmatpush1.bf16.xpose.msra.mxu0 0
    %1660 = vmatprep.subr.bf16.mxu0 0
    %1661 = vmatpush1.bf16.xpose.msra.mxu0 0
    %1662 = vmatprep.subr.bf16.mxu0 0
    %1663 = vmatpush1.bf16.xpose.msra.mxu0 0
    %1664 = vmatprep.subr.bf16.mxu0 0
    %1665 = vmatpush1.bf16.xpose.msra.mxu0 0
    %1666 = vmatprep.subr.bf16.mxu0 0
    %1667 = vmatpush1.bf16.xpose.msra.mxu0 0
    %1668 = vmatprep.subr.bf16.mxu0 0
    %1669 = vmatpush1.bf16.xpose.msra.mxu0 0
    %1670 = vmatprep.mubr.bf16.mxu0 0
    %1671 = vmatmul.mubr.bf16.gmra.mrb[0].mxu0 %v1633
    %v1672 = vpop.f32.mrb[0].mxu0
    %v1673 = vadd.f32 0.0, %v1672
    %v1674 = vpop.f32.mrb[0].mxu0
    %v1675 = vpop.f32.mrb[0].mxu0
    %v1676 = vpop.f32.mrb[0].mxu0
    %1677 = vdwg.mxu0
    %1679 = vrot.lane.b32.xlu0 %v429, 64
    %v1680 = vpop.permute.xlu0 %1679
    %v1682 = vsel %vm553, %v429, 0
    %v1685 = vsel %vm553, %v1680, 0
    %1687 = vmatprep.subr.bf16.mxu0 0
    %1688 = vmatpush1.bf16.xpose.msra.mxu0 %v1685
    %1689 = vmatprep.subr.bf16.mxu0 0
    %1690 = vmatpush1.bf16.xpose.msra.mxu0 0
    %1691 = vmatprep.subr.bf16.mxu0 0
    %1692 = vmatpush1.bf16.xpose.msra.mxu0 0
    %1693 = vmatprep.subr.bf16.mxu0 0
    %1694 = vmatpush1.bf16.xpose.msra.mxu0 0
    %1695 = vmatprep.subr.bf16.mxu0 0
    %1696 = vmatpush1.bf16.xpose.msra.mxu0 0
    %1697 = vmatprep.subr.bf16.mxu0 0
    %1698 = vmatpush1.bf16.xpose.msra.mxu0 0
    %1699 = vmatprep.subr.bf16.mxu0 0
    %1700 = vmatpush1.bf16.xpose.msra.mxu0 0
    %1701 = vmatprep.subr.bf16.mxu0 0
    %1702 = vmatpush1.bf16.xpose.msra.mxu0 0
    %1703 = vmatprep.subr.bf16.mxu0 0
    %1704 = vmatpush1.bf16.xpose.msra.mxu0 0
    %1705 = vmatprep.subr.bf16.mxu0 0
    %1706 = vmatpush1.bf16.xpose.msra.mxu0 0
    %1707 = vmatprep.subr.bf16.mxu0 0
    %1708 = vmatpush1.bf16.xpose.msra.mxu0 0
    %1709 = vmatprep.subr.bf16.mxu0 0
    %1710 = vmatpush1.bf16.xpose.msra.mxu0 0
    %1711 = vmatprep.subr.bf16.mxu0 0
    %1712 = vmatpush1.bf16.xpose.msra.mxu0 0
    %1713 = vmatprep.subr.bf16.mxu0 0
    %1714 = vmatpush1.bf16.xpose.msra.mxu0 0
    %1715 = vmatprep.subr.bf16.mxu0 0
    %1716 = vmatpush1.bf16.xpose.msra.mxu0 0
    %1717 = vmatprep.subr.bf16.mxu0 0
    %1718 = vmatpush1.bf16.xpose.msra.mxu0 0
    %1719 = vmatprep.mubr.bf16.mxu0 0
    %1720 = vmatmul.mubr.bf16.gmra.mrb[0].mxu0 %v1682
    %v1721 = vpop.f32.mrb[0].mxu0
    %v1722 = vadd.f32 0.0, %v1721
    %v1723 = vpop.f32.mrb[0].mxu0
    %v1724 = vpop.f32.mrb[0].mxu0
    %v1725 = vpop.f32.mrb[0].mxu0
    %1726 = vdwg.mxu0
    %1728 = vrot.lane.b32.xlu0 %v430, 64
    %v1729 = vpop.permute.xlu0 %1728
    %v1731 = vsel %vm553, %v430, 0
    %v1734 = vsel %vm553, %v1729, 0
    %1736 = vmatprep.subr.bf16.mxu0 0
    %1737 = vmatpush1.bf16.xpose.msra.mxu0 %v1734
    %1738 = vmatprep.subr.bf16.mxu0 0
    %1739 = vmatpush1.bf16.xpose.msra.mxu0 0
    %1740 = vmatprep.subr.bf16.mxu0 0
    %1741 = vmatpush1.bf16.xpose.msra.mxu0 0
    %1742 = vmatprep.subr.bf16.mxu0 0
    %1743 = vmatpush1.bf16.xpose.msra.mxu0 0
    %1744 = vmatprep.subr.bf16.mxu0 0
    %1745 = vmatpush1.bf16.xpose.msra.mxu0 0
    %1746 = vmatprep.subr.bf16.mxu0 0
    %1747 = vmatpush1.bf16.xpose.msra.mxu0 0
    %1748 = vmatprep.subr.bf16.mxu0 0
    %1749 = vmatpush1.bf16.xpose.msra.mxu0 0
    %1750 = vmatprep.subr.bf16.mxu0 0
    %1751 = vmatpush1.bf16.xpose.msra.mxu0 0
    %1752 = vmatprep.subr.bf16.mxu0 0
    %1753 = vmatpush1.bf16.xpose.msra.mxu0 0
    %1754 = vmatprep.subr.bf16.mxu0 0
    %1755 = vmatpush1.bf16.xpose.msra.mxu0 0
    %1756 = vmatprep.subr.bf16.mxu0 0
    %1757 = vmatpush1.bf16.xpose.msra.mxu0 0
    %1758 = vmatprep.subr.bf16.mxu0 0
    %1759 = vmatpush1.bf16.xpose.msra.mxu0 0
    %1760 = vmatprep.subr.bf16.mxu0 0
    %1761 = vmatpush1.bf16.xpose.msra.mxu0 0
    %1762 = vmatprep.subr.bf16.mxu0 0
    %1763 = vmatpush1.bf16.xpose.msra.mxu0 0
    %1764 = vmatprep.subr.bf16.mxu0 0
    %1765 = vmatpush1.bf16.xpose.msra.mxu0 0
    %1766 = vmatprep.subr.bf16.mxu0 0
    %1767 = vmatpush1.bf16.xpose.msra.mxu0 0
    %1768 = vmatprep.mubr.bf16.mxu0 0
    %1769 = vmatmul.mubr.bf16.gmra.mrb[0].mxu0 %v1731
    %v1770 = vpop.f32.mrb[0].mxu0
    %v1771 = vadd.f32 0.0, %v1770
    %v1772 = vpop.f32.mrb[0].mxu0
    %v1773 = vpop.f32.mrb[0].mxu0
    %v1774 = vpop.f32.mrb[0].mxu0
    %1775 = vdwg.mxu0
    %1777 = vrot.lane.b32.xlu0 %v431, 64
    %v1778 = vpop.permute.xlu0 %1777
    %v1780 = vsel %vm553, %v431, 0
    %v1783 = vsel %vm553, %v1778, 0
    %1785 = vmatprep.subr.bf16.mxu0 0
    %1786 = vmatpush1.bf16.xpose.msra.mxu0 %v1783
    %1787 = vmatprep.subr.bf16.mxu0 0
    %1788 = vmatpush1.bf16.xpose.msra.mxu0 0
    %1789 = vmatprep.subr.bf16.mxu0 0
    %1790 = vmatpush1.bf16.xpose.msra.mxu0 0
    %1791 = vmatprep.subr.bf16.mxu0 0
    %1792 = vmatpush1.bf16.xpose.msra.mxu0 0
    %1793 = vmatprep.subr.bf16.mxu0 0
    %1794 = vmatpush1.bf16.xpose.msra.mxu0 0
    %1795 = vmatprep.subr.bf16.mxu0 0
    %1796 = vmatpush1.bf16.xpose.msra.mxu0 0
    %1797 = vmatprep.subr.bf16.mxu0 0
    %1798 = vmatpush1.bf16.xpose.msra.mxu0 0
    %1799 = vmatprep.subr.bf16.mxu0 0
    %1800 = vmatpush1.bf16.xpose.msra.mxu0 0
    %1801 = vmatprep.subr.bf16.mxu0 0
    %1802 = vmatpush1.bf16.xpose.msra.mxu0 0
    %1803 = vmatprep.subr.bf16.mxu0 0
    %1804 = vmatpush1.bf16.xpose.msra.mxu0 0
    %1805 = vmatprep.subr.bf16.mxu0 0
    %1806 = vmatpush1.bf16.xpose.msra.mxu0 0
    %1807 = vmatprep.subr.bf16.mxu0 0
    %1808 = vmatpush1.bf16.xpose.msra.mxu0 0
    %1809 = vmatprep.subr.bf16.mxu0 0
    %1810 = vmatpush1.bf16.xpose.msra.mxu0 0
    %1811 = vmatprep.subr.bf16.mxu0 0
    %1812 = vmatpush1.bf16.xpose.msra.mxu0 0
    %1813 = vmatprep.subr.bf16.mxu0 0
    %1814 = vmatpush1.bf16.xpose.msra.mxu0 0
    %1815 = vmatprep.subr.bf16.mxu0 0
    %1816 = vmatpush1.bf16.xpose.msra.mxu0 0
    %1817 = vmatprep.mubr.bf16.mxu0 0
    %1818 = vmatmul.mubr.bf16.gmra.mrb[0].mxu0 %v1780
    %v1819 = vpop.f32.mrb[0].mxu0
    %v1820 = vadd.f32 0.0, %v1819
    %v1821 = vpop.f32.mrb[0].mxu0
    %v1822 = vpop.f32.mrb[0].mxu0
    %v1823 = vpop.f32.mrb[0].mxu0
    %1824 = vdwg.mxu0
    %1826 = vrot.lane.b32.xlu0 %v432, 64
    %v1827 = vpop.permute.xlu0 %1826
    %v1829 = vsel %vm553, %v432, 0
    %v1832 = vsel %vm553, %v1827, 0
    %1834 = vmatprep.subr.bf16.mxu0 0
    %1835 = vmatpush1.bf16.xpose.msra.mxu0 %v1832
    %1836 = vmatprep.subr.bf16.mxu0 0
    %1837 = vmatpush1.bf16.xpose.msra.mxu0 0
    %1838 = vmatprep.subr.bf16.mxu0 0
    %1839 = vmatpush1.bf16.xpose.msra.mxu0 0
    %1840 = vmatprep.subr.bf16.mxu0 0
    %1841 = vmatpush1.bf16.xpose.msra.mxu0 0
    %1842 = vmatprep.subr.bf16.mxu0 0
    %1843 = vmatpush1.bf16.xpose.msra.mxu0 0
    %1844 = vmatprep.subr.bf16.mxu0 0
    %1845 = vmatpush1.bf16.xpose.msra.mxu0 0
    %1846 = vmatprep.subr.bf16.mxu0 0
    %1847 = vmatpush1.bf16.xpose.msra.mxu0 0
    %1848 = vmatprep.subr.bf16.mxu0 0
    %1849 = vmatpush1.bf16.xpose.msra.mxu0 0
    %1850 = vmatprep.subr.bf16.mxu0 0
    %1851 = vmatpush1.bf16.xpose.msra.mxu0 0
    %1852 = vmatprep.subr.bf16.mxu0 0
    %1853 = vmatpush1.bf16.xpose.msra.mxu0 0
    %1854 = vmatprep.subr.bf16.mxu0 0
    %1855 = vmatpush1.bf16.xpose.msra.mxu0 0
    %1856 = vmatprep.subr.bf16.mxu0 0
    %1857 = vmatpush1.bf16.xpose.msra.mxu0 0
    %1858 = vmatprep.subr.bf16.mxu0 0
    %1859 = vmatpush1.bf16.xpose.msra.mxu0 0
    %1860 = vmatprep.subr.bf16.mxu0 0
    %1861 = vmatpush1.bf16.xpose.msra.mxu0 0
    %1862 = vmatprep.subr.bf16.mxu0 0
    %1863 = vmatpush1.bf16.xpose.msra.mxu0 0
    %1864 = vmatprep.subr.bf16.mxu0 0
    %1865 = vmatpush1.bf16.xpose.msra.mxu0 0
    %1866 = vmatprep.mubr.bf16.mxu0 0
    %1867 = vmatmul.mubr.bf16.gmra.mrb[0].mxu0 %v1829
    %v1868 = vpop.f32.mrb[0].mxu0
    %v1869 = vadd.f32 0.0, %v1868
    %v1870 = vpop.f32.mrb[0].mxu0
    %v1871 = vpop.f32.mrb[0].mxu0
    %v1872 = vpop.f32.mrb[0].mxu0
    %1873 = vdwg.mxu0
    %1875 = vrot.lane.b32.xlu0 %v433, 64
    %v1876 = vpop.permute.xlu0 %1875
    %v1878 = vsel %vm553, %v433, 0
    %v1881 = vsel %vm553, %v1876, 0
    %1883 = vmatprep.subr.bf16.mxu0 0
    %1884 = vmatpush1.bf16.xpose.msra.mxu0 %v1881
    %1885 = vmatprep.subr.bf16.mxu0 0
    %1886 = vmatpush1.bf16.xpose.msra.mxu0 0
    %1887 = vmatprep.subr.bf16.mxu0 0
    %1888 = vmatpush1.bf16.xpose.msra.mxu0 0
    %1889 = vmatprep.subr.bf16.mxu0 0
    %1890 = vmatpush1.bf16.xpose.msra.mxu0 0
    %1891 = vmatprep.subr.bf16.mxu0 0
    %1892 = vmatpush1.bf16.xpose.msra.mxu0 0
    %1893 = vmatprep.subr.bf16.mxu0 0
    %1894 = vmatpush1.bf16.xpose.msra.mxu0 0
    %1895 = vmatprep.subr.bf16.mxu0 0
    %1896 = vmatpush1.bf16.xpose.msra.mxu0 0
    %1897 = vmatprep.subr.bf16.mxu0 0
    %1898 = vmatpush1.bf16.xpose.msra.mxu0 0
    %1899 = vmatprep.subr.bf16.mxu0 0
    %1900 = vmatpush1.bf16.xpose.msra.mxu0 0
    %1901 = vmatprep.subr.bf16.mxu0 0
    %1902 = vmatpush1.bf16.xpose.msra.mxu0 0
    %1903 = vmatprep.subr.bf16.mxu0 0
    %1904 = vmatpush1.bf16.xpose.msra.mxu0 0
    %1905 = vmatprep.subr.bf16.mxu0 0
    %1906 = vmatpush1.bf16.xpose.msra.mxu0 0
    %1907 = vmatprep.subr.bf16.mxu0 0
    %1908 = vmatpush1.bf16.xpose.msra.mxu0 0
    %1909 = vmatprep.subr.bf16.mxu0 0
    %1910 = vmatpush1.bf16.xpose.msra.mxu0 0
    %1911 = vmatprep.subr.bf16.mxu0 0
    %1912 = vmatpush1.bf16.xpose.msra.mxu0 0
    %1913 = vmatprep.subr.bf16.mxu0 0
    %1914 = vmatpush1.bf16.xpose.msra.mxu0 0
    %1915 = vmatprep.mubr.bf16.mxu0 0
    %1916 = vmatmul.mubr.bf16.gmra.mrb[0].mxu0 %v1878
    %v1917 = vpop.f32.mrb[0].mxu0
    %v1918 = vadd.f32 0.0, %v1917
    %v1919 = vpop.f32.mrb[0].mxu0
    %v1920 = vpop.f32.mrb[0].mxu0
    %v1921 = vpop.f32.mrb[0].mxu0
    %1922 = vdwg.mxu0
    %1924 = vrot.lane.b32.xlu0 %v434, 64
    %v1925 = vpop.permute.xlu0 %1924
    %v1927 = vsel %vm553, %v434, 0
    %v1930 = vsel %vm553, %v1925, 0
    %1932 = vmatprep.subr.bf16.mxu0 0
    %1933 = vmatpush1.bf16.xpose.msra.mxu0 %v1930
    %1934 = vmatprep.subr.bf16.mxu0 0
    %1935 = vmatpush1.bf16.xpose.msra.mxu0 0
    %1936 = vmatprep.subr.bf16.mxu0 0
    %1937 = vmatpush1.bf16.xpose.msra.mxu0 0
    %1938 = vmatprep.subr.bf16.mxu0 0
    %1939 = vmatpush1.bf16.xpose.msra.mxu0 0
    %1940 = vmatprep.subr.bf16.mxu0 0
    %1941 = vmatpush1.bf16.xpose.msra.mxu0 0
    %1942 = vmatprep.subr.bf16.mxu0 0
    %1943 = vmatpush1.bf16.xpose.msra.mxu0 0
    %1944 = vmatprep.subr.bf16.mxu0 0
    %1945 = vmatpush1.bf16.xpose.msra.mxu0 0
    %1946 = vmatprep.subr.bf16.mxu0 0
    %1947 = vmatpush1.bf16.xpose.msra.mxu0 0
    %1948 = vmatprep.subr.bf16.mxu0 0
    %1949 = vmatpush1.bf16.xpose.msra.mxu0 0
    %1950 = vmatprep.subr.bf16.mxu0 0
    %1951 = vmatpush1.bf16.xpose.msra.mxu0 0
    %1952 = vmatprep.subr.bf16.mxu0 0
    %1953 = vmatpush1.bf16.xpose.msra.mxu0 0
    %1954 = vmatprep.subr.bf16.mxu0 0
    %1955 = vmatpush1.bf16.xpose.msra.mxu0 0
    %1956 = vmatprep.subr.bf16.mxu0 0
    %1957 = vmatpush1.bf16.xpose.msra.mxu0 0
    %1958 = vmatprep.subr.bf16.mxu0 0
    %1959 = vmatpush1.bf16.xpose.msra.mxu0 0
    %1960 = vmatprep.subr.bf16.mxu0 0
    %1961 = vmatpush1.bf16.xpose.msra.mxu0 0
    %1962 = vmatprep.subr.bf16.mxu0 0
    %1963 = vmatpush1.bf16.xpose.msra.mxu0 0
    %1964 = vmatprep.mubr.bf16.mxu0 0
    %1965 = vmatmul.mubr.bf16.gmra.mrb[0].mxu0 %v1927
    %v1966 = vpop.f32.mrb[0].mxu0
    %v1967 = vadd.f32 0.0, %v1966
    %v1968 = vpop.f32.mrb[0].mxu0
    %v1969 = vpop.f32.mrb[0].mxu0
    %v1970 = vpop.f32.mrb[0].mxu0
    %1971 = vdwg.mxu0
    %1973 = vrot.lane.b32.xlu0 %v435, 64
    %v1974 = vpop.permute.xlu0 %1973
    %v1976 = vsel %vm553, %v435, 0
    %v1979 = vsel %vm553, %v1974, 0
    %1981 = vmatprep.subr.bf16.mxu0 0
    %1982 = vmatpush1.bf16.xpose.msra.mxu0 %v1979
    %1983 = vmatprep.subr.bf16.mxu0 0
    %1984 = vmatpush1.bf16.xpose.msra.mxu0 0
    %1985 = vmatprep.subr.bf16.mxu0 0
    %1986 = vmatpush1.bf16.xpose.msra.mxu0 0
    %1987 = vmatprep.subr.bf16.mxu0 0
    %1988 = vmatpush1.bf16.xpose.msra.mxu0 0
    %1989 = vmatprep.subr.bf16.mxu0 0
    %1990 = vmatpush1.bf16.xpose.msra.mxu0 0
    %1991 = vmatprep.subr.bf16.mxu0 0
    %1992 = vmatpush1.bf16.xpose.msra.mxu0 0
    %1993 = vmatprep.subr.bf16.mxu0 0
    %1994 = vmatpush1.bf16.xpose.msra.mxu0 0
    %1995 = vmatprep.subr.bf16.mxu0 0
    %1996 = vmatpush1.bf16.xpose.msra.mxu0 0
    %1997 = vmatprep.subr.bf16.mxu0 0
    %1998 = vmatpush1.bf16.xpose.msra.mxu0 0
    %1999 = vmatprep.subr.bf16.mxu0 0
    %2000 = vmatpush1.bf16.xpose.msra.mxu0 0
    %2001 = vmatprep.subr.bf16.mxu0 0
    %2002 = vmatpush1.bf16.xpose.msra.mxu0 0
    %2003 = vmatprep.subr.bf16.mxu0 0
    %2004 = vmatpush1.bf16.xpose.msra.mxu0 0
    %2005 = vmatprep.subr.bf16.mxu0 0
    %2006 = vmatpush1.bf16.xpose.msra.mxu0 0
    %2007 = vmatprep.subr.bf16.mxu0 0
    %2008 = vmatpush1.bf16.xpose.msra.mxu0 0
    %2009 = vmatprep.subr.bf16.mxu0 0
    %2010 = vmatpush1.bf16.xpose.msra.mxu0 0
    %2011 = vmatprep.subr.bf16.mxu0 0
    %2012 = vmatpush1.bf16.xpose.msra.mxu0 0
    %2013 = vmatprep.mubr.bf16.mxu0 0
    %2014 = vmatmul.mubr.bf16.gmra.mrb[0].mxu0 %v1976
    %v2015 = vpop.f32.mrb[0].mxu0
    %v2016 = vadd.f32 0.0, %v2015
    %v2017 = vpop.f32.mrb[0].mxu0
    %v2018 = vpop.f32.mrb[0].mxu0
    %v2019 = vpop.f32.mrb[0].mxu0
    %2020 = vdwg.mxu0
    %2022 = vrot.lane.b32.xlu0 %v436, 64
    %v2023 = vpop.permute.xlu0 %2022
    %v2025 = vsel %vm553, %v436, 0
    %v2028 = vsel %vm553, %v2023, 0
    %2030 = vmatprep.subr.bf16.mxu0 0
    %2031 = vmatpush1.bf16.xpose.msra.mxu0 %v2028
    %2032 = vmatprep.subr.bf16.mxu0 0
    %2033 = vmatpush1.bf16.xpose.msra.mxu0 0
    %2034 = vmatprep.subr.bf16.mxu0 0
    %2035 = vmatpush1.bf16.xpose.msra.mxu0 0
    %2036 = vmatprep.subr.bf16.mxu0 0
    %2037 = vmatpush1.bf16.xpose.msra.mxu0 0
    %2038 = vmatprep.subr.bf16.mxu0 0
    %2039 = vmatpush1.bf16.xpose.msra.mxu0 0
    %2040 = vmatprep.subr.bf16.mxu0 0
    %2041 = vmatpush1.bf16.xpose.msra.mxu0 0
    %2042 = vmatprep.subr.bf16.mxu0 0
    %2043 = vmatpush1.bf16.xpose.msra.mxu0 0
    %2044 = vmatprep.subr.bf16.mxu0 0
    %2045 = vmatpush1.bf16.xpose.msra.mxu0 0
    %2046 = vmatprep.subr.bf16.mxu0 0
    %2047 = vmatpush1.bf16.xpose.msra.mxu0 0
    %2048 = vmatprep.subr.bf16.mxu0 0
    %2049 = vmatpush1.bf16.xpose.msra.mxu0 0
    %2050 = vmatprep.subr.bf16.mxu0 0
    %2051 = vmatpush1.bf16.xpose.msra.mxu0 0
    %2052 = vmatprep.subr.bf16.mxu0 0
    %2053 = vmatpush1.bf16.xpose.msra.mxu0 0
    %2054 = vmatprep.subr.bf16.mxu0 0
    %2055 = vmatpush1.bf16.xpose.msra.mxu0 0
    %2056 = vmatprep.subr.bf16.mxu0 0
    %2057 = vmatpush1.bf16.xpose.msra.mxu0 0
    %2058 = vmatprep.subr.bf16.mxu0 0
    %2059 = vmatpush1.bf16.xpose.msra.mxu0 0
    %2060 = vmatprep.subr.bf16.mxu0 0
    %2061 = vmatpush1.bf16.xpose.msra.mxu0 0
    %2062 = vmatprep.mubr.bf16.mxu0 0
    %2063 = vmatmul.mubr.bf16.gmra.mrb[0].mxu0 %v2025
    %v2064 = vpop.f32.mrb[0].mxu0
    %v2065 = vadd.f32 0.0, %v2064
    %v2066 = vpop.f32.mrb[0].mxu0
    %v2067 = vpop.f32.mrb[0].mxu0
    %v2068 = vpop.f32.mrb[0].mxu0
    %2069 = vdwg.mxu0
    %2071 = vrot.lane.b32.xlu0 %v437, 64
    %v2072 = vpop.permute.xlu0 %2071
    %v2074 = vsel %vm553, %v437, 0
    %v2077 = vsel %vm553, %v2072, 0
    %2079 = vmatprep.subr.bf16.mxu0 0
    %2080 = vmatpush1.bf16.xpose.msra.mxu0 %v2077
    %2081 = vmatprep.subr.bf16.mxu0 0
    %2082 = vmatpush1.bf16.xpose.msra.mxu0 0
    %2083 = vmatprep.subr.bf16.mxu0 0
    %2084 = vmatpush1.bf16.xpose.msra.mxu0 0
    %2085 = vmatprep.subr.bf16.mxu0 0
    %2086 = vmatpush1.bf16.xpose.msra.mxu0 0
    %2087 = vmatprep.subr.bf16.mxu0 0
    %2088 = vmatpush1.bf16.xpose.msra.mxu0 0
    %2089 = vmatprep.subr.bf16.mxu0 0
    %2090 = vmatpush1.bf16.xpose.msra.mxu0 0
    %2091 = vmatprep.subr.bf16.mxu0 0
    %2092 = vmatpush1.bf16.xpose.msra.mxu0 0
    %2093 = vmatprep.subr.bf16.mxu0 0
    %2094 = vmatpush1.bf16.xpose.msra.mxu0 0
    %2095 = vmatprep.subr.bf16.mxu0 0
    %2096 = vmatpush1.bf16.xpose.msra.mxu0 0
    %2097 = vmatprep.subr.bf16.mxu0 0
    %2098 = vmatpush1.bf16.xpose.msra.mxu0 0
    %2099 = vmatprep.subr.bf16.mxu0 0
    %2100 = vmatpush1.bf16.xpose.msra.mxu0 0
    %2101 = vmatprep.subr.bf16.mxu0 0
    %2102 = vmatpush1.bf16.xpose.msra.mxu0 0
    %2103 = vmatprep.subr.bf16.mxu0 0
    %2104 = vmatpush1.bf16.xpose.msra.mxu0 0
    %2105 = vmatprep.subr.bf16.mxu0 0
    %2106 = vmatpush1.bf16.xpose.msra.mxu0 0
    %2107 = vmatprep.subr.bf16.mxu0 0
    %2108 = vmatpush1.bf16.xpose.msra.mxu0 0
    %2109 = vmatprep.subr.bf16.mxu0 0
    %2110 = vmatpush1.bf16.xpose.msra.mxu0 0
    %2111 = vmatprep.mubr.bf16.mxu0 0
    %2112 = vmatmul.mubr.bf16.gmra.mrb[0].mxu0 %v2074
    %v2113 = vpop.f32.mrb[0].mxu0
    %v2114 = vadd.f32 0.0, %v2113
    %v2115 = vpop.f32.mrb[0].mxu0
    %v2116 = vpop.f32.mrb[0].mxu0
    %v2117 = vpop.f32.mrb[0].mxu0
    %2118 = vdwg.mxu0
    %vm2119 = vcmask 64512
    %v2120 = vsel %vm2119, %v595, -inf
    %2121 = vmax.xlane.f32.xlu0 %v2120
    %v2122 = vpop.xlane.xlu0 %2121
    %v2123 = vsel %vm2119, %v644, -inf
    %2124 = vmax.xlane.f32.xlu0 %v2123
    %v2125 = vpop.xlane.xlu0 %2124
    %v2126 = vsel %vm2119, %v693, -inf
    %2127 = vmax.xlane.f32.xlu0 %v2126
    %v2128 = vpop.xlane.xlu0 %2127
    %v2129 = vsel %vm2119, %v742, -inf
    %2130 = vmax.xlane.f32.xlu0 %v2129
    %v2131 = vpop.xlane.xlu0 %2130
    %v2132 = vsel %vm2119, %v791, -inf
    %2133 = vmax.xlane.f32.xlu0 %v2132
    %v2134 = vpop.xlane.xlu0 %2133
    %v2135 = vsel %vm2119, %v840, -inf
    %2136 = vmax.xlane.f32.xlu0 %v2135
    %v2137 = vpop.xlane.xlu0 %2136
    %v2138 = vsel %vm2119, %v889, -inf
    %2139 = vmax.xlane.f32.xlu0 %v2138
    %v2140 = vpop.xlane.xlu0 %2139
    %v2141 = vsel %vm2119, %v938, -inf
    %2142 = vmax.xlane.f32.xlu0 %v2141
    %v2143 = vpop.xlane.xlu0 %2142
    %v2144 = vsel %vm2119, %v987, -inf
    %2145 = vmax.xlane.f32.xlu0 %v2144
    %v2146 = vpop.xlane.xlu0 %2145
    %v2147 = vsel %vm2119, %v1036, -inf
    %2148 = vmax.xlane.f32.xlu0 %v2147
    %v2149 = vpop.xlane.xlu0 %2148
    %v2150 = vsel %vm2119, %v1085, -inf
    %2151 = vmax.xlane.f32.xlu0 %v2150
    %v2152 = vpop.xlane.xlu0 %2151
    %v2153 = vsel %vm2119, %v1134, -inf
    %2154 = vmax.xlane.f32.xlu0 %v2153
    %v2155 = vpop.xlane.xlu0 %2154
    %v2156 = vsel %vm2119, %v1183, -inf
    %2157 = vmax.xlane.f32.xlu0 %v2156
    %v2158 = vpop.xlane.xlu0 %2157
    %v2159 = vsel %vm2119, %v1232, -inf
    %2160 = vmax.xlane.f32.xlu0 %v2159
    %v2161 = vpop.xlane.xlu0 %2160
    %v2162 = vsel %vm2119, %v1281, -inf
    %2163 = vmax.xlane.f32.xlu0 %v2162
    %v2164 = vpop.xlane.xlu0 %2163
    %v2165 = vsel %vm2119, %v1330, -inf
    %2166 = vmax.xlane.f32.xlu0 %v2165
    %v2167 = vpop.xlane.xlu0 %2166
    %v2168 = vsel %vm2119, %v1379, -inf
    %2169 = vmax.xlane.f32.xlu0 %v2168
    %v2170 = vpop.xlane.xlu0 %2169
    %v2171 = vsel %vm2119, %v1428, -inf
    %2172 = vmax.xlane.f32.xlu0 %v2171
    %v2173 = vpop.xlane.xlu0 %2172
    %v2174 = vsel %vm2119, %v1477, -inf
    %2175 = vmax.xlane.f32.xlu0 %v2174
    %v2176 = vpop.xlane.xlu0 %2175
    %v2177 = vsel %vm2119, %v1526, -inf
    %2178 = vmax.xlane.f32.xlu0 %v2177
    %v2179 = vpop.xlane.xlu0 %2178
    %v2180 = vsel %vm2119, %v1575, -inf
    %2181 = vmax.xlane.f32.xlu0 %v2180
    %v2182 = vpop.xlane.xlu0 %2181
    %v2183 = vsel %vm2119, %v1624, -inf
    %2184 = vmax.xlane.f32.xlu0 %v2183
    %v2185 = vpop.xlane.xlu0 %2184
    %v2186 = vsel %vm2119, %v1673, -inf
    %2187 = vmax.xlane.f32.xlu0 %v2186
    %v2188 = vpop.xlane.xlu0 %2187
    %v2189 = vsel %vm2119, %v1722, -inf
    %2190 = vmax.xlane.f32.xlu0 %v2189
    %v2191 = vpop.xlane.xlu0 %2190
    %v2192 = vsel %vm2119, %v1771, -inf
    %2193 = vmax.xlane.f32.xlu0 %v2192
    %v2194 = vpop.xlane.xlu0 %2193
    %v2195 = vsel %vm2119, %v1820, -inf
    %2196 = vmax.xlane.f32.xlu0 %v2195
    %v2197 = vpop.xlane.xlu0 %2196
    %v2198 = vsel %vm2119, %v1869, -inf
    %2199 = vmax.xlane.f32.xlu0 %v2198
    %v2200 = vpop.xlane.xlu0 %2199
    %v2201 = vsel %vm2119, %v1918, -inf
    %2202 = vmax.xlane.f32.xlu0 %v2201
    %v2203 = vpop.xlane.xlu0 %2202
    %v2204 = vsel %vm2119, %v1967, -inf
    %2205 = vmax.xlane.f32.xlu0 %v2204
    %v2206 = vpop.xlane.xlu0 %2205
    %v2207 = vsel %vm2119, %v2016, -inf
    %2208 = vmax.xlane.f32.xlu0 %v2207
    %v2209 = vpop.xlane.xlu0 %2208
    %v2210 = vsel %vm2119, %v2065, -inf
    %2211 = vmax.xlane.f32.xlu0 %v2210
    %v2212 = vpop.xlane.xlu0 %2211
    %v2213 = vsel %vm2119, %v2114, -inf
    %2214 = vmax.xlane.f32.xlu0 %v2213
    %v2215 = vpop.xlane.xlu0 %2214
    %v2216 = vsub.f32 %v595, %v2122
    %v2217 = vsub.f32 %v644, %v2125
    %v2218 = vsub.f32 %v693, %v2128
    %v2219 = vsub.f32 %v742, %v2131
    %v2220 = vsub.f32 %v791, %v2134
    %v2221 = vsub.f32 %v840, %v2137
    %v2222 = vsub.f32 %v889, %v2140
    %v2223 = vsub.f32 %v938, %v2143
    %v2224 = vsub.f32 %v987, %v2146
    %v2225 = vsub.f32 %v1036, %v2149
    %v2226 = vsub.f32 %v1085, %v2152
    %v2227 = vsub.f32 %v1134, %v2155
    %v2228 = vsub.f32 %v1183, %v2158
    %v2229 = vsub.f32 %v1232, %v2161
    %v2230 = vsub.f32 %v1281, %v2164
    %v2231 = vsub.f32 %v1330, %v2167
    %v2232 = vsub.f32 %v1379, %v2170
    %v2233 = vsub.f32 %v1428, %v2173
    %v2234 = vsub.f32 %v1477, %v2176
    %v2235 = vsub.f32 %v1526, %v2179
    %v2236 = vsub.f32 %v1575, %v2182
    %v2237 = vsub.f32 %v1624, %v2185
    %v2238 = vsub.f32 %v1673, %v2188
    %v2239 = vsub.f32 %v1722, %v2191
    %v2240 = vsub.f32 %v1771, %v2194
    %v2241 = vsub.f32 %v1820, %v2197
    %v2242 = vsub.f32 %v1869, %v2200
    %v2243 = vsub.f32 %v1918, %v2203
    %v2244 = vsub.f32 %v1967, %v2206
    %v2245 = vsub.f32 %v2016, %v2209
    %v2246 = vsub.f32 %v2065, %v2212
    %v2247 = vsub.f32 %v2114, %v2215
    %v2248 = vmul.f32 %v2216, 1.442695
    %v2249 = vpow.pop %v2248
    %v2250 = vmul.f32 %v2217, 1.442695
    %v2251 = vpow.pop %v2250
    %v2252 = vmul.f32 %v2218, 1.442695
    %v2253 = vpow.pop %v2252
    %v2254 = vmul.f32 %v2219, 1.442695
    %v2255 = vpow.pop %v2254
    %v2256 = vmul.f32 %v2220, 1.442695
    %v2257 = vpow.pop %v2256
    %v2258 = vmul.f32 %v2221, 1.442695
    %v2259 = vpow.pop %v2258
    %v2260 = vmul.f32 %v2222, 1.442695
    %v2261 = vpow.pop %v2260
    %v2262 = vmul.f32 %v2223, 1.442695
    %v2263 = vpow.pop %v2262
    %v2264 = vmul.f32 %v2224, 1.442695
    %v2265 = vpow.pop %v2264
    %v2266 = vmul.f32 %v2225, 1.442695
    %v2267 = vpow.pop %v2266
    %v2268 = vmul.f32 %v2226, 1.442695
    %v2269 = vpow.pop %v2268
    %v2270 = vmul.f32 %v2227, 1.442695
    %v2271 = vpow.pop %v2270
    %v2272 = vmul.f32 %v2228, 1.442695
    %v2273 = vpow.pop %v2272
    %v2274 = vmul.f32 %v2229, 1.442695
    %v2275 = vpow.pop %v2274
    %v2276 = vmul.f32 %v2230, 1.442695
    %v2277 = vpow.pop %v2276
    %v2278 = vmul.f32 %v2231, 1.442695
    %v2279 = vpow.pop %v2278
    %v2280 = vmul.f32 %v2232, 1.442695
    %v2281 = vpow.pop %v2280
    %v2282 = vmul.f32 %v2233, 1.442695
    %v2283 = vpow.pop %v2282
    %v2284 = vmul.f32 %v2234, 1.442695
    %v2285 = vpow.pop %v2284
    %v2286 = vmul.f32 %v2235, 1.442695
    %v2287 = vpow.pop %v2286
    %v2288 = vmul.f32 %v2236, 1.442695
    %v2289 = vpow.pop %v2288
    %v2290 = vmul.f32 %v2237, 1.442695
    %v2291 = vpow.pop %v2290
    %v2292 = vmul.f32 %v2238, 1.442695
    %v2293 = vpow.pop %v2292
    %v2294 = vmul.f32 %v2239, 1.442695
    %v2295 = vpow.pop %v2294
    %v2296 = vmul.f32 %v2240, 1.442695
    %v2297 = vpow.pop %v2296
    %v2298 = vmul.f32 %v2241, 1.442695
    %v2299 = vpow.pop %v2298
    %v2300 = vmul.f32 %v2242, 1.442695
    %v2301 = vpow.pop %v2300
    %v2302 = vmul.f32 %v2243, 1.442695
    %v2303 = vpow.pop %v2302
    %v2304 = vmul.f32 %v2244, 1.442695
    %v2305 = vpow.pop %v2304
    %v2306 = vmul.f32 %v2245, 1.442695
    %v2307 = vpow.pop %v2306
    %v2308 = vmul.f32 %v2246, 1.442695
    %v2309 = vpow.pop %v2308
    %v2310 = vmul.f32 %v2247, 1.442695
    %v2311 = vpow.pop %v2310
    %v2312 = vsel %vm2119, %v2249, 0.0
    %2313 = vadd.xlane.f32.xlu0 %v2312
    %v2314 = vpop.xlane.xlu0 %2313
    %v2315 = vsel %vm2119, %v2251, 0.0
    %2316 = vadd.xlane.f32.xlu0 %v2315
    %v2317 = vpop.xlane.xlu0 %2316
    %v2318 = vsel %vm2119, %v2253, 0.0
    %2319 = vadd.xlane.f32.xlu0 %v2318
    %v2320 = vpop.xlane.xlu0 %2319
    %v2321 = vsel %vm2119, %v2255, 0.0
    %2322 = vadd.xlane.f32.xlu0 %v2321
    %v2323 = vpop.xlane.xlu0 %2322
    %v2324 = vsel %vm2119, %v2257, 0.0
    %2325 = vadd.xlane.f32.xlu0 %v2324
    %v2326 = vpop.xlane.xlu0 %2325
    %v2327 = vsel %vm2119, %v2259, 0.0
    %2328 = vadd.xlane.f32.xlu0 %v2327
    %v2329 = vpop.xlane.xlu0 %2328
    %v2330 = vsel %vm2119, %v2261, 0.0
    %2331 = vadd.xlane.f32.xlu0 %v2330
    %v2332 = vpop.xlane.xlu0 %2331
    %v2333 = vsel %vm2119, %v2263, 0.0
    %2334 = vadd.xlane.f32.xlu0 %v2333
    %v2335 = vpop.xlane.xlu0 %2334
    %v2336 = vsel %vm2119, %v2265, 0.0
    %2337 = vadd.xlane.f32.xlu0 %v2336
    %v2338 = vpop.xlane.xlu0 %2337
    %v2339 = vsel %vm2119, %v2267, 0.0
    %2340 = vadd.xlane.f32.xlu0 %v2339
    %v2341 = vpop.xlane.xlu0 %2340
    %v2342 = vsel %vm2119, %v2269, 0.0
    %2343 = vadd.xlane.f32.xlu0 %v2342
    %v2344 = vpop.xlane.xlu0 %2343
    %v2345 = vsel %vm2119, %v2271, 0.0
    %2346 = vadd.xlane.f32.xlu0 %v2345
    %v2347 = vpop.xlane.xlu0 %2346
    %v2348 = vsel %vm2119, %v2273, 0.0
    %2349 = vadd.xlane.f32.xlu0 %v2348
    %v2350 = vpop.xlane.xlu0 %2349
    %v2351 = vsel %vm2119, %v2275, 0.0
    %2352 = vadd.xlane.f32.xlu0 %v2351
    %v2353 = vpop.xlane.xlu0 %2352
    %v2354 = vsel %vm2119, %v2277, 0.0
    %2355 = vadd.xlane.f32.xlu0 %v2354
    %v2356 = vpop.xlane.xlu0 %2355
    %v2357 = vsel %vm2119, %v2279, 0.0
    %2358 = vadd.xlane.f32.xlu0 %v2357
    %v2359 = vpop.xlane.xlu0 %2358
    %v2360 = vsel %vm2119, %v2281, 0.0
    %2361 = vadd.xlane.f32.xlu0 %v2360
    %v2362 = vpop.xlane.xlu0 %2361
    %v2363 = vsel %vm2119, %v2283, 0.0
    %2364 = vadd.xlane.f32.xlu0 %v2363
    %v2365 = vpop.xlane.xlu0 %2364
    %v2366 = vsel %vm2119, %v2285, 0.0
    %2367 = vadd.xlane.f32.xlu0 %v2366
    %v2368 = vpop.xlane.xlu0 %2367
    %v2369 = vsel %vm2119, %v2287, 0.0
    %2370 = vadd.xlane.f32.xlu0 %v2369
    %v2371 = vpop.xlane.xlu0 %2370
    %v2372 = vsel %vm2119, %v2289, 0.0
    %2373 = vadd.xlane.f32.xlu0 %v2372
    %v2374 = vpop.xlane.xlu0 %2373
    %v2375 = vsel %vm2119, %v2291, 0.0
    %2376 = vadd.xlane.f32.xlu0 %v2375
    %v2377 = vpop.xlane.xlu0 %2376
    %v2378 = vsel %vm2119, %v2293, 0.0
    %2379 = vadd.xlane.f32.xlu0 %v2378
    %v2380 = vpop.xlane.xlu0 %2379
    %v2381 = vsel %vm2119, %v2295, 0.0
    %2382 = vadd.xlane.f32.xlu0 %v2381
    %v2383 = vpop.xlane.xlu0 %2382
    %v2384 = vsel %vm2119, %v2297, 0.0
    %2385 = vadd.xlane.f32.xlu0 %v2384
    %v2386 = vpop.xlane.xlu0 %2385
    %v2387 = vsel %vm2119, %v2299, 0.0
    %2388 = vadd.xlane.f32.xlu0 %v2387
    %v2389 = vpop.xlane.xlu0 %2388
    %v2390 = vsel %vm2119, %v2301, 0.0
    %2391 = vadd.xlane.f32.xlu0 %v2390
    %v2392 = vpop.xlane.xlu0 %2391
    %v2393 = vsel %vm2119, %v2303, 0.0
    %2394 = vadd.xlane.f32.xlu0 %v2393
    %v2395 = vpop.xlane.xlu0 %2394
    %v2396 = vsel %vm2119, %v2305, 0.0
    %2397 = vadd.xlane.f32.xlu0 %v2396
    %v2398 = vpop.xlane.xlu0 %2397
    %v2399 = vsel %vm2119, %v2307, 0.0
    %2400 = vadd.xlane.f32.xlu0 %v2399
    %v2401 = vpop.xlane.xlu0 %2400
    %v2402 = vsel %vm2119, %v2309, 0.0
    %2403 = vadd.xlane.f32.xlu0 %v2402
    %v2404 = vpop.xlane.xlu0 %2403
    %v2405 = vsel %vm2119, %v2311, 0.0
    %2406 = vadd.xlane.f32.xlu0 %v2405
    %v2407 = vpop.xlane.xlu0 %2406
    %v2408 = vrcp.pop %v2314
    %v2409 = vrcp.pop %v2317
    %v2410 = vrcp.pop %v2320
    %v2411 = vrcp.pop %v2323
    %v2412 = vrcp.pop %v2326
    %v2413 = vrcp.pop %v2329
    %v2414 = vrcp.pop %v2332
    %v2415 = vrcp.pop %v2335
    %v2416 = vrcp.pop %v2338
    %v2417 = vrcp.pop %v2341
    %v2418 = vrcp.pop %v2344
    %v2419 = vrcp.pop %v2347
    %v2420 = vrcp.pop %v2350
    %v2421 = vrcp.pop %v2353
    %v2422 = vrcp.pop %v2356
    %v2423 = vrcp.pop %v2359
    %v2424 = vrcp.pop %v2362
    %v2425 = vrcp.pop %v2365
    %v2426 = vrcp.pop %v2368
    %v2427 = vrcp.pop %v2371
    %v2428 = vrcp.pop %v2374
    %v2429 = vrcp.pop %v2377
    %v2430 = vrcp.pop %v2380
    %v2431 = vrcp.pop %v2383
    %v2432 = vrcp.pop %v2386
    %v2433 = vrcp.pop %v2389
    %v2434 = vrcp.pop %v2392
    %v2435 = vrcp.pop %v2395
    %v2436 = vrcp.pop %v2398
    %v2437 = vrcp.pop %v2401
    %v2438 = vrcp.pop %v2404
    %v2439 = vrcp.pop %v2407
    %v2440 = vmul.f32 %v2249, %v2408
    %v2441 = vmul.f32 %v2251, %v2409
    %v2442 = vmul.f32 %v2253, %v2410
    %v2443 = vmul.f32 %v2255, %v2411
    %v2444 = vmul.f32 %v2257, %v2412
    %v2445 = vmul.f32 %v2259, %v2413
    %v2446 = vmul.f32 %v2261, %v2414
    %v2447 = vmul.f32 %v2263, %v2415
    %v2448 = vmul.f32 %v2265, %v2416
    %v2449 = vmul.f32 %v2267, %v2417
    %v2450 = vmul.f32 %v2269, %v2418
    %v2451 = vmul.f32 %v2271, %v2419
    %v2452 = vmul.f32 %v2273, %v2420
    %v2453 = vmul.f32 %v2275, %v2421
    %v2454 = vmul.f32 %v2277, %v2422
    %v2455 = vmul.f32 %v2279, %v2423
    %v2456 = vmul.f32 %v2281, %v2424
    %v2457 = vmul.f32 %v2283, %v2425
    %v2458 = vmul.f32 %v2285, %v2426
    %v2459 = vmul.f32 %v2287, %v2427
    %v2460 = vmul.f32 %v2289, %v2428
    %v2461 = vmul.f32 %v2291, %v2429
    %v2462 = vmul.f32 %v2293, %v2430
    %v2463 = vmul.f32 %v2295, %v2431
    %v2464 = vmul.f32 %v2297, %v2432
    %v2465 = vmul.f32 %v2299, %v2433
    %v2466 = vmul.f32 %v2301, %v2434
    %v2467 = vmul.f32 %v2303, %v2435
    %v2468 = vmul.f32 %v2305, %v2436
    %v2469 = vmul.f32 %v2307, %v2437
    %v2470 = vmul.f32 %v2309, %v2438
    %v2471 = vmul.f32 %v2311, %v2439
    %v2472 = vpack.c.bf16 %v2440, %v2440
    %v2473 = vpack.c.bf16 %v2441, %v2441
    %v2474 = vpack.c.bf16 %v2442, %v2442
    %v2475 = vpack.c.bf16 %v2443, %v2443
    %v2476 = vpack.c.bf16 %v2444, %v2444
    %v2477 = vpack.c.bf16 %v2445, %v2445
    %v2478 = vpack.c.bf16 %v2446, %v2446
    %v2479 = vpack.c.bf16 %v2447, %v2447
    %v2480 = vpack.c.bf16 %v2448, %v2448
    %v2481 = vpack.c.bf16 %v2449, %v2449
    %v2482 = vpack.c.bf16 %v2450, %v2450
    %v2483 = vpack.c.bf16 %v2451, %v2451
    %v2484 = vpack.c.bf16 %v2452, %v2452
    %v2485 = vpack.c.bf16 %v2453, %v2453
    %v2486 = vpack.c.bf16 %v2454, %v2454
    %v2487 = vpack.c.bf16 %v2455, %v2455
    %v2488 = vpack.c.bf16 %v2456, %v2456
    %v2489 = vpack.c.bf16 %v2457, %v2457
    %v2490 = vpack.c.bf16 %v2458, %v2458
    %v2491 = vpack.c.bf16 %v2459, %v2459
    %v2492 = vpack.c.bf16 %v2460, %v2460
    %v2493 = vpack.c.bf16 %v2461, %v2461
    %v2494 = vpack.c.bf16 %v2462, %v2462
    %v2495 = vpack.c.bf16 %v2463, %v2463
    %v2496 = vpack.c.bf16 %v2464, %v2464
    %v2497 = vpack.c.bf16 %v2465, %v2465
    %v2498 = vpack.c.bf16 %v2466, %v2466
    %v2499 = vpack.c.bf16 %v2467, %v2467
    %v2500 = vpack.c.bf16 %v2468, %v2468
    %v2501 = vpack.c.bf16 %v2469, %v2469
    %v2502 = vpack.c.bf16 %v2470, %v2470
    %v2503 = vpack.c.bf16 %v2471, %v2471
    %v2505 = vsel %vm2119, %v2472, 0
    %vm2507 = vcmask 1043456
    %v2509 = vsel %vm2507, %v518, 0
    %2511 = vmatprep.subr.bf16.mxu0 0
    %2512 = vmatpush1.bf16.msra.mxu0 %v2509
    %2513 = vmatprep.subr.bf16.mxu0 0
    %2514 = vmatpush1.bf16.msra.mxu0 0
    %2515 = vmatprep.subr.bf16.mxu0 0
    %2516 = vmatpush1.bf16.msra.mxu0 0
    %2517 = vmatprep.subr.bf16.mxu0 0
    %2518 = vmatpush1.bf16.msra.mxu0 0
    %2519 = vmatprep.subr.bf16.mxu0 0
    %2520 = vmatpush1.bf16.msra.mxu0 0
    %2521 = vmatprep.subr.bf16.mxu0 0
    %2522 = vmatpush1.bf16.msra.mxu0 0
    %2523 = vmatprep.subr.bf16.mxu0 0
    %2524 = vmatpush1.bf16.msra.mxu0 0
    %2525 = vmatprep.subr.bf16.mxu0 0
    %2526 = vmatpush1.bf16.msra.mxu0 0
    %2527 = vmatprep.subr.bf16.mxu0 0
    %2528 = vmatpush1.bf16.msra.mxu0 0
    %2529 = vmatprep.subr.bf16.mxu0 0
    %2530 = vmatpush1.bf16.msra.mxu0 0
    %2531 = vmatprep.subr.bf16.mxu0 0
    %2532 = vmatpush1.bf16.msra.mxu0 0
    %2533 = vmatprep.subr.bf16.mxu0 0
    %2534 = vmatpush1.bf16.msra.mxu0 0
    %2535 = vmatprep.subr.bf16.mxu0 0
    %2536 = vmatpush1.bf16.msra.mxu0 0
    %2537 = vmatprep.subr.bf16.mxu0 0
    %2538 = vmatpush1.bf16.msra.mxu0 0
    %2539 = vmatprep.subr.bf16.mxu0 0
    %2540 = vmatpush1.bf16.msra.mxu0 0
    %2541 = vmatprep.subr.bf16.mxu0 0
    %2542 = vmatpush1.bf16.msra.mxu0 0
    %2543 = vmatprep.mubr.bf16.mxu0 0
    %2544 = vmatmul.mubr.bf16.gmra.mrb[0].mxu0 %v2505
    %v2545 = vpop.f32.mrb[0].mxu0
    %v2546 = vadd.f32 0.0, %v2545
    %v2547 = vpop.f32.mrb[0].mxu0
    %v2548 = vpop.f32.mrb[0].mxu0
    %v2549 = vpop.f32.mrb[0].mxu0
    %2550 = vdwg.mxu0
    %v2552 = vsel %vm2119, %v2473, 0
    %v2555 = vsel %vm2507, %v519, 0
    %2557 = vmatprep.subr.bf16.mxu0 0
    %2558 = vmatpush1.bf16.msra.mxu0 %v2555
    %2559 = vmatprep.subr.bf16.mxu0 0
    %2560 = vmatpush1.bf16.msra.mxu0 0
    %2561 = vmatprep.subr.bf16.mxu0 0
    %2562 = vmatpush1.bf16.msra.mxu0 0
    %2563 = vmatprep.subr.bf16.mxu0 0
    %2564 = vmatpush1.bf16.msra.mxu0 0
    %2565 = vmatprep.subr.bf16.mxu0 0
    %2566 = vmatpush1.bf16.msra.mxu0 0
    %2567 = vmatprep.subr.bf16.mxu0 0
    %2568 = vmatpush1.bf16.msra.mxu0 0
    %2569 = vmatprep.subr.bf16.mxu0 0
    %2570 = vmatpush1.bf16.msra.mxu0 0
    %2571 = vmatprep.subr.bf16.mxu0 0
    %2572 = vmatpush1.bf16.msra.mxu0 0
    %2573 = vmatprep.subr.bf16.mxu0 0
    %2574 = vmatpush1.bf16.msra.mxu0 0
    %2575 = vmatprep.subr.bf16.mxu0 0
    %2576 = vmatpush1.bf16.msra.mxu0 0
    %2577 = vmatprep.subr.bf16.mxu0 0
    %2578 = vmatpush1.bf16.msra.mxu0 0
    %2579 = vmatprep.subr.bf16.mxu0 0
    %2580 = vmatpush1.bf16.msra.mxu0 0
    %2581 = vmatprep.subr.bf16.mxu0 0
    %2582 = vmatpush1.bf16.msra.mxu0 0
    %2583 = vmatprep.subr.bf16.mxu0 0
    %2584 = vmatpush1.bf16.msra.mxu0 0
    %2585 = vmatprep.subr.bf16.mxu0 0
    %2586 = vmatpush1.bf16.msra.mxu0 0
    %2587 = vmatprep.subr.bf16.mxu0 0
    %2588 = vmatpush1.bf16.msra.mxu0 0
    %2589 = vmatprep.mubr.bf16.mxu0 0
    %2590 = vmatmul.mubr.bf16.gmra.mrb[0].mxu0 %v2552
    %v2591 = vpop.f32.mrb[0].mxu0
    %v2592 = vadd.f32 0.0, %v2591
    %v2593 = vpop.f32.mrb[0].mxu0
    %v2594 = vpop.f32.mrb[0].mxu0
    %v2595 = vpop.f32.mrb[0].mxu0
    %2596 = vdwg.mxu0
    %v2598 = vsel %vm2119, %v2474, 0
    %v2601 = vsel %vm2507, %v520, 0
    %2603 = vmatprep.subr.bf16.mxu0 0
    %2604 = vmatpush1.bf16.msra.mxu0 %v2601
    %2605 = vmatprep.subr.bf16.mxu0 0
    %2606 = vmatpush1.bf16.msra.mxu0 0
    %2607 = vmatprep.subr.bf16.mxu0 0
    %2608 = vmatpush1.bf16.msra.mxu0 0
    %2609 = vmatprep.subr.bf16.mxu0 0
    %2610 = vmatpush1.bf16.msra.mxu0 0
    %2611 = vmatprep.subr.bf16.mxu0 0
    %2612 = vmatpush1.bf16.msra.mxu0 0
    %2613 = vmatprep.subr.bf16.mxu0 0
    %2614 = vmatpush1.bf16.msra.mxu0 0
    %2615 = vmatprep.subr.bf16.mxu0 0
    %2616 = vmatpush1.bf16.msra.mxu0 0
    %2617 = vmatprep.subr.bf16.mxu0 0
    %2618 = vmatpush1.bf16.msra.mxu0 0
    %2619 = vmatprep.subr.bf16.mxu0 0
    %2620 = vmatpush1.bf16.msra.mxu0 0
    %2621 = vmatprep.subr.bf16.mxu0 0
    %2622 = vmatpush1.bf16.msra.mxu0 0
    %2623 = vmatprep.subr.bf16.mxu0 0
    %2624 = vmatpush1.bf16.msra.mxu0 0
    %2625 = vmatprep.subr.bf16.mxu0 0
    %2626 = vmatpush1.bf16.msra.mxu0 0
    %2627 = vmatprep.subr.bf16.mxu0 0
    %2628 = vmatpush1.bf16.msra.mxu0 0
    %2629 = vmatprep.subr.bf16.mxu0 0
    %2630 = vmatpush1.bf16.msra.mxu0 0
    %2631 = vmatprep.subr.bf16.mxu0 0
    %2632 = vmatpush1.bf16.msra.mxu0 0
    %2633 = vmatprep.subr.bf16.mxu0 0
    %2634 = vmatpush1.bf16.msra.mxu0 0
    %2635 = vmatprep.mubr.bf16.mxu0 0
    %2636 = vmatmul.mubr.bf16.gmra.mrb[0].mxu0 %v2598
    %v2637 = vpop.f32.mrb[0].mxu0
    %v2638 = vadd.f32 0.0, %v2637
    %v2639 = vpop.f32.mrb[0].mxu0
    %v2640 = vpop.f32.mrb[0].mxu0
    %v2641 = vpop.f32.mrb[0].mxu0
    %2642 = vdwg.mxu0
    %v2644 = vsel %vm2119, %v2475, 0
    %v2647 = vsel %vm2507, %v521, 0
    %2649 = vmatprep.subr.bf16.mxu0 0
    %2650 = vmatpush1.bf16.msra.mxu0 %v2647
    %2651 = vmatprep.subr.bf16.mxu0 0
    %2652 = vmatpush1.bf16.msra.mxu0 0
    %2653 = vmatprep.subr.bf16.mxu0 0
    %2654 = vmatpush1.bf16.msra.mxu0 0
    %2655 = vmatprep.subr.bf16.mxu0 0
    %2656 = vmatpush1.bf16.msra.mxu0 0
    %2657 = vmatprep.subr.bf16.mxu0 0
    %2658 = vmatpush1.bf16.msra.mxu0 0
    %2659 = vmatprep.subr.bf16.mxu0 0
    %2660 = vmatpush1.bf16.msra.mxu0 0
    %2661 = vmatprep.subr.bf16.mxu0 0
    %2662 = vmatpush1.bf16.msra.mxu0 0
    %2663 = vmatprep.subr.bf16.mxu0 0
    %2664 = vmatpush1.bf16.msra.mxu0 0
    %2665 = vmatprep.subr.bf16.mxu0 0
    %2666 = vmatpush1.bf16.msra.mxu0 0
    %2667 = vmatprep.subr.bf16.mxu0 0
    %2668 = vmatpush1.bf16.msra.mxu0 0
    %2669 = vmatprep.subr.bf16.mxu0 0
    %2670 = vmatpush1.bf16.msra.mxu0 0
    %2671 = vmatprep.subr.bf16.mxu0 0
    %2672 = vmatpush1.bf16.msra.mxu0 0
    %2673 = vmatprep.subr.bf16.mxu0 0
    %2674 = vmatpush1.bf16.msra.mxu0 0
    %2675 = vmatprep.subr.bf16.mxu0 0
    %2676 = vmatpush1.bf16.msra.mxu0 0
    %2677 = vmatprep.subr.bf16.mxu0 0
    %2678 = vmatpush1.bf16.msra.mxu0 0
    %2679 = vmatprep.subr.bf16.mxu0 0
    %2680 = vmatpush1.bf16.msra.mxu0 0
    %2681 = vmatprep.mubr.bf16.mxu0 0
    %2682 = vmatmul.mubr.bf16.gmra.mrb[0].mxu0 %v2644
    %v2683 = vpop.f32.mrb[0].mxu0
    %v2684 = vadd.f32 0.0, %v2683
    %v2685 = vpop.f32.mrb[0].mxu0
    %v2686 = vpop.f32.mrb[0].mxu0
    %v2687 = vpop.f32.mrb[0].mxu0
    %2688 = vdwg.mxu0
    %v2690 = vsel %vm2119, %v2476, 0
    %v2693 = vsel %vm2507, %v522, 0
    %2695 = vmatprep.subr.bf16.mxu0 0
    %2696 = vmatpush1.bf16.msra.mxu0 %v2693
    %2697 = vmatprep.subr.bf16.mxu0 0
    %2698 = vmatpush1.bf16.msra.mxu0 0
    %2699 = vmatprep.subr.bf16.mxu0 0
    %2700 = vmatpush1.bf16.msra.mxu0 0
    %2701 = vmatprep.subr.bf16.mxu0 0
    %2702 = vmatpush1.bf16.msra.mxu0 0
    %2703 = vmatprep.subr.bf16.mxu0 0
    %2704 = vmatpush1.bf16.msra.mxu0 0
    %2705 = vmatprep.subr.bf16.mxu0 0
    %2706 = vmatpush1.bf16.msra.mxu0 0
    %2707 = vmatprep.subr.bf16.mxu0 0
    %2708 = vmatpush1.bf16.msra.mxu0 0
    %2709 = vmatprep.subr.bf16.mxu0 0
    %2710 = vmatpush1.bf16.msra.mxu0 0
    %2711 = vmatprep.subr.bf16.mxu0 0
    %2712 = vmatpush1.bf16.msra.mxu0 0
    %2713 = vmatprep.subr.bf16.mxu0 0
    %2714 = vmatpush1.bf16.msra.mxu0 0
    %2715 = vmatprep.subr.bf16.mxu0 0
    %2716 = vmatpush1.bf16.msra.mxu0 0
    %2717 = vmatprep.subr.bf16.mxu0 0
    %2718 = vmatpush1.bf16.msra.mxu0 0
    %2719 = vmatprep.subr.bf16.mxu0 0
    %2720 = vmatpush1.bf16.msra.mxu0 0
    %2721 = vmatprep.subr.bf16.mxu0 0
    %2722 = vmatpush1.bf16.msra.mxu0 0
    %2723 = vmatprep.subr.bf16.mxu0 0
    %2724 = vmatpush1.bf16.msra.mxu0 0
    %2725 = vmatprep.subr.bf16.mxu0 0
    %2726 = vmatpush1.bf16.msra.mxu0 0
    %2727 = vmatprep.mubr.bf16.mxu0 0
    %2728 = vmatmul.mubr.bf16.gmra.mrb[0].mxu0 %v2690
    %v2729 = vpop.f32.mrb[0].mxu0
    %v2730 = vadd.f32 0.0, %v2729
    %v2731 = vpop.f32.mrb[0].mxu0
    %v2732 = vpop.f32.mrb[0].mxu0
    %v2733 = vpop.f32.mrb[0].mxu0
    %2734 = vdwg.mxu0
    %v2736 = vsel %vm2119, %v2477, 0
    %v2739 = vsel %vm2507, %v523, 0
    %2741 = vmatprep.subr.bf16.mxu0 0
    %2742 = vmatpush1.bf16.msra.mxu0 %v2739
    %2743 = vmatprep.subr.bf16.mxu0 0
    %2744 = vmatpush1.bf16.msra.mxu0 0
    %2745 = vmatprep.subr.bf16.mxu0 0
    %2746 = vmatpush1.bf16.msra.mxu0 0
    %2747 = vmatprep.subr.bf16.mxu0 0
    %2748 = vmatpush1.bf16.msra.mxu0 0
    %2749 = vmatprep.subr.bf16.mxu0 0
    %2750 = vmatpush1.bf16.msra.mxu0 0
    %2751 = vmatprep.subr.bf16.mxu0 0
    %2752 = vmatpush1.bf16.msra.mxu0 0
    %2753 = vmatprep.subr.bf16.mxu0 0
    %2754 = vmatpush1.bf16.msra.mxu0 0
    %2755 = vmatprep.subr.bf16.mxu0 0
    %2756 = vmatpush1.bf16.msra.mxu0 0
    %2757 = vmatprep.subr.bf16.mxu0 0
    %2758 = vmatpush1.bf16.msra.mxu0 0
    %2759 = vmatprep.subr.bf16.mxu0 0
    %2760 = vmatpush1.bf16.msra.mxu0 0
    %2761 = vmatprep.subr.bf16.mxu0 0
    %2762 = vmatpush1.bf16.msra.mxu0 0
    %2763 = vmatprep.subr.bf16.mxu0 0
    %2764 = vmatpush1.bf16.msra.mxu0 0
    %2765 = vmatprep.subr.bf16.mxu0 0
    %2766 = vmatpush1.bf16.msra.mxu0 0
    %2767 = vmatprep.subr.bf16.mxu0 0
    %2768 = vmatpush1.bf16.msra.mxu0 0
    %2769 = vmatprep.subr.bf16.mxu0 0
    %2770 = vmatpush1.bf16.msra.mxu0 0
    %2771 = vmatprep.subr.bf16.mxu0 0
    %2772 = vmatpush1.bf16.msra.mxu0 0
    %2773 = vmatprep.mubr.bf16.mxu0 0
    %2774 = vmatmul.mubr.bf16.gmra.mrb[0].mxu0 %v2736
    %v2775 = vpop.f32.mrb[0].mxu0
    %v2776 = vadd.f32 0.0, %v2775
    %v2777 = vpop.f32.mrb[0].mxu0
    %v2778 = vpop.f32.mrb[0].mxu0
    %v2779 = vpop.f32.mrb[0].mxu0
    %2780 = vdwg.mxu0
    %v2782 = vsel %vm2119, %v2478, 0
    %v2785 = vsel %vm2507, %v524, 0
    %2787 = vmatprep.subr.bf16.mxu0 0
    %2788 = vmatpush1.bf16.msra.mxu0 %v2785
    %2789 = vmatprep.subr.bf16.mxu0 0
    %2790 = vmatpush1.bf16.msra.mxu0 0
    %2791 = vmatprep.subr.bf16.mxu0 0
    %2792 = vmatpush1.bf16.msra.mxu0 0
    %2793 = vmatprep.subr.bf16.mxu0 0
    %2794 = vmatpush1.bf16.msra.mxu0 0
    %2795 = vmatprep.subr.bf16.mxu0 0
    %2796 = vmatpush1.bf16.msra.mxu0 0
    %2797 = vmatprep.subr.bf16.mxu0 0
    %2798 = vmatpush1.bf16.msra.mxu0 0
    %2799 = vmatprep.subr.bf16.mxu0 0
    %2800 = vmatpush1.bf16.msra.mxu0 0
    %2801 = vmatprep.subr.bf16.mxu0 0
    %2802 = vmatpush1.bf16.msra.mxu0 0
    %2803 = vmatprep.subr.bf16.mxu0 0
    %2804 = vmatpush1.bf16.msra.mxu0 0
    %2805 = vmatprep.subr.bf16.mxu0 0
    %2806 = vmatpush1.bf16.msra.mxu0 0
    %2807 = vmatprep.subr.bf16.mxu0 0
    %2808 = vmatpush1.bf16.msra.mxu0 0
    %2809 = vmatprep.subr.bf16.mxu0 0
    %2810 = vmatpush1.bf16.msra.mxu0 0
    %2811 = vmatprep.subr.bf16.mxu0 0
    %2812 = vmatpush1.bf16.msra.mxu0 0
    %2813 = vmatprep.subr.bf16.mxu0 0
    %2814 = vmatpush1.bf16.msra.mxu0 0
    %2815 = vmatprep.subr.bf16.mxu0 0
    %2816 = vmatpush1.bf16.msra.mxu0 0
    %2817 = vmatprep.subr.bf16.mxu0 0
    %2818 = vmatpush1.bf16.msra.mxu0 0
    %2819 = vmatprep.mubr.bf16.mxu0 0
    %2820 = vmatmul.mubr.bf16.gmra.mrb[0].mxu0 %v2782
    %v2821 = vpop.f32.mrb[0].mxu0
    %v2822 = vadd.f32 0.0, %v2821
    %v2823 = vpop.f32.mrb[0].mxu0
    %v2824 = vpop.f32.mrb[0].mxu0
    %v2825 = vpop.f32.mrb[0].mxu0
    %2826 = vdwg.mxu0
    %v2828 = vsel %vm2119, %v2479, 0
    %v2831 = vsel %vm2507, %v525, 0
    %2833 = vmatprep.subr.bf16.mxu0 0
    %2834 = vmatpush1.bf16.msra.mxu0 %v2831
    %2835 = vmatprep.subr.bf16.mxu0 0
    %2836 = vmatpush1.bf16.msra.mxu0 0
    %2837 = vmatprep.subr.bf16.mxu0 0
    %2838 = vmatpush1.bf16.msra.mxu0 0
    %2839 = vmatprep.subr.bf16.mxu0 0
    %2840 = vmatpush1.bf16.msra.mxu0 0
    %2841 = vmatprep.subr.bf16.mxu0 0
    %2842 = vmatpush1.bf16.msra.mxu0 0
    %2843 = vmatprep.subr.bf16.mxu0 0
    %2844 = vmatpush1.bf16.msra.mxu0 0
    %2845 = vmatprep.subr.bf16.mxu0 0
    %2846 = vmatpush1.bf16.msra.mxu0 0
    %2847 = vmatprep.subr.bf16.mxu0 0
    %2848 = vmatpush1.bf16.msra.mxu0 0
    %2849 = vmatprep.subr.bf16.mxu0 0
    %2850 = vmatpush1.bf16.msra.mxu0 0
    %2851 = vmatprep.subr.bf16.mxu0 0
    %2852 = vmatpush1.bf16.msra.mxu0 0
    %2853 = vmatprep.subr.bf16.mxu0 0
    %2854 = vmatpush1.bf16.msra.mxu0 0
    %2855 = vmatprep.subr.bf16.mxu0 0
    %2856 = vmatpush1.bf16.msra.mxu0 0
    %2857 = vmatprep.subr.bf16.mxu0 0
    %2858 = vmatpush1.bf16.msra.mxu0 0
    %2859 = vmatprep.subr.bf16.mxu0 0
    %2860 = vmatpush1.bf16.msra.mxu0 0
    %2861 = vmatprep.subr.bf16.mxu0 0
    %2862 = vmatpush1.bf16.msra.mxu0 0
    %2863 = vmatprep.subr.bf16.mxu0 0
    %2864 = vmatpush1.bf16.msra.mxu0 0
    %2865 = vmatprep.mubr.bf16.mxu0 0
    %2866 = vmatmul.mubr.bf16.gmra.mrb[0].mxu0 %v2828
    %v2867 = vpop.f32.mrb[0].mxu0
    %v2868 = vadd.f32 0.0, %v2867
    %v2869 = vpop.f32.mrb[0].mxu0
    %v2870 = vpop.f32.mrb[0].mxu0
    %v2871 = vpop.f32.mrb[0].mxu0
    %2872 = vdwg.mxu0
    %v2874 = vsel %vm2119, %v2480, 0
    %v2877 = vsel %vm2507, %v526, 0
    %2879 = vmatprep.subr.bf16.mxu0 0
    %2880 = vmatpush1.bf16.msra.mxu0 %v2877
    %2881 = vmatprep.subr.bf16.mxu0 0
    %2882 = vmatpush1.bf16.msra.mxu0 0
    %2883 = vmatprep.subr.bf16.mxu0 0
    %2884 = vmatpush1.bf16.msra.mxu0 0
    %2885 = vmatprep.subr.bf16.mxu0 0
    %2886 = vmatpush1.bf16.msra.mxu0 0
    %2887 = vmatprep.subr.bf16.mxu0 0
    %2888 = vmatpush1.bf16.msra.mxu0 0
    %2889 = vmatprep.subr.bf16.mxu0 0
    %2890 = vmatpush1.bf16.msra.mxu0 0
    %2891 = vmatprep.subr.bf16.mxu0 0
    %2892 = vmatpush1.bf16.msra.mxu0 0
    %2893 = vmatprep.subr.bf16.mxu0 0
    %2894 = vmatpush1.bf16.msra.mxu0 0
    %2895 = vmatprep.subr.bf16.mxu0 0
    %2896 = vmatpush1.bf16.msra.mxu0 0
    %2897 = vmatprep.subr.bf16.mxu0 0
    %2898 = vmatpush1.bf16.msra.mxu0 0
    %2899 = vmatprep.subr.bf16.mxu0 0
    %2900 = vmatpush1.bf16.msra.mxu0 0
    %2901 = vmatprep.subr.bf16.mxu0 0
    %2902 = vmatpush1.bf16.msra.mxu0 0
    %2903 = vmatprep.subr.bf16.mxu0 0
    %2904 = vmatpush1.bf16.msra.mxu0 0
    %2905 = vmatprep.subr.bf16.mxu0 0
    %2906 = vmatpush1.bf16.msra.mxu0 0
    %2907 = vmatprep.subr.bf16.mxu0 0
    %2908 = vmatpush1.bf16.msra.mxu0 0
    %2909 = vmatprep.subr.bf16.mxu0 0
    %2910 = vmatpush1.bf16.msra.mxu0 0
    %2911 = vmatprep.mubr.bf16.mxu0 0
    %2912 = vmatmul.mubr.bf16.gmra.mrb[0].mxu0 %v2874
    %v2913 = vpop.f32.mrb[0].mxu0
    %v2914 = vadd.f32 0.0, %v2913
    %v2915 = vpop.f32.mrb[0].mxu0
    %v2916 = vpop.f32.mrb[0].mxu0
    %v2917 = vpop.f32.mrb[0].mxu0
    %2918 = vdwg.mxu0
    %v2920 = vsel %vm2119, %v2481, 0
    %v2923 = vsel %vm2507, %v527, 0
    %2925 = vmatprep.subr.bf16.mxu0 0
    %2926 = vmatpush1.bf16.msra.mxu0 %v2923
    %2927 = vmatprep.subr.bf16.mxu0 0
    %2928 = vmatpush1.bf16.msra.mxu0 0
    %2929 = vmatprep.subr.bf16.mxu0 0
    %2930 = vmatpush1.bf16.msra.mxu0 0
    %2931 = vmatprep.subr.bf16.mxu0 0
    %2932 = vmatpush1.bf16.msra.mxu0 0
    %2933 = vmatprep.subr.bf16.mxu0 0
    %2934 = vmatpush1.bf16.msra.mxu0 0
    %2935 = vmatprep.subr.bf16.mxu0 0
    %2936 = vmatpush1.bf16.msra.mxu0 0
    %2937 = vmatprep.subr.bf16.mxu0 0
    %2938 = vmatpush1.bf16.msra.mxu0 0
    %2939 = vmatprep.subr.bf16.mxu0 0
    %2940 = vmatpush1.bf16.msra.mxu0 0
    %2941 = vmatprep.subr.bf16.mxu0 0
    %2942 = vmatpush1.bf16.msra.mxu0 0
    %2943 = vmatprep.subr.bf16.mxu0 0
    %2944 = vmatpush1.bf16.msra.mxu0 0
    %2945 = vmatprep.subr.bf16.mxu0 0
    %2946 = vmatpush1.bf16.msra.mxu0 0
    %2947 = vmatprep.subr.bf16.mxu0 0
    %2948 = vmatpush1.bf16.msra.mxu0 0
    %2949 = vmatprep.subr.bf16.mxu0 0
    %2950 = vmatpush1.bf16.msra.mxu0 0
    %2951 = vmatprep.subr.bf16.mxu0 0
    %2952 = vmatpush1.bf16.msra.mxu0 0
    %2953 = vmatprep.subr.bf16.mxu0 0
    %2954 = vmatpush1.bf16.msra.mxu0 0
    %2955 = vmatprep.subr.bf16.mxu0 0
    %2956 = vmatpush1.bf16.msra.mxu0 0
    %2957 = vmatprep.mubr.bf16.mxu0 0
    %2958 = vmatmul.mubr.bf16.gmra.mrb[0].mxu0 %v2920
    %v2959 = vpop.f32.mrb[0].mxu0
    %v2960 = vadd.f32 0.0, %v2959
    %v2961 = vpop.f32.mrb[0].mxu0
    %v2962 = vpop.f32.mrb[0].mxu0
    %v2963 = vpop.f32.mrb[0].mxu0
    %2964 = vdwg.mxu0
    %v2966 = vsel %vm2119, %v2482, 0
    %v2969 = vsel %vm2507, %v528, 0
    %2971 = vmatprep.subr.bf16.mxu0 0
    %2972 = vmatpush1.bf16.msra.mxu0 %v2969
    %2973 = vmatprep.subr.bf16.mxu0 0
    %2974 = vmatpush1.bf16.msra.mxu0 0
    %2975 = vmatprep.subr.bf16.mxu0 0
    %2976 = vmatpush1.bf16.msra.mxu0 0
    %2977 = vmatprep.subr.bf16.mxu0 0
    %2978 = vmatpush1.bf16.msra.mxu0 0
    %2979 = vmatprep.subr.bf16.mxu0 0
    %2980 = vmatpush1.bf16.msra.mxu0 0
    %2981 = vmatprep.subr.bf16.mxu0 0
    %2982 = vmatpush1.bf16.msra.mxu0 0
    %2983 = vmatprep.subr.bf16.mxu0 0
    %2984 = vmatpush1.bf16.msra.mxu0 0
    %2985 = vmatprep.subr.bf16.mxu0 0
    %2986 = vmatpush1.bf16.msra.mxu0 0
    %2987 = vmatprep.subr.bf16.mxu0 0
    %2988 = vmatpush1.bf16.msra.mxu0 0
    %2989 = vmatprep.subr.bf16.mxu0 0
    %2990 = vmatpush1.bf16.msra.mxu0 0
    %2991 = vmatprep.subr.bf16.mxu0 0
    %2992 = vmatpush1.bf16.msra.mxu0 0
    %2993 = vmatprep.subr.bf16.mxu0 0
    %2994 = vmatpush1.bf16.msra.mxu0 0
    %2995 = vmatprep.subr.bf16.mxu0 0
    %2996 = vmatpush1.bf16.msra.mxu0 0
    %2997 = vmatprep.subr.bf16.mxu0 0
    %2998 = vmatpush1.bf16.msra.mxu0 0
    %2999 = vmatprep.subr.bf16.mxu0 0
    %3000 = vmatpush1.bf16.msra.mxu0 0
    %3001 = vmatprep.subr.bf16.mxu0 0
    %3002 = vmatpush1.bf16.msra.mxu0 0
    %3003 = vmatprep.mubr.bf16.mxu0 0
    %3004 = vmatmul.mubr.bf16.gmra.mrb[0].mxu0 %v2966
    %v3005 = vpop.f32.mrb[0].mxu0
    %v3006 = vadd.f32 0.0, %v3005
    %v3007 = vpop.f32.mrb[0].mxu0
    %v3008 = vpop.f32.mrb[0].mxu0
    %v3009 = vpop.f32.mrb[0].mxu0
    %3010 = vdwg.mxu0
    %v3012 = vsel %vm2119, %v2483, 0
    %v3015 = vsel %vm2507, %v529, 0
    %3017 = vmatprep.subr.bf16.mxu0 0
    %3018 = vmatpush1.bf16.msra.mxu0 %v3015
    %3019 = vmatprep.subr.bf16.mxu0 0
    %3020 = vmatpush1.bf16.msra.mxu0 0
    %3021 = vmatprep.subr.bf16.mxu0 0
    %3022 = vmatpush1.bf16.msra.mxu0 0
    %3023 = vmatprep.subr.bf16.mxu0 0
    %3024 = vmatpush1.bf16.msra.mxu0 0
    %3025 = vmatprep.subr.bf16.mxu0 0
    %3026 = vmatpush1.bf16.msra.mxu0 0
    %3027 = vmatprep.subr.bf16.mxu0 0
    %3028 = vmatpush1.bf16.msra.mxu0 0
    %3029 = vmatprep.subr.bf16.mxu0 0
    %3030 = vmatpush1.bf16.msra.mxu0 0
    %3031 = vmatprep.subr.bf16.mxu0 0
    %3032 = vmatpush1.bf16.msra.mxu0 0
    %3033 = vmatprep.subr.bf16.mxu0 0
    %3034 = vmatpush1.bf16.msra.mxu0 0
    %3035 = vmatprep.subr.bf16.mxu0 0
    %3036 = vmatpush1.bf16.msra.mxu0 0
    %3037 = vmatprep.subr.bf16.mxu0 0
    %3038 = vmatpush1.bf16.msra.mxu0 0
    %3039 = vmatprep.subr.bf16.mxu0 0
    %3040 = vmatpush1.bf16.msra.mxu0 0
    %3041 = vmatprep.subr.bf16.mxu0 0
    %3042 = vmatpush1.bf16.msra.mxu0 0
    %3043 = vmatprep.subr.bf16.mxu0 0
    %3044 = vmatpush1.bf16.msra.mxu0 0
    %3045 = vmatprep.subr.bf16.mxu0 0
    %3046 = vmatpush1.bf16.msra.mxu0 0
    %3047 = vmatprep.subr.bf16.mxu0 0
    %3048 = vmatpush1.bf16.msra.mxu0 0
    %3049 = vmatprep.mubr.bf16.mxu0 0
    %3050 = vmatmul.mubr.bf16.gmra.mrb[0].mxu0 %v3012
    %v3051 = vpop.f32.mrb[0].mxu0
    %v3052 = vadd.f32 0.0, %v3051
    %v3053 = vpop.f32.mrb[0].mxu0
    %v3054 = vpop.f32.mrb[0].mxu0
    %v3055 = vpop.f32.mrb[0].mxu0
    %3056 = vdwg.mxu0
    %v3058 = vsel %vm2119, %v2484, 0
    %v3061 = vsel %vm2507, %v530, 0
    %3063 = vmatprep.subr.bf16.mxu0 0
    %3064 = vmatpush1.bf16.msra.mxu0 %v3061
    %3065 = vmatprep.subr.bf16.mxu0 0
    %3066 = vmatpush1.bf16.msra.mxu0 0
    %3067 = vmatprep.subr.bf16.mxu0 0
    %3068 = vmatpush1.bf16.msra.mxu0 0
    %3069 = vmatprep.subr.bf16.mxu0 0
    %3070 = vmatpush1.bf16.msra.mxu0 0
    %3071 = vmatprep.subr.bf16.mxu0 0
    %3072 = vmatpush1.bf16.msra.mxu0 0
    %3073 = vmatprep.subr.bf16.mxu0 0
    %3074 = vmatpush1.bf16.msra.mxu0 0
    %3075 = vmatprep.subr.bf16.mxu0 0
    %3076 = vmatpush1.bf16.msra.mxu0 0
    %3077 = vmatprep.subr.bf16.mxu0 0
    %3078 = vmatpush1.bf16.msra.mxu0 0
    %3079 = vmatprep.subr.bf16.mxu0 0
    %3080 = vmatpush1.bf16.msra.mxu0 0
    %3081 = vmatprep.subr.bf16.mxu0 0
    %3082 = vmatpush1.bf16.msra.mxu0 0
    %3083 = vmatprep.subr.bf16.mxu0 0
    %3084 = vmatpush1.bf16.msra.mxu0 0
    %3085 = vmatprep.subr.bf16.mxu0 0
    %3086 = vmatpush1.bf16.msra.mxu0 0
    %3087 = vmatprep.subr.bf16.mxu0 0
    %3088 = vmatpush1.bf16.msra.mxu0 0
    %3089 = vmatprep.subr.bf16.mxu0 0
    %3090 = vmatpush1.bf16.msra.mxu0 0
    %3091 = vmatprep.subr.bf16.mxu0 0
    %3092 = vmatpush1.bf16.msra.mxu0 0
    %3093 = vmatprep.subr.bf16.mxu0 0
    %3094 = vmatpush1.bf16.msra.mxu0 0
    %3095 = vmatprep.mubr.bf16.mxu0 0
    %3096 = vmatmul.mubr.bf16.gmra.mrb[0].mxu0 %v3058
    %v3097 = vpop.f32.mrb[0].mxu0
    %v3098 = vadd.f32 0.0, %v3097
    %v3099 = vpop.f32.mrb[0].mxu0
    %v3100 = vpop.f32.mrb[0].mxu0
    %v3101 = vpop.f32.mrb[0].mxu0
    %3102 = vdwg.mxu0
    %v3104 = vsel %vm2119, %v2485, 0
    %v3107 = vsel %vm2507, %v531, 0
    %3109 = vmatprep.subr.bf16.mxu0 0
    %3110 = vmatpush1.bf16.msra.mxu0 %v3107
    %3111 = vmatprep.subr.bf16.mxu0 0
    %3112 = vmatpush1.bf16.msra.mxu0 0
    %3113 = vmatprep.subr.bf16.mxu0 0
    %3114 = vmatpush1.bf16.msra.mxu0 0
    %3115 = vmatprep.subr.bf16.mxu0 0
    %3116 = vmatpush1.bf16.msra.mxu0 0
    %3117 = vmatprep.subr.bf16.mxu0 0
    %3118 = vmatpush1.bf16.msra.mxu0 0
    %3119 = vmatprep.subr.bf16.mxu0 0
    %3120 = vmatpush1.bf16.msra.mxu0 0
    %3121 = vmatprep.subr.bf16.mxu0 0
    %3122 = vmatpush1.bf16.msra.mxu0 0
    %3123 = vmatprep.subr.bf16.mxu0 0
    %3124 = vmatpush1.bf16.msra.mxu0 0
    %3125 = vmatprep.subr.bf16.mxu0 0
    %3126 = vmatpush1.bf16.msra.mxu0 0
    %3127 = vmatprep.subr.bf16.mxu0 0
    %3128 = vmatpush1.bf16.msra.mxu0 0
    %3129 = vmatprep.subr.bf16.mxu0 0
    %3130 = vmatpush1.bf16.msra.mxu0 0
    %3131 = vmatprep.subr.bf16.mxu0 0
    %3132 = vmatpush1.bf16.msra.mxu0 0
    %3133 = vmatprep.subr.bf16.mxu0 0
    %3134 = vmatpush1.bf16.msra.mxu0 0
    %3135 = vmatprep.subr.bf16.mxu0 0
    %3136 = vmatpush1.bf16.msra.mxu0 0
    %3137 = vmatprep.subr.bf16.mxu0 0
    %3138 = vmatpush1.bf16.msra.mxu0 0
    %3139 = vmatprep.subr.bf16.mxu0 0
    %3140 = vmatpush1.bf16.msra.mxu0 0
    %3141 = vmatprep.mubr.bf16.mxu0 0
    %3142 = vmatmul.mubr.bf16.gmra.mrb[0].mxu0 %v3104
    %v3143 = vpop.f32.mrb[0].mxu0
    %v3144 = vadd.f32 0.0, %v3143
    %v3145 = vpop.f32.mrb[0].mxu0
    %v3146 = vpop.f32.mrb[0].mxu0
    %v3147 = vpop.f32.mrb[0].mxu0
    %3148 = vdwg.mxu0
    %v3150 = vsel %vm2119, %v2486, 0
    %v3153 = vsel %vm2507, %v532, 0
    %3155 = vmatprep.subr.bf16.mxu0 0
    %3156 = vmatpush1.bf16.msra.mxu0 %v3153
    %3157 = vmatprep.subr.bf16.mxu0 0
    %3158 = vmatpush1.bf16.msra.mxu0 0
    %3159 = vmatprep.subr.bf16.mxu0 0
    %3160 = vmatpush1.bf16.msra.mxu0 0
    %3161 = vmatprep.subr.bf16.mxu0 0
    %3162 = vmatpush1.bf16.msra.mxu0 0
    %3163 = vmatprep.subr.bf16.mxu0 0
    %3164 = vmatpush1.bf16.msra.mxu0 0
    %3165 = vmatprep.subr.bf16.mxu0 0
    %3166 = vmatpush1.bf16.msra.mxu0 0
    %3167 = vmatprep.subr.bf16.mxu0 0
    %3168 = vmatpush1.bf16.msra.mxu0 0
    %3169 = vmatprep.subr.bf16.mxu0 0
    %3170 = vmatpush1.bf16.msra.mxu0 0
    %3171 = vmatprep.subr.bf16.mxu0 0
    %3172 = vmatpush1.bf16.msra.mxu0 0
    %3173 = vmatprep.subr.bf16.mxu0 0
    %3174 = vmatpush1.bf16.msra.mxu0 0
    %3175 = vmatprep.subr.bf16.mxu0 0
    %3176 = vmatpush1.bf16.msra.mxu0 0
    %3177 = vmatprep.subr.bf16.mxu0 0
    %3178 = vmatpush1.bf16.msra.mxu0 0
    %3179 = vmatprep.subr.bf16.mxu0 0
    %3180 = vmatpush1.bf16.msra.mxu0 0
    %3181 = vmatprep.subr.bf16.mxu0 0
    %3182 = vmatpush1.bf16.msra.mxu0 0
    %3183 = vmatprep.subr.bf16.mxu0 0
    %3184 = vmatpush1.bf16.msra.mxu0 0
    %3185 = vmatprep.subr.bf16.mxu0 0
    %3186 = vmatpush1.bf16.msra.mxu0 0
    %3187 = vmatprep.mubr.bf16.mxu0 0
    %3188 = vmatmul.mubr.bf16.gmra.mrb[0].mxu0 %v3150
    %v3189 = vpop.f32.mrb[0].mxu0
    %v3190 = vadd.f32 0.0, %v3189
    %v3191 = vpop.f32.mrb[0].mxu0
    %v3192 = vpop.f32.mrb[0].mxu0
    %v3193 = vpop.f32.mrb[0].mxu0
    %3194 = vdwg.mxu0
    %v3196 = vsel %vm2119, %v2487, 0
    %v3199 = vsel %vm2507, %v533, 0
    %3201 = vmatprep.subr.bf16.mxu0 0
    %3202 = vmatpush1.bf16.msra.mxu0 %v3199
    %3203 = vmatprep.subr.bf16.mxu0 0
    %3204 = vmatpush1.bf16.msra.mxu0 0
    %3205 = vmatprep.subr.bf16.mxu0 0
    %3206 = vmatpush1.bf16.msra.mxu0 0
    %3207 = vmatprep.subr.bf16.mxu0 0
    %3208 = vmatpush1.bf16.msra.mxu0 0
    %3209 = vmatprep.subr.bf16.mxu0 0
    %3210 = vmatpush1.bf16.msra.mxu0 0
    %3211 = vmatprep.subr.bf16.mxu0 0
    %3212 = vmatpush1.bf16.msra.mxu0 0
    %3213 = vmatprep.subr.bf16.mxu0 0
    %3214 = vmatpush1.bf16.msra.mxu0 0
    %3215 = vmatprep.subr.bf16.mxu0 0
    %3216 = vmatpush1.bf16.msra.mxu0 0
    %3217 = vmatprep.subr.bf16.mxu0 0
    %3218 = vmatpush1.bf16.msra.mxu0 0
    %3219 = vmatprep.subr.bf16.mxu0 0
    %3220 = vmatpush1.bf16.msra.mxu0 0
    %3221 = vmatprep.subr.bf16.mxu0 0
    %3222 = vmatpush1.bf16.msra.mxu0 0
    %3223 = vmatprep.subr.bf16.mxu0 0
    %3224 = vmatpush1.bf16.msra.mxu0 0
    %3225 = vmatprep.subr.bf16.mxu0 0
    %3226 = vmatpush1.bf16.msra.mxu0 0
    %3227 = vmatprep.subr.bf16.mxu0 0
    %3228 = vmatpush1.bf16.msra.mxu0 0
    %3229 = vmatprep.subr.bf16.mxu0 0
    %3230 = vmatpush1.bf16.msra.mxu0 0
    %3231 = vmatprep.subr.bf16.mxu0 0
    %3232 = vmatpush1.bf16.msra.mxu0 0
    %3233 = vmatprep.mubr.bf16.mxu0 0
    %3234 = vmatmul.mubr.bf16.gmra.mrb[0].mxu0 %v3196
    %v3235 = vpop.f32.mrb[0].mxu0
    %v3236 = vadd.f32 0.0, %v3235
    %v3237 = vpop.f32.mrb[0].mxu0
    %v3238 = vpop.f32.mrb[0].mxu0
    %v3239 = vpop.f32.mrb[0].mxu0
    %3240 = vdwg.mxu0
    %v3242 = vsel %vm2119, %v2488, 0
    %v3245 = vsel %vm2507, %v534, 0
    %3247 = vmatprep.subr.bf16.mxu0 0
    %3248 = vmatpush1.bf16.msra.mxu0 %v3245
    %3249 = vmatprep.subr.bf16.mxu0 0
    %3250 = vmatpush1.bf16.msra.mxu0 0
    %3251 = vmatprep.subr.bf16.mxu0 0
    %3252 = vmatpush1.bf16.msra.mxu0 0
    %3253 = vmatprep.subr.bf16.mxu0 0
    %3254 = vmatpush1.bf16.msra.mxu0 0
    %3255 = vmatprep.subr.bf16.mxu0 0
    %3256 = vmatpush1.bf16.msra.mxu0 0
    %3257 = vmatprep.subr.bf16.mxu0 0
    %3258 = vmatpush1.bf16.msra.mxu0 0
    %3259 = vmatprep.subr.bf16.mxu0 0
    %3260 = vmatpush1.bf16.msra.mxu0 0
    %3261 = vmatprep.subr.bf16.mxu0 0
    %3262 = vmatpush1.bf16.msra.mxu0 0
    %3263 = vmatprep.subr.bf16.mxu0 0
    %3264 = vmatpush1.bf16.msra.mxu0 0
    %3265 = vmatprep.subr.bf16.mxu0 0
    %3266 = vmatpush1.bf16.msra.mxu0 0
    %3267 = vmatprep.subr.bf16.mxu0 0
    %3268 = vmatpush1.bf16.msra.mxu0 0
    %3269 = vmatprep.subr.bf16.mxu0 0
    %3270 = vmatpush1.bf16.msra.mxu0 0
    %3271 = vmatprep.subr.bf16.mxu0 0
    %3272 = vmatpush1.bf16.msra.mxu0 0
    %3273 = vmatprep.subr.bf16.mxu0 0
    %3274 = vmatpush1.bf16.msra.mxu0 0
    %3275 = vmatprep.subr.bf16.mxu0 0
    %3276 = vmatpush1.bf16.msra.mxu0 0
    %3277 = vmatprep.subr.bf16.mxu0 0
    %3278 = vmatpush1.bf16.msra.mxu0 0
    %3279 = vmatprep.mubr.bf16.mxu0 0
    %3280 = vmatmul.mubr.bf16.gmra.mrb[0].mxu0 %v3242
    %v3281 = vpop.f32.mrb[0].mxu0
    %v3282 = vadd.f32 0.0, %v3281
    %v3283 = vpop.f32.mrb[0].mxu0
    %v3284 = vpop.f32.mrb[0].mxu0
    %v3285 = vpop.f32.mrb[0].mxu0
    %3286 = vdwg.mxu0
    %v3288 = vsel %vm2119, %v2489, 0
    %v3291 = vsel %vm2507, %v535, 0
    %3293 = vmatprep.subr.bf16.mxu0 0
    %3294 = vmatpush1.bf16.msra.mxu0 %v3291
    %3295 = vmatprep.subr.bf16.mxu0 0
    %3296 = vmatpush1.bf16.msra.mxu0 0
    %3297 = vmatprep.subr.bf16.mxu0 0
    %3298 = vmatpush1.bf16.msra.mxu0 0
    %3299 = vmatprep.subr.bf16.mxu0 0
    %3300 = vmatpush1.bf16.msra.mxu0 0
    %3301 = vmatprep.subr.bf16.mxu0 0
    %3302 = vmatpush1.bf16.msra.mxu0 0
    %3303 = vmatprep.subr.bf16.mxu0 0
    %3304 = vmatpush1.bf16.msra.mxu0 0
    %3305 = vmatprep.subr.bf16.mxu0 0
    %3306 = vmatpush1.bf16.msra.mxu0 0
    %3307 = vmatprep.subr.bf16.mxu0 0
    %3308 = vmatpush1.bf16.msra.mxu0 0
    %3309 = vmatprep.subr.bf16.mxu0 0
    %3310 = vmatpush1.bf16.msra.mxu0 0
    %3311 = vmatprep.subr.bf16.mxu0 0
    %3312 = vmatpush1.bf16.msra.mxu0 0
    %3313 = vmatprep.subr.bf16.mxu0 0
    %3314 = vmatpush1.bf16.msra.mxu0 0
    %3315 = vmatprep.subr.bf16.mxu0 0
    %3316 = vmatpush1.bf16.msra.mxu0 0
    %3317 = vmatprep.subr.bf16.mxu0 0
    %3318 = vmatpush1.bf16.msra.mxu0 0
    %3319 = vmatprep.subr.bf16.mxu0 0
    %3320 = vmatpush1.bf16.msra.mxu0 0
    %3321 = vmatprep.subr.bf16.mxu0 0
    %3322 = vmatpush1.bf16.msra.mxu0 0
    %3323 = vmatprep.subr.bf16.mxu0 0
    %3324 = vmatpush1.bf16.msra.mxu0 0
    %3325 = vmatprep.mubr.bf16.mxu0 0
    %3326 = vmatmul.mubr.bf16.gmra.mrb[0].mxu0 %v3288
    %v3327 = vpop.f32.mrb[0].mxu0
    %v3328 = vadd.f32 0.0, %v3327
    %v3329 = vpop.f32.mrb[0].mxu0
    %v3330 = vpop.f32.mrb[0].mxu0
    %v3331 = vpop.f32.mrb[0].mxu0
    %3332 = vdwg.mxu0
    %v3334 = vsel %vm2119, %v2490, 0
    %v3337 = vsel %vm2507, %v536, 0
    %3339 = vmatprep.subr.bf16.mxu0 0
    %3340 = vmatpush1.bf16.msra.mxu0 %v3337
    %3341 = vmatprep.subr.bf16.mxu0 0
    %3342 = vmatpush1.bf16.msra.mxu0 0
    %3343 = vmatprep.subr.bf16.mxu0 0
    %3344 = vmatpush1.bf16.msra.mxu0 0
    %3345 = vmatprep.subr.bf16.mxu0 0
    %3346 = vmatpush1.bf16.msra.mxu0 0
    %3347 = vmatprep.subr.bf16.mxu0 0
    %3348 = vmatpush1.bf16.msra.mxu0 0
    %3349 = vmatprep.subr.bf16.mxu0 0
    %3350 = vmatpush1.bf16.msra.mxu0 0
    %3351 = vmatprep.subr.bf16.mxu0 0
    %3352 = vmatpush1.bf16.msra.mxu0 0
    %3353 = vmatprep.subr.bf16.mxu0 0
    %3354 = vmatpush1.bf16.msra.mxu0 0
    %3355 = vmatprep.subr.bf16.mxu0 0
    %3356 = vmatpush1.bf16.msra.mxu0 0
    %3357 = vmatprep.subr.bf16.mxu0 0
    %3358 = vmatpush1.bf16.msra.mxu0 0
    %3359 = vmatprep.subr.bf16.mxu0 0
    %3360 = vmatpush1.bf16.msra.mxu0 0
    %3361 = vmatprep.subr.bf16.mxu0 0
    %3362 = vmatpush1.bf16.msra.mxu0 0
    %3363 = vmatprep.subr.bf16.mxu0 0
    %3364 = vmatpush1.bf16.msra.mxu0 0
    %3365 = vmatprep.subr.bf16.mxu0 0
    %3366 = vmatpush1.bf16.msra.mxu0 0
    %3367 = vmatprep.subr.bf16.mxu0 0
    %3368 = vmatpush1.bf16.msra.mxu0 0
    %3369 = vmatprep.subr.bf16.mxu0 0
    %3370 = vmatpush1.bf16.msra.mxu0 0
    %3371 = vmatprep.mubr.bf16.mxu0 0
    %3372 = vmatmul.mubr.bf16.gmra.mrb[0].mxu0 %v3334
    %v3373 = vpop.f32.mrb[0].mxu0
    %v3374 = vadd.f32 0.0, %v3373
    %v3375 = vpop.f32.mrb[0].mxu0
    %v3376 = vpop.f32.mrb[0].mxu0
    %v3377 = vpop.f32.mrb[0].mxu0
    %3378 = vdwg.mxu0
    %v3380 = vsel %vm2119, %v2491, 0
    %v3383 = vsel %vm2507, %v537, 0
    %3385 = vmatprep.subr.bf16.mxu0 0
    %3386 = vmatpush1.bf16.msra.mxu0 %v3383
    %3387 = vmatprep.subr.bf16.mxu0 0
    %3388 = vmatpush1.bf16.msra.mxu0 0
    %3389 = vmatprep.subr.bf16.mxu0 0
    %3390 = vmatpush1.bf16.msra.mxu0 0
    %3391 = vmatprep.subr.bf16.mxu0 0
    %3392 = vmatpush1.bf16.msra.mxu0 0
    %3393 = vmatprep.subr.bf16.mxu0 0
    %3394 = vmatpush1.bf16.msra.mxu0 0
    %3395 = vmatprep.subr.bf16.mxu0 0
    %3396 = vmatpush1.bf16.msra.mxu0 0
    %3397 = vmatprep.subr.bf16.mxu0 0
    %3398 = vmatpush1.bf16.msra.mxu0 0
    %3399 = vmatprep.subr.bf16.mxu0 0
    %3400 = vmatpush1.bf16.msra.mxu0 0
    %3401 = vmatprep.subr.bf16.mxu0 0
    %3402 = vmatpush1.bf16.msra.mxu0 0
    %3403 = vmatprep.subr.bf16.mxu0 0
    %3404 = vmatpush1.bf16.msra.mxu0 0
    %3405 = vmatprep.subr.bf16.mxu0 0
    %3406 = vmatpush1.bf16.msra.mxu0 0
    %3407 = vmatprep.subr.bf16.mxu0 0
    %3408 = vmatpush1.bf16.msra.mxu0 0
    %3409 = vmatprep.subr.bf16.mxu0 0
    %3410 = vmatpush1.bf16.msra.mxu0 0
    %3411 = vmatprep.subr.bf16.mxu0 0
    %3412 = vmatpush1.bf16.msra.mxu0 0
    %3413 = vmatprep.subr.bf16.mxu0 0
    %3414 = vmatpush1.bf16.msra.mxu0 0
    %3415 = vmatprep.subr.bf16.mxu0 0
    %3416 = vmatpush1.bf16.msra.mxu0 0
    %3417 = vmatprep.mubr.bf16.mxu0 0
    %3418 = vmatmul.mubr.bf16.gmra.mrb[0].mxu0 %v3380
    %v3419 = vpop.f32.mrb[0].mxu0
    %v3420 = vadd.f32 0.0, %v3419
    %v3421 = vpop.f32.mrb[0].mxu0
    %v3422 = vpop.f32.mrb[0].mxu0
    %v3423 = vpop.f32.mrb[0].mxu0
    %3424 = vdwg.mxu0
    %v3426 = vsel %vm2119, %v2492, 0
    %v3429 = vsel %vm2507, %v538, 0
    %3431 = vmatprep.subr.bf16.mxu0 0
    %3432 = vmatpush1.bf16.msra.mxu0 %v3429
    %3433 = vmatprep.subr.bf16.mxu0 0
    %3434 = vmatpush1.bf16.msra.mxu0 0
    %3435 = vmatprep.subr.bf16.mxu0 0
    %3436 = vmatpush1.bf16.msra.mxu0 0
    %3437 = vmatprep.subr.bf16.mxu0 0
    %3438 = vmatpush1.bf16.msra.mxu0 0
    %3439 = vmatprep.subr.bf16.mxu0 0
    %3440 = vmatpush1.bf16.msra.mxu0 0
    %3441 = vmatprep.subr.bf16.mxu0 0
    %3442 = vmatpush1.bf16.msra.mxu0 0
    %3443 = vmatprep.subr.bf16.mxu0 0
    %3444 = vmatpush1.bf16.msra.mxu0 0
    %3445 = vmatprep.subr.bf16.mxu0 0
    %3446 = vmatpush1.bf16.msra.mxu0 0
    %3447 = vmatprep.subr.bf16.mxu0 0
    %3448 = vmatpush1.bf16.msra.mxu0 0
    %3449 = vmatprep.subr.bf16.mxu0 0
    %3450 = vmatpush1.bf16.msra.mxu0 0
    %3451 = vmatprep.subr.bf16.mxu0 0
    %3452 = vmatpush1.bf16.msra.mxu0 0
    %3453 = vmatprep.subr.bf16.mxu0 0
    %3454 = vmatpush1.bf16.msra.mxu0 0
    %3455 = vmatprep.subr.bf16.mxu0 0
    %3456 = vmatpush1.bf16.msra.mxu0 0
    %3457 = vmatprep.subr.bf16.mxu0 0
    %3458 = vmatpush1.bf16.msra.mxu0 0
    %3459 = vmatprep.subr.bf16.mxu0 0
    %3460 = vmatpush1.bf16.msra.mxu0 0
    %3461 = vmatprep.subr.bf16.mxu0 0
    %3462 = vmatpush1.bf16.msra.mxu0 0
    %3463 = vmatprep.mubr.bf16.mxu0 0
    %3464 = vmatmul.mubr.bf16.gmra.mrb[0].mxu0 %v3426
    %v3465 = vpop.f32.mrb[0].mxu0
    %v3466 = vadd.f32 0.0, %v3465
    %v3467 = vpop.f32.mrb[0].mxu0
    %v3468 = vpop.f32.mrb[0].mxu0
    %v3469 = vpop.f32.mrb[0].mxu0
    %3470 = vdwg.mxu0
    %v3472 = vsel %vm2119, %v2493, 0
    %v3475 = vsel %vm2507, %v539, 0
    %3477 = vmatprep.subr.bf16.mxu0 0
    %3478 = vmatpush1.bf16.msra.mxu0 %v3475
    %3479 = vmatprep.subr.bf16.mxu0 0
    %3480 = vmatpush1.bf16.msra.mxu0 0
    %3481 = vmatprep.subr.bf16.mxu0 0
    %3482 = vmatpush1.bf16.msra.mxu0 0
    %3483 = vmatprep.subr.bf16.mxu0 0
    %3484 = vmatpush1.bf16.msra.mxu0 0
    %3485 = vmatprep.subr.bf16.mxu0 0
    %3486 = vmatpush1.bf16.msra.mxu0 0
    %3487 = vmatprep.subr.bf16.mxu0 0
    %3488 = vmatpush1.bf16.msra.mxu0 0
    %3489 = vmatprep.subr.bf16.mxu0 0
    %3490 = vmatpush1.bf16.msra.mxu0 0
    %3491 = vmatprep.subr.bf16.mxu0 0
    %3492 = vmatpush1.bf16.msra.mxu0 0
    %3493 = vmatprep.subr.bf16.mxu0 0
    %3494 = vmatpush1.bf16.msra.mxu0 0
    %3495 = vmatprep.subr.bf16.mxu0 0
    %3496 = vmatpush1.bf16.msra.mxu0 0
    %3497 = vmatprep.subr.bf16.mxu0 0
    %3498 = vmatpush1.bf16.msra.mxu0 0
    %3499 = vmatprep.subr.bf16.mxu0 0
    %3500 = vmatpush1.bf16.msra.mxu0 0
    %3501 = vmatprep.subr.bf16.mxu0 0
    %3502 = vmatpush1.bf16.msra.mxu0 0
    %3503 = vmatprep.subr.bf16.mxu0 0
    %3504 = vmatpush1.bf16.msra.mxu0 0
    %3505 = vmatprep.subr.bf16.mxu0 0
    %3506 = vmatpush1.bf16.msra.mxu0 0
    %3507 = vmatprep.subr.bf16.mxu0 0
    %3508 = vmatpush1.bf16.msra.mxu0 0
    %3509 = vmatprep.mubr.bf16.mxu0 0
    %3510 = vmatmul.mubr.bf16.gmra.mrb[0].mxu0 %v3472
    %v3511 = vpop.f32.mrb[0].mxu0
    %v3512 = vadd.f32 0.0, %v3511
    %v3513 = vpop.f32.mrb[0].mxu0
    %v3514 = vpop.f32.mrb[0].mxu0
    %v3515 = vpop.f32.mrb[0].mxu0
    %3516 = vdwg.mxu0
    %v3518 = vsel %vm2119, %v2494, 0
    %v3521 = vsel %vm2507, %v540, 0
    %3523 = vmatprep.subr.bf16.mxu0 0
    %3524 = vmatpush1.bf16.msra.mxu0 %v3521
    %3525 = vmatprep.subr.bf16.mxu0 0
    %3526 = vmatpush1.bf16.msra.mxu0 0
    %3527 = vmatprep.subr.bf16.mxu0 0
    %3528 = vmatpush1.bf16.msra.mxu0 0
    %3529 = vmatprep.subr.bf16.mxu0 0
    %3530 = vmatpush1.bf16.msra.mxu0 0
    %3531 = vmatprep.subr.bf16.mxu0 0
    %3532 = vmatpush1.bf16.msra.mxu0 0
    %3533 = vmatprep.subr.bf16.mxu0 0
    %3534 = vmatpush1.bf16.msra.mxu0 0
    %3535 = vmatprep.subr.bf16.mxu0 0
    %3536 = vmatpush1.bf16.msra.mxu0 0
    %3537 = vmatprep.subr.bf16.mxu0 0
    %3538 = vmatpush1.bf16.msra.mxu0 0
    %3539 = vmatprep.subr.bf16.mxu0 0
    %3540 = vmatpush1.bf16.msra.mxu0 0
    %3541 = vmatprep.subr.bf16.mxu0 0
    %3542 = vmatpush1.bf16.msra.mxu0 0
    %3543 = vmatprep.subr.bf16.mxu0 0
    %3544 = vmatpush1.bf16.msra.mxu0 0
    %3545 = vmatprep.subr.bf16.mxu0 0
    %3546 = vmatpush1.bf16.msra.mxu0 0
    %3547 = vmatprep.subr.bf16.mxu0 0
    %3548 = vmatpush1.bf16.msra.mxu0 0
    %3549 = vmatprep.subr.bf16.mxu0 0
    %3550 = vmatpush1.bf16.msra.mxu0 0
    %3551 = vmatprep.subr.bf16.mxu0 0
    %3552 = vmatpush1.bf16.msra.mxu0 0
    %3553 = vmatprep.subr.bf16.mxu0 0
    %3554 = vmatpush1.bf16.msra.mxu0 0
    %3555 = vmatprep.mubr.bf16.mxu0 0
    %3556 = vmatmul.mubr.bf16.gmra.mrb[0].mxu0 %v3518
    %v3557 = vpop.f32.mrb[0].mxu0
    %v3558 = vadd.f32 0.0, %v3557
    %v3559 = vpop.f32.mrb[0].mxu0
    %v3560 = vpop.f32.mrb[0].mxu0
    %v3561 = vpop.f32.mrb[0].mxu0
    %3562 = vdwg.mxu0
    %v3564 = vsel %vm2119, %v2495, 0
    %v3567 = vsel %vm2507, %v541, 0
    %3569 = vmatprep.subr.bf16.mxu0 0
    %3570 = vmatpush1.bf16.msra.mxu0 %v3567
    %3571 = vmatprep.subr.bf16.mxu0 0
    %3572 = vmatpush1.bf16.msra.mxu0 0
    %3573 = vmatprep.subr.bf16.mxu0 0
    %3574 = vmatpush1.bf16.msra.mxu0 0
    %3575 = vmatprep.subr.bf16.mxu0 0
    %3576 = vmatpush1.bf16.msra.mxu0 0
    %3577 = vmatprep.subr.bf16.mxu0 0
    %3578 = vmatpush1.bf16.msra.mxu0 0
    %3579 = vmatprep.subr.bf16.mxu0 0
    %3580 = vmatpush1.bf16.msra.mxu0 0
    %3581 = vmatprep.subr.bf16.mxu0 0
    %3582 = vmatpush1.bf16.msra.mxu0 0
    %3583 = vmatprep.subr.bf16.mxu0 0
    %3584 = vmatpush1.bf16.msra.mxu0 0
    %3585 = vmatprep.subr.bf16.mxu0 0
    %3586 = vmatpush1.bf16.msra.mxu0 0
    %3587 = vmatprep.subr.bf16.mxu0 0
    %3588 = vmatpush1.bf16.msra.mxu0 0
    %3589 = vmatprep.subr.bf16.mxu0 0
    %3590 = vmatpush1.bf16.msra.mxu0 0
    %3591 = vmatprep.subr.bf16.mxu0 0
    %3592 = vmatpush1.bf16.msra.mxu0 0
    %3593 = vmatprep.subr.bf16.mxu0 0
    %3594 = vmatpush1.bf16.msra.mxu0 0
    %3595 = vmatprep.subr.bf16.mxu0 0
    %3596 = vmatpush1.bf16.msra.mxu0 0
    %3597 = vmatprep.subr.bf16.mxu0 0
    %3598 = vmatpush1.bf16.msra.mxu0 0
    %3599 = vmatprep.subr.bf16.mxu0 0
    %3600 = vmatpush1.bf16.msra.mxu0 0
    %3601 = vmatprep.mubr.bf16.mxu0 0
    %3602 = vmatmul.mubr.bf16.gmra.mrb[0].mxu0 %v3564
    %v3603 = vpop.f32.mrb[0].mxu0
    %v3604 = vadd.f32 0.0, %v3603
    %v3605 = vpop.f32.mrb[0].mxu0
    %v3606 = vpop.f32.mrb[0].mxu0
    %v3607 = vpop.f32.mrb[0].mxu0
    %3608 = vdwg.mxu0
    %v3610 = vsel %vm2119, %v2496, 0
    %v3613 = vsel %vm2507, %v542, 0
    %3615 = vmatprep.subr.bf16.mxu0 0
    %3616 = vmatpush1.bf16.msra.mxu0 %v3613
    %3617 = vmatprep.subr.bf16.mxu0 0
    %3618 = vmatpush1.bf16.msra.mxu0 0
    %3619 = vmatprep.subr.bf16.mxu0 0
    %3620 = vmatpush1.bf16.msra.mxu0 0
    %3621 = vmatprep.subr.bf16.mxu0 0
    %3622 = vmatpush1.bf16.msra.mxu0 0
    %3623 = vmatprep.subr.bf16.mxu0 0
    %3624 = vmatpush1.bf16.msra.mxu0 0
    %3625 = vmatprep.subr.bf16.mxu0 0
    %3626 = vmatpush1.bf16.msra.mxu0 0
    %3627 = vmatprep.subr.bf16.mxu0 0
    %3628 = vmatpush1.bf16.msra.mxu0 0
    %3629 = vmatprep.subr.bf16.mxu0 0
    %3630 = vmatpush1.bf16.msra.mxu0 0
    %3631 = vmatprep.subr.bf16.mxu0 0
    %3632 = vmatpush1.bf16.msra.mxu0 0
    %3633 = vmatprep.subr.bf16.mxu0 0
    %3634 = vmatpush1.bf16.msra.mxu0 0
    %3635 = vmatprep.subr.bf16.mxu0 0
    %3636 = vmatpush1.bf16.msra.mxu0 0
    %3637 = vmatprep.subr.bf16.mxu0 0
    %3638 = vmatpush1.bf16.msra.mxu0 0
    %3639 = vmatprep.subr.bf16.mxu0 0
    %3640 = vmatpush1.bf16.msra.mxu0 0
    %3641 = vmatprep.subr.bf16.mxu0 0
    %3642 = vmatpush1.bf16.msra.mxu0 0
    %3643 = vmatprep.subr.bf16.mxu0 0
    %3644 = vmatpush1.bf16.msra.mxu0 0
    %3645 = vmatprep.subr.bf16.mxu0 0
    %3646 = vmatpush1.bf16.msra.mxu0 0
    %3647 = vmatprep.mubr.bf16.mxu0 0
    %3648 = vmatmul.mubr.bf16.gmra.mrb[0].mxu0 %v3610
    %v3649 = vpop.f32.mrb[0].mxu0
    %v3650 = vadd.f32 0.0, %v3649
    %v3651 = vpop.f32.mrb[0].mxu0
    %v3652 = vpop.f32.mrb[0].mxu0
    %v3653 = vpop.f32.mrb[0].mxu0
    %3654 = vdwg.mxu0
    %v3656 = vsel %vm2119, %v2497, 0
    %v3659 = vsel %vm2507, %v543, 0
    %3661 = vmatprep.subr.bf16.mxu0 0
    %3662 = vmatpush1.bf16.msra.mxu0 %v3659
    %3663 = vmatprep.subr.bf16.mxu0 0
    %3664 = vmatpush1.bf16.msra.mxu0 0
    %3665 = vmatprep.subr.bf16.mxu0 0
    %3666 = vmatpush1.bf16.msra.mxu0 0
    %3667 = vmatprep.subr.bf16.mxu0 0
    %3668 = vmatpush1.bf16.msra.mxu0 0
    %3669 = vmatprep.subr.bf16.mxu0 0
    %3670 = vmatpush1.bf16.msra.mxu0 0
    %3671 = vmatprep.subr.bf16.mxu0 0
    %3672 = vmatpush1.bf16.msra.mxu0 0
    %3673 = vmatprep.subr.bf16.mxu0 0
    %3674 = vmatpush1.bf16.msra.mxu0 0
    %3675 = vmatprep.subr.bf16.mxu0 0
    %3676 = vmatpush1.bf16.msra.mxu0 0
    %3677 = vmatprep.subr.bf16.mxu0 0
    %3678 = vmatpush1.bf16.msra.mxu0 0
    %3679 = vmatprep.subr.bf16.mxu0 0
    %3680 = vmatpush1.bf16.msra.mxu0 0
    %3681 = vmatprep.subr.bf16.mxu0 0
    %3682 = vmatpush1.bf16.msra.mxu0 0
    %3683 = vmatprep.subr.bf16.mxu0 0
    %3684 = vmatpush1.bf16.msra.mxu0 0
    %3685 = vmatprep.subr.bf16.mxu0 0
    %3686 = vmatpush1.bf16.msra.mxu0 0
    %3687 = vmatprep.subr.bf16.mxu0 0
    %3688 = vmatpush1.bf16.msra.mxu0 0
    %3689 = vmatprep.subr.bf16.mxu0 0
    %3690 = vmatpush1.bf16.msra.mxu0 0
    %3691 = vmatprep.subr.bf16.mxu0 0
    %3692 = vmatpush1.bf16.msra.mxu0 0
    %3693 = vmatprep.mubr.bf16.mxu0 0
    %3694 = vmatmul.mubr.bf16.gmra.mrb[0].mxu0 %v3656
    %v3695 = vpop.f32.mrb[0].mxu0
    %v3696 = vadd.f32 0.0, %v3695
    %v3697 = vpop.f32.mrb[0].mxu0
    %v3698 = vpop.f32.mrb[0].mxu0
    %v3699 = vpop.f32.mrb[0].mxu0
    %3700 = vdwg.mxu0
    %v3702 = vsel %vm2119, %v2498, 0
    %v3705 = vsel %vm2507, %v544, 0
    %3707 = vmatprep.subr.bf16.mxu0 0
    %3708 = vmatpush1.bf16.msra.mxu0 %v3705
    %3709 = vmatprep.subr.bf16.mxu0 0
    %3710 = vmatpush1.bf16.msra.mxu0 0
    %3711 = vmatprep.subr.bf16.mxu0 0
    %3712 = vmatpush1.bf16.msra.mxu0 0
    %3713 = vmatprep.subr.bf16.mxu0 0
    %3714 = vmatpush1.bf16.msra.mxu0 0
    %3715 = vmatprep.subr.bf16.mxu0 0
    %3716 = vmatpush1.bf16.msra.mxu0 0
    %3717 = vmatprep.subr.bf16.mxu0 0
    %3718 = vmatpush1.bf16.msra.mxu0 0
    %3719 = vmatprep.subr.bf16.mxu0 0
    %3720 = vmatpush1.bf16.msra.mxu0 0
    %3721 = vmatprep.subr.bf16.mxu0 0
    %3722 = vmatpush1.bf16.msra.mxu0 0
    %3723 = vmatprep.subr.bf16.mxu0 0
    %3724 = vmatpush1.bf16.msra.mxu0 0
    %3725 = vmatprep.subr.bf16.mxu0 0
    %3726 = vmatpush1.bf16.msra.mxu0 0
    %3727 = vmatprep.subr.bf16.mxu0 0
    %3728 = vmatpush1.bf16.msra.mxu0 0
    %3729 = vmatprep.subr.bf16.mxu0 0
    %3730 = vmatpush1.bf16.msra.mxu0 0
    %3731 = vmatprep.subr.bf16.mxu0 0
    %3732 = vmatpush1.bf16.msra.mxu0 0
    %3733 = vmatprep.subr.bf16.mxu0 0
    %3734 = vmatpush1.bf16.msra.mxu0 0
    %3735 = vmatprep.subr.bf16.mxu0 0
    %3736 = vmatpush1.bf16.msra.mxu0 0
    %3737 = vmatprep.subr.bf16.mxu0 0
    %3738 = vmatpush1.bf16.msra.mxu0 0
    %3739 = vmatprep.mubr.bf16.mxu0 0
    %3740 = vmatmul.mubr.bf16.gmra.mrb[0].mxu0 %v3702
    %v3741 = vpop.f32.mrb[0].mxu0
    %v3742 = vadd.f32 0.0, %v3741
    %v3743 = vpop.f32.mrb[0].mxu0
    %v3744 = vpop.f32.mrb[0].mxu0
    %v3745 = vpop.f32.mrb[0].mxu0
    %3746 = vdwg.mxu0
    %v3748 = vsel %vm2119, %v2499, 0
    %v3751 = vsel %vm2507, %v545, 0
    %3753 = vmatprep.subr.bf16.mxu0 0
    %3754 = vmatpush1.bf16.msra.mxu0 %v3751
    %3755 = vmatprep.subr.bf16.mxu0 0
    %3756 = vmatpush1.bf16.msra.mxu0 0
    %3757 = vmatprep.subr.bf16.mxu0 0
    %3758 = vmatpush1.bf16.msra.mxu0 0
    %3759 = vmatprep.subr.bf16.mxu0 0
    %3760 = vmatpush1.bf16.msra.mxu0 0
    %3761 = vmatprep.subr.bf16.mxu0 0
    %3762 = vmatpush1.bf16.msra.mxu0 0
    %3763 = vmatprep.subr.bf16.mxu0 0
    %3764 = vmatpush1.bf16.msra.mxu0 0
    %3765 = vmatprep.subr.bf16.mxu0 0
    %3766 = vmatpush1.bf16.msra.mxu0 0
    %3767 = vmatprep.subr.bf16.mxu0 0
    %3768 = vmatpush1.bf16.msra.mxu0 0
    %3769 = vmatprep.subr.bf16.mxu0 0
    %3770 = vmatpush1.bf16.msra.mxu0 0
    %3771 = vmatprep.subr.bf16.mxu0 0
    %3772 = vmatpush1.bf16.msra.mxu0 0
    %3773 = vmatprep.subr.bf16.mxu0 0
    %3774 = vmatpush1.bf16.msra.mxu0 0
    %3775 = vmatprep.subr.bf16.mxu0 0
    %3776 = vmatpush1.bf16.msra.mxu0 0
    %3777 = vmatprep.subr.bf16.mxu0 0
    %3778 = vmatpush1.bf16.msra.mxu0 0
    %3779 = vmatprep.subr.bf16.mxu0 0
    %3780 = vmatpush1.bf16.msra.mxu0 0
    %3781 = vmatprep.subr.bf16.mxu0 0
    %3782 = vmatpush1.bf16.msra.mxu0 0
    %3783 = vmatprep.subr.bf16.mxu0 0
    %3784 = vmatpush1.bf16.msra.mxu0 0
    %3785 = vmatprep.mubr.bf16.mxu0 0
    %3786 = vmatmul.mubr.bf16.gmra.mrb[0].mxu0 %v3748
    %v3787 = vpop.f32.mrb[0].mxu0
    %v3788 = vadd.f32 0.0, %v3787
    %v3789 = vpop.f32.mrb[0].mxu0
    %v3790 = vpop.f32.mrb[0].mxu0
    %v3791 = vpop.f32.mrb[0].mxu0
    %3792 = vdwg.mxu0
    %v3794 = vsel %vm2119, %v2500, 0
    %v3797 = vsel %vm2507, %v546, 0
    %3799 = vmatprep.subr.bf16.mxu0 0
    %3800 = vmatpush1.bf16.msra.mxu0 %v3797
    %3801 = vmatprep.subr.bf16.mxu0 0
    %3802 = vmatpush1.bf16.msra.mxu0 0
    %3803 = vmatprep.subr.bf16.mxu0 0
    %3804 = vmatpush1.bf16.msra.mxu0 0
    %3805 = vmatprep.subr.bf16.mxu0 0
    %3806 = vmatpush1.bf16.msra.mxu0 0
    %3807 = vmatprep.subr.bf16.mxu0 0
    %3808 = vmatpush1.bf16.msra.mxu0 0
    %3809 = vmatprep.subr.bf16.mxu0 0
    %3810 = vmatpush1.bf16.msra.mxu0 0
    %3811 = vmatprep.subr.bf16.mxu0 0
    %3812 = vmatpush1.bf16.msra.mxu0 0
    %3813 = vmatprep.subr.bf16.mxu0 0
    %3814 = vmatpush1.bf16.msra.mxu0 0
    %3815 = vmatprep.subr.bf16.mxu0 0
    %3816 = vmatpush1.bf16.msra.mxu0 0
    %3817 = vmatprep.subr.bf16.mxu0 0
    %3818 = vmatpush1.bf16.msra.mxu0 0
    %3819 = vmatprep.subr.bf16.mxu0 0
    %3820 = vmatpush1.bf16.msra.mxu0 0
    %3821 = vmatprep.subr.bf16.mxu0 0
    %3822 = vmatpush1.bf16.msra.mxu0 0
    %3823 = vmatprep.subr.bf16.mxu0 0
    %3824 = vmatpush1.bf16.msra.mxu0 0
    %3825 = vmatprep.subr.bf16.mxu0 0
    %3826 = vmatpush1.bf16.msra.mxu0 0
    %3827 = vmatprep.subr.bf16.mxu0 0
    %3828 = vmatpush1.bf16.msra.mxu0 0
    %3829 = vmatprep.subr.bf16.mxu0 0
    %3830 = vmatpush1.bf16.msra.mxu0 0
    %3831 = vmatprep.mubr.bf16.mxu0 0
    %3832 = vmatmul.mubr.bf16.gmra.mrb[0].mxu0 %v3794
    %v3833 = vpop.f32.mrb[0].mxu0
    %v3834 = vadd.f32 0.0, %v3833
    %v3835 = vpop.f32.mrb[0].mxu0
    %v3836 = vpop.f32.mrb[0].mxu0
    %v3837 = vpop.f32.mrb[0].mxu0
    %3838 = vdwg.mxu0
    %v3840 = vsel %vm2119, %v2501, 0
    %v3843 = vsel %vm2507, %v547, 0
    %3845 = vmatprep.subr.bf16.mxu0 0
    %3846 = vmatpush1.bf16.msra.mxu0 %v3843
    %3847 = vmatprep.subr.bf16.mxu0 0
    %3848 = vmatpush1.bf16.msra.mxu0 0
    %3849 = vmatprep.subr.bf16.mxu0 0
    %3850 = vmatpush1.bf16.msra.mxu0 0
    %3851 = vmatprep.subr.bf16.mxu0 0
    %3852 = vmatpush1.bf16.msra.mxu0 0
    %3853 = vmatprep.subr.bf16.mxu0 0
    %3854 = vmatpush1.bf16.msra.mxu0 0
    %3855 = vmatprep.subr.bf16.mxu0 0
    %3856 = vmatpush1.bf16.msra.mxu0 0
    %3857 = vmatprep.subr.bf16.mxu0 0
    %3858 = vmatpush1.bf16.msra.mxu0 0
    %3859 = vmatprep.subr.bf16.mxu0 0
    %3860 = vmatpush1.bf16.msra.mxu0 0
    %3861 = vmatprep.subr.bf16.mxu0 0
    %3862 = vmatpush1.bf16.msra.mxu0 0
    %3863 = vmatprep.subr.bf16.mxu0 0
    %3864 = vmatpush1.bf16.msra.mxu0 0
    %3865 = vmatprep.subr.bf16.mxu0 0
    %3866 = vmatpush1.bf16.msra.mxu0 0
    %3867 = vmatprep.subr.bf16.mxu0 0
    %3868 = vmatpush1.bf16.msra.mxu0 0
    %3869 = vmatprep.subr.bf16.mxu0 0
    %3870 = vmatpush1.bf16.msra.mxu0 0
    %3871 = vmatprep.subr.bf16.mxu0 0
    %3872 = vmatpush1.bf16.msra.mxu0 0
    %3873 = vmatprep.subr.bf16.mxu0 0
    %3874 = vmatpush1.bf16.msra.mxu0 0
    %3875 = vmatprep.subr.bf16.mxu0 0
    %3876 = vmatpush1.bf16.msra.mxu0 0
    %3877 = vmatprep.mubr.bf16.mxu0 0
    %3878 = vmatmul.mubr.bf16.gmra.mrb[0].mxu0 %v3840
    %v3879 = vpop.f32.mrb[0].mxu0
    %v3880 = vadd.f32 0.0, %v3879
    %v3881 = vpop.f32.mrb[0].mxu0
    %v3882 = vpop.f32.mrb[0].mxu0
    %v3883 = vpop.f32.mrb[0].mxu0
    %3884 = vdwg.mxu0
    %v3886 = vsel %vm2119, %v2502, 0
    %v3889 = vsel %vm2507, %v548, 0
    %3891 = vmatprep.subr.bf16.mxu0 0
    %3892 = vmatpush1.bf16.msra.mxu0 %v3889
    %3893 = vmatprep.subr.bf16.mxu0 0
    %3894 = vmatpush1.bf16.msra.mxu0 0
    %3895 = vmatprep.subr.bf16.mxu0 0
    %3896 = vmatpush1.bf16.msra.mxu0 0
    %3897 = vmatprep.subr.bf16.mxu0 0
    %3898 = vmatpush1.bf16.msra.mxu0 0
    %3899 = vmatprep.subr.bf16.mxu0 0
    %3900 = vmatpush1.bf16.msra.mxu0 0
    %3901 = vmatprep.subr.bf16.mxu0 0
    %3902 = vmatpush1.bf16.msra.mxu0 0
    %3903 = vmatprep.subr.bf16.mxu0 0
    %3904 = vmatpush1.bf16.msra.mxu0 0
    %3905 = vmatprep.subr.bf16.mxu0 0
    %3906 = vmatpush1.bf16.msra.mxu0 0
    %3907 = vmatprep.subr.bf16.mxu0 0
    %3908 = vmatpush1.bf16.msra.mxu0 0
    %3909 = vmatprep.subr.bf16.mxu0 0
    %3910 = vmatpush1.bf16.msra.mxu0 0
    %3911 = vmatprep.subr.bf16.mxu0 0
    %3912 = vmatpush1.bf16.msra.mxu0 0
    %3913 = vmatprep.subr.bf16.mxu0 0
    %3914 = vmatpush1.bf16.msra.mxu0 0
    %3915 = vmatprep.subr.bf16.mxu0 0
    %3916 = vmatpush1.bf16.msra.mxu0 0
    %3917 = vmatprep.subr.bf16.mxu0 0
    %3918 = vmatpush1.bf16.msra.mxu0 0
    %3919 = vmatprep.subr.bf16.mxu0 0
    %3920 = vmatpush1.bf16.msra.mxu0 0
    %3921 = vmatprep.subr.bf16.mxu0 0
    %3922 = vmatpush1.bf16.msra.mxu0 0
    %3923 = vmatprep.mubr.bf16.mxu0 0
    %3924 = vmatmul.mubr.bf16.gmra.mrb[0].mxu0 %v3886
    %v3925 = vpop.f32.mrb[0].mxu0
    %v3926 = vadd.f32 0.0, %v3925
    %v3927 = vpop.f32.mrb[0].mxu0
    %v3928 = vpop.f32.mrb[0].mxu0
    %v3929 = vpop.f32.mrb[0].mxu0
    %3930 = vdwg.mxu0
    %v3932 = vsel %vm2119, %v2503, 0
    %v3935 = vsel %vm2507, %v549, 0
    %3937 = vmatprep.subr.bf16.mxu0 0
    %3938 = vmatpush1.bf16.msra.mxu0 %v3935
    %3939 = vmatprep.subr.bf16.mxu0 0
    %3940 = vmatpush1.bf16.msra.mxu0 0
    %3941 = vmatprep.subr.bf16.mxu0 0
    %3942 = vmatpush1.bf16.msra.mxu0 0
    %3943 = vmatprep.subr.bf16.mxu0 0
    %3944 = vmatpush1.bf16.msra.mxu0 0
    %3945 = vmatprep.subr.bf16.mxu0 0
    %3946 = vmatpush1.bf16.msra.mxu0 0
    %3947 = vmatprep.subr.bf16.mxu0 0
    %3948 = vmatpush1.bf16.msra.mxu0 0
    %3949 = vmatprep.subr.bf16.mxu0 0
    %3950 = vmatpush1.bf16.msra.mxu0 0
    %3951 = vmatprep.subr.bf16.mxu0 0
    %3952 = vmatpush1.bf16.msra.mxu0 0
    %3953 = vmatprep.subr.bf16.mxu0 0
    %3954 = vmatpush1.bf16.msra.mxu0 0
    %3955 = vmatprep.subr.bf16.mxu0 0
    %3956 = vmatpush1.bf16.msra.mxu0 0
    %3957 = vmatprep.subr.bf16.mxu0 0
    %3958 = vmatpush1.bf16.msra.mxu0 0
    %3959 = vmatprep.subr.bf16.mxu0 0
    %3960 = vmatpush1.bf16.msra.mxu0 0
    %3961 = vmatprep.subr.bf16.mxu0 0
    %3962 = vmatpush1.bf16.msra.mxu0 0
    %3963 = vmatprep.subr.bf16.mxu0 0
    %3964 = vmatpush1.bf16.msra.mxu0 0
    %3965 = vmatprep.subr.bf16.mxu0 0
    %3966 = vmatpush1.bf16.msra.mxu0 0
    %3967 = vmatprep.subr.bf16.mxu0 0
    %3968 = vmatpush1.bf16.msra.mxu0 0
    %3969 = vmatprep.mubr.bf16.mxu0 0
    %3970 = vmatmul.mubr.bf16.gmra.mrb[0].mxu0 %v3932
    %v3971 = vpop.f32.mrb[0].mxu0
    %v3972 = vadd.f32 0.0, %v3971
    %v3973 = vpop.f32.mrb[0].mxu0
    %v3974 = vpop.f32.mrb[0].mxu0
    %v3975 = vpop.f32.mrb[0].mxu0
    %3976 = vdwg.mxu0
    %v3977 = vpack.c.bf16 %v2592, %v2546
    %v3978 = vpack.c.bf16 %v2684, %v2638
    %v3979 = vpack.c.bf16 %v2776, %v2730
    %v3980 = vpack.c.bf16 %v2868, %v2822
    %3981 = vst.msk [vmem:[#allocation2] sm:$0xff] %vm553, %v3977
    %3982 = vst.msk [vmem:[#allocation2 + $0x8] sm:$0xff] %vm553, %v3978
    %3983 = vst.msk [vmem:[#allocation2 + $0x10] sm:$0xff] %vm553, %v3979
    %3984 = vst.msk [vmem:[#allocation2 + $0x18] sm:$0xff] %vm553, %v3980
    %v3985 = vpack.c.bf16 %v2960, %v2914
    %v3986 = vpack.c.bf16 %v3052, %v3006
    %v3987 = vpack.c.bf16 %v3144, %v3098
    %v3988 = vpack.c.bf16 %v3236, %v3190
    %3993 = vrot.lane.b32.xlu0 %v3985, 16
    %v3994 = vpop.permute.xlu0 %3993
    %3995 = vrot.lane.b32.xlu0 %v3986, 16
    %v3996 = vpop.permute.xlu0 %3995
    %3997 = vrot.lane.b32.xlu0 %v3987, 16
    %v3998 = vpop.permute.xlu0 %3997
    %3999 = vrot.lane.b32.xlu0 %v3988, 16
    %v4000 = vpop.permute.xlu0 %3999
    %vm4005 = vcmask 261248
    %4006 = vst.msk [vmem:[#allocation2] sm:$0xff] %vm4005, %v3994
    %4007 = vst.msk [vmem:[#allocation2 + $0x8] sm:$0xff] %vm4005, %v3996
    %4008 = vst.msk [vmem:[#allocation2 + $0x10] sm:$0xff] %vm4005, %v3998
    %4009 = vst.msk [vmem:[#allocation2 + $0x18] sm:$0xff] %vm4005, %v4000
    %v4010 = vpack.c.bf16 %v3328, %v3282
    %v4011 = vpack.c.bf16 %v3420, %v3374
    %v4012 = vpack.c.bf16 %v3512, %v3466
    %v4013 = vpack.c.bf16 %v3604, %v3558
    %4018 = vrot.lane.b32.xlu0 %v4010, 32
    %v4019 = vpop.permute.xlu0 %4018
    %4020 = vrot.lane.b32.xlu0 %v4011, 32
    %v4021 = vpop.permute.xlu0 %4020
    %4022 = vrot.lane.b32.xlu0 %v4012, 32
    %v4023 = vpop.permute.xlu0 %4022
    %4024 = vrot.lane.b32.xlu0 %v4013, 32
    %v4025 = vpop.permute.xlu0 %4024
    %vm4030 = vcmask 392448
    %4031 = vst.msk [vmem:[#allocation2] sm:$0xff] %vm4030, %v4019
    %4032 = vst.msk [vmem:[#allocation2 + $0x8] sm:$0xff] %vm4030, %v4021
    %4033 = vst.msk [vmem:[#allocation2 + $0x10] sm:$0xff] %vm4030, %v4023
    %4034 = vst.msk [vmem:[#allocation2 + $0x18] sm:$0xff] %vm4030, %v4025
    %v4035 = vpack.c.bf16 %v3696, %v3650
    %v4036 = vpack.c.bf16 %v3788, %v3742
    %v4037 = vpack.c.bf16 %v3880, %v3834
    %v4038 = vpack.c.bf16 %v3972, %v3926
    %4043 = vrot.lane.b32.xlu0 %v4035, 48
    %v4044 = vpop.permute.xlu0 %4043
    %4045 = vrot.lane.b32.xlu0 %v4036, 48
    %v4046 = vpop.permute.xlu0 %4045
    %4047 = vrot.lane.b32.xlu0 %v4037, 48
    %v4048 = vpop.permute.xlu0 %4047
    %4049 = vrot.lane.b32.xlu0 %v4038, 48
    %v4050 = vpop.permute.xlu0 %4049
    %vm4055 = vcmask 523648
    %4056 = vst.msk [vmem:[#allocation2] sm:$0xff] %vm4055, %v4044
    %4057 = vst.msk [vmem:[#allocation2 + $0x8] sm:$0xff] %vm4055, %v4046
    %4058 = vst.msk [vmem:[#allocation2 + $0x10] sm:$0xff] %vm4055, %v4048
    %4059 = vst.msk [vmem:[#allocation2 + $0x18] sm:$0xff] %vm4055, %v4050
    %v4060 = vld [vmem:[#allocation2] sm:$0xff]
    %v4061 = vld [vmem:[#allocation2 + $0x8] sm:$0xff]
    %v4062 = vld [vmem:[#allocation2 + $0x10] sm:$0xff]
    %v4063 = vld [vmem:[#allocation2 + $0x18] sm:$0xff]
    %v4064 = vld [vmem:[%s4] sm:$0xf]
    %v4065 = vld [vmem:[%s4 + $0x4] sm:$0xf]
    %v4066 = vld [vmem:[%s4 + $0x8] sm:$0xf]
    %v4067 = vld [vmem:[%s4 + $0xc] sm:$0xf]
    %v4068 = vld [vmem:[%s4 + $0x10] sm:$0xf]
    %v4069 = vld [vmem:[%s4 + $0x14] sm:$0xf]
    %v4070 = vld [vmem:[%s4 + $0x18] sm:$0xf]
    %v4071 = vld [vmem:[%s4 + $0x1c] sm:$0xf]
    %v4072 = vld [vmem:[#allocation3] sm:$0x1]
    %v4074 = vlaneseq
    %v4075 = vshrl.u32 %v4074, 7
    %v4076 = vsub.s32 0, %v4075
    %v4077 = vrot.slane %v4072, %v4076
    %v4087 = vunpack.c.l.b16 %v4064
    %v4088 = vunpack.c.l.b16 %v4065
    %v4089 = vunpack.c.l.b16 %v4066
    %v4090 = vunpack.c.l.b16 %v4067
    %v4091 = vunpack.c.l.b16 %v4068
    %v4092 = vunpack.c.l.b16 %v4069
    %v4093 = vunpack.c.l.b16 %v4070
    %v4094 = vunpack.c.l.b16 %v4071
    %v4095 = vpack.c.b16 %v4088, %v4087
    %v4096 = vpack.c.b16 %v4090, %v4089
    %v4097 = vpack.c.b16 %v4092, %v4091
    %v4098 = vpack.c.b16 %v4094, %v4093
    %vm4103 = vcmask 523264
    %v4105 = vsel %vm4103, %v4060, 0
    %v4108 = vsel %vm4103, %v4061, 0
    %v4111 = vsel %vm4103, %v4062, 0
    %v4114 = vsel %vm4103, %v4063, 0
    %4116 = vmatprep.subr.bf16.mxu0 0
    %4117 = vmatpush1.bf16.msra.mxu0 %v4095
    %4118 = vmatprep.subr.bf16.mxu0 0
    %4119 = vmatpush1.bf16.msra.mxu0 %v4096
    %4120 = vmatprep.subr.bf16.mxu0 0
    %4121 = vmatpush1.bf16.msra.mxu0 %v4097
    %4122 = vmatprep.subr.bf16.mxu0 0
    %4123 = vmatpush1.bf16.msra.mxu0 %v4098
    %4124 = vmatprep.subr.bf16.mxu0 0
    %4125 = vmatpush1.bf16.msra.mxu0 0
    %4126 = vmatprep.subr.bf16.mxu0 0
    %4127 = vmatpush1.bf16.msra.mxu0 0
    %4128 = vmatprep.subr.bf16.mxu0 0
    %4129 = vmatpush1.bf16.msra.mxu0 0
    %4130 = vmatprep.subr.bf16.mxu0 0
    %4131 = vmatpush1.bf16.msra.mxu0 0
    %4132 = vmatprep.subr.bf16.mxu0 0
    %4133 = vmatpush1.bf16.msra.mxu0 0
    %4134 = vmatprep.subr.bf16.mxu0 0
    %4135 = vmatpush1.bf16.msra.mxu0 0
    %4136 = vmatprep.subr.bf16.mxu0 0
    %4137 = vmatpush1.bf16.msra.mxu0 0
    %4138 = vmatprep.subr.bf16.mxu0 0
    %4139 = vmatpush1.bf16.msra.mxu0 0
    %4140 = vmatprep.subr.bf16.mxu0 0
    %4141 = vmatpush1.bf16.msra.mxu0 0
    %4142 = vmatprep.subr.bf16.mxu0 0
    %4143 = vmatpush1.bf16.msra.mxu0 0
    %4144 = vmatprep.subr.bf16.mxu0 0
    %4145 = vmatpush1.bf16.msra.mxu0 0
    %4146 = vmatprep.subr.bf16.mxu0 0
    %4147 = vmatpush1.bf16.msra.mxu0 0
    %4148 = vmatprep.mubr.bf16.mxu0 0
    %4149 = vmatmul.mubr.bf16.gmra.mrb[0].mxu0 %v4105
    %v4150 = vpop.f32.mrb[0].mxu0
    %v4151 = vadd.f32 %v4077, %v4150
    %v4152 = vpop.f32.mrb[0].mxu0
    %v4153 = vpop.f32.mrb[0].mxu0
    %v4154 = vadd.f32 %v4077, %v4153
    %v4155 = vpop.f32.mrb[0].mxu0
    %4156 = vmatprep.mubr.bf16.mxu0 0
    %4157 = vmatmul.mubr.bf16.gmra.mrb[0].mxu0 %v4108
    %v4158 = vpop.f32.mrb[0].mxu0
    %v4159 = vadd.f32 %v4077, %v4158
    %v4160 = vpop.f32.mrb[0].mxu0
    %v4161 = vpop.f32.mrb[0].mxu0
    %v4162 = vadd.f32 %v4077, %v4161
    %v4163 = vpop.f32.mrb[0].mxu0
    %4164 = vmatprep.mubr.bf16.mxu0 0
    %4165 = vmatmul.mubr.bf16.gmra.mrb[0].mxu0 %v4111
    %v4166 = vpop.f32.mrb[0].mxu0
    %v4167 = vadd.f32 %v4077, %v4166
    %v4168 = vpop.f32.mrb[0].mxu0
    %v4169 = vpop.f32.mrb[0].mxu0
    %v4170 = vadd.f32 %v4077, %v4169
    %v4171 = vpop.f32.mrb[0].mxu0
    %4172 = vmatprep.mubr.bf16.mxu0 0
    %4173 = vmatmul.mubr.bf16.gmra.mrb[0].mxu0 %v4114
    %v4174 = vpop.f32.mrb[0].mxu0
    %v4175 = vadd.f32 %v4077, %v4174
    %v4176 = vpop.f32.mrb[0].mxu0
    %v4177 = vpop.f32.mrb[0].mxu0
    %v4178 = vadd.f32 %v4077, %v4177
    %v4179 = vpop.f32.mrb[0].mxu0
    %4180 = vdwg.mxu0
    %v4181 = vadd.f32 %v69, %v4151
    %v4182 = vadd.f32 %v70, %v4154
    %v4183 = vadd.f32 %v71, %v4159
    %v4184 = vadd.f32 %v72, %v4162
    %v4185 = vadd.f32 %v73, %v4167
    %v4186 = vadd.f32 %v74, %v4170
    %v4187 = vadd.f32 %v75, %v4175
    %v4188 = vadd.f32 %v76, %v4178
    %v4189 = vsel %vm77, %v4181, 0.0
    %4190 = vadd.xlane.f32.xlu0 %v4189
    %v4191 = vpop.xlane.xlu0 %4190
    %v4192 = vsel %vm77, %v4182, 0.0
    %4193 = vadd.xlane.f32.xlu0 %v4192
    %v4194 = vpop.xlane.xlu0 %4193
    %v4195 = vsel %vm77, %v4183, 0.0
    %4196 = vadd.xlane.f32.xlu0 %v4195
    %v4197 = vpop.xlane.xlu0 %4196
    %v4198 = vsel %vm77, %v4184, 0.0
    %4199 = vadd.xlane.f32.xlu0 %v4198
    %v4200 = vpop.xlane.xlu0 %4199
    %v4201 = vsel %vm77, %v4185, 0.0
    %4202 = vadd.xlane.f32.xlu0 %v4201
    %v4203 = vpop.xlane.xlu0 %4202
    %v4204 = vsel %vm77, %v4186, 0.0
    %4205 = vadd.xlane.f32.xlu0 %v4204
    %v4206 = vpop.xlane.xlu0 %4205
    %v4207 = vsel %vm77, %v4187, 0.0
    %4208 = vadd.xlane.f32.xlu0 %v4207
    %v4209 = vpop.xlane.xlu0 %4208
    %v4210 = vsel %vm77, %v4188, 0.0
    %4211 = vadd.xlane.f32.xlu0 %v4210
    %v4212 = vpop.xlane.xlu0 %4211
    %v4213 = vmul.f32 %v4191, %v102
    %v4214 = vmul.f32 %v4194, %v102
    %v4215 = vmul.f32 %v4197, %v102
    %v4216 = vmul.f32 %v4200, %v102
    %v4217 = vmul.f32 %v4203, %v102
    %v4218 = vmul.f32 %v4206, %v102
    %v4219 = vmul.f32 %v4209, %v102
    %v4220 = vmul.f32 %v4212, %v102
    %v4221 = vsub.f32 %v4181, %v4213
    %v4222 = vsub.f32 %v4182, %v4214
    %v4223 = vsub.f32 %v4183, %v4215
    %v4224 = vsub.f32 %v4184, %v4216
    %v4225 = vsub.f32 %v4185, %v4217
    %v4226 = vsub.f32 %v4186, %v4218
    %v4227 = vsub.f32 %v4187, %v4219
    %v4228 = vsub.f32 %v4188, %v4220
    %v4229 = vmul.f32 %v4221, %v4221
    %v4230 = vmul.f32 %v4222, %v4222
    %v4231 = vmul.f32 %v4223, %v4223
    %v4232 = vmul.f32 %v4224, %v4224
    %v4233 = vmul.f32 %v4225, %v4225
    %v4234 = vmul.f32 %v4226, %v4226
    %v4235 = vmul.f32 %v4227, %v4227
    %v4236 = vmul.f32 %v4228, %v4228
    %v4237 = vsel %vm77, %v4229, 0.0
    %4238 = vadd.xlane.f32.xlu0 %v4237
    %v4239 = vpop.xlane.xlu0 %4238
    %v4240 = vsel %vm77, %v4230, 0.0
    %4241 = vadd.xlane.f32.xlu0 %v4240
    %v4242 = vpop.xlane.xlu0 %4241
    %v4243 = vsel %vm77, %v4231, 0.0
    %4244 = vadd.xlane.f32.xlu0 %v4243
    %v4245 = vpop.xlane.xlu0 %4244
    %v4246 = vsel %vm77, %v4232, 0.0
    %4247 = vadd.xlane.f32.xlu0 %v4246
    %v4248 = vpop.xlane.xlu0 %4247
    %v4249 = vsel %vm77, %v4233, 0.0
    %4250 = vadd.xlane.f32.xlu0 %v4249
    %v4251 = vpop.xlane.xlu0 %4250
    %v4252 = vsel %vm77, %v4234, 0.0
    %4253 = vadd.xlane.f32.xlu0 %v4252
    %v4254 = vpop.xlane.xlu0 %4253
    %v4255 = vsel %vm77, %v4235, 0.0
    %4256 = vadd.xlane.f32.xlu0 %v4255
    %v4257 = vpop.xlane.xlu0 %4256
    %v4258 = vsel %vm77, %v4236, 0.0
    %4259 = vadd.xlane.f32.xlu0 %v4258
    %v4260 = vpop.xlane.xlu0 %4259
    %v4261 = vmul.f32 %v4239, %v102
    %v4262 = vmul.f32 %v4242, %v102
    %v4263 = vmul.f32 %v4245, %v102
    %v4264 = vmul.f32 %v4248, %v102
    %v4265 = vmul.f32 %v4251, %v102
    %v4266 = vmul.f32 %v4254, %v102
    %v4267 = vmul.f32 %v4257, %v102
    %v4268 = vmul.f32 %v4260, %v102
    %v4269 = vadd.f32 %v4261, 1e-05
    %v4270 = vadd.f32 %v4262, 1e-05
    %v4271 = vadd.f32 %v4263, 1e-05
    %v4272 = vadd.f32 %v4264, 1e-05
    %v4273 = vadd.f32 %v4265, 1e-05
    %v4274 = vadd.f32 %v4266, 1e-05
    %v4275 = vadd.f32 %v4267, 1e-05
    %v4276 = vadd.f32 %v4268, 1e-05
    %v4277 = vrsqrt.pop %v4269
    %v4278 = vrsqrt.pop %v4270
    %v4279 = vrsqrt.pop %v4271
    %v4280 = vrsqrt.pop %v4272
    %v4281 = vrsqrt.pop %v4273
    %v4282 = vrsqrt.pop %v4274
    %v4283 = vrsqrt.pop %v4275
    %v4284 = vrsqrt.pop %v4276
    %v4285 = vmul.f32 %v4221, %v4277
    %v4286 = vmul.f32 %v4222, %v4278
    %v4287 = vmul.f32 %v4223, %v4279
    %v4288 = vmul.f32 %v4224, %v4280
    %v4289 = vmul.f32 %v4225, %v4281
    %v4290 = vmul.f32 %v4226, %v4282
    %v4291 = vmul.f32 %v4227, %v4283
    %v4292 = vmul.f32 %v4228, %v4284
    %v4293 = vld [vmem:[%s6] sm:$0x1]
    %v4295 = vlaneseq
    %v4296 = vshrl.u32 %v4295, 7
    %v4297 = vsub.s32 0, %v4296
    %v4298 = vrot.slane %v4293, %v4297
    %v4300 = vmul.f32 %v4285, %v4298
    %v4301 = vmul.f32 %v4286, %v4298
    %v4302 = vmul.f32 %v4287, %v4298
    %v4303 = vmul.f32 %v4288, %v4298
    %v4304 = vmul.f32 %v4289, %v4298
    %v4305 = vmul.f32 %v4290, %v4298
    %v4306 = vmul.f32 %v4291, %v4298
    %v4307 = vmul.f32 %v4292, %v4298
    %v4308 = vld [vmem:[%s7] sm:$0x1]
    %v4310 = vlaneseq
    %v4311 = vshrl.u32 %v4310, 7
    %v4312 = vsub.s32 0, %v4311
    %v4313 = vrot.slane %v4308, %v4312
    %v4315 = vadd.f32 %v4300, %v4313
    %v4316 = vadd.f32 %v4301, %v4313
    %v4317 = vadd.f32 %v4302, %v4313
    %v4318 = vadd.f32 %v4303, %v4313
    %v4319 = vadd.f32 %v4304, %v4313
    %v4320 = vadd.f32 %v4305, %v4313
    %v4321 = vadd.f32 %v4306, %v4313
    %v4322 = vadd.f32 %v4307, %v4313
    %v4323 = vpack.c.bf16 %v4316, %v4315
    %v4324 = vpack.c.bf16 %v4318, %v4317
    %v4325 = vpack.c.bf16 %v4320, %v4319
    %v4326 = vpack.c.bf16 %v4322, %v4321
    %v4327 = vld [vmem:[#allocation6] sm:$0xf]
    %v4328 = vld [vmem:[#allocation6 + $0x4] sm:$0xf]
    %v4329 = vld [vmem:[#allocation6 + $0x8] sm:$0xf]
    %v4330 = vld [vmem:[#allocation6 + $0xc] sm:$0xf]
    %v4331 = vld [vmem:[%s9] sm:$0x1]
    %v4333 = vlaneseq
    %v4334 = vshrl.u32 %v4333, 7
    %v4335 = vsub.s32 0, %v4334
    %v4336 = vrot.slane %v4331, %v4335
    %v4342 = vunpack.c.l.b16 %v4327
    %v4343 = vunpack.c.l.b16 %v4328
    %v4344 = vunpack.c.l.b16 %v4329
    %v4345 = vunpack.c.l.b16 %v4330
    %v4346 = vpack.c.b16 %v4343, %v4342
    %v4347 = vpack.c.b16 %v4345, %v4344
    %v4351 = vsel %vm77, %v4323, 0
    %v4354 = vsel %vm77, %v4324, 0
    %v4357 = vsel %vm77, %v4325, 0
    %v4360 = vsel %vm77, %v4326, 0
    %4362 = vmatprep.subr.bf16.mxu0 0
    %4363 = vmatpush1.bf16.msra.mxu0 %v4346
    %4364 = vmatprep.subr.bf16.mxu0 0
    %4365 = vmatpush1.bf16.msra.mxu0 %v4347
    %4366 = vmatprep.subr.bf16.mxu0 0
    %4367 = vmatpush1.bf16.msra.mxu0 0
    %4368 = vmatprep.subr.bf16.mxu0 0
    %4369 = vmatpush1.bf16.msra.mxu0 0
    %4370 = vmatprep.subr.bf16.mxu0 0
    %4371 = vmatpush1.bf16.msra.mxu0 0
    %4372 = vmatprep.subr.bf16.mxu0 0
    %4373 = vmatpush1.bf16.msra.mxu0 0
    %4374 = vmatprep.subr.bf16.mxu0 0
    %4375 = vmatpush1.bf16.msra.mxu0 0
    %4376 = vmatprep.subr.bf16.mxu0 0
    %4377 = vmatpush1.bf16.msra.mxu0 0
    %4378 = vmatprep.subr.bf16.mxu0 0
    %4379 = vmatpush1.bf16.msra.mxu0 0
    %4380 = vmatprep.subr.bf16.mxu0 0
    %4381 = vmatpush1.bf16.msra.mxu0 0
    %4382 = vmatprep.subr.bf16.mxu0 0
    %4383 = vmatpush1.bf16.msra.mxu0 0
    %4384 = vmatprep.subr.bf16.mxu0 0
    %4385 = vmatpush1.bf16.msra.mxu0 0
    %4386 = vmatprep.subr.bf16.mxu0 0
    %4387 = vmatpush1.bf16.msra.mxu0 0
    %4388 = vmatprep.subr.bf16.mxu0 0
    %4389 = vmatpush1.bf16.msra.mxu0 0
    %4390 = vmatprep.subr.bf16.mxu0 0
    %4391 = vmatpush1.bf16.msra.mxu0 0
    %4392 = vmatprep.subr.bf16.mxu0 0
    %4393 = vmatpush1.bf16.msra.mxu0 0
    %4394 = vmatprep.mubr.bf16.mxu0 0
    %4395 = vmatmul.mubr.bf16.gmra.mrb[0].mxu0 %v4351
    %v4396 = vpop.f32.mrb[0].mxu0
    %v4397 = vadd.f32 %v4336, %v4396
    %v4398 = vpop.f32.mrb[0].mxu0
    %v4399 = vpop.f32.mrb[0].mxu0
    %v4400 = vadd.f32 %v4336, %v4399
    %v4401 = vpop.f32.mrb[0].mxu0
    %4402 = vmatprep.mubr.bf16.mxu0 0
    %4403 = vmatmul.mubr.bf16.gmra.mrb[0].mxu0 %v4354
    %v4404 = vpop.f32.mrb[0].mxu0
    %v4405 = vadd.f32 %v4336, %v4404
    %v4406 = vpop.f32.mrb[0].mxu0
    %v4407 = vpop.f32.mrb[0].mxu0
    %v4408 = vadd.f32 %v4336, %v4407
    %v4409 = vpop.f32.mrb[0].mxu0
    %4410 = vmatprep.mubr.bf16.mxu0 0
    %4411 = vmatmul.mubr.bf16.gmra.mrb[0].mxu0 %v4357
    %v4412 = vpop.f32.mrb[0].mxu0
    %v4413 = vadd.f32 %v4336, %v4412
    %v4414 = vpop.f32.mrb[0].mxu0
    %v4415 = vpop.f32.mrb[0].mxu0
    %v4416 = vadd.f32 %v4336, %v4415
    %v4417 = vpop.f32.mrb[0].mxu0
    %4418 = vmatprep.mubr.bf16.mxu0 0
    %4419 = vmatmul.mubr.bf16.gmra.mrb[0].mxu0 %v4360
    %v4420 = vpop.f32.mrb[0].mxu0
    %v4421 = vadd.f32 %v4336, %v4420
    %v4422 = vpop.f32.mrb[0].mxu0
    %v4423 = vpop.f32.mrb[0].mxu0
    %v4424 = vadd.f32 %v4336, %v4423
    %v4425 = vpop.f32.mrb[0].mxu0
    %4426 = vdwg.mxu0
    %v4427 = vmax.f32 %v4397, 0.0
    %v4428 = vmax.f32 %v4400, 0.0
    %v4429 = vmax.f32 %v4405, 0.0
    %v4430 = vmax.f32 %v4408, 0.0
    %v4431 = vmax.f32 %v4413, 0.0
    %v4432 = vmax.f32 %v4416, 0.0
    %v4433 = vmax.f32 %v4421, 0.0
    %v4434 = vmax.f32 %v4424, 0.0
    %v4435 = vpack.c.bf16 %v4428, %v4427
    %v4436 = vpack.c.bf16 %v4430, %v4429
    %v4437 = vpack.c.bf16 %v4432, %v4431
    %v4438 = vpack.c.bf16 %v4434, %v4433
    %v4439 = vld [vmem:[%s10] sm:$0xf]
    %v4440 = vld [vmem:[%s10 + $0x4] sm:$0xf]
    %v4441 = vld [vmem:[%s10 + $0x8] sm:$0xf]
    %v4442 = vld [vmem:[%s10 + $0xc] sm:$0xf]
    %v4443 = vld [vmem:[%s10 + $0x10] sm:$0xf]
    %v4444 = vld [vmem:[%s10 + $0x14] sm:$0xf]
    %v4445 = vld [vmem:[%s10 + $0x18] sm:$0xf]
    %v4446 = vld [vmem:[%s10 + $0x1c] sm:$0xf]
    %v4447 = vld [vmem:[%s11] sm:$0x1]
    %v4449 = vlaneseq
    %v4450 = vshrl.u32 %v4449, 7
    %v4451 = vsub.s32 0, %v4450
    %v4452 = vrot.slane %v4447, %v4451
    %v4462 = vunpack.c.l.b16 %v4439
    %v4463 = vunpack.c.l.b16 %v4440
    %v4464 = vunpack.c.l.b16 %v4441
    %v4465 = vunpack.c.l.b16 %v4442
    %v4466 = vunpack.c.l.b16 %v4443
    %v4467 = vunpack.c.l.b16 %v4444
    %v4468 = vunpack.c.l.b16 %v4445
    %v4469 = vunpack.c.l.b16 %v4446
    %v4470 = vpack.c.b16 %v4463, %v4462
    %v4471 = vpack.c.b16 %v4465, %v4464
    %v4472 = vpack.c.b16 %v4467, %v4466
    %v4473 = vpack.c.b16 %v4469, %v4468
    %v4479 = vsel %vm4103, %v4435, 0
    %v4482 = vsel %vm4103, %v4436, 0
    %v4485 = vsel %vm4103, %v4437, 0
    %v4488 = vsel %vm4103, %v4438, 0
    %4490 = vmatprep.subr.bf16.mxu0 0
    %4491 = vmatpush1.bf16.msra.mxu0 %v4470
    %4492 = vmatprep.subr.bf16.mxu0 0
    %4493 = vmatpush1.bf16.msra.mxu0 %v4471
    %4494 = vmatprep.subr.bf16.mxu0 0
    %4495 = vmatpush1.bf16.msra.mxu0 %v4472
    %4496 = vmatprep.subr.bf16.mxu0 0
    %4497 = vmatpush1.bf16.msra.mxu0 %v4473
    %4498 = vmatprep.subr.bf16.mxu0 0
    %4499 = vmatpush1.bf16.msra.mxu0 0
    %4500 = vmatprep.subr.bf16.mxu0 0
    %4501 = vmatpush1.bf16.msra.mxu0 0
    %4502 = vmatprep.subr.bf16.mxu0 0
    %4503 = vmatpush1.bf16.msra.mxu0 0
    %4504 = vmatprep.subr.bf16.mxu0 0
    %4505 = vmatpush1.bf16.msra.mxu0 0
    %4506 = vmatprep.subr.bf16.mxu0 0
    %4507 = vmatpush1.bf16.msra.mxu0 0
    %4508 = vmatprep.subr.bf16.mxu0 0
    %4509 = vmatpush1.bf16.msra.mxu0 0
    %4510 = vmatprep.subr.bf16.mxu0 0
    %4511 = vmatpush1.bf16.msra.mxu0 0
    %4512 = vmatprep.subr.bf16.mxu0 0
    %4513 = vmatpush1.bf16.msra.mxu0 0
    %4514 = vmatprep.subr.bf16.mxu0 0
    %4515 = vmatpush1.bf16.msra.mxu0 0
    %4516 = vmatprep.subr.bf16.mxu0 0
    %4517 = vmatpush1.bf16.msra.mxu0 0
    %4518 = vmatprep.subr.bf16.mxu0 0
    %4519 = vmatpush1.bf16.msra.mxu0 0
    %4520 = vmatprep.subr.bf16.mxu0 0
    %4521 = vmatpush1.bf16.msra.mxu0 0
    %4522 = vmatprep.mubr.bf16.mxu0 0
    %4523 = vmatmul.mubr.bf16.gmra.mrb[0].mxu0 %v4479
    %v4524 = vpop.f32.mrb[0].mxu0
    %v4525 = vadd.f32 %v4452, %v4524
    %v4526 = vpop.f32.mrb[0].mxu0
    %v4527 = vpop.f32.mrb[0].mxu0
    %v4528 = vadd.f32 %v4452, %v4527
    %v4529 = vpop.f32.mrb[0].mxu0
    %4530 = vmatprep.mubr.bf16.mxu0 0
    %4531 = vmatmul.mubr.bf16.gmra.mrb[0].mxu0 %v4482
    %v4532 = vpop.f32.mrb[0].mxu0
    %v4533 = vadd.f32 %v4452, %v4532
    %v4534 = vpop.f32.mrb[0].mxu0
    %v4535 = vpop.f32.mrb[0].mxu0
    %v4536 = vadd.f32 %v4452, %v4535
    %v4537 = vpop.f32.mrb[0].mxu0
    %4538 = vmatprep.mubr.bf16.mxu0 0
    %4539 = vmatmul.mubr.bf16.gmra.mrb[0].mxu0 %v4485
    %v4540 = vpop.f32.mrb[0].mxu0
    %v4541 = vadd.f32 %v4452, %v4540
    %v4542 = vpop.f32.mrb[0].mxu0
    %v4543 = vpop.f32.mrb[0].mxu0
    %v4544 = vadd.f32 %v4452, %v4543
    %v4545 = vpop.f32.mrb[0].mxu0
    %4546 = vmatprep.mubr.bf16.mxu0 0
    %4547 = vmatmul.mubr.bf16.gmra.mrb[0].mxu0 %v4488
    %v4548 = vpop.f32.mrb[0].mxu0
    %v4549 = vadd.f32 %v4452, %v4548
    %v4550 = vpop.f32.mrb[0].mxu0
    %v4551 = vpop.f32.mrb[0].mxu0
    %v4552 = vadd.f32 %v4452, %v4551
    %v4553 = vpop.f32.mrb[0].mxu0
    %4554 = vdwg.mxu0
    %v4555 = vadd.f32 %v4181, %v4525
    %v4556 = vadd.f32 %v4182, %v4528
    %v4557 = vadd.f32 %v4183, %v4533
    %v4558 = vadd.f32 %v4184, %v4536
    %v4559 = vadd.f32 %v4185, %v4541
    %v4560 = vadd.f32 %v4186, %v4544
    %v4561 = vadd.f32 %v4187, %v4549
    %v4562 = vadd.f32 %v4188, %v4552
    %4563 = vst.msk [vmem:[#allocation8] sm:$0xff] %vm77, %v4555
    %4564 = vst.msk [vmem:[#allocation8 + $0x8] sm:$0xff] %vm77, %v4556
    %4565 = vst.msk [vmem:[#allocation8 + $0x10] sm:$0xff] %vm77, %v4557
    %4566 = vst.msk [vmem:[#allocation8 + $0x18] sm:$0xff] %vm77, %v4558
    %4567 = vst.msk [vmem:[#allocation8 + $0x20] sm:$0xff] %vm77, %v4559
    %4568 = vst.msk [vmem:[#allocation8 + $0x28] sm:$0xff] %vm77, %v4560
    %4569 = vst.msk [vmem:[#allocation8 + $0x30] sm:$0xff] %vm77, %v4561
    %4570 = vst.msk [vmem:[#allocation8 + $0x38] sm:$0xff] %vm77, %v4562
    // Predicated region
    $region58: #{tpu_custom_call.1} parent=1 // pred_check
      _
    $region59: #{tpu_custom_call.1} parent=1 // pred_check_branch
      %4572 = sbr.rel (0) target = $region61
    $region60: #{tpu_custom_call.1} parent=1 // pred_region
      %s4574 = ssub.s32 1024, 1024
      %4575 = vsyncadd [#allocation5], %s4574
      %s4576 = sshll.u32 [#allocation8], 4
      %s4577 = int_to_ptr.vmem [resolvable:$true] %s4576
      %4582 = dma.vmem_to_hbm [thread:$0]  %s4577, 1024, %s12, [#allocation5], 128, 128, 8
    $region61: #{tpu_custom_call.1} parent=1 // pred_fallthru
      _
    // Predicated region
    $region62: #{tpu_custom_call.1} parent=1 // pred_check
      _
    $region63: #{tpu_custom_call.1} parent=1 // pred_check_branch
      %4584 = sbr.rel (0) target = $region65
    $region64: #{tpu_custom_call.1} parent=1 // pred_region
      %4585 = dma.done [#allocation5], 1024
    $region65: #{tpu_custom_call.1} parent=1 // pred_fallthru
      _
    %4586 = vsyncpa [#allocation4], 1
    %4587 = vsyncpa [#allocation7], 1
    %4588 = vsyncpa [#allocation5], 1

// kernel: tpu_custom_call.1
$region0: #{tpu_custom_call.1}
  #allocation0 [shape = 'u32[]', space=smem, size = 0x4, offset = 0x4, fixed_abs, tag = 'smem constant byte address 0x4 - core index']
  #allocation1 [shape = 'u32[144,128]{1,0:T(1,128)}', space=vmem, size = 0x12000, scoped, tag = 'internal scratch']
  #allocation2 [shape = 'bf16[64,64]{1,0:T(16,128)(2,1)}', space=vmem, size = 0x4000, scoped, tag = 'scratch operand']
  %s0 = inlined_call_operand.vmem [shape: f32[8,8,32], index: 0, kind: input, shape index: {}]
  %s1 = inlined_call_operand.vmem [shape: f32[1,32], index: 1, kind: input, shape index: {}]
  %s2 = inlined_call_operand.vmem [shape: f32[1,32], index: 2, kind: input, shape index: {}]
  %s3 = inlined_call_operand.vmem [shape: bf16[32,192], index: 3, kind: input, shape index: {}]
  %s4 = inlined_call_operand.vmem [shape: bf16[64,32], index: 4, kind: input, shape index: {}]
  %s5 = inlined_call_operand.hbm [shape: f32[1,32], index: 5, kind: input, shape index: {}]
  %s6 = inlined_call_operand.vmem [shape: f32[1,32], index: 6, kind: input, shape index: {}]
  %s7 = inlined_call_operand.vmem [shape: f32[1,32], index: 7, kind: input, shape index: {}]
  %s8 = inlined_call_operand.hbm [shape: bf16[32,64], index: 8, kind: input, shape index: {}]
  %s9 = inlined_call_operand.vmem [shape: f32[1,64], index: 9, kind: input, shape index: {}]
  %s10 = inlined_call_operand.vmem [shape: bf16[64,32], index: 10, kind: input, shape index: {}]
  %s11 = inlined_call_operand.vmem [shape: f32[1,32], index: 11, kind: input, shape index: {}]
  %s12 = inlined_call_operand.hbm [shape: f32[8,8,32], index: 12, kind: output, shape index: {}]
  %s13 = sld [smem:[#allocation0]]
  $region66: #{tpu_custom_call.1} parent=0
    _
  %s15 = ssub.s32 1, %s13
  %s16 = scalar_select 0, %s15, %s13
  $region1: #{tpu_custom_call.1} parent=0
    #allocation3 [shape = 'u8[512]{0}', space=vmem, size = 0x400, scoped, tag = 'input window, operand 5, single buffered']
    #allocation4 [shape = 's32[1]{0}', space=sflag, size = 0x4, scoped, tag = 'scoped memory for tpu_custom_call.1']
    #allocation5 [shape = 's32[1]{0}', space=sflag, size = 0x4, scoped, tag = 'scoped memory for tpu_custom_call.1']
    #allocation6 [shape = 'u8[8192]{0}', space=vmem, size = 0x2000, scoped, tag = 'input window, operand 8, single buffered']
    #allocation7 [shape = 's32[1]{0}', space=sflag, size = 0x4, scoped, tag = 'scoped memory for tpu_custom_call.1']
    #allocation8 [shape = 'u8[32768]{0}', space=vmem, size = 0x8000, scoped, tag = 'output window, operand 0, single buffered']
    %17 = vsyncpa [#allocation4], 0
    %18 = vsyncpa [#allocation7], 0
    %19 = vsyncpa [#allocation5], 0
    // Predicated region
    $region2: #{tpu_custom_call.1} parent=1 // pred_check
      _
    $region3: #{tpu_custom_call.1} parent=1 // pred_check_branch
      %21 = sbr.rel (0) target = $region5
    $region4: #{tpu_custom_call.1} parent=1 // pred_region
      _
    $region5: #{tpu_custom_call.1} parent=1 // pred_fallthru
      _
    // Predicated region
    $region6: #{tpu_custom_call.1} parent=1 // pred_check
      _
    $region7: #{tpu_custom_call.1} parent=1 // pred_check_branch
      %23 = sbr.rel (0) target = $region9
    $region8: #{tpu_custom_call.1} parent=1 // pred_region
      _
    $region9: #{tpu_custom_call.1} parent=1 // pred_fallthru
      _
    // Predicated region
    $region10: #{tpu_custom_call.1} parent=1 // pred_check
      _
    $region11: #{tpu_custom_call.1} parent=1 // pred_check_branch
      %25 = sbr.rel (0) target = $region13
    $region12: #{tpu_custom_call.1} parent=1 // pred_region
      _
    $region13: #{tpu_custom_call.1} parent=1 // pred_fallthru
      _
    // Predicated region
    $region14: #{tpu_custom_call.1} parent=1 // pred_check
      _
    $region15: #{tpu_custom_call.1} parent=1 // pred_check_branch
      %27 = sbr.rel (0) target = $region17
    $region16: #{tpu_custom_call.1} parent=1 // pred_region
      _
    $region17: #{tpu_custom_call.1} parent=1 // pred_fallthru
      _
    // Predicated region
    $region18: #{tpu_custom_call.1} parent=1 // pred_check
      _
    $region19: #{tpu_custom_call.1} parent=1 // pred_check_branch
      %29 = sbr.rel (0) target = $region21
    $region20: #{tpu_custom_call.1} parent=1 // pred_region
      _
    $region21: #{tpu_custom_call.1} parent=1 // pred_fallthru
      _
    // Predicated region
    $region22: #{tpu_custom_call.1} parent=1 // pred_check
      _
    $region23: #{tpu_custom_call.1} parent=1 // pred_check_branch
      %31 = sbr.rel (0) target = $region25
    $region24: #{tpu_custom_call.1} parent=1 // pred_region
      %s33 = ssub.s32 16, 16
      %34 = vsyncadd [#allocation4], %s33
      %s36 = sshll.u32 [#allocation3], 4
      %s37 = int_to_ptr.vmem [resolvable:$true] %s36
      %39 = dma.hbm_to_vmem [thread:$0]  %s5, 16, %s37, [#allocation4]
    $region25: #{tpu_custom_call.1} parent=1 // pred_fallthru
      _
    // Predicated region
    $region26: #{tpu_custom_call.1} parent=1 // pred_check
      _
    $region27: #{tpu_custom_call.1} parent=1 // pred_check_branch
      %41 = sbr.rel (0) target = $region29
    $region28: #{tpu_custom_call.1} parent=1 // pred_region
      _
    $region29: #{tpu_custom_call.1} parent=1 // pred_fallthru
      _
    // Predicated region
    $region30: #{tpu_custom_call.1} parent=1 // pred_check
      _
    $region31: #{tpu_custom_call.1} parent=1 // pred_check_branch
      %43 = sbr.rel (0) target = $region33
    $region32: #{tpu_custom_call.1} parent=1 // pred_region
      _
    $region33: #{tpu_custom_call.1} parent=1 // pred_fallthru
      _
    // Predicated region
    $region34: #{tpu_custom_call.1} parent=1 // pred_check
      _
    $region35: #{tpu_custom_call.1} parent=1 // pred_check_branch
      %45 = sbr.rel (0) target = $region37
    $region36: #{tpu_custom_call.1} parent=1 // pred_region
      %s47 = ssub.s32 256, 256
      %48 = vsyncadd [#allocation7], %s47
      %s49 = sshll.u32 [#allocation6], 4
      %s50 = int_to_ptr.vmem [resolvable:$true] %s49
      %55 = dma.hbm_to_vmem [thread:$0]  %s8, 256, %s50, [#allocation7], 64, 64, 4
    $region37: #{tpu_custom_call.1} parent=1 // pred_fallthru
      _
    // Predicated region
    $region38: #{tpu_custom_call.1} parent=1 // pred_check
      _
    $region39: #{tpu_custom_call.1} parent=1 // pred_check_branch
      %57 = sbr.rel (0) target = $region41
    $region40: #{tpu_custom_call.1} parent=1 // pred_region
      _
    $region41: #{tpu_custom_call.1} parent=1 // pred_fallthru
      _
    // Predicated region
    $region42: #{tpu_custom_call.1} parent=1 // pred_check
      _
    $region43: #{tpu_custom_call.1} parent=1 // pred_check_branch
      %59 = sbr.rel (0) target = $region45
    $region44: #{tpu_custom_call.1} parent=1 // pred_region
      _
    $region45: #{tpu_custom_call.1} parent=1 // pred_fallthru
      _
    // Predicated region
    $region46: #{tpu_custom_call.1} parent=1 // pred_check
      _
    $region47: #{tpu_custom_call.1} parent=1 // pred_check_branch
      %61 = sbr.rel (0) target = $region49
    $region48: #{tpu_custom_call.1} parent=1 // pred_region
      _
    $region49: #{tpu_custom_call.1} parent=1 // pred_fallthru
      _
    // Predicated region
    $region50: #{tpu_custom_call.1} parent=1 // pred_check
      _
    $region51: #{tpu_custom_call.1} parent=1 // pred_check_branch
      %63 = sbr.rel (0) target = $region53
    $region52: #{tpu_custom_call.1} parent=1 // pred_region
      %64 = dma.done [#allocation4], 16
    $region53: #{tpu_custom_call.1} parent=1 // pred_fallthru
      _
    // Predicated region
    $region54: #{tpu_custom_call.1} parent=1 // pred_check
      _
    $region55: #{tpu_custom_call.1} parent=1 // pred_check_branch
      %66 = sbr.rel (0) target = $region57
    $region56: #{tpu_custom_call.1} parent=1 // pred_region
      %67 = dma.done [#allocation7], 256
    $region57: #{tpu_custom_call.1} parent=1 // pred_fallthru
      _
    %v69 = vld [vmem:[%s0] sm:$0xff]
    %v70 = vld [vmem:[%s0 + $0x8] sm:$0xff]
    %v71 = vld [vmem:[%s0 + $0x10] sm:$0xff]
    %v72 = vld [vmem:[%s0 + $0x18] sm:$0xff]
    %v73 = vld [vmem:[%s0 + $0x20] sm:$0xff]
    %v74 = vld [vmem:[%s0 + $0x28] sm:$0xff]
    %v75 = vld [vmem:[%s0 + $0x30] sm:$0xff]
    %v76 = vld [vmem:[%s0 + $0x38] sm:$0xff]
    %vm77 = vcmask 261120
    %v78 = vsel %vm77, %v69, 0.0
    %79 = vadd.xlane.f32.xlu0 %v78
    %v80 = vpop.xlane.xlu0 %79
    %v81 = vsel %vm77, %v70, 0.0
    %82 = vadd.xlane.f32.xlu0 %v81
    %v83 = vpop.xlane.xlu0 %82
    %v84 = vsel %vm77, %v71, 0.0
    %85 = vadd.xlane.f32.xlu0 %v84
    %v86 = vpop.xlane.xlu0 %85
    %v87 = vsel %vm77, %v72, 0.0
    %88 = vadd.xlane.f32.xlu0 %v87
    %v89 = vpop.xlane.xlu0 %88
    %v90 = vsel %vm77, %v73, 0.0
    %91 = vadd.xlane.f32.xlu0 %v90
    %v92 = vpop.xlane.xlu0 %91
    %v93 = vsel %vm77, %v74, 0.0
    %94 = vadd.xlane.f32.xlu0 %v93
    %v95 = vpop.xlane.xlu0 %94
    %v96 = vsel %vm77, %v75, 0.0
    %97 = vadd.xlane.f32.xlu0 %v96
    %v98 = vpop.xlane.xlu0 %97
    %v99 = vsel %vm77, %v76, 0.0
    %100 = vadd.xlane.f32.xlu0 %v99
    %v101 = vpop.xlane.xlu0 %100
    %v102 = vrcp.pop 32.0
    %v103 = vmul.f32 %v80, %v102
    %v104 = vmul.f32 %v83, %v102
    %v105 = vmul.f32 %v86, %v102
    %v106 = vmul.f32 %v89, %v102
    %v107 = vmul.f32 %v92, %v102
    %v108 = vmul.f32 %v95, %v102
    %v109 = vmul.f32 %v98, %v102
    %v110 = vmul.f32 %v101, %v102
    %v111 = vsub.f32 %v69, %v103
    %v112 = vsub.f32 %v70, %v104
    %v113 = vsub.f32 %v71, %v105
    %v114 = vsub.f32 %v72, %v106
    %v115 = vsub.f32 %v73, %v107
    %v116 = vsub.f32 %v74, %v108
    %v117 = vsub.f32 %v75, %v109
    %v118 = vsub.f32 %v76, %v110
    %v119 = vmul.f32 %v111, %v111
    %v120 = vmul.f32 %v112, %v112
    %v121 = vmul.f32 %v113, %v113
    %v122 = vmul.f32 %v114, %v114
    %v123 = vmul.f32 %v115, %v115
    %v124 = vmul.f32 %v116, %v116
    %v125 = vmul.f32 %v117, %v117
    %v126 = vmul.f32 %v118, %v118
    %v127 = vsel %vm77, %v119, 0.0
    %128 = vadd.xlane.f32.xlu0 %v127
    %v129 = vpop.xlane.xlu0 %128
    %v130 = vsel %vm77, %v120, 0.0
    %131 = vadd.xlane.f32.xlu0 %v130
    %v132 = vpop.xlane.xlu0 %131
    %v133 = vsel %vm77, %v121, 0.0
    %134 = vadd.xlane.f32.xlu0 %v133
    %v135 = vpop.xlane.xlu0 %134
    %v136 = vsel %vm77, %v122, 0.0
    %137 = vadd.xlane.f32.xlu0 %v136
    %v138 = vpop.xlane.xlu0 %137
    %v139 = vsel %vm77, %v123, 0.0
    %140 = vadd.xlane.f32.xlu0 %v139
    %v141 = vpop.xlane.xlu0 %140
    %v142 = vsel %vm77, %v124, 0.0
    %143 = vadd.xlane.f32.xlu0 %v142
    %v144 = vpop.xlane.xlu0 %143
    %v145 = vsel %vm77, %v125, 0.0
    %146 = vadd.xlane.f32.xlu0 %v145
    %v147 = vpop.xlane.xlu0 %146
    %v148 = vsel %vm77, %v126, 0.0
    %149 = vadd.xlane.f32.xlu0 %v148
    %v150 = vpop.xlane.xlu0 %149
    %v151 = vmul.f32 %v129, %v102
    %v152 = vmul.f32 %v132, %v102
    %v153 = vmul.f32 %v135, %v102
    %v154 = vmul.f32 %v138, %v102
    %v155 = vmul.f32 %v141, %v102
    %v156 = vmul.f32 %v144, %v102
    %v157 = vmul.f32 %v147, %v102
    %v158 = vmul.f32 %v150, %v102
    %v159 = vadd.f32 %v151, 1e-05
    %v160 = vadd.f32 %v152, 1e-05
    %v161 = vadd.f32 %v153, 1e-05
    %v162 = vadd.f32 %v154, 1e-05
    %v163 = vadd.f32 %v155, 1e-05
    %v164 = vadd.f32 %v156, 1e-05
    %v165 = vadd.f32 %v157, 1e-05
    %v166 = vadd.f32 %v158, 1e-05
    %v167 = vrsqrt.pop %v159
    %v168 = vrsqrt.pop %v160
    %v169 = vrsqrt.pop %v161
    %v170 = vrsqrt.pop %v162
    %v171 = vrsqrt.pop %v163
    %v172 = vrsqrt.pop %v164
    %v173 = vrsqrt.pop %v165
    %v174 = vrsqrt.pop %v166
    %v175 = vmul.f32 %v111, %v167
    %v176 = vmul.f32 %v112, %v168
    %v177 = vmul.f32 %v113, %v169
    %v178 = vmul.f32 %v114, %v170
    %v179 = vmul.f32 %v115, %v171
    %v180 = vmul.f32 %v116, %v172
    %v181 = vmul.f32 %v117, %v173
    %v182 = vmul.f32 %v118, %v174
    %v183 = vld [vmem:[%s1] sm:$0x1]
    %v185 = vlaneseq
    %v186 = vshrl.u32 %v185, 7
    %v187 = vsub.s32 0, %v186
    %v188 = vrot.slane %v183, %v187
    %v190 = vmul.f32 %v175, %v188
    %v191 = vmul.f32 %v176, %v188
    %v192 = vmul.f32 %v177, %v188
    %v193 = vmul.f32 %v178, %v188
    %v194 = vmul.f32 %v179, %v188
    %v195 = vmul.f32 %v180, %v188
    %v196 = vmul.f32 %v181, %v188
    %v197 = vmul.f32 %v182, %v188
    %v198 = vld [vmem:[%s2] sm:$0x1]
    %v200 = vlaneseq
    %v201 = vshrl.u32 %v200, 7
    %v202 = vsub.s32 0, %v201
    %v203 = vrot.slane %v198, %v202
    %v205 = vadd.f32 %v190, %v203
    %v206 = vadd.f32 %v191, %v203
    %v207 = vadd.f32 %v192, %v203
    %v208 = vadd.f32 %v193, %v203
    %v209 = vadd.f32 %v194, %v203
    %v210 = vadd.f32 %v195, %v203
    %v211 = vadd.f32 %v196, %v203
    %v212 = vadd.f32 %v197, %v203
    %v213 = vpack.c.bf16 %v206, %v205
    %v214 = vpack.c.bf16 %v208, %v207
    %v215 = vpack.c.bf16 %v210, %v209
    %v216 = vpack.c.bf16 %v212, %v211
    %v217 = vld [vmem:[%s3] sm:$0xff]
    %v218 = vld [vmem:[%s3 + $0x8] sm:$0xff]
    %v219 = vld [vmem:[%s3 + $0x10] sm:$0xff]
    %v220 = vld [vmem:[%s3 + $0x18] sm:$0xff]
    %v225 = vunpack.c.l.b16 %v217
    %v226 = vunpack.c.h.b16 %v217
    %v227 = vunpack.c.l.b16 %v218
    %v228 = vunpack.c.h.b16 %v218
    %v229 = vunpack.c.l.b16 %v219
    %v230 = vunpack.c.h.b16 %v219
    %v231 = vunpack.c.l.b16 %v220
    %v232 = vunpack.c.h.b16 %v220
    %v233 = vpack.c.b16 %v227, %v225
    %v234 = vpack.c.b16 %v228, %v226
    %v235 = vpack.c.b16 %v231, %v229
    %v236 = vpack.c.b16 %v232, %v230
    %v242 = vsel %vm77, %v213, 0
    %v245 = vsel %vm77, %v214, 0
    %v248 = vsel %vm77, %v215, 0
    %v251 = vsel %vm77, %v216, 0
    %253 = vmatprep.subr.bf16.mxu0 %v234
    %254 = vmatpush1.bf16.msra.mxu0 %v233
    %255 = vmatprep.subr.bf16.mxu0 %v236
    %256 = vmatpush1.bf16.msra.mxu0 %v235
    %257 = vmatprep.subr.bf16.mxu0 0
    %258 = vmatpush1.bf16.msra.mxu0 0
    %259 = vmatprep.subr.bf16.mxu0 0
    %260 = vmatpush1.bf16.msra.mxu0 0
    %261 = vmatprep.subr.bf16.mxu0 0
    %262 = vmatpush1.bf16.msra.mxu0 0
    %263 = vmatprep.subr.bf16.mxu0 0
    %264 = vmatpush1.bf16.msra.mxu0 0
    %265 = vmatprep.subr.bf16.mxu0 0
    %266 = vmatpush1.bf16.msra.mxu0 0
    %267 = vmatprep.subr.bf16.mxu0 0
    %268 = vmatpush1.bf16.msra.mxu0 0
    %269 = vmatprep.subr.bf16.mxu0 0
    %270 = vmatpush1.bf16.msra.mxu0 0
    %271 = vmatprep.subr.bf16.mxu0 0
    %272 = vmatpush1.bf16.msra.mxu0 0
    %273 = vmatprep.subr.bf16.mxu0 0
    %274 = vmatpush1.bf16.msra.mxu0 0
    %275 = vmatprep.subr.bf16.mxu0 0
    %276 = vmatpush1.bf16.msra.mxu0 0
    %277 = vmatprep.subr.bf16.mxu0 0
    %278 = vmatpush1.bf16.msra.mxu0 0
    %279 = vmatprep.subr.bf16.mxu0 0
    %280 = vmatpush1.bf16.msra.mxu0 0
    %281 = vmatprep.subr.bf16.mxu0 0
    %282 = vmatpush1.bf16.msra.mxu0 0
    %283 = vmatprep.subr.bf16.mxu0 0
    %284 = vmatpush1.bf16.msra.mxu0 0
    %285 = vmatprep.mubr.bf16.mxu0 0
    %286 = vmatmul.mubr.bf16.gmra.mrb[0].mxu0 %v242
    %v287 = vpop.f32.mrb[0].mxu0
    %v288 = vadd.f32 0.0, %v287
    %v289 = vpop.f32.mrb[0].mxu0
    %v290 = vadd.f32 0.0, %v289
    %v291 = vpop.f32.mrb[0].mxu0
    %v292 = vadd.f32 0.0, %v291
    %v293 = vpop.f32.mrb[0].mxu0
    %v294 = vadd.f32 0.0, %v293
    %295 = vmatprep.mubr.bf16.mxu0 0
    %296 = vmatmul.mubr.bf16.gmra.mrb[0].mxu0 %v245
    %v297 = vpop.f32.mrb[0].mxu0
    %v298 = vadd.f32 0.0, %v297
    %v299 = vpop.f32.mrb[0].mxu0
    %v300 = vadd.f32 0.0, %v299
    %v301 = vpop.f32.mrb[0].mxu0
    %v302 = vadd.f32 0.0, %v301
    %v303 = vpop.f32.mrb[0].mxu0
    %v304 = vadd.f32 0.0, %v303
    %305 = vmatprep.mubr.bf16.mxu0 0
    %306 = vmatmul.mubr.bf16.gmra.mrb[0].mxu0 %v248
    %v307 = vpop.f32.mrb[0].mxu0
    %v308 = vadd.f32 0.0, %v307
    %v309 = vpop.f32.mrb[0].mxu0
    %v310 = vadd.f32 0.0, %v309
    %v311 = vpop.f32.mrb[0].mxu0
    %v312 = vadd.f32 0.0, %v311
    %v313 = vpop.f32.mrb[0].mxu0
    %v314 = vadd.f32 0.0, %v313
    %315 = vmatprep.mubr.bf16.mxu0 0
    %316 = vmatmul.mubr.bf16.gmra.mrb[0].mxu0 %v251
    %v317 = vpop.f32.mrb[0].mxu0
    %v318 = vadd.f32 0.0, %v317
    %v319 = vpop.f32.mrb[0].mxu0
    %v320 = vadd.f32 0.0, %v319
    %v321 = vpop.f32.mrb[0].mxu0
    %v322 = vadd.f32 0.0, %v321
    %v323 = vpop.f32.mrb[0].mxu0
    %v324 = vadd.f32 0.0, %v323
    %325 = vdwg.mxu0
    %334 = vrot.lane.b32.xlu0 %v288, 112
    %v335 = vpop.permute.xlu0 %334
    %336 = vrot.lane.b32.xlu0 %v292, 112
    %v337 = vpop.permute.xlu0 %336
    %338 = vrot.lane.b32.xlu0 %v298, 112
    %v339 = vpop.permute.xlu0 %338
    %340 = vrot.lane.b32.xlu0 %v302, 112
    %v341 = vpop.permute.xlu0 %340
    %342 = vrot.lane.b32.xlu0 %v308, 112
    %v343 = vpop.permute.xlu0 %342
    %344 = vrot.lane.b32.xlu0 %v312, 112
    %v345 = vpop.permute.xlu0 %344
    %346 = vrot.lane.b32.xlu0 %v318, 112
    %v347 = vpop.permute.xlu0 %346
    %348 = vrot.lane.b32.xlu0 %v322, 112
    %v349 = vpop.permute.xlu0 %348
    %358 = vrot.lane.b32.xlu0 %v288, 96
    %v359 = vpop.permute.xlu0 %358
    %360 = vrot.lane.b32.xlu0 %v292, 96
    %v361 = vpop.permute.xlu0 %360
    %362 = vrot.lane.b32.xlu0 %v298, 96
    %v363 = vpop.permute.xlu0 %362
    %364 = vrot.lane.b32.xlu0 %v302, 96
    %v365 = vpop.permute.xlu0 %364
    %366 = vrot.lane.b32.xlu0 %v308, 96
    %v367 = vpop.permute.xlu0 %366
    %368 = vrot.lane.b32.xlu0 %v312, 96
    %v369 = vpop.permute.xlu0 %368
    %370 = vrot.lane.b32.xlu0 %v318, 96
    %v371 = vpop.permute.xlu0 %370
    %372 = vrot.lane.b32.xlu0 %v322, 96
    %v373 = vpop.permute.xlu0 %372
    %382 = vrot.lane.b32.xlu0 %v288, 80
    %v383 = vpop.permute.xlu0 %382
    %384 = vrot.lane.b32.xlu0 %v292, 80
    %v385 = vpop.permute.xlu0 %384
    %386 = vrot.lane.b32.xlu0 %v298, 80
    %v387 = vpop.permute.xlu0 %386
    %388 = vrot.lane.b32.xlu0 %v302, 80
    %v389 = vpop.permute.xlu0 %388
    %390 = vrot.lane.b32.xlu0 %v308, 80
    %v391 = vpop.permute.xlu0 %390
    %392 = vrot.lane.b32.xlu0 %v312, 80
    %v393 = vpop.permute.xlu0 %392
    %394 = vrot.lane.b32.xlu0 %v318, 80
    %v395 = vpop.permute.xlu0 %394
    %396 = vrot.lane.b32.xlu0 %v322, 80
    %v397 = vpop.permute.xlu0 %396
    %v406 = vpack.c.bf16 %v288, %v288
    %v407 = vpack.c.bf16 %v292, %v292
    %v408 = vpack.c.bf16 %v298, %v298
    %v409 = vpack.c.bf16 %v302, %v302
    %v410 = vpack.c.bf16 %v308, %v308
    %v411 = vpack.c.bf16 %v312, %v312
    %v412 = vpack.c.bf16 %v318, %v318
    %v413 = vpack.c.bf16 %v322, %v322
    %v414 = vpack.c.bf16 %v335, %v335
    %v415 = vpack.c.bf16 %v337, %v337
    %v416 = vpack.c.bf16 %v339, %v339
    %v417 = vpack.c.bf16 %v341, %v341
    %v418 = vpack.c.bf16 %v343, %v343
    %v419 = vpack.c.bf16 %v345, %v345
    %v420 = vpack.c.bf16 %v347, %v347
    %v421 = vpack.c.bf16 %v349, %v349
    %v422 = vpack.c.bf16 %v359, %v359
    %v423 = vpack.c.bf16 %v361, %v361
    %v424 = vpack.c.bf16 %v363, %v363
    %v425 = vpack.c.bf16 %v365, %v365
    %v426 = vpack.c.bf16 %v367, %v367
    %v427 = vpack.c.bf16 %v369, %v369
    %v428 = vpack.c.bf16 %v371, %v371
    %v429 = vpack.c.bf16 %v373, %v373
    %v430 = vpack.c.bf16 %v383, %v383
    %v431 = vpack.c.bf16 %v385, %v385
    %v432 = vpack.c.bf16 %v387, %v387
    %v433 = vpack.c.bf16 %v389, %v389
    %v434 = vpack.c.bf16 %v391, %v391
    %v435 = vpack.c.bf16 %v393, %v393
    %v436 = vpack.c.bf16 %v395, %v395
    %v437 = vpack.c.bf16 %v397, %v397
    %446 = vrot.lane.b32.xlu0 %v290, 112
    %v447 = vpop.permute.xlu0 %446
    %448 = vrot.lane.b32.xlu0 %v294, 112
    %v449 = vpop.permute.xlu0 %448
    %450 = vrot.lane.b32.xlu0 %v300, 112
    %v451 = vpop.permute.xlu0 %450
    %452 = vrot.lane.b32.xlu0 %v304, 112
    %v453 = vpop.permute.xlu0 %452
    %454 = vrot.lane.b32.xlu0 %v310, 112
    %v455 = vpop.permute.xlu0 %454
    %456 = vrot.lane.b32.xlu0 %v314, 112
    %v457 = vpop.permute.xlu0 %456
    %458 = vrot.lane.b32.xlu0 %v320, 112
    %v459 = vpop.permute.xlu0 %458
    %460 = vrot.lane.b32.xlu0 %v324, 112
    %v461 = vpop.permute.xlu0 %460
    %470 = vrot.lane.b32.xlu0 %v290, 96
    %v471 = vpop.permute.xlu0 %470
    %472 = vrot.lane.b32.xlu0 %v294, 96
    %v473 = vpop.permute.xlu0 %472
    %474 = vrot.lane.b32.xlu0 %v300, 96
    %v475 = vpop.permute.xlu0 %474
    %476 = vrot.lane.b32.xlu0 %v304, 96
    %v477 = vpop.permute.xlu0 %476
    %478 = vrot.lane.b32.xlu0 %v310, 96
    %v479 = vpop.permute.xlu0 %478
    %480 = vrot.lane.b32.xlu0 %v314, 96
    %v481 = vpop.permute.xlu0 %480
    %482 = vrot.lane.b32.xlu0 %v320, 96
    %v483 = vpop.permute.xlu0 %482
    %484 = vrot.lane.b32.xlu0 %v324, 96
    %v485 = vpop.permute.xlu0 %484
    %494 = vrot.lane.b32.xlu0 %v290, 80
    %v495 = vpop.permute.xlu0 %494
    %496 = vrot.lane.b32.xlu0 %v294, 80
    %v497 = vpop.permute.xlu0 %496
    %498 = vrot.lane.b32.xlu0 %v300, 80
    %v499 = vpop.permute.xlu0 %498
    %500 = vrot.lane.b32.xlu0 %v304, 80
    %v501 = vpop.permute.xlu0 %500
    %502 = vrot.lane.b32.xlu0 %v310, 80
    %v503 = vpop.permute.xlu0 %502
    %504 = vrot.lane.b32.xlu0 %v314, 80
    %v505 = vpop.permute.xlu0 %504
    %506 = vrot.lane.b32.xlu0 %v320, 80
    %v507 = vpop.permute.xlu0 %506
    %508 = vrot.lane.b32.xlu0 %v324, 80
    %v509 = vpop.permute.xlu0 %508
    %v518 = vpack.c.bf16 %v290, %v290
    %v519 = vpack.c.bf16 %v294, %v294
    %v520 = vpack.c.bf16 %v300, %v300
    %v521 = vpack.c.bf16 %v304, %v304
    %v522 = vpack.c.bf16 %v310, %v310
    %v523 = vpack.c.bf16 %v314, %v314
    %v524 = vpack.c.bf16 %v320, %v320
    %v525 = vpack.c.bf16 %v324, %v324
    %v526 = vpack.c.bf16 %v447, %v447
    %v527 = vpack.c.bf16 %v449, %v449
    %v528 = vpack.c.bf16 %v451, %v451
    %v529 = vpack.c.bf16 %v453, %v453
    %v530 = vpack.c.bf16 %v455, %v455
    %v531 = vpack.c.bf16 %v457, %v457
    %v532 = vpack.c.bf16 %v459, %v459
    %v533 = vpack.c.bf16 %v461, %v461
    %v534 = vpack.c.bf16 %v471, %v471
    %v535 = vpack.c.bf16 %v473, %v473
    %v536 = vpack.c.bf16 %v475, %v475
    %v537 = vpack.c.bf16 %v477, %v477
    %v538 = vpack.c.bf16 %v479, %v479
    %v539 = vpack.c.bf16 %v481, %v481
    %v540 = vpack.c.bf16 %v483, %v483
    %v541 = vpack.c.bf16 %v485, %v485
    %v542 = vpack.c.bf16 %v495, %v495
    %v543 = vpack.c.bf16 %v497, %v497
    %v544 = vpack.c.bf16 %v499, %v499
    %v545 = vpack.c.bf16 %v501, %v501
    %v546 = vpack.c.bf16 %v503, %v503
    %v547 = vpack.c.bf16 %v505, %v505
    %v548 = vpack.c.bf16 %v507, %v507
    %v549 = vpack.c.bf16 %v509, %v509
    %551 = vrot.lane.b32.xlu0 %v406, 64
    %v552 = vpop.permute.xlu0 %551
    %vm553 = vcmask 130048
    %v555 = vsel %vm553, %v406, 0
    %v558 = vsel %vm553, %v552, 0
    %560 = vmatprep.subr.bf16.mxu0 0
    %561 = vmatpush1.bf16.xpose.msra.mxu0 %v558
    %562 = vmatprep.subr.bf16.mxu0 0
    %563 = vmatpush1.bf16.xpose.msra.mxu0 0
    %564 = vmatprep.subr.bf16.mxu0 0
    %565 = vmatpush1.bf16.xpose.msra.mxu0 0
    %566 = vmatprep.subr.bf16.mxu0 0
    %567 = vmatpush1.bf16.xpose.msra.mxu0 0
    %568 = vmatprep.subr.bf16.mxu0 0
    %569 = vmatpush1.bf16.xpose.msra.mxu0 0
    %570 = vmatprep.subr.bf16.mxu0 0
    %571 = vmatpush1.bf16.xpose.msra.mxu0 0
    %572 = vmatprep.subr.bf16.mxu0 0
    %573 = vmatpush1.bf16.xpose.msra.mxu0 0
    %574 = vmatprep.subr.bf16.mxu0 0
    %575 = vmatpush1.bf16.xpose.msra.mxu0 0
    %576 = vmatprep.subr.bf16.mxu0 0
    %577 = vmatpush1.bf16.xpose.msra.mxu0 0
    %578 = vmatprep.subr.bf16.mxu0 0
    %579 = vmatpush1.bf16.xpose.msra.mxu0 0
    %580 = vmatprep.subr.bf16.mxu0 0
    %581 = vmatpush1.bf16.xpose.msra.mxu0 0
    %582 = vmatprep.subr.bf16.mxu0 0
    %583 = vmatpush1.bf16.xpose.msra.mxu0 0
    %584 = vmatprep.subr.bf16.mxu0 0
    %585 = vmatpush1.bf16.xpose.msra.mxu0 0
    %586 = vmatprep.subr.bf16.mxu0 0
    %587 = vmatpush1.bf16.xpose.msra.mxu0 0
    %588 = vmatprep.subr.bf16.mxu0 0
    %589 = vmatpush1.bf16.xpose.msra.mxu0 0
    %590 = vmatprep.subr.bf16.mxu0 0
    %591 = vmatpush1.bf16.xpose.msra.mxu0 0
    %592 = vmatprep.mubr.bf16.mxu0 0
    %593 = vmatmul.mubr.bf16.gmra.mrb[0].mxu0 %v555
    %v594 = vpop.f32.mrb[0].mxu0
    %v595 = vadd.f32 0.0, %v594
    %v596 = vpop.f32.mrb[0].mxu0
    %v597 = vpop.f32.mrb[0].mxu0
    %v598 = vpop.f32.mrb[0].mxu0
    %599 = vdwg.mxu0
    %601 = vrot.lane.b32.xlu0 %v407, 64
    %v602 = vpop.permute.xlu0 %601
    %v604 = vsel %vm553, %v407, 0
    %v607 = vsel %vm553, %v602, 0
    %609 = vmatprep.subr.bf16.mxu0 0
    %610 = vmatpush1.bf16.xpose.msra.mxu0 %v607
    %611 = vmatprep.subr.bf16.mxu0 0
    %612 = vmatpush1.bf16.xpose.msra.mxu0 0
    %613 = vmatprep.subr.bf16.mxu0 0
    %614 = vmatpush1.bf16.xpose.msra.mxu0 0
    %615 = vmatprep.subr.bf16.mxu0 0
    %616 = vmatpush1.bf16.xpose.msra.mxu0 0
    %617 = vmatprep.subr.bf16.mxu0 0
    %618 = vmatpush1.bf16.xpose.msra.mxu0 0
    %619 = vmatprep.subr.bf16.mxu0 0
    %620 = vmatpush1.bf16.xpose.msra.mxu0 0
    %621 = vmatprep.subr.bf16.mxu0 0
    %622 = vmatpush1.bf16.xpose.msra.mxu0 0
    %623 = vmatprep.subr.bf16.mxu0 0
    %624 = vmatpush1.bf16.xpose.msra.mxu0 0
    %625 = vmatprep.subr.bf16.mxu0 0
    %626 = vmatpush1.bf16.xpose.msra.mxu0 0
    %627 = vmatprep.subr.bf16.mxu0 0
    %628 = vmatpush1.bf16.xpose.msra.mxu0 0
    %629 = vmatprep.subr.bf16.mxu0 0
    %630 = vmatpush1.bf16.xpose.msra.mxu0 0
    %631 = vmatprep.subr.bf16.mxu0 0
    %632 = vmatpush1.bf16.xpose.msra.mxu0 0
    %633 = vmatprep.subr.bf16.mxu0 0
    %634 = vmatpush1.bf16.xpose.msra.mxu0 0
    %635 = vmatprep.subr.bf16.mxu0 0
    %636 = vmatpush1.bf16.xpose.msra.mxu0 0
    %637 = vmatprep.subr.bf16.mxu0 0
    %638 = vmatpush1.bf16.xpose.msra.mxu0 0
    %639 = vmatprep.subr.bf16.mxu0 0
    %640 = vmatpush1.bf16.xpose.msra.mxu0 0
    %641 = vmatprep.mubr.bf16.mxu0 0
    %642 = vmatmul.mubr.bf16.gmra.mrb[0].mxu0 %v604
    %v643 = vpop.f32.mrb[0].mxu0
    %v644 = vadd.f32 0.0, %v643
    %v645 = vpop.f32.mrb[0].mxu0
    %v646 = vpop.f32.mrb[0].mxu0
    %v647 = vpop.f32.mrb[0].mxu0
    %648 = vdwg.mxu0
    %650 = vrot.lane.b32.xlu0 %v408, 64
    %v651 = vpop.permute.xlu0 %650
    %v653 = vsel %vm553, %v408, 0
    %v656 = vsel %vm553, %v651, 0
    %658 = vmatprep.subr.bf16.mxu0 0
    %659 = vmatpush1.bf16.xpose.msra.mxu0 %v656
    %660 = vmatprep.subr.bf16.mxu0 0
    %661 = vmatpush1.bf16.xpose.msra.mxu0 0
    %662 = vmatprep.subr.bf16.mxu0 0
    %663 = vmatpush1.bf16.xpose.msra.mxu0 0
    %664 = vmatprep.subr.bf16.mxu0 0
    %665 = vmatpush1.bf16.xpose.msra.mxu0 0
    %666 = vmatprep.subr.bf16.mxu0 0
    %667 = vmatpush1.bf16.xpose.msra.mxu0 0
    %668 = vmatprep.subr.bf16.mxu0 0
    %669 = vmatpush1.bf16.xpose.msra.mxu0 0
    %670 = vmatprep.subr.bf16.mxu0 0
    %671 = vmatpush1.bf16.xpose.msra.mxu0 0
    %672 = vmatprep.subr.bf16.mxu0 0
    %673 = vmatpush1.bf16.xpose.msra.mxu0 0
    %674 = vmatprep.subr.bf16.mxu0 0
    %675 = vmatpush1.bf16.xpose.msra.mxu0 0
    %676 = vmatprep.subr.bf16.mxu0 0
    %677 = vmatpush1.bf16.xpose.msra.mxu0 0
    %678 = vmatprep.subr.bf16.mxu0 0
    %679 = vmatpush1.bf16.xpose.msra.mxu0 0
    %680 = vmatprep.subr.bf16.mxu0 0
    %681 = vmatpush1.bf16.xpose.msra.mxu0 0
    %682 = vmatprep.subr.bf16.mxu0 0
    %683 = vmatpush1.bf16.xpose.msra.mxu0 0
    %684 = vmatprep.subr.bf16.mxu0 0
    %685 = vmatpush1.bf16.xpose.msra.mxu0 0
    %686 = vmatprep.subr.bf16.mxu0 0
    %687 = vmatpush1.bf16.xpose.msra.mxu0 0
    %688 = vmatprep.subr.bf16.mxu0 0
    %689 = vmatpush1.bf16.xpose.msra.mxu0 0
    %690 = vmatprep.mubr.bf16.mxu0 0
    %691 = vmatmul.mubr.bf16.gmra.mrb[0].mxu0 %v653
    %v692 = vpop.f32.mrb[0].mxu0
    %v693 = vadd.f32 0.0, %v692
    %v694 = vpop.f32.mrb[0].mxu0
    %v695 = vpop.f32.mrb[0].mxu0
    %v696 = vpop.f32.mrb[0].mxu0
    %697 = vdwg.mxu0
    %699 = vrot.lane.b32.xlu0 %v409, 64
    %v700 = vpop.permute.xlu0 %699
    %v702 = vsel %vm553, %v409, 0
    %v705 = vsel %vm553, %v700, 0
    %707 = vmatprep.subr.bf16.mxu0 0
    %708 = vmatpush1.bf16.xpose.msra.mxu0 %v705
    %709 = vmatprep.subr.bf16.mxu0 0
    %710 = vmatpush1.bf16.xpose.msra.mxu0 0
    %711 = vmatprep.subr.bf16.mxu0 0
    %712 = vmatpush1.bf16.xpose.msra.mxu0 0
    %713 = vmatprep.subr.bf16.mxu0 0
    %714 = vmatpush1.bf16.xpose.msra.mxu0 0
    %715 = vmatprep.subr.bf16.mxu0 0
    %716 = vmatpush1.bf16.xpose.msra.mxu0 0
    %717 = vmatprep.subr.bf16.mxu0 0
    %718 = vmatpush1.bf16.xpose.msra.mxu0 0
    %719 = vmatprep.subr.bf16.mxu0 0
    %720 = vmatpush1.bf16.xpose.msra.mxu0 0
    %721 = vmatprep.subr.bf16.mxu0 0
    %722 = vmatpush1.bf16.xpose.msra.mxu0 0
    %723 = vmatprep.subr.bf16.mxu0 0
    %724 = vmatpush1.bf16.xpose.msra.mxu0 0
    %725 = vmatprep.subr.bf16.mxu0 0
    %726 = vmatpush1.bf16.xpose.msra.mxu0 0
    %727 = vmatprep.subr.bf16.mxu0 0
    %728 = vmatpush1.bf16.xpose.msra.mxu0 0
    %729 = vmatprep.subr.bf16.mxu0 0
    %730 = vmatpush1.bf16.xpose.msra.mxu0 0
    %731 = vmatprep.subr.bf16.mxu0 0
    %732 = vmatpush1.bf16.xpose.msra.mxu0 0
    %733 = vmatprep.subr.bf16.mxu0 0
    %734 = vmatpush1.bf16.xpose.msra.mxu0 0
    %735 = vmatprep.subr.bf16.mxu0 0
    %736 = vmatpush1.bf16.xpose.msra.mxu0 0
    %737 = vmatprep.subr.bf16.mxu0 0
    %738 = vmatpush1.bf16.xpose.msra.mxu0 0
    %739 = vmatprep.mubr.bf16.mxu0 0
    %740 = vmatmul.mubr.bf16.gmra.mrb[0].mxu0 %v702
    %v741 = vpop.f32.mrb[0].mxu0
    %v742 = vadd.f32 0.0, %v741
    %v743 = vpop.f32.mrb[0].mxu0
    %v744 = vpop.f32.mrb[0].mxu0
    %v745 = vpop.f32.mrb[0].mxu0
    %746 = vdwg.mxu0
    %748 = vrot.lane.b32.xlu0 %v410, 64
    %v749 = vpop.permute.xlu0 %748
    %v751 = vsel %vm553, %v410, 0
    %v754 = vsel %vm553, %v749, 0
    %756 = vmatprep.subr.bf16.mxu0 0
    %757 = vmatpush1.bf16.xpose.msra.mxu0 %v754
    %758 = vmatprep.subr.bf16.mxu0 0
    %759 = vmatpush1.bf16.xpose.msra.mxu0 0
    %760 = vmatprep.subr.bf16.mxu0 0
    %761 = vmatpush1.bf16.xpose.msra.mxu0 0
    %762 = vmatprep.subr.bf16.mxu0 0
    %763 = vmatpush1.bf16.xpose.msra.mxu0 0
    %764 = vmatprep.subr.bf16.mxu0 0
    %765 = vmatpush1.bf16.xpose.msra.mxu0 0
    %766 = vmatprep.subr.bf16.mxu0 0
    %767 = vmatpush1.bf16.xpose.msra.mxu0 0
    %768 = vmatprep.subr.bf16.mxu0 0
    %769 = vmatpush1.bf16.xpose.msra.mxu0 0
    %770 = vmatprep.subr.bf16.mxu0 0
    %771 = vmatpush1.bf16.xpose.msra.mxu0 0
    %772 = vmatprep.subr.bf16.mxu0 0
    %773 = vmatpush1.bf16.xpose.msra.mxu0 0
    %774 = vmatprep.subr.bf16.mxu0 0
    %775 = vmatpush1.bf16.xpose.msra.mxu0 0
    %776 = vmatprep.subr.bf16.mxu0 0
    %777 = vmatpush1.bf16.xpose.msra.mxu0 0
    %778 = vmatprep.subr.bf16.mxu0 0
    %779 = vmatpush1.bf16.xpose.msra.mxu0 0
    %780 = vmatprep.subr.bf16.mxu0 0
    %781 = vmatpush1.bf16.xpose.msra.mxu0 0
    %782 = vmatprep.subr.bf16.mxu0 0
    %783 = vmatpush1.bf16.xpose.msra.mxu0 0
    %784 = vmatprep.subr.bf16.mxu0 0
    %785 = vmatpush1.bf16.xpose.msra.mxu0 0
    %786 = vmatprep.subr.bf16.mxu0 0
    %787 = vmatpush1.bf16.xpose.msra.mxu0 0
    %788 = vmatprep.mubr.bf16.mxu0 0
    %789 = vmatmul.mubr.bf16.gmra.mrb[0].mxu0 %v751
    %v790 = vpop.f32.mrb[0].mxu0
    %v791 = vadd.f32 0.0, %v790
    %v792 = vpop.f32.mrb[0].mxu0
    %v793 = vpop.f32.mrb[0].mxu0
    %v794 = vpop.f32.mrb[0].mxu0
    %795 = vdwg.mxu0
    %797 = vrot.lane.b32.xlu0 %v411, 64
    %v798 = vpop.permute.xlu0 %797
    %v800 = vsel %vm553, %v411, 0
    %v803 = vsel %vm553, %v798, 0
    %805 = vmatprep.subr.bf16.mxu0 0
    %806 = vmatpush1.bf16.xpose.msra.mxu0 %v803
    %807 = vmatprep.subr.bf16.mxu0 0
    %808 = vmatpush1.bf16.xpose.msra.mxu0 0
    %809 = vmatprep.subr.bf16.mxu0 0
    %810 = vmatpush1.bf16.xpose.msra.mxu0 0
    %811 = vmatprep.subr.bf16.mxu0 0
    %812 = vmatpush1.bf16.xpose.msra.mxu0 0
    %813 = vmatprep.subr.bf16.mxu0 0
    %814 = vmatpush1.bf16.xpose.msra.mxu0 0
    %815 = vmatprep.subr.bf16.mxu0 0
    %816 = vmatpush1.bf16.xpose.msra.mxu0 0
    %817 = vmatprep.subr.bf16.mxu0 0
    %818 = vmatpush1.bf16.xpose.msra.mxu0 0
    %819 = vmatprep.subr.bf16.mxu0 0
    %820 = vmatpush1.bf16.xpose.msra.mxu0 0
    %821 = vmatprep.subr.bf16.mxu0 0
    %822 = vmatpush1.bf16.xpose.msra.mxu0 0
    %823 = vmatprep.subr.bf16.mxu0 0
    %824 = vmatpush1.bf16.xpose.msra.mxu0 0
    %825 = vmatprep.subr.bf16.mxu0 0
    %826 = vmatpush1.bf16.xpose.msra.mxu0 0
    %827 = vmatprep.subr.bf16.mxu0 0
    %828 = vmatpush1.bf16.xpose.msra.mxu0 0
    %829 = vmatprep.subr.bf16.mxu0 0
    %830 = vmatpush1.bf16.xpose.msra.mxu0 0
    %831 = vmatprep.subr.bf16.mxu0 0
    %832 = vmatpush1.bf16.xpose.msra.mxu0 0
    %833 = vmatprep.subr.bf16.mxu0 0
    %834 = vmatpush1.bf16.xpose.msra.mxu0 0
    %835 = vmatprep.subr.bf16.mxu0 0
    %836 = vmatpush1.bf16.xpose.msra.mxu0 0
    %837 = vmatprep.mubr.bf16.mxu0 0
    %838 = vmatmul.mubr.bf16.gmra.mrb[0].mxu0 %v800
    %v839 = vpop.f32.mrb[0].mxu0
    %v840 = vadd.f32 0.0, %v839
    %v841 = vpop.f32.mrb[0].mxu0
    %v842 = vpop.f32.mrb[0].mxu0
    %v843 = vpop.f32.mrb[0].mxu0
    %844 = vdwg.mxu0
    %846 = vrot.lane.b32.xlu0 %v412, 64
    %v847 = vpop.permute.xlu0 %846
    %v849 = vsel %vm553, %v412, 0
    %v852 = vsel %vm553, %v847, 0
    %854 = vmatprep.subr.bf16.mxu0 0
    %855 = vmatpush1.bf16.xpose.msra.mxu0 %v852
    %856 = vmatprep.subr.bf16.mxu0 0
    %857 = vmatpush1.bf16.xpose.msra.mxu0 0
    %858 = vmatprep.subr.bf16.mxu0 0
    %859 = vmatpush1.bf16.xpose.msra.mxu0 0
    %860 = vmatprep.subr.bf16.mxu0 0
    %861 = vmatpush1.bf16.xpose.msra.mxu0 0
    %862 = vmatprep.subr.bf16.mxu0 0
    %863 = vmatpush1.bf16.xpose.msra.mxu0 0
    %864 = vmatprep.subr.bf16.mxu0 0
    %865 = vmatpush1.bf16.xpose.msra.mxu0 0
    %866 = vmatprep.subr.bf16.mxu0 0
    %867 = vmatpush1.bf16.xpose.msra.mxu0 0
    %868 = vmatprep.subr.bf16.mxu0 0
    %869 = vmatpush1.bf16.xpose.msra.mxu0 0
    %870 = vmatprep.subr.bf16.mxu0 0
    %871 = vmatpush1.bf16.xpose.msra.mxu0 0
    %872 = vmatprep.subr.bf16.mxu0 0
    %873 = vmatpush1.bf16.xpose.msra.mxu0 0
    %874 = vmatprep.subr.bf16.mxu0 0
    %875 = vmatpush1.bf16.xpose.msra.mxu0 0
    %876 = vmatprep.subr.bf16.mxu0 0
    %877 = vmatpush1.bf16.xpose.msra.mxu0 0
    %878 = vmatprep.subr.bf16.mxu0 0
    %879 = vmatpush1.bf16.xpose.msra.mxu0 0
    %880 = vmatprep.subr.bf16.mxu0 0
    %881 = vmatpush1.bf16.xpose.msra.mxu0 0
    %882 = vmatprep.subr.bf16.mxu0 0
    %883 = vmatpush1.bf16.xpose.msra.mxu0 0
    %884 = vmatprep.subr.bf16.mxu0 0
    %885 = vmatpush1.bf16.xpose.msra.mxu0 0
    %886 = vmatprep.mubr.bf16.mxu0 0
    %887 = vmatmul.mubr.bf16.gmra.mrb[0].mxu0 %v849
    %v888 = vpop.f32.mrb[0].mxu0
    %v889 = vadd.f32 0.0, %v888
    %v890 = vpop.f32.mrb[0].mxu0
    %v891 = vpop.f32.mrb[0].mxu0
    %v892 = vpop.f32.mrb[0].mxu0
    %893 = vdwg.mxu0
    %895 = vrot.lane.b32.xlu0 %v413, 64
    %v896 = vpop.permute.xlu0 %895
    %v898 = vsel %vm553, %v413, 0
    %v901 = vsel %vm553, %v896, 0
    %903 = vmatprep.subr.bf16.mxu0 0
    %904 = vmatpush1.bf16.xpose.msra.mxu0 %v901
    %905 = vmatprep.subr.bf16.mxu0 0
    %906 = vmatpush1.bf16.xpose.msra.mxu0 0
    %907 = vmatprep.subr.bf16.mxu0 0
    %908 = vmatpush1.bf16.xpose.msra.mxu0 0
    %909 = vmatprep.subr.bf16.mxu0 0
    %910 = vmatpush1.bf16.xpose.msra.mxu0 0
    %911 = vmatprep.subr.bf16.mxu0 0
    %912 = vmatpush1.bf16.xpose.msra.mxu0 0
    %913 = vmatprep.subr.bf16.mxu0 0
    %914 = vmatpush1.bf16.xpose.msra.mxu0 0
    %915 = vmatprep.subr.bf16.mxu0 0
    %916 = vmatpush1.bf16.xpose.msra.mxu0 0
    %917 = vmatprep.subr.bf16.mxu0 0
    %918 = vmatpush1.bf16.xpose.msra.mxu0 0
    %919 = vmatprep.subr.bf16.mxu0 0
    %920 = vmatpush1.bf16.xpose.msra.mxu0 0
    %921 = vmatprep.subr.bf16.mxu0 0
    %922 = vmatpush1.bf16.xpose.msra.mxu0 0
    %923 = vmatprep.subr.bf16.mxu0 0
    %924 = vmatpush1.bf16.xpose.msra.mxu0 0
    %925 = vmatprep.subr.bf16.mxu0 0
    %926 = vmatpush1.bf16.xpose.msra.mxu0 0
    %927 = vmatprep.subr.bf16.mxu0 0
    %928 = vmatpush1.bf16.xpose.msra.mxu0 0
    %929 = vmatprep.subr.bf16.mxu0 0
    %930 = vmatpush1.bf16.xpose.msra.mxu0 0
    %931 = vmatprep.subr.bf16.mxu0 0
    %932 = vmatpush1.bf16.xpose.msra.mxu0 0
    %933 = vmatprep.subr.bf16.mxu0 0
    %934 = vmatpush1.bf16.xpose.msra.mxu0 0
    %935 = vmatprep.mubr.bf16.mxu0 0
    %936 = vmatmul.mubr.bf16.gmra.mrb[0].mxu0 %v898
    %v937 = vpop.f32.mrb[0].mxu0
    %v938 = vadd.f32 0.0, %v937
    %v939 = vpop.f32.mrb[0].mxu0
    %v940 = vpop.f32.mrb[0].mxu0
    %v941 = vpop.f32.mrb[0].mxu0
    %942 = vdwg.mxu0
    %944 = vrot.lane.b32.xlu0 %v414, 64
    %v945 = vpop.permute.xlu0 %944
    %v947 = vsel %vm553, %v414, 0
    %v950 = vsel %vm553, %v945, 0
    %952 = vmatprep.subr.bf16.mxu0 0
    %953 = vmatpush1.bf16.xpose.msra.mxu0 %v950
    %954 = vmatprep.subr.bf16.mxu0 0
    %955 = vmatpush1.bf16.xpose.msra.mxu0 0
    %956 = vmatprep.subr.bf16.mxu0 0
    %957 = vmatpush1.bf16.xpose.msra.mxu0 0
    %958 = vmatprep.subr.bf16.mxu0 0
    %959 = vmatpush1.bf16.xpose.msra.mxu0 0
    %960 = vmatprep.subr.bf16.mxu0 0
    %961 = vmatpush1.bf16.xpose.msra.mxu0 0
    %962 = vmatprep.subr.bf16.mxu0 0
    %963 = vmatpush1.bf16.xpose.msra.mxu0 0
    %964 = vmatprep.subr.bf16.mxu0 0
    %965 = vmatpush1.bf16.xpose.msra.mxu0 0
    %966 = vmatprep.subr.bf16.mxu0 0
    %967 = vmatpush1.bf16.xpose.msra.mxu0 0
    %968 = vmatprep.subr.bf16.mxu0 0
    %969 = vmatpush1.bf16.xpose.msra.mxu0 0
    %970 = vmatprep.subr.bf16.mxu0 0
    %971 = vmatpush1.bf16.xpose.msra.mxu0 0
    %972 = vmatprep.subr.bf16.mxu0 0
    %973 = vmatpush1.bf16.xpose.msra.mxu0 0
    %974 = vmatprep.subr.bf16.mxu0 0
    %975 = vmatpush1.bf16.xpose.msra.mxu0 0
    %976 = vmatprep.subr.bf16.mxu0 0
    %977 = vmatpush1.bf16.xpose.msra.mxu0 0
    %978 = vmatprep.subr.bf16.mxu0 0
    %979 = vmatpush1.bf16.xpose.msra.mxu0 0
    %980 = vmatprep.subr.bf16.mxu0 0
    %981 = vmatpush1.bf16.xpose.msra.mxu0 0
    %982 = vmatprep.subr.bf16.mxu0 0
    %983 = vmatpush1.bf16.xpose.msra.mxu0 0
    %984 = vmatprep.mubr.bf16.mxu0 0
    %985 = vmatmul.mubr.bf16.gmra.mrb[0].mxu0 %v947
    %v986 = vpop.f32.mrb[0].mxu0
    %v987 = vadd.f32 0.0, %v986
    %v988 = vpop.f32.mrb[0].mxu0
    %v989 = vpop.f32.mrb[0].mxu0
    %v990 = vpop.f32.mrb[0].mxu0
    %991 = vdwg.mxu0
    %993 = vrot.lane.b32.xlu0 %v415, 64
    %v994 = vpop.permute.xlu0 %993
    %v996 = vsel %vm553, %v415, 0
    %v999 = vsel %vm553, %v994, 0
    %1001 = vmatprep.subr.bf16.mxu0 0
    %1002 = vmatpush1.bf16.xpose.msra.mxu0 %v999
    %1003 = vmatprep.subr.bf16.mxu0 0
    %1004 = vmatpush1.bf16.xpose.msra.mxu0 0
    %1005 = vmatprep.subr.bf16.mxu0 0
    %1006 = vmatpush1.bf16.xpose.msra.mxu0 0
    %1007 = vmatprep.subr.bf16.mxu0 0
    %1008 = vmatpush1.bf16.xpose.msra.mxu0 0
    %1009 = vmatprep.subr.bf16.mxu0 0
    %1010 = vmatpush1.bf16.xpose.msra.mxu0 0
    %1011 = vmatprep.subr.bf16.mxu0 0
    %1012 = vmatpush1.bf16.xpose.msra.mxu0 0
    %1013 = vmatprep.subr.bf16.mxu0 0
    %1014 = vmatpush1.bf16.xpose.msra.mxu0 0
    %1015 = vmatprep.subr.bf16.mxu0 0
    %1016 = vmatpush1.bf16.xpose.msra.mxu0 0
    %1017 = vmatprep.subr.bf16.mxu0 0
    %1018 = vmatpush1.bf16.xpose.msra.mxu0 0
    %1019 = vmatprep.subr.bf16.mxu0 0
    %1020 = vmatpush1.bf16.xpose.msra.mxu0 0
    %1021 = vmatprep.subr.bf16.mxu0 0
    %1022 = vmatpush1.bf16.xpose.msra.mxu0 0
    %1023 = vmatprep.subr.bf16.mxu0 0
    %1024 = vmatpush1.bf16.xpose.msra.mxu0 0
    %1025 = vmatprep.subr.bf16.mxu0 0
    %1026 = vmatpush1.bf16.xpose.msra.mxu0 0
    %1027 = vmatprep.subr.bf16.mxu0 0
    %1028 = vmatpush1.bf16.xpose.msra.mxu0 0
    %1029 = vmatprep.subr.bf16.mxu0 0
    %1030 = vmatpush1.bf16.xpose.msra.mxu0 0
    %1031 = vmatprep.subr.bf16.mxu0 0
    %1032 = vmatpush1.bf16.xpose.msra.mxu0 0
    %1033 = vmatprep.mubr.bf16.mxu0 0
    %1034 = vmatmul.mubr.bf16.gmra.mrb[0].mxu0 %v996
    %v1035 = vpop.f32.mrb[0].mxu0
    %v1036 = vadd.f32 0.0, %v1035
    %v1037 = vpop.f32.mrb[0].mxu0
    %v1038 = vpop.f32.mrb[0].mxu0
    %v1039 = vpop.f32.mrb[0].mxu0
    %1040 = vdwg.mxu0
    %1042 = vrot.lane.b32.xlu0 %v416, 64
    %v1043 = vpop.permute.xlu0 %1042
    %v1045 = vsel %vm553, %v416, 0
    %v1048 = vsel %vm553, %v1043, 0
    %1050 = vmatprep.subr.bf16.mxu0 0
    %1051 = vmatpush1.bf16.xpose.msra.mxu0 %v1048
    %1052 = vmatprep.subr.bf16.mxu0 0
    %1053 = vmatpush1.bf16.xpose.msra.mxu0 0
    %1054 = vmatprep.subr.bf16.mxu0 0
    %1055 = vmatpush1.bf16.xpose.msra.mxu0 0
    %1056 = vmatprep.subr.bf16.mxu0 0
    %1057 = vmatpush1.bf16.xpose.msra.mxu0 0
    %1058 = vmatprep.subr.bf16.mxu0 0
    %1059 = vmatpush1.bf16.xpose.msra.mxu0 0
    %1060 = vmatprep.subr.bf16.mxu0 0
    %1061 = vmatpush1.bf16.xpose.msra.mxu0 0
    %1062 = vmatprep.subr.bf16.mxu0 0
    %1063 = vmatpush1.bf16.xpose.msra.mxu0 0
    %1064 = vmatprep.subr.bf16.mxu0 0
    %1065 = vmatpush1.bf16.xpose.msra.mxu0 0
    %1066 = vmatprep.subr.bf16.mxu0 0
    %1067 = vmatpush1.bf16.xpose.msra.mxu0 0
    %1068 = vmatprep.subr.bf16.mxu0 0
    %1069 = vmatpush1.bf16.xpose.msra.mxu0 0
    %1070 = vmatprep.subr.bf16.mxu0 0
    %1071 = vmatpush1.bf16.xpose.msra.mxu0 0
    %1072 = vmatprep.subr.bf16.mxu0 0
    %1073 = vmatpush1.bf16.xpose.msra.mxu0 0
    %1074 = vmatprep.subr.bf16.mxu0 0
    %1075 = vmatpush1.bf16.xpose.msra.mxu0 0
    %1076 = vmatprep.subr.bf16.mxu0 0
    %1077 = vmatpush1.bf16.xpose.msra.mxu0 0
    %1078 = vmatprep.subr.bf16.mxu0 0
    %1079 = vmatpush1.bf16.xpose.msra.mxu0 0
    %1080 = vmatprep.subr.bf16.mxu0 0
    %1081 = vmatpush1.bf16.xpose.msra.mxu0 0
    %1082 = vmatprep.mubr.bf16.mxu0 0
    %1083 = vmatmul.mubr.bf16.gmra.mrb[0].mxu0 %v1045
    %v1084 = vpop.f32.mrb[0].mxu0
    %v1085 = vadd.f32 0.0, %v1084
    %v1086 = vpop.f32.mrb[0].mxu0
    %v1087 = vpop.f32.mrb[0].mxu0
    %v1088 = vpop.f32.mrb[0].mxu0
    %1089 = vdwg.mxu0
    %1091 = vrot.lane.b32.xlu0 %v417, 64
    %v1092 = vpop.permute.xlu0 %1091
    %v1094 = vsel %vm553, %v417, 0
    %v1097 = vsel %vm553, %v1092, 0
    %1099 = vmatprep.subr.bf16.mxu0 0
    %1100 = vmatpush1.bf16.xpose.msra.mxu0 %v1097
    %1101 = vmatprep.subr.bf16.mxu0 0
    %1102 = vmatpush1.bf16.xpose.msra.mxu0 0
    %1103 = vmatprep.subr.bf16.mxu0 0
    %1104 = vmatpush1.bf16.xpose.msra.mxu0 0
    %1105 = vmatprep.subr.bf16.mxu0 0
    %1106 = vmatpush1.bf16.xpose.msra.mxu0 0
    %1107 = vmatprep.subr.bf16.mxu0 0
    %1108 = vmatpush1.bf16.xpose.msra.mxu0 0
    %1109 = vmatprep.subr.bf16.mxu0 0
    %1110 = vmatpush1.bf16.xpose.msra.mxu0 0
    %1111 = vmatprep.subr.bf16.mxu0 0
    %1112 = vmatpush1.bf16.xpose.msra.mxu0 0
    %1113 = vmatprep.subr.bf16.mxu0 0
    %1114 = vmatpush1.bf16.xpose.msra.mxu0 0
    %1115 = vmatprep.subr.bf16.mxu0 0
    %1116 = vmatpush1.bf16.xpose.msra.mxu0 0
    %1117 = vmatprep.subr.bf16.mxu0 0
    %1118 = vmatpush1.bf16.xpose.msra.mxu0 0
    %1119 = vmatprep.subr.bf16.mxu0 0
    %1120 = vmatpush1.bf16.xpose.msra.mxu0 0
    %1121 = vmatprep.subr.bf16.mxu0 0
    %1122 = vmatpush1.bf16.xpose.msra.mxu0 0
    %1123 = vmatprep.subr.bf16.mxu0 0
    %1124 = vmatpush1.bf16.xpose.msra.mxu0 0
    %1125 = vmatprep.subr.bf16.mxu0 0
    %1126 = vmatpush1.bf16.xpose.msra.mxu0 0
    %1127 = vmatprep.subr.bf16.mxu0 0
    %1128 = vmatpush1.bf16.xpose.msra.mxu0 0
    %1129 = vmatprep.subr.bf16.mxu0 0
    %1130 = vmatpush1.bf16.xpose.msra.mxu0 0
    %1131 = vmatprep.mubr.bf16.mxu0 0
    %1132 = vmatmul.mubr.bf16.gmra.mrb[0].mxu0 %v1094
    %v1133 = vpop.f32.mrb[0].mxu0
    %v1134 = vadd.f32 0.0, %v1133
    %v1135 = vpop.f32.mrb[0].mxu0
    %v1136 = vpop.f32.mrb[0].mxu0
    %v1137 = vpop.f32.mrb[0].mxu0
    %1138 = vdwg.mxu0
    %1140 = vrot.lane.b32.xlu0 %v418, 64
    %v1141 = vpop.permute.xlu0 %1140
    %v1143 = vsel %vm553, %v418, 0
    %v1146 = vsel %vm553, %v1141, 0
    %1148 = vmatprep.subr.bf16.mxu0 0
    %1149 = vmatpush1.bf16.xpose.msra.mxu0 %v1146
    %1150 = vmatprep.subr.bf16.mxu0 0
    %1151 = vmatpush1.bf16.xpose.msra.mxu0 0
    %1152 = vmatprep.subr.bf16.mxu0 0
    %1153 = vmatpush1.bf16.xpose.msra.mxu0 0
    %1154 = vmatprep.subr.bf16.mxu0 0
    %1155 = vmatpush1.bf16.xpose.msra.mxu0 0
    %1156 = vmatprep.subr.bf16.mxu0 0
    %1157 = vmatpush1.bf16.xpose.msra.mxu0 0
    %1158 = vmatprep.subr.bf16.mxu0 0
    %1159 = vmatpush1.bf16.xpose.msra.mxu0 0
    %1160 = vmatprep.subr.bf16.mxu0 0
    %1161 = vmatpush1.bf16.xpose.msra.mxu0 0
    %1162 = vmatprep.subr.bf16.mxu0 0
    %1163 = vmatpush1.bf16.xpose.msra.mxu0 0
    %1164 = vmatprep.subr.bf16.mxu0 0
    %1165 = vmatpush1.bf16.xpose.msra.mxu0 0
    %1166 = vmatprep.subr.bf16.mxu0 0
    %1167 = vmatpush1.bf16.xpose.msra.mxu0 0
    %1168 = vmatprep.subr.bf16.mxu0 0
    %1169 = vmatpush1.bf16.xpose.msra.mxu0 0
    %1170 = vmatprep.subr.bf16.mxu0 0
    %1171 = vmatpush1.bf16.xpose.msra.mxu0 0
    %1172 = vmatprep.subr.bf16.mxu0 0
    %1173 = vmatpush1.bf16.xpose.msra.mxu0 0
    %1174 = vmatprep.subr.bf16.mxu0 0
    %1175 = vmatpush1.bf16.xpose.msra.mxu0 0
    %1176 = vmatprep.subr.bf16.mxu0 0
    %1177 = vmatpush1.bf16.xpose.msra.mxu0 0
    %1178 = vmatprep.subr.bf16.mxu0 0
    %1179 = vmatpush1.bf16.xpose.msra.mxu0 0
    %1180 = vmatprep.mubr.bf16.mxu0 0
    %1181 = vmatmul.mubr.bf16.gmra.mrb[0].mxu0 %v1143
    %v1182 = vpop.f32.mrb[0].mxu0
    %v1183 = vadd.f32 0.0, %v1182
    %v1184 = vpop.f32.mrb[0].mxu0
    %v1185 = vpop.f32.mrb[0].mxu0
    %v1186 = vpop.f32.mrb[0].mxu0
    %1187 = vdwg.mxu0
    %1189 = vrot.lane.b32.xlu0 %v419, 64
    %v1190 = vpop.permute.xlu0 %1189
    %v1192 = vsel %vm553, %v419, 0
    %v1195 = vsel %vm553, %v1190, 0
    %1197 = vmatprep.subr.bf16.mxu0 0
    %1198 = vmatpush1.bf16.xpose.msra.mxu0 %v1195
    %1199 = vmatprep.subr.bf16.mxu0 0
    %1200 = vmatpush1.bf16.xpose.msra.mxu0 0
    %1201 = vmatprep.subr.bf16.mxu0 0
    %1202 = vmatpush1.bf16.xpose.msra.mxu0 0
    %1203 = vmatprep.subr.bf16.mxu0 0
    %1204 = vmatpush1.bf16.xpose.msra.mxu0 0
    %1205 = vmatprep.subr.bf16.mxu0 0
    %1206 = vmatpush1.bf16.xpose.msra.mxu0 0
    %1207 = vmatprep.subr.bf16.mxu0 0
    %1208 = vmatpush1.bf16.xpose.msra.mxu0 0
    %1209 = vmatprep.subr.bf16.mxu0 0
    %1210 = vmatpush1.bf16.xpose.msra.mxu0 0
    %1211 = vmatprep.subr.bf16.mxu0 0
    %1212 = vmatpush1.bf16.xpose.msra.mxu0 0
    %1213 = vmatprep.subr.bf16.mxu0 0
    %1214 = vmatpush1.bf16.xpose.msra.mxu0 0
    %1215 = vmatprep.subr.bf16.mxu0 0
    %1216 = vmatpush1.bf16.xpose.msra.mxu0 0
    %1217 = vmatprep.subr.bf16.mxu0 0
    %1218 = vmatpush1.bf16.xpose.msra.mxu0 0
    %1219 = vmatprep.subr.bf16.mxu0 0
    %1220 = vmatpush1.bf16.xpose.msra.mxu0 0
    %1221 = vmatprep.subr.bf16.mxu0 0
    %1222 = vmatpush1.bf16.xpose.msra.mxu0 0
    %1223 = vmatprep.subr.bf16.mxu0 0
    %1224 = vmatpush1.bf16.xpose.msra.mxu0 0
    %1225 = vmatprep.subr.bf16.mxu0 0
    %1226 = vmatpush1.bf16.xpose.msra.mxu0 0
    %1227 = vmatprep.subr.bf16.mxu0 0
    %1228 = vmatpush1.bf16.xpose.msra.mxu0 0
    %1229 = vmatprep.mubr.bf16.mxu0 0
    %1230 = vmatmul.mubr.bf16.gmra.mrb[0].mxu0 %v1192
    %v1231 = vpop.f32.mrb[0].mxu0
    %v1232 = vadd.f32 0.0, %v1231
    %v1233 = vpop.f32.mrb[0].mxu0
    %v1234 = vpop.f32.mrb[0].mxu0
    %v1235 = vpop.f32.mrb[0].mxu0
    %1236 = vdwg.mxu0
    %1238 = vrot.lane.b32.xlu0 %v420, 64
    %v1239 = vpop.permute.xlu0 %1238
    %v1241 = vsel %vm553, %v420, 0
    %v1244 = vsel %vm553, %v1239, 0
    %1246 = vmatprep.subr.bf16.mxu0 0
    %1247 = vmatpush1.bf16.xpose.msra.mxu0 %v1244
    %1248 = vmatprep.subr.bf16.mxu0 0
    %1249 = vmatpush1.bf16.xpose.msra.mxu0 0
    %1250 = vmatprep.subr.bf16.mxu0 0
    %1251 = vmatpush1.bf16.xpose.msra.mxu0 0
    %1252 = vmatprep.subr.bf16.mxu0 0
    %1253 = vmatpush1.bf16.xpose.msra.mxu0 0
    %1254 = vmatprep.subr.bf16.mxu0 0
    %1255 = vmatpush1.bf16.xpose.msra.mxu0 0
    %1256 = vmatprep.subr.bf16.mxu0 0
    %1257 = vmatpush1.bf16.xpose.msra.mxu0 0
    %1258 = vmatprep.subr.bf16.mxu0 0
    %1259 = vmatpush1.bf16.xpose.msra.mxu0 0
    %1260 = vmatprep.subr.bf16.mxu0 0
    %1261 = vmatpush1.bf16.xpose.msra.mxu0 0
    %1262 = vmatprep.subr.bf16.mxu0 0
    %1263 = vmatpush1.bf16.xpose.msra.mxu0 0
    %1264 = vmatprep.subr.bf16.mxu0 0
    %1265 = vmatpush1.bf16.xpose.msra.mxu0 0
    %1266 = vmatprep.subr.bf16.mxu0 0
    %1267 = vmatpush1.bf16.xpose.msra.mxu0 0
    %1268 = vmatprep.subr.bf16.mxu0 0
    %1269 = vmatpush1.bf16.xpose.msra.mxu0 0
    %1270 = vmatprep.subr.bf16.mxu0 0
    %1271 = vmatpush1.bf16.xpose.msra.mxu0 0
    %1272 = vmatprep.subr.bf16.mxu0 0
    %1273 = vmatpush1.bf16.xpose.msra.mxu0 0
    %1274 = vmatprep.subr.bf16.mxu0 0
    %1275 = vmatpush1.bf16.xpose.msra.mxu0 0
    %1276 = vmatprep.subr.bf16.mxu0 0
    %1277 = vmatpush1.bf16.xpose.msra.mxu0 0
    %1278 = vmatprep.mubr.bf16.mxu0 0
    %1279 = vmatmul.mubr.bf16.gmra.mrb[0].mxu0 %v1241
    %v1280 = vpop.f32.mrb[0].mxu0
    %v1281 = vadd.f32 0.0, %v1280
    %v1282 = vpop.f32.mrb[0].mxu0
    %v1283 = vpop.f32.mrb[0].mxu0
    %v1284 = vpop.f32.mrb[0].mxu0
    %1285 = vdwg.mxu0
    %1287 = vrot.lane.b32.xlu0 %v421, 64
    %v1288 = vpop.permute.xlu0 %1287
    %v1290 = vsel %vm553, %v421, 0
    %v1293 = vsel %vm553, %v1288, 0
    %1295 = vmatprep.subr.bf16.mxu0 0
    %1296 = vmatpush1.bf16.xpose.msra.mxu0 %v1293
    %1297 = vmatprep.subr.bf16.mxu0 0
    %1298 = vmatpush1.bf16.xpose.msra.mxu0 0
    %1299 = vmatprep.subr.bf16.mxu0 0
    %1300 = vmatpush1.bf16.xpose.msra.mxu0 0
    %1301 = vmatprep.subr.bf16.mxu0 0
    %1302 = vmatpush1.bf16.xpose.msra.mxu0 0
    %1303 = vmatprep.subr.bf16.mxu0 0
    %1304 = vmatpush1.bf16.xpose.msra.mxu0 0
    %1305 = vmatprep.subr.bf16.mxu0 0
    %1306 = vmatpush1.bf16.xpose.msra.mxu0 0
    %1307 = vmatprep.subr.bf16.mxu0 0
    %1308 = vmatpush1.bf16.xpose.msra.mxu0 0
    %1309 = vmatprep.subr.bf16.mxu0 0
    %1310 = vmatpush1.bf16.xpose.msra.mxu0 0
    %1311 = vmatprep.subr.bf16.mxu0 0
    %1312 = vmatpush1.bf16.xpose.msra.mxu0 0
    %1313 = vmatprep.subr.bf16.mxu0 0
    %1314 = vmatpush1.bf16.xpose.msra.mxu0 0
    %1315 = vmatprep.subr.bf16.mxu0 0
    %1316 = vmatpush1.bf16.xpose.msra.mxu0 0
    %1317 = vmatprep.subr.bf16.mxu0 0
    %1318 = vmatpush1.bf16.xpose.msra.mxu0 0
    %1319 = vmatprep.subr.bf16.mxu0 0
    %1320 = vmatpush1.bf16.xpose.msra.mxu0 0
    %1321 = vmatprep.subr.bf16.mxu0 0
    %1322 = vmatpush1.bf16.xpose.msra.mxu0 0
    %1323 = vmatprep.subr.bf16.mxu0 0
    %1324 = vmatpush1.bf16.xpose.msra.mxu0 0
    %1325 = vmatprep.subr.bf16.mxu0 0
    %1326 = vmatpush1.bf16.xpose.msra.mxu0 0
    %1327 = vmatprep.mubr.bf16.mxu0 0
    %1328 = vmatmul.mubr.bf16.gmra.mrb[0].mxu0 %v1290
    %v1329 = vpop.f32.mrb[0].mxu0
    %v1330 = vadd.f32 0.0, %v1329
    %v1331 = vpop.f32.mrb[0].mxu0
    %v1332 = vpop.f32.mrb[0].mxu0
    %v1333 = vpop.f32.mrb[0].mxu0
    %1334 = vdwg.mxu0
    %1336 = vrot.lane.b32.xlu0 %v422, 64
    %v1337 = vpop.permute.xlu0 %1336
    %v1339 = vsel %vm553, %v422, 0
    %v1342 = vsel %vm553, %v1337, 0
    %1344 = vmatprep.subr.bf16.mxu0 0
    %1345 = vmatpush1.bf16.xpose.msra.mxu0 %v1342
    %1346 = vmatprep.subr.bf16.mxu0 0
    %1347 = vmatpush1.bf16.xpose.msra.mxu0 0
    %1348 = vmatprep.subr.bf16.mxu0 0
    %1349 = vmatpush1.bf16.xpose.msra.mxu0 0
    %1350 = vmatprep.subr.bf16.mxu0 0
    %1351 = vmatpush1.bf16.xpose.msra.mxu0 0
    %1352 = vmatprep.subr.bf16.mxu0 0
    %1353 = vmatpush1.bf16.xpose.msra.mxu0 0
    %1354 = vmatprep.subr.bf16.mxu0 0
    %1355 = vmatpush1.bf16.xpose.msra.mxu0 0
    %1356 = vmatprep.subr.bf16.mxu0 0
    %1357 = vmatpush1.bf16.xpose.msra.mxu0 0
    %1358 = vmatprep.subr.bf16.mxu0 0
    %1359 = vmatpush1.bf16.xpose.msra.mxu0 0
    %1360 = vmatprep.subr.bf16.mxu0 0
    %1361 = vmatpush1.bf16.xpose.msra.mxu0 0
    %1362 = vmatprep.subr.bf16.mxu0 0
    %1363 = vmatpush1.bf16.xpose.msra.mxu0 0
    %1364 = vmatprep.subr.bf16.mxu0 0
    %1365 = vmatpush1.bf16.xpose.msra.mxu0 0
    %1366 = vmatprep.subr.bf16.mxu0 0
    %1367 = vmatpush1.bf16.xpose.msra.mxu0 0
    %1368 = vmatprep.subr.bf16.mxu0 0
    %1369 = vmatpush1.bf16.xpose.msra.mxu0 0
    %1370 = vmatprep.subr.bf16.mxu0 0
    %1371 = vmatpush1.bf16.xpose.msra.mxu0 0
    %1372 = vmatprep.subr.bf16.mxu0 0
    %1373 = vmatpush1.bf16.xpose.msra.mxu0 0
    %1374 = vmatprep.subr.bf16.mxu0 0
    %1375 = vmatpush1.bf16.xpose.msra.mxu0 0
    %1376 = vmatprep.mubr.bf16.mxu0 0
    %1377 = vmatmul.mubr.bf16.gmra.mrb[0].mxu0 %v1339
    %v1378 = vpop.f32.mrb[0].mxu0
    %v1379 = vadd.f32 0.0, %v1378
    %v1380 = vpop.f32.mrb[0].mxu0
    %v1381 = vpop.f32.mrb[0].mxu0
    %v1382 = vpop.f32.mrb[0].mxu0
    %1383 = vdwg.mxu0
    %1385 = vrot.lane.b32.xlu0 %v423, 64
    %v1386 = vpop.permute.xlu0 %1385
    %v1388 = vsel %vm553, %v423, 0
    %v1391 = vsel %vm553, %v1386, 0
    %1393 = vmatprep.subr.bf16.mxu0 0
    %1394 = vmatpush1.bf16.xpose.msra.mxu0 %v1391
    %1395 = vmatprep.subr.bf16.mxu0 0
    %1396 = vmatpush1.bf16.xpose.msra.mxu0 0
    %1397 = vmatprep.subr.bf16.mxu0 0
    %1398 = vmatpush1.bf16.xpose.msra.mxu0 0
    %1399 = vmatprep.subr.bf16.mxu0 0
    %1400 = vmatpush1.bf16.xpose.msra.mxu0 0
    %1401 = vmatprep.subr.bf16.mxu0 0
    %1402 = vmatpush1.bf16.xpose.msra.mxu0 0
    %1403 = vmatprep.subr.bf16.mxu0 0
    %1404 = vmatpush1.bf16.xpose.msra.mxu0 0
    %1405 = vmatprep.subr.bf16.mxu0 0
    %1406 = vmatpush1.bf16.xpose.msra.mxu0 0
    %1407 = vmatprep.subr.bf16.mxu0 0
    %1408 = vmatpush1.bf16.xpose.msra.mxu0 0
    %1409 = vmatprep.subr.bf16.mxu0 0
    %1410 = vmatpush1.bf16.xpose.msra.mxu0 0
    %1411 = vmatprep.subr.bf16.mxu0 0
    %1412 = vmatpush1.bf16.xpose.msra.mxu0 0
    %1413 = vmatprep.subr.bf16.mxu0 0
    %1414 = vmatpush1.bf16.xpose.msra.mxu0 0
    %1415 = vmatprep.subr.bf16.mxu0 0
    %1416 = vmatpush1.bf16.xpose.msra.mxu0 0
    %1417 = vmatprep.subr.bf16.mxu0 0
    %1418 = vmatpush1.bf16.xpose.msra.mxu0 0
    %1419 = vmatprep.subr.bf16.mxu0 0
    %1420 = vmatpush1.bf16.xpose.msra.mxu0 0
    %1421 = vmatprep.subr.bf16.mxu0 0
    %1422 = vmatpush1.bf16.xpose.msra.mxu0 0
    %1423 = vmatprep.subr.bf16.mxu0 0
    %1424 = vmatpush1.bf16.xpose.msra.mxu0 0
    %1425 = vmatprep.mubr.bf16.mxu0 0
    %1426 = vmatmul.mubr.bf16.gmra.mrb[0].mxu0 %v1388
    %v1427 = vpop.f32.mrb[0].mxu0
    %v1428 = vadd.f32 0.0, %v1427
    %v1429 = vpop.f32.mrb[0].mxu0
    %v1430 = vpop.f32.mrb[0].mxu0
    %v1431 = vpop.f32.mrb[0].mxu0
    %1432 = vdwg.mxu0
    %1434 = vrot.lane.b32.xlu0 %v424, 64
    %v1435 = vpop.permute.xlu0 %1434
    %v1437 = vsel %vm553, %v424, 0
    %v1440 = vsel %vm553, %v1435, 0
    %1442 = vmatprep.subr.bf16.mxu0 0
    %1443 = vmatpush1.bf16.xpose.msra.mxu0 %v1440
    %1444 = vmatprep.subr.bf16.mxu0 0
    %1445 = vmatpush1.bf16.xpose.msra.mxu0 0
    %1446 = vmatprep.subr.bf16.mxu0 0
    %1447 = vmatpush1.bf16.xpose.msra.mxu0 0
    %1448 = vmatprep.subr.bf16.mxu0 0
    %1449 = vmatpush1.bf16.xpose.msra.mxu0 0
    %1450 = vmatprep.subr.bf16.mxu0 0
    %1451 = vmatpush1.bf16.xpose.msra.mxu0 0
    %1452 = vmatprep.subr.bf16.mxu0 0
    %1453 = vmatpush1.bf16.xpose.msra.mxu0 0
    %1454 = vmatprep.subr.bf16.mxu0 0
    %1455 = vmatpush1.bf16.xpose.msra.mxu0 0
    %1456 = vmatprep.subr.bf16.mxu0 0
    %1457 = vmatpush1.bf16.xpose.msra.mxu0 0
    %1458 = vmatprep.subr.bf16.mxu0 0
    %1459 = vmatpush1.bf16.xpose.msra.mxu0 0
    %1460 = vmatprep.subr.bf16.mxu0 0
    %1461 = vmatpush1.bf16.xpose.msra.mxu0 0
    %1462 = vmatprep.subr.bf16.mxu0 0
    %1463 = vmatpush1.bf16.xpose.msra.mxu0 0
    %1464 = vmatprep.subr.bf16.mxu0 0
    %1465 = vmatpush1.bf16.xpose.msra.mxu0 0
    %1466 = vmatprep.subr.bf16.mxu0 0
    %1467 = vmatpush1.bf16.xpose.msra.mxu0 0
    %1468 = vmatprep.subr.bf16.mxu0 0
    %1469 = vmatpush1.bf16.xpose.msra.mxu0 0
    %1470 = vmatprep.subr.bf16.mxu0 0
    %1471 = vmatpush1.bf16.xpose.msra.mxu0 0
    %1472 = vmatprep.subr.bf16.mxu0 0
    %1473 = vmatpush1.bf16.xpose.msra.mxu0 0
    %1474 = vmatprep.mubr.bf16.mxu0 0
    %1475 = vmatmul.mubr.bf16.gmra.mrb[0].mxu0 %v1437
    %v1476 = vpop.f32.mrb[0].mxu0
    %v1477 = vadd.f32 0.0, %v1476
    %v1478 = vpop.f32.mrb[0].mxu0
    %v1479 = vpop.f32.mrb[0].mxu0
    %v1480 = vpop.f32.mrb[0].mxu0
    %1481 = vdwg.mxu0
    %1483 = vrot.lane.b32.xlu0 %v425, 64
    %v1484 = vpop.permute.xlu0 %1483
    %v1486 = vsel %vm553, %v425, 0
    %v1489 = vsel %vm553, %v1484, 0
    %1491 = vmatprep.subr.bf16.mxu0 0
    %1492 = vmatpush1.bf16.xpose.msra.mxu0 %v1489
    %1493 = vmatprep.subr.bf16.mxu0 0
    %1494 = vmatpush1.bf16.xpose.msra.mxu0 0
    %1495 = vmatprep.subr.bf16.mxu0 0
    %1496 = vmatpush1.bf16.xpose.msra.mxu0 0
    %1497 = vmatprep.subr.bf16.mxu0 0
    %1498 = vmatpush1.bf16.xpose.msra.mxu0 0
    %1499 = vmatprep.subr.bf16.mxu0 0
    %1500 = vmatpush1.bf16.xpose.msra.mxu0 0
    %1501 = vmatprep.subr.bf16.mxu0 0
    %1502 = vmatpush1.bf16.xpose.msra.mxu0 0
    %1503 = vmatprep.subr.bf16.mxu0 0
    %1504 = vmatpush1.bf16.xpose.msra.mxu0 0
    %1505 = vmatprep.subr.bf16.mxu0 0
    %1506 = vmatpush1.bf16.xpose.msra.mxu0 0
    %1507 = vmatprep.subr.bf16.mxu0 0
    %1508 = vmatpush1.bf16.xpose.msra.mxu0 0
    %1509 = vmatprep.subr.bf16.mxu0 0
    %1510 = vmatpush1.bf16.xpose.msra.mxu0 0
    %1511 = vmatprep.subr.bf16.mxu0 0
    %1512 = vmatpush1.bf16.xpose.msra.mxu0 0
    %1513 = vmatprep.subr.bf16.mxu0 0
    %1514 = vmatpush1.bf16.xpose.msra.mxu0 0
    %1515 = vmatprep.subr.bf16.mxu0 0
    %1516 = vmatpush1.bf16.xpose.msra.mxu0 0
    %1517 = vmatprep.subr.bf16.mxu0 0
    %1518 = vmatpush1.bf16.xpose.msra.mxu0 0
    %1519 = vmatprep.subr.bf16.mxu0 0
    %1520 = vmatpush1.bf16.xpose.msra.mxu0 0
    %1521 = vmatprep.subr.bf16.mxu0 0
    %1522 = vmatpush1.bf16.xpose.msra.mxu0 0
    %1523 = vmatprep.mubr.bf16.mxu0 0
    %1524 = vmatmul.mubr.bf16.gmra.mrb[0].mxu0 %v1486
    %v1525 = vpop.f32.mrb[0].mxu0
    %v1526 = vadd.f32 0.0, %v1525
    %v1527 = vpop.f32.mrb[0].mxu0
    %v1528 = vpop.f32.mrb[0].mxu0
    %v1529 = vpop.f32.mrb[0].mxu0
    %1530 = vdwg.mxu0
    %1532 = vrot.lane.b32.xlu0 %v426, 64
    %v1533 = vpop.permute.xlu0 %1532
    %v1535 = vsel %vm553, %v426, 0
    %v1538 = vsel %vm553, %v1533, 0
    %1540 = vmatprep.subr.bf16.mxu0 0
    %1541 = vmatpush1.bf16.xpose.msra.mxu0 %v1538
    %1542 = vmatprep.subr.bf16.mxu0 0
    %1543 = vmatpush1.bf16.xpose.msra.mxu0 0
    %1544 = vmatprep.subr.bf16.mxu0 0
    %1545 = vmatpush1.bf16.xpose.msra.mxu0 0
    %1546 = vmatprep.subr.bf16.mxu0 0
    %1547 = vmatpush1.bf16.xpose.msra.mxu0 0
    %1548 = vmatprep.subr.bf16.mxu0 0
    %1549 = vmatpush1.bf16.xpose.msra.mxu0 0
    %1550 = vmatprep.subr.bf16.mxu0 0
    %1551 = vmatpush1.bf16.xpose.msra.mxu0 0
    %1552 = vmatprep.subr.bf16.mxu0 0
    %1553 = vmatpush1.bf16.xpose.msra.mxu0 0
    %1554 = vmatprep.subr.bf16.mxu0 0
    %1555 = vmatpush1.bf16.xpose.msra.mxu0 0
    %1556 = vmatprep.subr.bf16.mxu0 0
    %1557 = vmatpush1.bf16.xpose.msra.mxu0 0
    %1558 = vmatprep.subr.bf16.mxu0 0
    %1559 = vmatpush1.bf16.xpose.msra.mxu0 0
    %1560 = vmatprep.subr.bf16.mxu0 0
    %1561 = vmatpush1.bf16.xpose.msra.mxu0 0
    %1562 = vmatprep.subr.bf16.mxu0 0
    %1563 = vmatpush1.bf16.xpose.msra.mxu0 0
    %1564 = vmatprep.subr.bf16.mxu0 0
    %1565 = vmatpush1.bf16.xpose.msra.mxu0 0
    %1566 = vmatprep.subr.bf16.mxu0 0
    %1567 = vmatpush1.bf16.xpose.msra.mxu0 0
    %1568 = vmatprep.subr.bf16.mxu0 0
    %1569 = vmatpush1.bf16.xpose.msra.mxu0 0
    %1570 = vmatprep.subr.bf16.mxu0 0
    %1571 = vmatpush1.bf16.xpose.msra.mxu0 0
    %1572 = vmatprep.mubr.bf16.mxu0 0
    %1573 = vmatmul.mubr.bf16.gmra.mrb[0].mxu0 %v1535
    %v1574 = vpop.f32.mrb[0].mxu0
    %v1575 = vadd.f32 0.0, %v1574
    %v1576 = vpop.f32.mrb[0].mxu0
    %v1577 = vpop.f32.mrb[0].mxu0
    %v1578 = vpop.f32.mrb[0].mxu0
    %1579 = vdwg.mxu0
    %1581 = vrot.lane.b32.xlu0 %v427, 64
    %v1582 = vpop.permute.xlu0 %1581
    %v1584 = vsel %vm553, %v427, 0
    %v1587 = vsel %vm553, %v1582, 0
    %1589 = vmatprep.subr.bf16.mxu0 0
    %1590 = vmatpush1.bf16.xpose.msra.mxu0 %v1587
    %1591 = vmatprep.subr.bf16.mxu0 0
    %1592 = vmatpush1.bf16.xpose.msra.mxu0 0
    %1593 = vmatprep.subr.bf16.mxu0 0
    %1594 = vmatpush1.bf16.xpose.msra.mxu0 0
    %1595 = vmatprep.subr.bf16.mxu0 0
    %1596 = vmatpush1.bf16.xpose.msra.mxu0 0
    %1597 = vmatprep.subr.bf16.mxu0 0
    %1598 = vmatpush1.bf16.xpose.msra.mxu0 0
    %1599 = vmatprep.subr.bf16.mxu0 0
    %1600 = vmatpush1.bf16.xpose.msra.mxu0 0
    %1601 = vmatprep.subr.bf16.mxu0 0
    %1602 = vmatpush1.bf16.xpose.msra.mxu0 0
    %1603 = vmatprep.subr.bf16.mxu0 0
    %1604 = vmatpush1.bf16.xpose.msra.mxu0 0
    %1605 = vmatprep.subr.bf16.mxu0 0
    %1606 = vmatpush1.bf16.xpose.msra.mxu0 0
    %1607 = vmatprep.subr.bf16.mxu0 0
    %1608 = vmatpush1.bf16.xpose.msra.mxu0 0
    %1609 = vmatprep.subr.bf16.mxu0 0
    %1610 = vmatpush1.bf16.xpose.msra.mxu0 0
    %1611 = vmatprep.subr.bf16.mxu0 0
    %1612 = vmatpush1.bf16.xpose.msra.mxu0 0
    %1613 = vmatprep.subr.bf16.mxu0 0
    %1614 = vmatpush1.bf16.xpose.msra.mxu0 0
    %1615 = vmatprep.subr.bf16.mxu0 0
    %1616 = vmatpush1.bf16.xpose.msra.mxu0 0
    %1617 = vmatprep.subr.bf16.mxu0 0
    %1618 = vmatpush1.bf16.xpose.msra.mxu0 0
    %1619 = vmatprep.subr.bf16.mxu0 0
    %1620 = vmatpush1.bf16.xpose.msra.mxu0 0
    %1621 = vmatprep.mubr.bf16.mxu0 0
    %1622 = vmatmul.mubr.bf16.gmra.mrb[0].mxu0 %v1584
    %v1623 = vpop.f32.mrb[0].mxu0
    %v1624 = vadd.f32 0.0, %v1623
    %v1625 = vpop.f32.mrb[0].mxu0
    %v1626 = vpop.f32.mrb[0].mxu0
    %v1627 = vpop.f32.mrb[0].mxu0
    %1628 = vdwg.mxu0
    %1630 = vrot.lane.b32.xlu0 %v428, 64
    %v1631 = vpop.permute.xlu0 %1630
    %v1633 = vsel %vm553, %v428, 0
    %v1636 = vsel %vm553, %v1631, 0
    %1638 = vmatprep.subr.bf16.mxu0 0
    %1639 = vmatpush1.bf16.xpose.msra.mxu0 %v1636
    %1640 = vmatprep.subr.bf16.mxu0 0
    %1641 = vmatpush1.bf16.xpose.msra.mxu0 0
    %1642 = vmatprep.subr.bf16.mxu0 0
    %1643 = vmatpush1.bf16.xpose.msra.mxu0 0
    %1644 = vmatprep.subr.bf16.mxu0 0
    %1645 = vmatpush1.bf16.xpose.msra.mxu0 0
    %1646 = vmatprep.subr.bf16.mxu0 0
    %1647 = vmatpush1.bf16.xpose.msra.mxu0 0
    %1648 = vmatprep.subr.bf16.mxu0 0
    %1649 = vmatpush1.bf16.xpose.msra.mxu0 0
    %1650 = vmatprep.subr.bf16.mxu0 0
    %1651 = vmatpush1.bf16.xpose.msra.mxu0 0
    %1652 = vmatprep.subr.bf16.mxu0 0
    %1653 = vmatpush1.bf16.xpose.msra.mxu0 0
    %1654 = vmatprep.subr.bf16.mxu0 0
    %1655 = vmatpush1.bf16.xpose.msra.mxu0 0
    %1656 = vmatprep.subr.bf16.mxu0 0
    %1657 = vmatpush1.bf16.xpose.msra.mxu0 0
    %1658 = vmatprep.subr.bf16.mxu0 0
    %1659 = vmatpush1.bf16.xpose.msra.mxu0 0
    %1660 = vmatprep.subr.bf16.mxu0 0
    %1661 = vmatpush1.bf16.xpose.msra.mxu0 0
    %1662 = vmatprep.subr.bf16.mxu0 0
    %1663 = vmatpush1.bf16.xpose.msra.mxu0 0
    %1664 = vmatprep.subr.bf16.mxu0 0
    %1665 = vmatpush1.bf16.xpose.msra.mxu0 0
    %1666 = vmatprep.subr.bf16.mxu0 0
    %1667 = vmatpush1.bf16.xpose.msra.mxu0 0
    %1668 = vmatprep.subr.bf16.mxu0 0
    %1669 = vmatpush1.bf16.xpose.msra.mxu0 0
    %1670 = vmatprep.mubr.bf16.mxu0 0
    %1671 = vmatmul.mubr.bf16.gmra.mrb[0].mxu0 %v1633
    %v1672 = vpop.f32.mrb[0].mxu0
    %v1673 = vadd.f32 0.0, %v1672
    %v1674 = vpop.f32.mrb[0].mxu0
    %v1675 = vpop.f32.mrb[0].mxu0
    %v1676 = vpop.f32.mrb[0].mxu0
    %1677 = vdwg.mxu0
    %1679 = vrot.lane.b32.xlu0 %v429, 64
    %v1680 = vpop.permute.xlu0 %1679
    %v1682 = vsel %vm553, %v429, 0
    %v1685 = vsel %vm553, %v1680, 0
    %1687 = vmatprep.subr.bf16.mxu0 0
    %1688 = vmatpush1.bf16.xpose.msra.mxu0 %v1685
    %1689 = vmatprep.subr.bf16.mxu0 0
    %1690 = vmatpush1.bf16.xpose.msra.mxu0 0
    %1691 = vmatprep.subr.bf16.mxu0 0
    %1692 = vmatpush1.bf16.xpose.msra.mxu0 0
    %1693 = vmatprep.subr.bf16.mxu0 0
    %1694 = vmatpush1.bf16.xpose.msra.mxu0 0
    %1695 = vmatprep.subr.bf16.mxu0 0
    %1696 = vmatpush1.bf16.xpose.msra.mxu0 0
    %1697 = vmatprep.subr.bf16.mxu0 0
    %1698 = vmatpush1.bf16.xpose.msra.mxu0 0
    %1699 = vmatprep.subr.bf16.mxu0 0
    %1700 = vmatpush1.bf16.xpose.msra.mxu0 0
    %1701 = vmatprep.subr.bf16.mxu0 0
    %1702 = vmatpush1.bf16.xpose.msra.mxu0 0
    %1703 = vmatprep.subr.bf16.mxu0 0
    %1704 = vmatpush1.bf16.xpose.msra.mxu0 0
    %1705 = vmatprep.subr.bf16.mxu0 0
    %1706 = vmatpush1.bf16.xpose.msra.mxu0 0
    %1707 = vmatprep.subr.bf16.mxu0 0
    %1708 = vmatpush1.bf16.xpose.msra.mxu0 0
    %1709 = vmatprep.subr.bf16.mxu0 0
    %1710 = vmatpush1.bf16.xpose.msra.mxu0 0
    %1711 = vmatprep.subr.bf16.mxu0 0
    %1712 = vmatpush1.bf16.xpose.msra.mxu0 0
    %1713 = vmatprep.subr.bf16.mxu0 0
    %1714 = vmatpush1.bf16.xpose.msra.mxu0 0
    %1715 = vmatprep.subr.bf16.mxu0 0
    %1716 = vmatpush1.bf16.xpose.msra.mxu0 0
    %1717 = vmatprep.subr.bf16.mxu0 0
    %1718 = vmatpush1.bf16.xpose.msra.mxu0 0
    %1719 = vmatprep.mubr.bf16.mxu0 0
    %1720 = vmatmul.mubr.bf16.gmra.mrb[0].mxu0 %v1682
    %v1721 = vpop.f32.mrb[0].mxu0
    %v1722 = vadd.f32 0.0, %v1721
    %v1723 = vpop.f32.mrb[0].mxu0
    %v1724 = vpop.f32.mrb[0].mxu0
    %v1725 = vpop.f32.mrb[0].mxu0
    %1726 = vdwg.mxu0
    %1728 = vrot.lane.b32.xlu0 %v430, 64
    %v1729 = vpop.permute.xlu0 %1728
    %v1731 = vsel %vm553, %v430, 0
    %v1734 = vsel %vm553, %v1729, 0
    %1736 = vmatprep.subr.bf16.mxu0 0
    %1737 = vmatpush1.bf16.xpose.msra.mxu0 %v1734
    %1738 = vmatprep.subr.bf16.mxu0 0
    %1739 = vmatpush1.bf16.xpose.msra.mxu0 0
    %1740 = vmatprep.subr.bf16.mxu0 0
    %1741 = vmatpush1.bf16.xpose.msra.mxu0 0
    %1742 = vmatprep.subr.bf16.mxu0 0
    %1743 = vmatpush1.bf16.xpose.msra.mxu0 0
    %1744 = vmatprep.subr.bf16.mxu0 0
    %1745 = vmatpush1.bf16.xpose.msra.mxu0 0
    %1746 = vmatprep.subr.bf16.mxu0 0
    %1747 = vmatpush1.bf16.xpose.msra.mxu0 0
    %1748 = vmatprep.subr.bf16.mxu0 0
    %1749 = vmatpush1.bf16.xpose.msra.mxu0 0
    %1750 = vmatprep.subr.bf16.mxu0 0
    %1751 = vmatpush1.bf16.xpose.msra.mxu0 0
    %1752 = vmatprep.subr.bf16.mxu0 0
    %1753 = vmatpush1.bf16.xpose.msra.mxu0 0
    %1754 = vmatprep.subr.bf16.mxu0 0
    %1755 = vmatpush1.bf16.xpose.msra.mxu0 0
    %1756 = vmatprep.subr.bf16.mxu0 0
    %1757 = vmatpush1.bf16.xpose.msra.mxu0 0
    %1758 = vmatprep.subr.bf16.mxu0 0
    %1759 = vmatpush1.bf16.xpose.msra.mxu0 0
    %1760 = vmatprep.subr.bf16.mxu0 0
    %1761 = vmatpush1.bf16.xpose.msra.mxu0 0
    %1762 = vmatprep.subr.bf16.mxu0 0
    %1763 = vmatpush1.bf16.xpose.msra.mxu0 0
    %1764 = vmatprep.subr.bf16.mxu0 0
    %1765 = vmatpush1.bf16.xpose.msra.mxu0 0
    %1766 = vmatprep.subr.bf16.mxu0 0
    %1767 = vmatpush1.bf16.xpose.msra.mxu0 0
    %1768 = vmatprep.mubr.bf16.mxu0 0
    %1769 = vmatmul.mubr.bf16.gmra.mrb[0].mxu0 %v1731
    %v1770 = vpop.f32.mrb[0].mxu0
    %v1771 = vadd.f32 0.0, %v1770
    %v1772 = vpop.f32.mrb[0].mxu0
    %v1773 = vpop.f32.mrb[0].mxu0
    %v1774 = vpop.f32.mrb[0].mxu0
    %1775 = vdwg.mxu0
    %1777 = vrot.lane.b32.xlu0 %v431, 64
    %v1778 = vpop.permute.xlu0 %1777
    %v1780 = vsel %vm553, %v431, 0
    %v1783 = vsel %vm553, %v1778, 0
    %1785 = vmatprep.subr.bf16.mxu0 0
    %1786 = vmatpush1.bf16.xpose.msra.mxu0 %v1783
    %1787 = vmatprep.subr.bf16.mxu0 0
    %1788 = vmatpush1.bf16.xpose.msra.mxu0 0
    %1789 = vmatprep.subr.bf16.mxu0 0
    %1790 = vmatpush1.bf16.xpose.msra.mxu0 0
    %1791 = vmatprep.subr.bf16.mxu0 0
    %1792 = vmatpush1.bf16.xpose.msra.mxu0 0
    %1793 = vmatprep.subr.bf16.mxu0 0
    %1794 = vmatpush1.bf16.xpose.msra.mxu0 0
    %1795 = vmatprep.subr.bf16.mxu0 0
    %1796 = vmatpush1.bf16.xpose.msra.mxu0 0
    %1797 = vmatprep.subr.bf16.mxu0 0
    %1798 = vmatpush1.bf16.xpose.msra.mxu0 0
    %1799 = vmatprep.subr.bf16.mxu0 0
    %1800 = vmatpush1.bf16.xpose.msra.mxu0 0
    %1801 = vmatprep.subr.bf16.mxu0 0
    %1802 = vmatpush1.bf16.xpose.msra.mxu0 0
    %1803 = vmatprep.subr.bf16.mxu0 0
    %1804 = vmatpush1.bf16.xpose.msra.mxu0 0
    %1805 = vmatprep.subr.bf16.mxu0 0
    %1806 = vmatpush1.bf16.xpose.msra.mxu0 0
    %1807 = vmatprep.subr.bf16.mxu0 0
    %1808 = vmatpush1.bf16.xpose.msra.mxu0 0
    %1809 = vmatprep.subr.bf16.mxu0 0
    %1810 = vmatpush1.bf16.xpose.msra.mxu0 0
    %1811 = vmatprep.subr.bf16.mxu0 0
    %1812 = vmatpush1.bf16.xpose.msra.mxu0 0
    %1813 = vmatprep.subr.bf16.mxu0 0
    %1814 = vmatpush1.bf16.xpose.msra.mxu0 0
    %1815 = vmatprep.subr.bf16.mxu0 0
    %1816 = vmatpush1.bf16.xpose.msra.mxu0 0
    %1817 = vmatprep.mubr.bf16.mxu0 0
    %1818 = vmatmul.mubr.bf16.gmra.mrb[0].mxu0 %v1780
    %v1819 = vpop.f32.mrb[0].mxu0
    %v1820 = vadd.f32 0.0, %v1819
    %v1821 = vpop.f32.mrb[0].mxu0
    %v1822 = vpop.f32.mrb[0].mxu0
    %v1823 = vpop.f32.mrb[0].mxu0
    %1824 = vdwg.mxu0
    %1826 = vrot.lane.b32.xlu0 %v432, 64
    %v1827 = vpop.permute.xlu0 %1826
    %v1829 = vsel %vm553, %v432, 0
    %v1832 = vsel %vm553, %v1827, 0
    %1834 = vmatprep.subr.bf16.mxu0 0
    %1835 = vmatpush1.bf16.xpose.msra.mxu0 %v1832
    %1836 = vmatprep.subr.bf16.mxu0 0
    %1837 = vmatpush1.bf16.xpose.msra.mxu0 0
    %1838 = vmatprep.subr.bf16.mxu0 0
    %1839 = vmatpush1.bf16.xpose.msra.mxu0 0
    %1840 = vmatprep.subr.bf16.mxu0 0
    %1841 = vmatpush1.bf16.xpose.msra.mxu0 0
    %1842 = vmatprep.subr.bf16.mxu0 0
    %1843 = vmatpush1.bf16.xpose.msra.mxu0 0
    %1844 = vmatprep.subr.bf16.mxu0 0
    %1845 = vmatpush1.bf16.xpose.msra.mxu0 0
    %1846 = vmatprep.subr.bf16.mxu0 0
    %1847 = vmatpush1.bf16.xpose.msra.mxu0 0
    %1848 = vmatprep.subr.bf16.mxu0 0
    %1849 = vmatpush1.bf16.xpose.msra.mxu0 0
    %1850 = vmatprep.subr.bf16.mxu0 0
    %1851 = vmatpush1.bf16.xpose.msra.mxu0 0
    %1852 = vmatprep.subr.bf16.mxu0 0
    %1853 = vmatpush1.bf16.xpose.msra.mxu0 0
    %1854 = vmatprep.subr.bf16.mxu0 0
    %1855 = vmatpush1.bf16.xpose.msra.mxu0 0
    %1856 = vmatprep.subr.bf16.mxu0 0
    %1857 = vmatpush1.bf16.xpose.msra.mxu0 0
    %1858 = vmatprep.subr.bf16.mxu0 0
    %1859 = vmatpush1.bf16.xpose.msra.mxu0 0
    %1860 = vmatprep.subr.bf16.mxu0 0
    %1861 = vmatpush1.bf16.xpose.msra.mxu0 0
    %1862 = vmatprep.subr.bf16.mxu0 0
    %1863 = vmatpush1.bf16.xpose.msra.mxu0 0
    %1864 = vmatprep.subr.bf16.mxu0 0
    %1865 = vmatpush1.bf16.xpose.msra.mxu0 0
    %1866 = vmatprep.mubr.bf16.mxu0 0
    %1867 = vmatmul.mubr.bf16.gmra.mrb[0].mxu0 %v1829
    %v1868 = vpop.f32.mrb[0].mxu0
    %v1869 = vadd.f32 0.0, %v1868
    %v1870 = vpop.f32.mrb[0].mxu0
    %v1871 = vpop.f32.mrb[0].mxu0
    %v1872 = vpop.f32.mrb[0].mxu0
    %1873 = vdwg.mxu0
    %1875 = vrot.lane.b32.xlu0 %v433, 64
    %v1876 = vpop.permute.xlu0 %1875
    %v1878 = vsel %vm553, %v433, 0
    %v1881 = vsel %vm553, %v1876, 0
    %1883 = vmatprep.subr.bf16.mxu0 0
    %1884 = vmatpush1.bf16.xpose.msra.mxu0 %v1881
    %1885 = vmatprep.subr.bf16.mxu0 0
    %1886 = vmatpush1.bf16.xpose.msra.mxu0 0
    %1887 = vmatprep.subr.bf16.mxu0 0
    %1888 = vmatpush1.bf16.xpose.msra.mxu0 0
    %1889 = vmatprep.subr.bf16.mxu0 0
    %1890 = vmatpush1.bf16.xpose.msra.mxu0 0
    %1891 = vmatprep.subr.bf16.mxu0 0
    %1892 = vmatpush1.bf16.xpose.msra.mxu0 0
    %1893 = vmatprep.subr.bf16.mxu0 0
    %1894 = vmatpush1.bf16.xpose.msra.mxu0 0
    %1895 = vmatprep.subr.bf16.mxu0 0
    %1896 = vmatpush1.bf16.xpose.msra.mxu0 0
    %1897 = vmatprep.subr.bf16.mxu0 0
    %1898 = vmatpush1.bf16.xpose.msra.mxu0 0
    %1899 = vmatprep.subr.bf16.mxu0 0
    %1900 = vmatpush1.bf16.xpose.msra.mxu0 0
    %1901 = vmatprep.subr.bf16.mxu0 0
    %1902 = vmatpush1.bf16.xpose.msra.mxu0 0
    %1903 = vmatprep.subr.bf16.mxu0 0
    %1904 = vmatpush1.bf16.xpose.msra.mxu0 0
    %1905 = vmatprep.subr.bf16.mxu0 0
    %1906 = vmatpush1.bf16.xpose.msra.mxu0 0
    %1907 = vmatprep.subr.bf16.mxu0 0
    %1908 = vmatpush1.bf16.xpose.msra.mxu0 0
    %1909 = vmatprep.subr.bf16.mxu0 0
    %1910 = vmatpush1.bf16.xpose.msra.mxu0 0
    %1911 = vmatprep.subr.bf16.mxu0 0
    %1912 = vmatpush1.bf16.xpose.msra.mxu0 0
    %1913 = vmatprep.subr.bf16.mxu0 0
    %1914 = vmatpush1.bf16.xpose.msra.mxu0 0
    %1915 = vmatprep.mubr.bf16.mxu0 0
    %1916 = vmatmul.mubr.bf16.gmra.mrb[0].mxu0 %v1878
    %v1917 = vpop.f32.mrb[0].mxu0
    %v1918 = vadd.f32 0.0, %v1917
    %v1919 = vpop.f32.mrb[0].mxu0
    %v1920 = vpop.f32.mrb[0].mxu0
    %v1921 = vpop.f32.mrb[0].mxu0
    %1922 = vdwg.mxu0
    %1924 = vrot.lane.b32.xlu0 %v434, 64
    %v1925 = vpop.permute.xlu0 %1924
    %v1927 = vsel %vm553, %v434, 0
    %v1930 = vsel %vm553, %v1925, 0
    %1932 = vmatprep.subr.bf16.mxu0 0
    %1933 = vmatpush1.bf16.xpose.msra.mxu0 %v1930
    %1934 = vmatprep.subr.bf16.mxu0 0
    %1935 = vmatpush1.bf16.xpose.msra.mxu0 0
    %1936 = vmatprep.subr.bf16.mxu0 0
    %1937 = vmatpush1.bf16.xpose.msra.mxu0 0
    %1938 = vmatprep.subr.bf16.mxu0 0
    %1939 = vmatpush1.bf16.xpose.msra.mxu0 0
    %1940 = vmatprep.subr.bf16.mxu0 0
    %1941 = vmatpush1.bf16.xpose.msra.mxu0 0
    %1942 = vmatprep.subr.bf16.mxu0 0
    %1943 = vmatpush1.bf16.xpose.msra.mxu0 0
    %1944 = vmatprep.subr.bf16.mxu0 0
    %1945 = vmatpush1.bf16.xpose.msra.mxu0 0
    %1946 = vmatprep.subr.bf16.mxu0 0
    %1947 = vmatpush1.bf16.xpose.msra.mxu0 0
    %1948 = vmatprep.subr.bf16.mxu0 0
    %1949 = vmatpush1.bf16.xpose.msra.mxu0 0
    %1950 = vmatprep.subr.bf16.mxu0 0
    %1951 = vmatpush1.bf16.xpose.msra.mxu0 0
    %1952 = vmatprep.subr.bf16.mxu0 0
    %1953 = vmatpush1.bf16.xpose.msra.mxu0 0
    %1954 = vmatprep.subr.bf16.mxu0 0
    %1955 = vmatpush1.bf16.xpose.msra.mxu0 0
    %1956 = vmatprep.subr.bf16.mxu0 0
    %1957 = vmatpush1.bf16.xpose.msra.mxu0 0
    %1958 = vmatprep.subr.bf16.mxu0 0
    %1959 = vmatpush1.bf16.xpose.msra.mxu0 0
    %1960 = vmatprep.subr.bf16.mxu0 0
    %1961 = vmatpush1.bf16.xpose.msra.mxu0 0
    %1962 = vmatprep.subr.bf16.mxu0 0
    %1963 = vmatpush1.bf16.xpose.msra.mxu0 0
    %1964 = vmatprep.mubr.bf16.mxu0 0
    %1965 = vmatmul.mubr.bf16.gmra.mrb[0].mxu0 %v1927
    %v1966 = vpop.f32.mrb[0].mxu0
    %v1967 = vadd.f32 0.0, %v1966
    %v1968 = vpop.f32.mrb[0].mxu0
    %v1969 = vpop.f32.mrb[0].mxu0
    %v1970 = vpop.f32.mrb[0].mxu0
    %1971 = vdwg.mxu0
    %1973 = vrot.lane.b32.xlu0 %v435, 64
    %v1974 = vpop.permute.xlu0 %1973
    %v1976 = vsel %vm553, %v435, 0
    %v1979 = vsel %vm553, %v1974, 0
    %1981 = vmatprep.subr.bf16.mxu0 0
    %1982 = vmatpush1.bf16.xpose.msra.mxu0 %v1979
    %1983 = vmatprep.subr.bf16.mxu0 0
    %1984 = vmatpush1.bf16.xpose.msra.mxu0 0
    %1985 = vmatprep.subr.bf16.mxu0 0
    %1986 = vmatpush1.bf16.xpose.msra.mxu0 0
    %1987 = vmatprep.subr.bf16.mxu0 0
    %1988 = vmatpush1.bf16.xpose.msra.mxu0 0
    %1989 = vmatprep.subr.bf16.mxu0 0
    %1990 = vmatpush1.bf16.xpose.msra.mxu0 0
    %1991 = vmatprep.subr.bf16.mxu0 0
    %1992 = vmatpush1.bf16.xpose.msra.mxu0 0
    %1993 = vmatprep.subr.bf16.mxu0 0
    %1994 = vmatpush1.bf16.xpose.msra.mxu0 0
    %1995 = vmatprep.subr.bf16.mxu0 0
    %1996 = vmatpush1.bf16.xpose.msra.mxu0 0
    %1997 = vmatprep.subr.bf16.mxu0 0
    %1998 = vmatpush1.bf16.xpose.msra.mxu0 0
    %1999 = vmatprep.subr.bf16.mxu0 0
    %2000 = vmatpush1.bf16.xpose.msra.mxu0 0
    %2001 = vmatprep.subr.bf16.mxu0 0
    %2002 = vmatpush1.bf16.xpose.msra.mxu0 0
    %2003 = vmatprep.subr.bf16.mxu0 0
    %2004 = vmatpush1.bf16.xpose.msra.mxu0 0
    %2005 = vmatprep.subr.bf16.mxu0 0
    %2006 = vmatpush1.bf16.xpose.msra.mxu0 0
    %2007 = vmatprep.subr.bf16.mxu0 0
    %2008 = vmatpush1.bf16.xpose.msra.mxu0 0
    %2009 = vmatprep.subr.bf16.mxu0 0
    %2010 = vmatpush1.bf16.xpose.msra.mxu0 0
    %2011 = vmatprep.subr.bf16.mxu0 0
    %2012 = vmatpush1.bf16.xpose.msra.mxu0 0
    %2013 = vmatprep.mubr.bf16.mxu0 0
    %2014 = vmatmul.mubr.bf16.gmra.mrb[0].mxu0 %v1976
    %v2015 = vpop.f32.mrb[0].mxu0
    %v2016 = vadd.f32 0.0, %v2015
    %v2017 = vpop.f32.mrb[0].mxu0
    %v2018 = vpop.f32.mrb[0].mxu0
    %v2019 = vpop.f32.mrb[0].mxu0
    %2020 = vdwg.mxu0
    %2022 = vrot.lane.b32.xlu0 %v436, 64
    %v2023 = vpop.permute.xlu0 %2022
    %v2025 = vsel %vm553, %v436, 0
    %v2028 = vsel %vm553, %v2023, 0
    %2030 = vmatprep.subr.bf16.mxu0 0
    %2031 = vmatpush1.bf16.xpose.msra.mxu0 %v2028
    %2032 = vmatprep.subr.bf16.mxu0 0
    %2033 = vmatpush1.bf16.xpose.msra.mxu0 0
    %2034 = vmatprep.subr.bf16.mxu0 0
    %2035 = vmatpush1.bf16.xpose.msra.mxu0 0
    %2036 = vmatprep.subr.bf16.mxu0 0
    %2037 = vmatpush1.bf16.xpose.msra.mxu0 0
    %2038 = vmatprep.subr.bf16.mxu0 0
    %2039 = vmatpush1.bf16.xpose.msra.mxu0 0
    %2040 = vmatprep.subr.bf16.mxu0 0
    %2041 = vmatpush1.bf16.xpose.msra.mxu0 0
    %2042 = vmatprep.subr.bf16.mxu0 0
    %2043 = vmatpush1.bf16.xpose.msra.mxu0 0
    %2044 = vmatprep.subr.bf16.mxu0 0
    %2045 = vmatpush1.bf16.xpose.msra.mxu0 0
    %2046 = vmatprep.subr.bf16.mxu0 0
    %2047 = vmatpush1.bf16.xpose.msra.mxu0 0
    %2048 = vmatprep.subr.bf16.mxu0 0
    %2049 = vmatpush1.bf16.xpose.msra.mxu0 0
    %2050 = vmatprep.subr.bf16.mxu0 0
    %2051 = vmatpush1.bf16.xpose.msra.mxu0 0
    %2052 = vmatprep.subr.bf16.mxu0 0
    %2053 = vmatpush1.bf16.xpose.msra.mxu0 0
    %2054 = vmatprep.subr.bf16.mxu0 0
    %2055 = vmatpush1.bf16.xpose.msra.mxu0 0
    %2056 = vmatprep.subr.bf16.mxu0 0
    %2057 = vmatpush1.bf16.xpose.msra.mxu0 0
    %2058 = vmatprep.subr.bf16.mxu0 0
    %2059 = vmatpush1.bf16.xpose.msra.mxu0 0
    %2060 = vmatprep.subr.bf16.mxu0 0
    %2061 = vmatpush1.bf16.xpose.msra.mxu0 0
    %2062 = vmatprep.mubr.bf16.mxu0 0
    %2063 = vmatmul.mubr.bf16.gmra.mrb[0].mxu0 %v2025
    %v2064 = vpop.f32.mrb[0].mxu0
    %v2065 = vadd.f32 0.0, %v2064
    %v2066 = vpop.f32.mrb[0].mxu0
    %v2067 = vpop.f32.mrb[0].mxu0
    %v2068 = vpop.f32.mrb[0].mxu0
    %2069 = vdwg.mxu0
    %2071 = vrot.lane.b32.xlu0 %v437, 64
    %v2072 = vpop.permute.xlu0 %2071
    %v2074 = vsel %vm553, %v437, 0
    %v2077 = vsel %vm553, %v2072, 0
    %2079 = vmatprep.subr.bf16.mxu0 0
    %2080 = vmatpush1.bf16.xpose.msra.mxu0 %v2077
    %2081 = vmatprep.subr.bf16.mxu0 0
    %2082 = vmatpush1.bf16.xpose.msra.mxu0 0
    %2083 = vmatprep.subr.bf16.mxu0 0
    %2084 = vmatpush1.bf16.xpose.msra.mxu0 0
    %2085 = vmatprep.subr.bf16.mxu0 0
    %2086 = vmatpush1.bf16.xpose.msra.mxu0 0
    %2087 = vmatprep.subr.bf16.mxu0 0
    %2088 = vmatpush1.bf16.xpose.msra.mxu0 0
    %2089 = vmatprep.subr.bf16.mxu0 0
    %2090 = vmatpush1.bf16.xpose.msra.mxu0 0
    %2091 = vmatprep.subr.bf16.mxu0 0
    %2092 = vmatpush1.bf16.xpose.msra.mxu0 0
    %2093 = vmatprep.subr.bf16.mxu0 0
    %2094 = vmatpush1.bf16.xpose.msra.mxu0 0
    %2095 = vmatprep.subr.bf16.mxu0 0
    %2096 = vmatpush1.bf16.xpose.msra.mxu0 0
    %2097 = vmatprep.subr.bf16.mxu0 0
    %2098 = vmatpush1.bf16.xpose.msra.mxu0 0
    %2099 = vmatprep.subr.bf16.mxu0 0
    %2100 = vmatpush1.bf16.xpose.msra.mxu0 0
    %2101 = vmatprep.subr.bf16.mxu0 0
    %2102 = vmatpush1.bf16.xpose.msra.mxu0 0
    %2103 = vmatprep.subr.bf16.mxu0 0
    %2104 = vmatpush1.bf16.xpose.msra.mxu0 0
    %2105 = vmatprep.subr.bf16.mxu0 0
    %2106 = vmatpush1.bf16.xpose.msra.mxu0 0
    %2107 = vmatprep.subr.bf16.mxu0 0
    %2108 = vmatpush1.bf16.xpose.msra.mxu0 0
    %2109 = vmatprep.subr.bf16.mxu0 0
    %2110 = vmatpush1.bf16.xpose.msra.mxu0 0
    %2111 = vmatprep.mubr.bf16.mxu0 0
    %2112 = vmatmul.mubr.bf16.gmra.mrb[0].mxu0 %v2074
    %v2113 = vpop.f32.mrb[0].mxu0
    %v2114 = vadd.f32 0.0, %v2113
    %v2115 = vpop.f32.mrb[0].mxu0
    %v2116 = vpop.f32.mrb[0].mxu0
    %v2117 = vpop.f32.mrb[0].mxu0
    %2118 = vdwg.mxu0
    %vm2119 = vcmask 64512
    %v2120 = vsel %vm2119, %v595, -inf
    %2121 = vmax.xlane.f32.xlu0 %v2120
    %v2122 = vpop.xlane.xlu0 %2121
    %v2123 = vsel %vm2119, %v644, -inf
    %2124 = vmax.xlane.f32.xlu0 %v2123
    %v2125 = vpop.xlane.xlu0 %2124
    %v2126 = vsel %vm2119, %v693, -inf
    %2127 = vmax.xlane.f32.xlu0 %v2126
    %v2128 = vpop.xlane.xlu0 %2127
    %v2129 = vsel %vm2119, %v742, -inf
    %2130 = vmax.xlane.f32.xlu0 %v2129
    %v2131 = vpop.xlane.xlu0 %2130
    %v2132 = vsel %vm2119, %v791, -inf
    %2133 = vmax.xlane.f32.xlu0 %v2132
    %v2134 = vpop.xlane.xlu0 %2133
    %v2135 = vsel %vm2119, %v840, -inf
    %2136 = vmax.xlane.f32.xlu0 %v2135
    %v2137 = vpop.xlane.xlu0 %2136
    %v2138 = vsel %vm2119, %v889, -inf
    %2139 = vmax.xlane.f32.xlu0 %v2138
    %v2140 = vpop.xlane.xlu0 %2139
    %v2141 = vsel %vm2119, %v938, -inf
    %2142 = vmax.xlane.f32.xlu0 %v2141
    %v2143 = vpop.xlane.xlu0 %2142
    %v2144 = vsel %vm2119, %v987, -inf
    %2145 = vmax.xlane.f32.xlu0 %v2144
    %v2146 = vpop.xlane.xlu0 %2145
    %v2147 = vsel %vm2119, %v1036, -inf
    %2148 = vmax.xlane.f32.xlu0 %v2147
    %v2149 = vpop.xlane.xlu0 %2148
    %v2150 = vsel %vm2119, %v1085, -inf
    %2151 = vmax.xlane.f32.xlu0 %v2150
    %v2152 = vpop.xlane.xlu0 %2151
    %v2153 = vsel %vm2119, %v1134, -inf
    %2154 = vmax.xlane.f32.xlu0 %v2153
    %v2155 = vpop.xlane.xlu0 %2154
    %v2156 = vsel %vm2119, %v1183, -inf
    %2157 = vmax.xlane.f32.xlu0 %v2156
    %v2158 = vpop.xlane.xlu0 %2157
    %v2159 = vsel %vm2119, %v1232, -inf
    %2160 = vmax.xlane.f32.xlu0 %v2159
    %v2161 = vpop.xlane.xlu0 %2160
    %v2162 = vsel %vm2119, %v1281, -inf
    %2163 = vmax.xlane.f32.xlu0 %v2162
    %v2164 = vpop.xlane.xlu0 %2163
    %v2165 = vsel %vm2119, %v1330, -inf
    %2166 = vmax.xlane.f32.xlu0 %v2165
    %v2167 = vpop.xlane.xlu0 %2166
    %v2168 = vsel %vm2119, %v1379, -inf
    %2169 = vmax.xlane.f32.xlu0 %v2168
    %v2170 = vpop.xlane.xlu0 %2169
    %v2171 = vsel %vm2119, %v1428, -inf
    %2172 = vmax.xlane.f32.xlu0 %v2171
    %v2173 = vpop.xlane.xlu0 %2172
    %v2174 = vsel %vm2119, %v1477, -inf
    %2175 = vmax.xlane.f32.xlu0 %v2174
    %v2176 = vpop.xlane.xlu0 %2175
    %v2177 = vsel %vm2119, %v1526, -inf
    %2178 = vmax.xlane.f32.xlu0 %v2177
    %v2179 = vpop.xlane.xlu0 %2178
    %v2180 = vsel %vm2119, %v1575, -inf
    %2181 = vmax.xlane.f32.xlu0 %v2180
    %v2182 = vpop.xlane.xlu0 %2181
    %v2183 = vsel %vm2119, %v1624, -inf
    %2184 = vmax.xlane.f32.xlu0 %v2183
    %v2185 = vpop.xlane.xlu0 %2184
    %v2186 = vsel %vm2119, %v1673, -inf
    %2187 = vmax.xlane.f32.xlu0 %v2186
    %v2188 = vpop.xlane.xlu0 %2187
    %v2189 = vsel %vm2119, %v1722, -inf
    %2190 = vmax.xlane.f32.xlu0 %v2189
    %v2191 = vpop.xlane.xlu0 %2190
    %v2192 = vsel %vm2119, %v1771, -inf
    %2193 = vmax.xlane.f32.xlu0 %v2192
    %v2194 = vpop.xlane.xlu0 %2193
    %v2195 = vsel %vm2119, %v1820, -inf
    %2196 = vmax.xlane.f32.xlu0 %v2195
    %v2197 = vpop.xlane.xlu0 %2196
    %v2198 = vsel %vm2119, %v1869, -inf
    %2199 = vmax.xlane.f32.xlu0 %v2198
    %v2200 = vpop.xlane.xlu0 %2199
    %v2201 = vsel %vm2119, %v1918, -inf
    %2202 = vmax.xlane.f32.xlu0 %v2201
    %v2203 = vpop.xlane.xlu0 %2202
    %v2204 = vsel %vm2119, %v1967, -inf
    %2205 = vmax.xlane.f32.xlu0 %v2204
    %v2206 = vpop.xlane.xlu0 %2205
    %v2207 = vsel %vm2119, %v2016, -inf
    %2208 = vmax.xlane.f32.xlu0 %v2207
    %v2209 = vpop.xlane.xlu0 %2208
    %v2210 = vsel %vm2119, %v2065, -inf
    %2211 = vmax.xlane.f32.xlu0 %v2210
    %v2212 = vpop.xlane.xlu0 %2211
    %v2213 = vsel %vm2119, %v2114, -inf
    %2214 = vmax.xlane.f32.xlu0 %v2213
    %v2215 = vpop.xlane.xlu0 %2214
    %v2216 = vsub.f32 %v595, %v2122
    %v2217 = vsub.f32 %v644, %v2125
    %v2218 = vsub.f32 %v693, %v2128
    %v2219 = vsub.f32 %v742, %v2131
    %v2220 = vsub.f32 %v791, %v2134
    %v2221 = vsub.f32 %v840, %v2137
    %v2222 = vsub.f32 %v889, %v2140
    %v2223 = vsub.f32 %v938, %v2143
    %v2224 = vsub.f32 %v987, %v2146
    %v2225 = vsub.f32 %v1036, %v2149
    %v2226 = vsub.f32 %v1085, %v2152
    %v2227 = vsub.f32 %v1134, %v2155
    %v2228 = vsub.f32 %v1183, %v2158
    %v2229 = vsub.f32 %v1232, %v2161
    %v2230 = vsub.f32 %v1281, %v2164
    %v2231 = vsub.f32 %v1330, %v2167
    %v2232 = vsub.f32 %v1379, %v2170
    %v2233 = vsub.f32 %v1428, %v2173
    %v2234 = vsub.f32 %v1477, %v2176
    %v2235 = vsub.f32 %v1526, %v2179
    %v2236 = vsub.f32 %v1575, %v2182
    %v2237 = vsub.f32 %v1624, %v2185
    %v2238 = vsub.f32 %v1673, %v2188
    %v2239 = vsub.f32 %v1722, %v2191
    %v2240 = vsub.f32 %v1771, %v2194
    %v2241 = vsub.f32 %v1820, %v2197
    %v2242 = vsub.f32 %v1869, %v2200
    %v2243 = vsub.f32 %v1918, %v2203
    %v2244 = vsub.f32 %v1967, %v2206
    %v2245 = vsub.f32 %v2016, %v2209
    %v2246 = vsub.f32 %v2065, %v2212
    %v2247 = vsub.f32 %v2114, %v2215
    %v2248 = vmul.f32 %v2216, 1.442695
    %v2249 = vpow.pop %v2248
    %v2250 = vmul.f32 %v2217, 1.442695
    %v2251 = vpow.pop %v2250
    %v2252 = vmul.f32 %v2218, 1.442695
    %v2253 = vpow.pop %v2252
    %v2254 = vmul.f32 %v2219, 1.442695
    %v2255 = vpow.pop %v2254
    %v2256 = vmul.f32 %v2220, 1.442695
    %v2257 = vpow.pop %v2256
    %v2258 = vmul.f32 %v2221, 1.442695
    %v2259 = vpow.pop %v2258
    %v2260 = vmul.f32 %v2222, 1.442695
    %v2261 = vpow.pop %v2260
    %v2262 = vmul.f32 %v2223, 1.442695
    %v2263 = vpow.pop %v2262
    %v2264 = vmul.f32 %v2224, 1.442695
    %v2265 = vpow.pop %v2264
    %v2266 = vmul.f32 %v2225, 1.442695
    %v2267 = vpow.pop %v2266
    %v2268 = vmul.f32 %v2226, 1.442695
    %v2269 = vpow.pop %v2268
    %v2270 = vmul.f32 %v2227, 1.442695
    %v2271 = vpow.pop %v2270
    %v2272 = vmul.f32 %v2228, 1.442695
    %v2273 = vpow.pop %v2272
    %v2274 = vmul.f32 %v2229, 1.442695
    %v2275 = vpow.pop %v2274
    %v2276 = vmul.f32 %v2230, 1.442695
    %v2277 = vpow.pop %v2276
    %v2278 = vmul.f32 %v2231, 1.442695
    %v2279 = vpow.pop %v2278
    %v2280 = vmul.f32 %v2232, 1.442695
    %v2281 = vpow.pop %v2280
    %v2282 = vmul.f32 %v2233, 1.442695
    %v2283 = vpow.pop %v2282
    %v2284 = vmul.f32 %v2234, 1.442695
    %v2285 = vpow.pop %v2284
    %v2286 = vmul.f32 %v2235, 1.442695
    %v2287 = vpow.pop %v2286
    %v2288 = vmul.f32 %v2236, 1.442695
    %v2289 = vpow.pop %v2288
    %v2290 = vmul.f32 %v2237, 1.442695
    %v2291 = vpow.pop %v2290
    %v2292 = vmul.f32 %v2238, 1.442695
    %v2293 = vpow.pop %v2292
    %v2294 = vmul.f32 %v2239, 1.442695
    %v2295 = vpow.pop %v2294
    %v2296 = vmul.f32 %v2240, 1.442695
    %v2297 = vpow.pop %v2296
    %v2298 = vmul.f32 %v2241, 1.442695
    %v2299 = vpow.pop %v2298
    %v2300 = vmul.f32 %v2242, 1.442695
    %v2301 = vpow.pop %v2300
    %v2302 = vmul.f32 %v2243, 1.442695
    %v2303 = vpow.pop %v2302
    %v2304 = vmul.f32 %v2244, 1.442695
    %v2305 = vpow.pop %v2304
    %v2306 = vmul.f32 %v2245, 1.442695
    %v2307 = vpow.pop %v2306
    %v2308 = vmul.f32 %v2246, 1.442695
    %v2309 = vpow.pop %v2308
    %v2310 = vmul.f32 %v2247, 1.442695
    %v2311 = vpow.pop %v2310
    %v2312 = vsel %vm2119, %v2249, 0.0
    %2313 = vadd.xlane.f32.xlu0 %v2312
    %v2314 = vpop.xlane.xlu0 %2313
    %v2315 = vsel %vm2119, %v2251, 0.0
    %2316 = vadd.xlane.f32.xlu0 %v2315
    %v2317 = vpop.xlane.xlu0 %2316
    %v2318 = vsel %vm2119, %v2253, 0.0
    %2319 = vadd.xlane.f32.xlu0 %v2318
    %v2320 = vpop.xlane.xlu0 %2319
    %v2321 = vsel %vm2119, %v2255, 0.0
    %2322 = vadd.xlane.f32.xlu0 %v2321
    %v2323 = vpop.xlane.xlu0 %2322
    %v2324 = vsel %vm2119, %v2257, 0.0
    %2325 = vadd.xlane.f32.xlu0 %v2324
    %v2326 = vpop.xlane.xlu0 %2325
    %v2327 = vsel %vm2119, %v2259, 0.0
    %2328 = vadd.xlane.f32.xlu0 %v2327
    %v2329 = vpop.xlane.xlu0 %2328
    %v2330 = vsel %vm2119, %v2261, 0.0
    %2331 = vadd.xlane.f32.xlu0 %v2330
    %v2332 = vpop.xlane.xlu0 %2331
    %v2333 = vsel %vm2119, %v2263, 0.0
    %2334 = vadd.xlane.f32.xlu0 %v2333
    %v2335 = vpop.xlane.xlu0 %2334
    %v2336 = vsel %vm2119, %v2265, 0.0
    %2337 = vadd.xlane.f32.xlu0 %v2336
    %v2338 = vpop.xlane.xlu0 %2337
    %v2339 = vsel %vm2119, %v2267, 0.0
    %2340 = vadd.xlane.f32.xlu0 %v2339
    %v2341 = vpop.xlane.xlu0 %2340
    %v2342 = vsel %vm2119, %v2269, 0.0
    %2343 = vadd.xlane.f32.xlu0 %v2342
    %v2344 = vpop.xlane.xlu0 %2343
    %v2345 = vsel %vm2119, %v2271, 0.0
    %2346 = vadd.xlane.f32.xlu0 %v2345
    %v2347 = vpop.xlane.xlu0 %2346
    %v2348 = vsel %vm2119, %v2273, 0.0
    %2349 = vadd.xlane.f32.xlu0 %v2348
    %v2350 = vpop.xlane.xlu0 %2349
    %v2351 = vsel %vm2119, %v2275, 0.0
    %2352 = vadd.xlane.f32.xlu0 %v2351
    %v2353 = vpop.xlane.xlu0 %2352
    %v2354 = vsel %vm2119, %v2277, 0.0
    %2355 = vadd.xlane.f32.xlu0 %v2354
    %v2356 = vpop.xlane.xlu0 %2355
    %v2357 = vsel %vm2119, %v2279, 0.0
    %2358 = vadd.xlane.f32.xlu0 %v2357
    %v2359 = vpop.xlane.xlu0 %2358
    %v2360 = vsel %vm2119, %v2281, 0.0
    %2361 = vadd.xlane.f32.xlu0 %v2360
    %v2362 = vpop.xlane.xlu0 %2361
    %v2363 = vsel %vm2119, %v2283, 0.0
    %2364 = vadd.xlane.f32.xlu0 %v2363
    %v2365 = vpop.xlane.xlu0 %2364
    %v2366 = vsel %vm2119, %v2285, 0.0
    %2367 = vadd.xlane.f32.xlu0 %v2366
    %v2368 = vpop.xlane.xlu0 %2367
    %v2369 = vsel %vm2119, %v2287, 0.0
    %2370 = vadd.xlane.f32.xlu0 %v2369
    %v2371 = vpop.xlane.xlu0 %2370
    %v2372 = vsel %vm2119, %v2289, 0.0
    %2373 = vadd.xlane.f32.xlu0 %v2372
    %v2374 = vpop.xlane.xlu0 %2373
    %v2375 = vsel %vm2119, %v2291, 0.0
    %2376 = vadd.xlane.f32.xlu0 %v2375
    %v2377 = vpop.xlane.xlu0 %2376
    %v2378 = vsel %vm2119, %v2293, 0.0
    %2379 = vadd.xlane.f32.xlu0 %v2378
    %v2380 = vpop.xlane.xlu0 %2379
    %v2381 = vsel %vm2119, %v2295, 0.0
    %2382 = vadd.xlane.f32.xlu0 %v2381
    %v2383 = vpop.xlane.xlu0 %2382
    %v2384 = vsel %vm2119, %v2297, 0.0
    %2385 = vadd.xlane.f32.xlu0 %v2384
    %v2386 = vpop.xlane.xlu0 %2385
    %v2387 = vsel %vm2119, %v2299, 0.0
    %2388 = vadd.xlane.f32.xlu0 %v2387
    %v2389 = vpop.xlane.xlu0 %2388
    %v2390 = vsel %vm2119, %v2301, 0.0
    %2391 = vadd.xlane.f32.xlu0 %v2390
    %v2392 = vpop.xlane.xlu0 %2391
    %v2393 = vsel %vm2119, %v2303, 0.0
    %2394 = vadd.xlane.f32.xlu0 %v2393
    %v2395 = vpop.xlane.xlu0 %2394
    %v2396 = vsel %vm2119, %v2305, 0.0
    %2397 = vadd.xlane.f32.xlu0 %v2396
    %v2398 = vpop.xlane.xlu0 %2397
    %v2399 = vsel %vm2119, %v2307, 0.0
    %2400 = vadd.xlane.f32.xlu0 %v2399
    %v2401 = vpop.xlane.xlu0 %2400
    %v2402 = vsel %vm2119, %v2309, 0.0
    %2403 = vadd.xlane.f32.xlu0 %v2402
    %v2404 = vpop.xlane.xlu0 %2403
    %v2405 = vsel %vm2119, %v2311, 0.0
    %2406 = vadd.xlane.f32.xlu0 %v2405
    %v2407 = vpop.xlane.xlu0 %2406
    %v2408 = vrcp.pop %v2314
    %v2409 = vrcp.pop %v2317
    %v2410 = vrcp.pop %v2320
    %v2411 = vrcp.pop %v2323
    %v2412 = vrcp.pop %v2326
    %v2413 = vrcp.pop %v2329
    %v2414 = vrcp.pop %v2332
    %v2415 = vrcp.pop %v2335
    %v2416 = vrcp.pop %v2338
    %v2417 = vrcp.pop %v2341
    %v2418 = vrcp.pop %v2344
    %v2419 = vrcp.pop %v2347
    %v2420 = vrcp.pop %v2350
    %v2421 = vrcp.pop %v2353
    %v2422 = vrcp.pop %v2356
    %v2423 = vrcp.pop %v2359
    %v2424 = vrcp.pop %v2362
    %v2425 = vrcp.pop %v2365
    %v2426 = vrcp.pop %v2368
    %v2427 = vrcp.pop %v2371
    %v2428 = vrcp.pop %v2374
    %v2429 = vrcp.pop %v2377
    %v2430 = vrcp.pop %v2380
    %v2431 = vrcp.pop %v2383
    %v2432 = vrcp.pop %v2386
    %v2433 = vrcp.pop %v2389
    %v2434 = vrcp.pop %v2392
    %v2435 = vrcp.pop %v2395
    %v2436 = vrcp.pop %v2398
    %v2437 = vrcp.pop %v2401
    %v2438 = vrcp.pop %v2404
    %v2439 = vrcp.pop %v2407
    %v2440 = vmul.f32 %v2249, %v2408
    %v2441 = vmul.f32 %v2251, %v2409
    %v2442 = vmul.f32 %v2253, %v2410
    %v2443 = vmul.f32 %v2255, %v2411
    %v2444 = vmul.f32 %v2257, %v2412
    %v2445 = vmul.f32 %v2259, %v2413
    %v2446 = vmul.f32 %v2261, %v2414
    %v2447 = vmul.f32 %v2263, %v2415
    %v2448 = vmul.f32 %v2265, %v2416
    %v2449 = vmul.f32 %v2267, %v2417
    %v2450 = vmul.f32 %v2269, %v2418
    %v2451 = vmul.f32 %v2271, %v2419
    %v2452 = vmul.f32 %v2273, %v2420
    %v2453 = vmul.f32 %v2275, %v2421
    %v2454 = vmul.f32 %v2277, %v2422
    %v2455 = vmul.f32 %v2279, %v2423
    %v2456 = vmul.f32 %v2281, %v2424
    %v2457 = vmul.f32 %v2283, %v2425
    %v2458 = vmul.f32 %v2285, %v2426
    %v2459 = vmul.f32 %v2287, %v2427
    %v2460 = vmul.f32 %v2289, %v2428
    %v2461 = vmul.f32 %v2291, %v2429
    %v2462 = vmul.f32 %v2293, %v2430
    %v2463 = vmul.f32 %v2295, %v2431
    %v2464 = vmul.f32 %v2297, %v2432
    %v2465 = vmul.f32 %v2299, %v2433
    %v2466 = vmul.f32 %v2301, %v2434
    %v2467 = vmul.f32 %v2303, %v2435
    %v2468 = vmul.f32 %v2305, %v2436
    %v2469 = vmul.f32 %v2307, %v2437
    %v2470 = vmul.f32 %v2309, %v2438
    %v2471 = vmul.f32 %v2311, %v2439
    %v2472 = vpack.c.bf16 %v2440, %v2440
    %v2473 = vpack.c.bf16 %v2441, %v2441
    %v2474 = vpack.c.bf16 %v2442, %v2442
    %v2475 = vpack.c.bf16 %v2443, %v2443
    %v2476 = vpack.c.bf16 %v2444, %v2444
    %v2477 = vpack.c.bf16 %v2445, %v2445
    %v2478 = vpack.c.bf16 %v2446, %v2446
    %v2479 = vpack.c.bf16 %v2447, %v2447
    %v2480 = vpack.c.bf16 %v2448, %v2448
    %v2481 = vpack.c.bf16 %v2449, %v2449
    %v2482 = vpack.c.bf16 %v2450, %v2450
    %v2483 = vpack.c.bf16 %v2451, %v2451
    %v2484 = vpack.c.bf16 %v2452, %v2452
    %v2485 = vpack.c.bf16 %v2453, %v2453
    %v2486 = vpack.c.bf16 %v2454, %v2454
    %v2487 = vpack.c.bf16 %v2455, %v2455
    %v2488 = vpack.c.bf16 %v2456, %v2456
    %v2489 = vpack.c.bf16 %v2457, %v2457
    %v2490 = vpack.c.bf16 %v2458, %v2458
    %v2491 = vpack.c.bf16 %v2459, %v2459
    %v2492 = vpack.c.bf16 %v2460, %v2460
    %v2493 = vpack.c.bf16 %v2461, %v2461
    %v2494 = vpack.c.bf16 %v2462, %v2462
    %v2495 = vpack.c.bf16 %v2463, %v2463
    %v2496 = vpack.c.bf16 %v2464, %v2464
    %v2497 = vpack.c.bf16 %v2465, %v2465
    %v2498 = vpack.c.bf16 %v2466, %v2466
    %v2499 = vpack.c.bf16 %v2467, %v2467
    %v2500 = vpack.c.bf16 %v2468, %v2468
    %v2501 = vpack.c.bf16 %v2469, %v2469
    %v2502 = vpack.c.bf16 %v2470, %v2470
    %v2503 = vpack.c.bf16 %v2471, %v2471
    %v2505 = vsel %vm2119, %v2472, 0
    %vm2507 = vcmask 1043456
    %v2509 = vsel %vm2507, %v518, 0
    %2511 = vmatprep.subr.bf16.mxu0 0
    %2512 = vmatpush1.bf16.msra.mxu0 %v2509
    %2513 = vmatprep.subr.bf16.mxu0 0
    %2514 = vmatpush1.bf16.msra.mxu0 0
    %2515 = vmatprep.subr.bf16.mxu0 0
    %2516 = vmatpush1.bf16.msra.mxu0 0
    %2517 = vmatprep.subr.bf16.mxu0 0
    %2518 = vmatpush1.bf16.msra.mxu0 0
    %2519 = vmatprep.subr.bf16.mxu0 0
    %2520 = vmatpush1.bf16.msra.mxu0 0
    %2521 = vmatprep.subr.bf16.mxu0 0
    %2522 = vmatpush1.bf16.msra.mxu0 0
    %2523 = vmatprep.subr.bf16.mxu0 0
    %2524 = vmatpush1.bf16.msra.mxu0 0
    %2525 = vmatprep.subr.bf16.mxu0 0
    %2526 = vmatpush1.bf16.msra.mxu0 0
    %2527 = vmatprep.subr.bf16.mxu0 0
    %2528 = vmatpush1.bf16.msra.mxu0 0
    %2529 = vmatprep.subr.bf16.mxu0 0
    %2530 = vmatpush1.bf16.msra.mxu0 0
    %2531 = vmatprep.subr.bf16.mxu0 0
    %2532 = vmatpush1.bf16.msra.mxu0 0
    %2533 = vmatprep.subr.bf16.mxu0 0
    %2534 = vmatpush1.bf16.msra.mxu0 0
    %2535 = vmatprep.subr.bf16.mxu0 0
    %2536 = vmatpush1.bf16.msra.mxu0 0
    %2537 = vmatprep.subr.bf16.mxu0 0
    %2538 = vmatpush1.bf16.msra.mxu0 0
    %2539 = vmatprep.subr.bf16.mxu0 0
    %2540 = vmatpush1.bf16.msra.mxu0 0
    %2541 = vmatprep.subr.bf16.mxu0 0
    %2542 = vmatpush1.bf16.msra.mxu0 0
    %2543 = vmatprep.mubr.bf16.mxu0 0
    %2544 = vmatmul.mubr.bf16.gmra.mrb[0].mxu0 %v2505
    %v2545 = vpop.f32.mrb[0].mxu0
    %v2546 = vadd.f32 0.0, %v2545
    %v2547 = vpop.f32.mrb[0].mxu0
    %v2548 = vpop.f32.mrb[0].mxu0
    %v2549 = vpop.f32.mrb[0].mxu0
    %2550 = vdwg.mxu0
    %v2552 = vsel %vm2119, %v2473, 0
    %v2555 = vsel %vm2507, %v519, 0
    %2557 = vmatprep.subr.bf16.mxu0 0
    %2558 = vmatpush1.bf16.msra.mxu0 %v2555
    %2559 = vmatprep.subr.bf16.mxu0 0
    %2560 = vmatpush1.bf16.msra.mxu0 0
    %2561 = vmatprep.subr.bf16.mxu0 0
    %2562 = vmatpush1.bf16.msra.mxu0 0
    %2563 = vmatprep.subr.bf16.mxu0 0
    %2564 = vmatpush1.bf16.msra.mxu0 0
    %2565 = vmatprep.subr.bf16.mxu0 0
    %2566 = vmatpush1.bf16.msra.mxu0 0
    %2567 = vmatprep.subr.bf16.mxu0 0
    %2568 = vmatpush1.bf16.msra.mxu0 0
    %2569 = vmatprep.subr.bf16.mxu0 0
    %2570 = vmatpush1.bf16.msra.mxu0 0
    %2571 = vmatprep.subr.bf16.mxu0 0
    %2572 = vmatpush1.bf16.msra.mxu0 0
    %2573 = vmatprep.subr.bf16.mxu0 0
    %2574 = vmatpush1.bf16.msra.mxu0 0
    %2575 = vmatprep.subr.bf16.mxu0 0
    %2576 = vmatpush1.bf16.msra.mxu0 0
    %2577 = vmatprep.subr.bf16.mxu0 0
    %2578 = vmatpush1.bf16.msra.mxu0 0
    %2579 = vmatprep.subr.bf16.mxu0 0
    %2580 = vmatpush1.bf16.msra.mxu0 0
    %2581 = vmatprep.subr.bf16.mxu0 0
    %2582 = vmatpush1.bf16.msra.mxu0 0
    %2583 = vmatprep.subr.bf16.mxu0 0
    %2584 = vmatpush1.bf16.msra.mxu0 0
    %2585 = vmatprep.subr.bf16.mxu0 0
    %2586 = vmatpush1.bf16.msra.mxu0 0
    %2587 = vmatprep.subr.bf16.mxu0 0
    %2588 = vmatpush1.bf16.msra.mxu0 0
    %2589 = vmatprep.mubr.bf16.mxu0 0
    %2590 = vmatmul.mubr.bf16.gmra.mrb[0].mxu0 %v2552
    %v2591 = vpop.f32.mrb[0].mxu0
    %v2592 = vadd.f32 0.0, %v2591
    %v2593 = vpop.f32.mrb[0].mxu0
    %v2594 = vpop.f32.mrb[0].mxu0
    %v2595 = vpop.f32.mrb[0].mxu0
    %2596 = vdwg.mxu0
    %v2598 = vsel %vm2119, %v2474, 0
    %v2601 = vsel %vm2507, %v520, 0
    %2603 = vmatprep.subr.bf16.mxu0 0
    %2604 = vmatpush1.bf16.msra.mxu0 %v2601
    %2605 = vmatprep.subr.bf16.mxu0 0
    %2606 = vmatpush1.bf16.msra.mxu0 0
    %2607 = vmatprep.subr.bf16.mxu0 0
    %2608 = vmatpush1.bf16.msra.mxu0 0
    %2609 = vmatprep.subr.bf16.mxu0 0
    %2610 = vmatpush1.bf16.msra.mxu0 0
    %2611 = vmatprep.subr.bf16.mxu0 0
    %2612 = vmatpush1.bf16.msra.mxu0 0
    %2613 = vmatprep.subr.bf16.mxu0 0
    %2614 = vmatpush1.bf16.msra.mxu0 0
    %2615 = vmatprep.subr.bf16.mxu0 0
    %2616 = vmatpush1.bf16.msra.mxu0 0
    %2617 = vmatprep.subr.bf16.mxu0 0
    %2618 = vmatpush1.bf16.msra.mxu0 0
    %2619 = vmatprep.subr.bf16.mxu0 0
    %2620 = vmatpush1.bf16.msra.mxu0 0
    %2621 = vmatprep.subr.bf16.mxu0 0
    %2622 = vmatpush1.bf16.msra.mxu0 0
    %2623 = vmatprep.subr.bf16.mxu0 0
    %2624 = vmatpush1.bf16.msra.mxu0 0
    %2625 = vmatprep.subr.bf16.mxu0 0
    %2626 = vmatpush1.bf16.msra.mxu0 0
    %2627 = vmatprep.subr.bf16.mxu0 0
    %2628 = vmatpush1.bf16.msra.mxu0 0
    %2629 = vmatprep.subr.bf16.mxu0 0
    %2630 = vmatpush1.bf16.msra.mxu0 0
    %2631 = vmatprep.subr.bf16.mxu0 0
    %2632 = vmatpush1.bf16.msra.mxu0 0
    %2633 = vmatprep.subr.bf16.mxu0 0
    %2634 = vmatpush1.bf16.msra.mxu0 0
    %2635 = vmatprep.mubr.bf16.mxu0 0
    %2636 = vmatmul.mubr.bf16.gmra.mrb[0].mxu0 %v2598
    %v2637 = vpop.f32.mrb[0].mxu0
    %v2638 = vadd.f32 0.0, %v2637
    %v2639 = vpop.f32.mrb[0].mxu0
    %v2640 = vpop.f32.mrb[0].mxu0
    %v2641 = vpop.f32.mrb[0].mxu0
    %2642 = vdwg.mxu0
    %v2644 = vsel %vm2119, %v2475, 0
    %v2647 = vsel %vm2507, %v521, 0
    %2649 = vmatprep.subr.bf16.mxu0 0
    %2650 = vmatpush1.bf16.msra.mxu0 %v2647
    %2651 = vmatprep.subr.bf16.mxu0 0
    %2652 = vmatpush1.bf16.msra.mxu0 0
    %2653 = vmatprep.subr.bf16.mxu0 0
    %2654 = vmatpush1.bf16.msra.mxu0 0
    %2655 = vmatprep.subr.bf16.mxu0 0
    %2656 = vmatpush1.bf16.msra.mxu0 0
    %2657 = vmatprep.subr.bf16.mxu0 0
    %2658 = vmatpush1.bf16.msra.mxu0 0
    %2659 = vmatprep.subr.bf16.mxu0 0
    %2660 = vmatpush1.bf16.msra.mxu0 0
    %2661 = vmatprep.subr.bf16.mxu0 0
    %2662 = vmatpush1.bf16.msra.mxu0 0
    %2663 = vmatprep.subr.bf16.mxu0 0
    %2664 = vmatpush1.bf16.msra.mxu0 0
    %2665 = vmatprep.subr.bf16.mxu0 0
    %2666 = vmatpush1.bf16.msra.mxu0 0
    %2667 = vmatprep.subr.bf16.mxu0 0
    %2668 = vmatpush1.bf16.msra.mxu0 0
    %2669 = vmatprep.subr.bf16.mxu0 0
    %2670 = vmatpush1.bf16.msra.mxu0 0
    %2671 = vmatprep.subr.bf16.mxu0 0
    %2672 = vmatpush1.bf16.msra.mxu0 0
    %2673 = vmatprep.subr.bf16.mxu0 0
    %2674 = vmatpush1.bf16.msra.mxu0 0
    %2675 = vmatprep.subr.bf16.mxu0 0
    %2676 = vmatpush1.bf16.msra.mxu0 0
    %2677 = vmatprep.subr.bf16.mxu0 0
    %2678 = vmatpush1.bf16.msra.mxu0 0
    %2679 = vmatprep.subr.bf16.mxu0 0
    %2680 = vmatpush1.bf16.msra.mxu0 0
    %2681 = vmatprep.mubr.bf16.mxu0 0
    %2682 = vmatmul.mubr.bf16.gmra.mrb[0].mxu0 %v2644
    %v2683 = vpop.f32.mrb[0].mxu0
    %v2684 = vadd.f32 0.0, %v2683
    %v2685 = vpop.f32.mrb[0].mxu0
    %v2686 = vpop.f32.mrb[0].mxu0
    %v2687 = vpop.f32.mrb[0].mxu0
    %2688 = vdwg.mxu0
    %v2690 = vsel %vm2119, %v2476, 0
    %v2693 = vsel %vm2507, %v522, 0
    %2695 = vmatprep.subr.bf16.mxu0 0
    %2696 = vmatpush1.bf16.msra.mxu0 %v2693
    %2697 = vmatprep.subr.bf16.mxu0 0
    %2698 = vmatpush1.bf16.msra.mxu0 0
    %2699 = vmatprep.subr.bf16.mxu0 0
    %2700 = vmatpush1.bf16.msra.mxu0 0
    %2701 = vmatprep.subr.bf16.mxu0 0
    %2702 = vmatpush1.bf16.msra.mxu0 0
    %2703 = vmatprep.subr.bf16.mxu0 0
    %2704 = vmatpush1.bf16.msra.mxu0 0
    %2705 = vmatprep.subr.bf16.mxu0 0
    %2706 = vmatpush1.bf16.msra.mxu0 0
    %2707 = vmatprep.subr.bf16.mxu0 0
    %2708 = vmatpush1.bf16.msra.mxu0 0
    %2709 = vmatprep.subr.bf16.mxu0 0
    %2710 = vmatpush1.bf16.msra.mxu0 0
    %2711 = vmatprep.subr.bf16.mxu0 0
    %2712 = vmatpush1.bf16.msra.mxu0 0
    %2713 = vmatprep.subr.bf16.mxu0 0
    %2714 = vmatpush1.bf16.msra.mxu0 0
    %2715 = vmatprep.subr.bf16.mxu0 0
    %2716 = vmatpush1.bf16.msra.mxu0 0
    %2717 = vmatprep.subr.bf16.mxu0 0
    %2718 = vmatpush1.bf16.msra.mxu0 0
    %2719 = vmatprep.subr.bf16.mxu0 0
    %2720 = vmatpush1.bf16.msra.mxu0 0
    %2721 = vmatprep.subr.bf16.mxu0 0
    %2722 = vmatpush1.bf16.msra.mxu0 0
    %2723 = vmatprep.subr.bf16.mxu0 0
    %2724 = vmatpush1.bf16.msra.mxu0 0
    %2725 = vmatprep.subr.bf16.mxu0 0
    %2726 = vmatpush1.bf16.msra.mxu0 0
    %2727 = vmatprep.mubr.bf16.mxu0 0
    %2728 = vmatmul.mubr.bf16.gmra.mrb[0].mxu0 %v2690
    %v2729 = vpop.f32.mrb[0].mxu0
    %v2730 = vadd.f32 0.0, %v2729
    %v2731 = vpop.f32.mrb[0].mxu0
    %v2732 = vpop.f32.mrb[0].mxu0
    %v2733 = vpop.f32.mrb[0].mxu0
    %2734 = vdwg.mxu0
    %v2736 = vsel %vm2119, %v2477, 0
    %v2739 = vsel %vm2507, %v523, 0
    %2741 = vmatprep.subr.bf16.mxu0 0
    %2742 = vmatpush1.bf16.msra.mxu0 %v2739
    %2743 = vmatprep.subr.bf16.mxu0 0
    %2744 = vmatpush1.bf16.msra.mxu0 0
    %2745 = vmatprep.subr.bf16.mxu0 0
    %2746 = vmatpush1.bf16.msra.mxu0 0
    %2747 = vmatprep.subr.bf16.mxu0 0
    %2748 = vmatpush1.bf16.msra.mxu0 0
    %2749 = vmatprep.subr.bf16.mxu0 0
    %2750 = vmatpush1.bf16.msra.mxu0 0
    %2751 = vmatprep.subr.bf16.mxu0 0
    %2752 = vmatpush1.bf16.msra.mxu0 0
    %2753 = vmatprep.subr.bf16.mxu0 0
    %2754 = vmatpush1.bf16.msra.mxu0 0
    %2755 = vmatprep.subr.bf16.mxu0 0
    %2756 = vmatpush1.bf16.msra.mxu0 0
    %2757 = vmatprep.subr.bf16.mxu0 0
    %2758 = vmatpush1.bf16.msra.mxu0 0
    %2759 = vmatprep.subr.bf16.mxu0 0
    %2760 = vmatpush1.bf16.msra.mxu0 0
    %2761 = vmatprep.subr.bf16.mxu0 0
    %2762 = vmatpush1.bf16.msra.mxu0 0
    %2763 = vmatprep.subr.bf16.mxu0 0
    %2764 = vmatpush1.bf16.msra.mxu0 0
    %2765 = vmatprep.subr.bf16.mxu0 0
    %2766 = vmatpush1.bf16.msra.mxu0 0
    %2767 = vmatprep.subr.bf16.mxu0 0
    %2768 = vmatpush1.bf16.msra.mxu0 0
    %2769 = vmatprep.subr.bf16.mxu0 0
    %2770 = vmatpush1.bf16.msra.mxu0 0
    %2771 = vmatprep.subr.bf16.mxu0 0
    %2772 = vmatpush1.bf16.msra.mxu0 0
    %2773 = vmatprep.mubr.bf16.mxu0 0
    %2774 = vmatmul.mubr.bf16.gmra.mrb[0].mxu0 %v2736
    %v2775 = vpop.f32.mrb[0].mxu0
    %v2776 = vadd.f32 0.0, %v2775
    %v2777 = vpop.f32.mrb[0].mxu0
    %v2778 = vpop.f32.mrb[0].mxu0
    %v2779 = vpop.f32.mrb[0].mxu0
    %2780 = vdwg.mxu0
    %v2782 = vsel %vm2119, %v2478, 0
    %v2785 = vsel %vm2507, %v524, 0
    %2787 = vmatprep.subr.bf16.mxu0 0
    %2788 = vmatpush1.bf16.msra.mxu0 %v2785
    %2789 = vmatprep.subr.bf16.mxu0 0
    %2790 = vmatpush1.bf16.msra.mxu0 0
    %2791 = vmatprep.subr.bf16.mxu0 0
    %2792 = vmatpush1.bf16.msra.mxu0 0
    %2793 = vmatprep.subr.bf16.mxu0 0
    %2794 = vmatpush1.bf16.msra.mxu0 0
    %2795 = vmatprep.subr.bf16.mxu0 0
    %2796 = vmatpush1.bf16.msra.mxu0 0
    %2797 = vmatprep.subr.bf16.mxu0 0
    %2798 = vmatpush1.bf16.msra.mxu0 0
    %2799 = vmatprep.subr.bf16.mxu0 0
    %2800 = vmatpush1.bf16.msra.mxu0 0
    %2801 = vmatprep.subr.bf16.mxu0 0
    %2802 = vmatpush1.bf16.msra.mxu0 0
    %2803 = vmatprep.subr.bf16.mxu0 0
    %2804 = vmatpush1.bf16.msra.mxu0 0
    %2805 = vmatprep.subr.bf16.mxu0 0
    %2806 = vmatpush1.bf16.msra.mxu0 0
    %2807 = vmatprep.subr.bf16.mxu0 0
    %2808 = vmatpush1.bf16.msra.mxu0 0
    %2809 = vmatprep.subr.bf16.mxu0 0
    %2810 = vmatpush1.bf16.msra.mxu0 0
    %2811 = vmatprep.subr.bf16.mxu0 0
    %2812 = vmatpush1.bf16.msra.mxu0 0
    %2813 = vmatprep.subr.bf16.mxu0 0
    %2814 = vmatpush1.bf16.msra.mxu0 0
    %2815 = vmatprep.subr.bf16.mxu0 0
    %2816 = vmatpush1.bf16.msra.mxu0 0
    %2817 = vmatprep.subr.bf16.mxu0 0
    %2818 = vmatpush1.bf16.msra.mxu0 0
    %2819 = vmatprep.mubr.bf16.mxu0 0
    %2820 = vmatmul.mubr.bf16.gmra.mrb[0].mxu0 %v2782
    %v2821 = vpop.f32.mrb[0].mxu0
    %v2822 = vadd.f32 0.0, %v2821
    %v2823 = vpop.f32.mrb[0].mxu0
    %v2824 = vpop.f32.mrb[0].mxu0
    %v2825 = vpop.f32.mrb[0].mxu0
    %2826 = vdwg.mxu0
    %v2828 = vsel %vm2119, %v2479, 0
    %v2831 = vsel %vm2507, %v525, 0
    %2833 = vmatprep.subr.bf16.mxu0 0
    %2834 = vmatpush1.bf16.msra.mxu0 %v2831
    %2835 = vmatprep.subr.bf16.mxu0 0
    %2836 = vmatpush1.bf16.msra.mxu0 0
    %2837 = vmatprep.subr.bf16.mxu0 0
    %2838 = vmatpush1.bf16.msra.mxu0 0
    %2839 = vmatprep.subr.bf16.mxu0 0
    %2840 = vmatpush1.bf16.msra.mxu0 0
    %2841 = vmatprep.subr.bf16.mxu0 0
    %2842 = vmatpush1.bf16.msra.mxu0 0
    %2843 = vmatprep.subr.bf16.mxu0 0
    %2844 = vmatpush1.bf16.msra.mxu0 0
    %2845 = vmatprep.subr.bf16.mxu0 0
    %2846 = vmatpush1.bf16.msra.mxu0 0
    %2847 = vmatprep.subr.bf16.mxu0 0
    %2848 = vmatpush1.bf16.msra.mxu0 0
    %2849 = vmatprep.subr.bf16.mxu0 0
    %2850 = vmatpush1.bf16.msra.mxu0 0
    %2851 = vmatprep.subr.bf16.mxu0 0
    %2852 = vmatpush1.bf16.msra.mxu0 0
    %2853 = vmatprep.subr.bf16.mxu0 0
    %2854 = vmatpush1.bf16.msra.mxu0 0
    %2855 = vmatprep.subr.bf16.mxu0 0
    %2856 = vmatpush1.bf16.msra.mxu0 0
    %2857 = vmatprep.subr.bf16.mxu0 0
    %2858 = vmatpush1.bf16.msra.mxu0 0
    %2859 = vmatprep.subr.bf16.mxu0 0
    %2860 = vmatpush1.bf16.msra.mxu0 0
    %2861 = vmatprep.subr.bf16.mxu0 0
    %2862 = vmatpush1.bf16.msra.mxu0 0
    %2863 = vmatprep.subr.bf16.mxu0 0
    %2864 = vmatpush1.bf16.msra.mxu0 0
    %2865 = vmatprep.mubr.bf16.mxu0 0
    %2866 = vmatmul.mubr.bf16.gmra.mrb[0].mxu0 %v2828
    %v2867 = vpop.f32.mrb[0].mxu0
    %v2868 = vadd.f32 0.0, %v2867
    %v2869 = vpop.f32.mrb[0].mxu0
    %v2870 = vpop.f32.mrb[0].mxu0
    %v2871 = vpop.f32.mrb[0].mxu0
    %2872 = vdwg.mxu0
    %v2874 = vsel %vm2119, %v2480, 0
    %v2877 = vsel %vm2507, %v526, 0
    %2879 = vmatprep.subr.bf16.mxu0 0
    %2880 = vmatpush1.bf16.msra.mxu0 %v2877
    %2881 = vmatprep.subr.bf16.mxu0 0
    %2882 = vmatpush1.bf16.msra.mxu0 0
    %2883 = vmatprep.subr.bf16.mxu0 0
    %2884 = vmatpush1.bf16.msra.mxu0 0
    %2885 = vmatprep.subr.bf16.mxu0 0
    %2886 = vmatpush1.bf16.msra.mxu0 0
    %2887 = vmatprep.subr.bf16.mxu0 0
    %2888 = vmatpush1.bf16.msra.mxu0 0
    %2889 = vmatprep.subr.bf16.mxu0 0
    %2890 = vmatpush1.bf16.msra.mxu0 0
    %2891 = vmatprep.subr.bf16.mxu0 0
    %2892 = vmatpush1.bf16.msra.mxu0 0
    %2893 = vmatprep.subr.bf16.mxu0 0
    %2894 = vmatpush1.bf16.msra.mxu0 0
    %2895 = vmatprep.subr.bf16.mxu0 0
    %2896 = vmatpush1.bf16.msra.mxu0 0
    %2897 = vmatprep.subr.bf16.mxu0 0
    %2898 = vmatpush1.bf16.msra.mxu0 0
    %2899 = vmatprep.subr.bf16.mxu0 0
    %2900 = vmatpush1.bf16.msra.mxu0 0
    %2901 = vmatprep.subr.bf16.mxu0 0
    %2902 = vmatpush1.bf16.msra.mxu0 0
    %2903 = vmatprep.subr.bf16.mxu0 0
    %2904 = vmatpush1.bf16.msra.mxu0 0
    %2905 = vmatprep.subr.bf16.mxu0 0
    %2906 = vmatpush1.bf16.msra.mxu0 0
    %2907 = vmatprep.subr.bf16.mxu0 0
    %2908 = vmatpush1.bf16.msra.mxu0 0
    %2909 = vmatprep.subr.bf16.mxu0 0
    %2910 = vmatpush1.bf16.msra.mxu0 0
    %2911 = vmatprep.mubr.bf16.mxu0 0
    %2912 = vmatmul.mubr.bf16.gmra.mrb[0].mxu0 %v2874
    %v2913 = vpop.f32.mrb[0].mxu0
    %v2914 = vadd.f32 0.0, %v2913
    %v2915 = vpop.f32.mrb[0].mxu0
    %v2916 = vpop.f32.mrb[0].mxu0
    %v2917 = vpop.f32.mrb[0].mxu0
    %2918 = vdwg.mxu0
    %v2920 = vsel %vm2119, %v2481, 0
    %v2923 = vsel %vm2507, %v527, 0
    %2925 = vmatprep.subr.bf16.mxu0 0
    %2926 = vmatpush1.bf16.msra.mxu0 %v2923
    %2927 = vmatprep.subr.bf16.mxu0 0
    %2928 = vmatpush1.bf16.msra.mxu0 0
    %2929 = vmatprep.subr.bf16.mxu0 0
    %2930 = vmatpush1.bf16.msra.mxu0 0
    %2931 = vmatprep.subr.bf16.mxu0 0
    %2932 = vmatpush1.bf16.msra.mxu0 0
    %2933 = vmatprep.subr.bf16.mxu0 0
    %2934 = vmatpush1.bf16.msra.mxu0 0
    %2935 = vmatprep.subr.bf16.mxu0 0
    %2936 = vmatpush1.bf16.msra.mxu0 0
    %2937 = vmatprep.subr.bf16.mxu0 0
    %2938 = vmatpush1.bf16.msra.mxu0 0
    %2939 = vmatprep.subr.bf16.mxu0 0
    %2940 = vmatpush1.bf16.msra.mxu0 0
    %2941 = vmatprep.subr.bf16.mxu0 0
    %2942 = vmatpush1.bf16.msra.mxu0 0
    %2943 = vmatprep.subr.bf16.mxu0 0
    %2944 = vmatpush1.bf16.msra.mxu0 0
    %2945 = vmatprep.subr.bf16.mxu0 0
    %2946 = vmatpush1.bf16.msra.mxu0 0
    %2947 = vmatprep.subr.bf16.mxu0 0
    %2948 = vmatpush1.bf16.msra.mxu0 0
    %2949 = vmatprep.subr.bf16.mxu0 0
    %2950 = vmatpush1.bf16.msra.mxu0 0
    %2951 = vmatprep.subr.bf16.mxu0 0
    %2952 = vmatpush1.bf16.msra.mxu0 0
    %2953 = vmatprep.subr.bf16.mxu0 0
    %2954 = vmatpush1.bf16.msra.mxu0 0
    %2955 = vmatprep.subr.bf16.mxu0 0
    %2956 = vmatpush1.bf16.msra.mxu0 0
    %2957 = vmatprep.mubr.bf16.mxu0 0
    %2958 = vmatmul.mubr.bf16.gmra.mrb[0].mxu0 %v2920
    %v2959 = vpop.f32.mrb[0].mxu0
    %v2960 = vadd.f32 0.0, %v2959
    %v2961 = vpop.f32.mrb[0].mxu0
    %v2962 = vpop.f32.mrb[0].mxu0
    %v2963 = vpop.f32.mrb[0].mxu0
    %2964 = vdwg.mxu0
    %v2966 = vsel %vm2119, %v2482, 0
    %v2969 = vsel %vm2507, %v528, 0
    %2971 = vmatprep.subr.bf16.mxu0 0
    %2972 = vmatpush1.bf16.msra.mxu0 %v2969
    %2973 = vmatprep.subr.bf16.mxu0 0
    %2974 = vmatpush1.bf16.msra.mxu0 0
    %2975 = vmatprep.subr.bf16.mxu0 0
    %2976 = vmatpush1.bf16.msra.mxu0 0
    %2977 = vmatprep.subr.bf16.mxu0 0
    %2978 = vmatpush1.bf16.msra.mxu0 0
    %2979 = vmatprep.subr.bf16.mxu0 0
    %2980 = vmatpush1.bf16.msra.mxu0 0
    %2981 = vmatprep.subr.bf16.mxu0 0
    %2982 = vmatpush1.bf16.msra.mxu0 0
    %2983 = vmatprep.subr.bf16.mxu0 0
    %2984 = vmatpush1.bf16.msra.mxu0 0
    %2985 = vmatprep.subr.bf16.mxu0 0
    %2986 = vmatpush1.bf16.msra.mxu0 0
    %2987 = vmatprep.subr.bf16.mxu0 0
    %2988 = vmatpush1.bf16.msra.mxu0 0
    %2989 = vmatprep.subr.bf16.mxu0 0
    %2990 = vmatpush1.bf16.msra.mxu0 0
    %2991 = vmatprep.subr.bf16.mxu0 0
    %2992 = vmatpush1.bf16.msra.mxu0 0
    %2993 = vmatprep.subr.bf16.mxu0 0
    %2994 = vmatpush1.bf16.msra.mxu0 0
    %2995 = vmatprep.subr.bf16.mxu0 0
    %2996 = vmatpush1.bf16.msra.mxu0 0
    %2997 = vmatprep.subr.bf16.mxu0 0
    %2998 = vmatpush1.bf16.msra.mxu0 0
    %2999 = vmatprep.subr.bf16.mxu0 0
    %3000 = vmatpush1.bf16.msra.mxu0 0
    %3001 = vmatprep.subr.bf16.mxu0 0
    %3002 = vmatpush1.bf16.msra.mxu0 0
    %3003 = vmatprep.mubr.bf16.mxu0 0
    %3004 = vmatmul.mubr.bf16.gmra.mrb[0].mxu0 %v2966
    %v3005 = vpop.f32.mrb[0].mxu0
    %v3006 = vadd.f32 0.0, %v3005
    %v3007 = vpop.f32.mrb[0].mxu0
    %v3008 = vpop.f32.mrb[0].mxu0
    %v3009 = vpop.f32.mrb[0].mxu0
    %3010 = vdwg.mxu0
    %v3012 = vsel %vm2119, %v2483, 0
    %v3015 = vsel %vm2507, %v529, 0
    %3017 = vmatprep.subr.bf16.mxu0 0
    %3018 = vmatpush1.bf16.msra.mxu0 %v3015
    %3019 = vmatprep.subr.bf16.mxu0 0
    %3020 = vmatpush1.bf16.msra.mxu0 0
    %3021 = vmatprep.subr.bf16.mxu0 0
    %3022 = vmatpush1.bf16.msra.mxu0 0
    %3023 = vmatprep.subr.bf16.mxu0 0
    %3024 = vmatpush1.bf16.msra.mxu0 0
    %3025 = vmatprep.subr.bf16.mxu0 0
    %3026 = vmatpush1.bf16.msra.mxu0 0
    %3027 = vmatprep.subr.bf16.mxu0 0
    %3028 = vmatpush1.bf16.msra.mxu0 0
    %3029 = vmatprep.subr.bf16.mxu0 0
    %3030 = vmatpush1.bf16.msra.mxu0 0
    %3031 = vmatprep.subr.bf16.mxu0 0
    %3032 = vmatpush1.bf16.msra.mxu0 0
    %3033 = vmatprep.subr.bf16.mxu0 0
    %3034 = vmatpush1.bf16.msra.mxu0 0
    %3035 = vmatprep.subr.bf16.mxu0 0
    %3036 = vmatpush1.bf16.msra.mxu0 0
    %3037 = vmatprep.subr.bf16.mxu0 0
    %3038 = vmatpush1.bf16.msra.mxu0 0
    %3039 = vmatprep.subr.bf16.mxu0 0
    %3040 = vmatpush1.bf16.msra.mxu0 0
    %3041 = vmatprep.subr.bf16.mxu0 0
    %3042 = vmatpush1.bf16.msra.mxu0 0
    %3043 = vmatprep.subr.bf16.mxu0 0
    %3044 = vmatpush1.bf16.msra.mxu0 0
    %3045 = vmatprep.subr.bf16.mxu0 0
    %3046 = vmatpush1.bf16.msra.mxu0 0
    %3047 = vmatprep.subr.bf16.mxu0 0
    %3048 = vmatpush1.bf16.msra.mxu0 0
    %3049 = vmatprep.mubr.bf16.mxu0 0
    %3050 = vmatmul.mubr.bf16.gmra.mrb[0].mxu0 %v3012
    %v3051 = vpop.f32.mrb[0].mxu0
    %v3052 = vadd.f32 0.0, %v3051
    %v3053 = vpop.f32.mrb[0].mxu0
    %v3054 = vpop.f32.mrb[0].mxu0
    %v3055 = vpop.f32.mrb[0].mxu0
    %3056 = vdwg.mxu0
    %v3058 = vsel %vm2119, %v2484, 0
    %v3061 = vsel %vm2507, %v530, 0
    %3063 = vmatprep.subr.bf16.mxu0 0
    %3064 = vmatpush1.bf16.msra.mxu0 %v3061
    %3065 = vmatprep.subr.bf16.mxu0 0
    %3066 = vmatpush1.bf16.msra.mxu0 0
    %3067 = vmatprep.subr.bf16.mxu0 0
    %3068 = vmatpush1.bf16.msra.mxu0 0
    %3069 = vmatprep.subr.bf16.mxu0 0
    %3070 = vmatpush1.bf16.msra.mxu0 0
    %3071 = vmatprep.subr.bf16.mxu0 0
    %3072 = vmatpush1.bf16.msra.mxu0 0
    %3073 = vmatprep.subr.bf16.mxu0 0
    %3074 = vmatpush1.bf16.msra.mxu0 0
    %3075 = vmatprep.subr.bf16.mxu0 0
    %3076 = vmatpush1.bf16.msra.mxu0 0
    %3077 = vmatprep.subr.bf16.mxu0 0
    %3078 = vmatpush1.bf16.msra.mxu0 0
    %3079 = vmatprep.subr.bf16.mxu0 0
    %3080 = vmatpush1.bf16.msra.mxu0 0
    %3081 = vmatprep.subr.bf16.mxu0 0
    %3082 = vmatpush1.bf16.msra.mxu0 0
    %3083 = vmatprep.subr.bf16.mxu0 0
    %3084 = vmatpush1.bf16.msra.mxu0 0
    %3085 = vmatprep.subr.bf16.mxu0 0
    %3086 = vmatpush1.bf16.msra.mxu0 0
    %3087 = vmatprep.subr.bf16.mxu0 0
    %3088 = vmatpush1.bf16.msra.mxu0 0
    %3089 = vmatprep.subr.bf16.mxu0 0
    %3090 = vmatpush1.bf16.msra.mxu0 0
    %3091 = vmatprep.subr.bf16.mxu0 0
    %3092 = vmatpush1.bf16.msra.mxu0 0
    %3093 = vmatprep.subr.bf16.mxu0 0
    %3094 = vmatpush1.bf16.msra.mxu0 0
    %3095 = vmatprep.mubr.bf16.mxu0 0
    %3096 = vmatmul.mubr.bf16.gmra.mrb[0].mxu0 %v3058
    %v3097 = vpop.f32.mrb[0].mxu0
    %v3098 = vadd.f32 0.0, %v3097
    %v3099 = vpop.f32.mrb[0].mxu0
    %v3100 = vpop.f32.mrb[0].mxu0
    %v3101 = vpop.f32.mrb[0].mxu0
    %3102 = vdwg.mxu0
    %v3104 = vsel %vm2119, %v2485, 0
    %v3107 = vsel %vm2507, %v531, 0
    %3109 = vmatprep.subr.bf16.mxu0 0
    %3110 = vmatpush1.bf16.msra.mxu0 %v3107
    %3111 = vmatprep.subr.bf16.mxu0 0
    %3112 = vmatpush1.bf16.msra.mxu0 0
    %3113 = vmatprep.subr.bf16.mxu0 0
    %3114 = vmatpush1.bf16.msra.mxu0 0
    %3115 = vmatprep.subr.bf16.mxu0 0
    %3116 = vmatpush1.bf16.msra.mxu0 0
    %3117 = vmatprep.subr.bf16.mxu0 0
    %3118 = vmatpush1.bf16.msra.mxu0 0
    %3119 = vmatprep.subr.bf16.mxu0 0
    %3120 = vmatpush1.bf16.msra.mxu0 0
    %3121 = vmatprep.subr.bf16.mxu0 0
    %3122 = vmatpush1.bf16.msra.mxu0 0
    %3123 = vmatprep.subr.bf16.mxu0 0
    %3124 = vmatpush1.bf16.msra.mxu0 0
    %3125 = vmatprep.subr.bf16.mxu0 0
    %3126 = vmatpush1.bf16.msra.mxu0 0
    %3127 = vmatprep.subr.bf16.mxu0 0
    %3128 = vmatpush1.bf16.msra.mxu0 0
    %3129 = vmatprep.subr.bf16.mxu0 0
    %3130 = vmatpush1.bf16.msra.mxu0 0
    %3131 = vmatprep.subr.bf16.mxu0 0
    %3132 = vmatpush1.bf16.msra.mxu0 0
    %3133 = vmatprep.subr.bf16.mxu0 0
    %3134 = vmatpush1.bf16.msra.mxu0 0
    %3135 = vmatprep.subr.bf16.mxu0 0
    %3136 = vmatpush1.bf16.msra.mxu0 0
    %3137 = vmatprep.subr.bf16.mxu0 0
    %3138 = vmatpush1.bf16.msra.mxu0 0
    %3139 = vmatprep.subr.bf16.mxu0 0
    %3140 = vmatpush1.bf16.msra.mxu0 0
    %3141 = vmatprep.mubr.bf16.mxu0 0
    %3142 = vmatmul.mubr.bf16.gmra.mrb[0].mxu0 %v3104
    %v3143 = vpop.f32.mrb[0].mxu0
    %v3144 = vadd.f32 0.0, %v3143
    %v3145 = vpop.f32.mrb[0].mxu0
    %v3146 = vpop.f32.mrb[0].mxu0
    %v3147 = vpop.f32.mrb[0].mxu0
    %3148 = vdwg.mxu0
    %v3150 = vsel %vm2119, %v2486, 0
    %v3153 = vsel %vm2507, %v532, 0
    %3155 = vmatprep.subr.bf16.mxu0 0
    %3156 = vmatpush1.bf16.msra.mxu0 %v3153
    %3157 = vmatprep.subr.bf16.mxu0 0
    %3158 = vmatpush1.bf16.msra.mxu0 0
    %3159 = vmatprep.subr.bf16.mxu0 0
    %3160 = vmatpush1.bf16.msra.mxu0 0
    %3161 = vmatprep.subr.bf16.mxu0 0
    %3162 = vmatpush1.bf16.msra.mxu0 0
    %3163 = vmatprep.subr.bf16.mxu0 0
    %3164 = vmatpush1.bf16.msra.mxu0 0
    %3165 = vmatprep.subr.bf16.mxu0 0
    %3166 = vmatpush1.bf16.msra.mxu0 0
    %3167 = vmatprep.subr.bf16.mxu0 0
    %3168 = vmatpush1.bf16.msra.mxu0 0
    %3169 = vmatprep.subr.bf16.mxu0 0
    %3170 = vmatpush1.bf16.msra.mxu0 0
    %3171 = vmatprep.subr.bf16.mxu0 0
    %3172 = vmatpush1.bf16.msra.mxu0 0
    %3173 = vmatprep.subr.bf16.mxu0 0
    %3174 = vmatpush1.bf16.msra.mxu0 0
    %3175 = vmatprep.subr.bf16.mxu0 0
    %3176 = vmatpush1.bf16.msra.mxu0 0
    %3177 = vmatprep.subr.bf16.mxu0 0
    %3178 = vmatpush1.bf16.msra.mxu0 0
    %3179 = vmatprep.subr.bf16.mxu0 0
    %3180 = vmatpush1.bf16.msra.mxu0 0
    %3181 = vmatprep.subr.bf16.mxu0 0
    %3182 = vmatpush1.bf16.msra.mxu0 0
    %3183 = vmatprep.subr.bf16.mxu0 0
    %3184 = vmatpush1.bf16.msra.mxu0 0
    %3185 = vmatprep.subr.bf16.mxu0 0
    %3186 = vmatpush1.bf16.msra.mxu0 0
    %3187 = vmatprep.mubr.bf16.mxu0 0
    %3188 = vmatmul.mubr.bf16.gmra.mrb[0].mxu0 %v3150
    %v3189 = vpop.f32.mrb[0].mxu0
    %v3190 = vadd.f32 0.0, %v3189
    %v3191 = vpop.f32.mrb[0].mxu0
    %v3192 = vpop.f32.mrb[0].mxu0
    %v3193 = vpop.f32.mrb[0].mxu0
    %3194 = vdwg.mxu0
    %v3196 = vsel %vm2119, %v2487, 0
    %v3199 = vsel %vm2507, %v533, 0
    %3201 = vmatprep.subr.bf16.mxu0 0
    %3202 = vmatpush1.bf16.msra.mxu0 %v3199
    %3203 = vmatprep.subr.bf16.mxu0 0
    %3204 = vmatpush1.bf16.msra.mxu0 0
    %3205 = vmatprep.subr.bf16.mxu0 0
    %3206 = vmatpush1.bf16.msra.mxu0 0
    %3207 = vmatprep.subr.bf16.mxu0 0
    %3208 = vmatpush1.bf16.msra.mxu0 0
    %3209 = vmatprep.subr.bf16.mxu0 0
    %3210 = vmatpush1.bf16.msra.mxu0 0
    %3211 = vmatprep.subr.bf16.mxu0 0
    %3212 = vmatpush1.bf16.msra.mxu0 0
    %3213 = vmatprep.subr.bf16.mxu0 0
    %3214 = vmatpush1.bf16.msra.mxu0 0
    %3215 = vmatprep.subr.bf16.mxu0 0
    %3216 = vmatpush1.bf16.msra.mxu0 0
    %3217 = vmatprep.subr.bf16.mxu0 0
    %3218 = vmatpush1.bf16.msra.mxu0 0
    %3219 = vmatprep.subr.bf16.mxu0 0
    %3220 = vmatpush1.bf16.msra.mxu0 0
    %3221 = vmatprep.subr.bf16.mxu0 0
    %3222 = vmatpush1.bf16.msra.mxu0 0
    %3223 = vmatprep.subr.bf16.mxu0 0
    %3224 = vmatpush1.bf16.msra.mxu0 0
    %3225 = vmatprep.subr.bf16.mxu0 0
    %3226 = vmatpush1.bf16.msra.mxu0 0
    %3227 = vmatprep.subr.bf16.mxu0 0
    %3228 = vmatpush1.bf16.msra.mxu0 0
    %3229 = vmatprep.subr.bf16.mxu0 0
    %3230 = vmatpush1.bf16.msra.mxu0 0
    %3231 = vmatprep.subr.bf16.mxu0 0
    %3232 = vmatpush1.bf16.msra.mxu0 0
    %3233 = vmatprep.mubr.bf16.mxu0 0
    %3234 = vmatmul.mubr.bf16.gmra.mrb[0].mxu0 %v3196
    %v3235 = vpop.f32.mrb[0].mxu0
    %v3236 = vadd.f32 0.0, %v3235
    %v3237 = vpop.f32.mrb[0].mxu0
    %v3238 = vpop.f32.mrb[0].mxu0
    %v3239 = vpop.f32.mrb[0].mxu0
    %3240 = vdwg.mxu0
    %v3242 = vsel %vm2119, %v2488, 0
    %v3245 = vsel %vm2507, %v534, 0
    %3247 = vmatprep.subr.bf16.mxu0 0
    %3248 = vmatpush1.bf16.msra.mxu0 %v3245
    %3249 = vmatprep.subr.bf16.mxu0 0
    %3250 = vmatpush1.bf16.msra.mxu0 0
    %3251 = vmatprep.subr.bf16.mxu0 0
    %3252 = vmatpush1.bf16.msra.mxu0 0
    %3253 = vmatprep.subr.bf16.mxu0 0
    %3254 = vmatpush1.bf16.msra.mxu0 0
    %3255 = vmatprep.subr.bf16.mxu0 0
    %3256 = vmatpush1.bf16.msra.mxu0 0
    %3257 = vmatprep.subr.bf16.mxu0 0
    %3258 = vmatpush1.bf16.msra.mxu0 0
    %3259 = vmatprep.subr.bf16.mxu0 0
    %3260 = vmatpush1.bf16.msra.mxu0 0
    %3261 = vmatprep.subr.bf16.mxu0 0
    %3262 = vmatpush1.bf16.msra.mxu0 0
    %3263 = vmatprep.subr.bf16.mxu0 0
    %3264 = vmatpush1.bf16.msra.mxu0 0
    %3265 = vmatprep.subr.bf16.mxu0 0
    %3266 = vmatpush1.bf16.msra.mxu0 0
    %3267 = vmatprep.subr.bf16.mxu0 0
    %3268 = vmatpush1.bf16.msra.mxu0 0
    %3269 = vmatprep.subr.bf16.mxu0 0
    %3270 = vmatpush1.bf16.msra.mxu0 0
    %3271 = vmatprep.subr.bf16.mxu0 0
    %3272 = vmatpush1.bf16.msra.mxu0 0
    %3273 = vmatprep.subr.bf16.mxu0 0
    %3274 = vmatpush1.bf16.msra.mxu0 0
    %3275 = vmatprep.subr.bf16.mxu0 0
    %3276 = vmatpush1.bf16.msra.mxu0 0
    %3277 = vmatprep.subr.bf16.mxu0 0
    %3278 = vmatpush1.bf16.msra.mxu0 0
    %3279 = vmatprep.mubr.bf16.mxu0 0
    %3280 = vmatmul.mubr.bf16.gmra.mrb[0].mxu0 %v3242
    %v3281 = vpop.f32.mrb[0].mxu0
    %v3282 = vadd.f32 0.0, %v3281
    %v3283 = vpop.f32.mrb[0].mxu0
    %v3284 = vpop.f32.mrb[0].mxu0
    %v3285 = vpop.f32.mrb[0].mxu0
    %3286 = vdwg.mxu0
    %v3288 = vsel %vm2119, %v2489, 0
    %v3291 = vsel %vm2507, %v535, 0
    %3293 = vmatprep.subr.bf16.mxu0 0
    %3294 = vmatpush1.bf16.msra.mxu0 %v3291
    %3295 = vmatprep.subr.bf16.mxu0 0
    %3296 = vmatpush1.bf16.msra.mxu0 0
    %3297 = vmatprep.subr.bf16.mxu0 0
    %3298 = vmatpush1.bf16.msra.mxu0 0
    %3299 = vmatprep.subr.bf16.mxu0 0
    %3300 = vmatpush1.bf16.msra.mxu0 0
    %3301 = vmatprep.subr.bf16.mxu0 0
    %3302 = vmatpush1.bf16.msra.mxu0 0
    %3303 = vmatprep.subr.bf16.mxu0 0
    %3304 = vmatpush1.bf16.msra.mxu0 0
    %3305 = vmatprep.subr.bf16.mxu0 0
    %3306 = vmatpush1.bf16.msra.mxu0 0
    %3307 = vmatprep.subr.bf16.mxu0 0
    %3308 = vmatpush1.bf16.msra.mxu0 0
    %3309 = vmatprep.subr.bf16.mxu0 0
    %3310 = vmatpush1.bf16.msra.mxu0 0
    %3311 = vmatprep.subr.bf16.mxu0 0
    %3312 = vmatpush1.bf16.msra.mxu0 0
    %3313 = vmatprep.subr.bf16.mxu0 0
    %3314 = vmatpush1.bf16.msra.mxu0 0
    %3315 = vmatprep.subr.bf16.mxu0 0
    %3316 = vmatpush1.bf16.msra.mxu0 0
    %3317 = vmatprep.subr.bf16.mxu0 0
    %3318 = vmatpush1.bf16.msra.mxu0 0
    %3319 = vmatprep.subr.bf16.mxu0 0
    %3320 = vmatpush1.bf16.msra.mxu0 0
    %3321 = vmatprep.subr.bf16.mxu0 0
    %3322 = vmatpush1.bf16.msra.mxu0 0
    %3323 = vmatprep.subr.bf16.mxu0 0
    %3324 = vmatpush1.bf16.msra.mxu0 0
    %3325 = vmatprep.mubr.bf16.mxu0 0
    %3326 = vmatmul.mubr.bf16.gmra.mrb[0].mxu0 %v3288
    %v3327 = vpop.f32.mrb[0].mxu0
    %v3328 = vadd.f32 0.0, %v3327
    %v3329 = vpop.f32.mrb[0].mxu0
    %v3330 = vpop.f32.mrb[0].mxu0
    %v3331 = vpop.f32.mrb[0].mxu0
    %3332 = vdwg.mxu0
    %v3334 = vsel %vm2119, %v2490, 0
    %v3337 = vsel %vm2507, %v536, 0
    %3339 = vmatprep.subr.bf16.mxu0 0
    %3340 = vmatpush1.bf16.msra.mxu0 %v3337
    %3341 = vmatprep.subr.bf16.mxu0 0
    %3342 = vmatpush1.bf16.msra.mxu0 0
    %3343 = vmatprep.subr.bf16.mxu0 0
    %3344 = vmatpush1.bf16.msra.mxu0 0
    %3345 = vmatprep.subr.bf16.mxu0 0
    %3346 = vmatpush1.bf16.msra.mxu0 0
    %3347 = vmatprep.subr.bf16.mxu0 0
    %3348 = vmatpush1.bf16.msra.mxu0 0
    %3349 = vmatprep.subr.bf16.mxu0 0
    %3350 = vmatpush1.bf16.msra.mxu0 0
    %3351 = vmatprep.subr.bf16.mxu0 0
    %3352 = vmatpush1.bf16.msra.mxu0 0
    %3353 = vmatprep.subr.bf16.mxu0 0
    %3354 = vmatpush1.bf16.msra.mxu0 0
    %3355 = vmatprep.subr.bf16.mxu0 0
    %3356 = vmatpush1.bf16.msra.mxu0 0
    %3357 = vmatprep.subr.bf16.mxu0 0
    %3358 = vmatpush1.bf16.msra.mxu0 0
    %3359 = vmatprep.subr.bf16.mxu0 0
    %3360 = vmatpush1.bf16.msra.mxu0 0
    %3361 = vmatprep.subr.bf16.mxu0 0
    %3362 = vmatpush1.bf16.msra.mxu0 0
    %3363 = vmatprep.subr.bf16.mxu0 0
    %3364 = vmatpush1.bf16.msra.mxu0 0
    %3365 = vmatprep.subr.bf16.mxu0 0
    %3366 = vmatpush1.bf16.msra.mxu0 0
    %3367 = vmatprep.subr.bf16.mxu0 0
    %3368 = vmatpush1.bf16.msra.mxu0 0
    %3369 = vmatprep.subr.bf16.mxu0 0
    %3370 = vmatpush1.bf16.msra.mxu0 0
    %3371 = vmatprep.mubr.bf16.mxu0 0
    %3372 = vmatmul.mubr.bf16.gmra.mrb[0].mxu0 %v3334
    %v3373 = vpop.f32.mrb[0].mxu0
    %v3374 = vadd.f32 0.0, %v3373
    %v3375 = vpop.f32.mrb[0].mxu0
    %v3376 = vpop.f32.mrb[0].mxu0
    %v3377 = vpop.f32.mrb[0].mxu0
    %3378 = vdwg.mxu0
    %v3380 = vsel %vm2119, %v2491, 0
    %v3383 = vsel %vm2507, %v537, 0
    %3385 = vmatprep.subr.bf16.mxu0 0
    %3386 = vmatpush1.bf16.msra.mxu0 %v3383
    %3387 = vmatprep.subr.bf16.mxu0 0
    %3388 = vmatpush1.bf16.msra.mxu0 0
    %3389 = vmatprep.subr.bf16.mxu0 0
    %3390 = vmatpush1.bf16.msra.mxu0 0
    %3391 = vmatprep.subr.bf16.mxu0 0
    %3392 = vmatpush1.bf16.msra.mxu0 0
    %3393 = vmatprep.subr.bf16.mxu0 0
    %3394 = vmatpush1.bf16.msra.mxu0 0
    %3395 = vmatprep.subr.bf16.mxu0 0
    %3396 = vmatpush1.bf16.msra.mxu0 0
    %3397 = vmatprep.subr.bf16.mxu0 0
    %3398 = vmatpush1.bf16.msra.mxu0 0
    %3399 = vmatprep.subr.bf16.mxu0 0
    %3400 = vmatpush1.bf16.msra.mxu0 0
    %3401 = vmatprep.subr.bf16.mxu0 0
    %3402 = vmatpush1.bf16.msra.mxu0 0
    %3403 = vmatprep.subr.bf16.mxu0 0
    %3404 = vmatpush1.bf16.msra.mxu0 0
    %3405 = vmatprep.subr.bf16.mxu0 0
    %3406 = vmatpush1.bf16.msra.mxu0 0
    %3407 = vmatprep.subr.bf16.mxu0 0
    %3408 = vmatpush1.bf16.msra.mxu0 0
    %3409 = vmatprep.subr.bf16.mxu0 0
    %3410 = vmatpush1.bf16.msra.mxu0 0
    %3411 = vmatprep.subr.bf16.mxu0 0
    %3412 = vmatpush1.bf16.msra.mxu0 0
    %3413 = vmatprep.subr.bf16.mxu0 0
    %3414 = vmatpush1.bf16.msra.mxu0 0
    %3415 = vmatprep.subr.bf16.mxu0 0
    %3416 = vmatpush1.bf16.msra.mxu0 0
    %3417 = vmatprep.mubr.bf16.mxu0 0
    %3418 = vmatmul.mubr.bf16.gmra.mrb[0].mxu0 %v3380
    %v3419 = vpop.f32.mrb[0].mxu0
    %v3420 = vadd.f32 0.0, %v3419
    %v3421 = vpop.f32.mrb[0].mxu0
    %v3422 = vpop.f32.mrb[0].mxu0
    %v3423 = vpop.f32.mrb[0].mxu0
    %3424 = vdwg.mxu0
    %v3426 = vsel %vm2119, %v2492, 0
    %v3429 = vsel %vm2507, %v538, 0
    %3431 = vmatprep.subr.bf16.mxu0 0
    %3432 = vmatpush1.bf16.msra.mxu0 %v3429
    %3433 = vmatprep.subr.bf16.mxu0 0
    %3434 = vmatpush1.bf16.msra.mxu0 0
    %3435 = vmatprep.subr.bf16.mxu0 0
    %3436 = vmatpush1.bf16.msra.mxu0 0
    %3437 = vmatprep.subr.bf16.mxu0 0
    %3438 = vmatpush1.bf16.msra.mxu0 0
    %3439 = vmatprep.subr.bf16.mxu0 0
    %3440 = vmatpush1.bf16.msra.mxu0 0
    %3441 = vmatprep.subr.bf16.mxu0 0
    %3442 = vmatpush1.bf16.msra.mxu0 0
    %3443 = vmatprep.subr.bf16.mxu0 0
    %3444 = vmatpush1.bf16.msra.mxu0 0
    %3445 = vmatprep.subr.bf16.mxu0 0
    %3446 = vmatpush1.bf16.msra.mxu0 0
    %3447 = vmatprep.subr.bf16.mxu0 0
    %3448 = vmatpush1.bf16.msra.mxu0 0
    %3449 = vmatprep.subr.bf16.mxu0 0
    %3450 = vmatpush1.bf16.msra.mxu0 0
    %3451 = vmatprep.subr.bf16.mxu0 0
    %3452 = vmatpush1.bf16.msra.mxu0 0
    %3453 = vmatprep.subr.bf16.mxu0 0
    %3454 = vmatpush1.bf16.msra.mxu0 0
    %3455 = vmatprep.subr.bf16.mxu0 0
    %3456 = vmatpush1.bf16.msra.mxu0 0
    %3457 = vmatprep.subr.bf16.mxu0 0
    %3458 = vmatpush1.bf16.msra.mxu0 0
    %3459 = vmatprep.subr.bf16.mxu0 0
    %3460 = vmatpush1.bf16.msra.mxu0 0
    %3461 = vmatprep.subr.bf16.mxu0 0
    %3462 = vmatpush1.bf16.msra.mxu0 0
    %3463 = vmatprep.mubr.bf16.mxu0 0
    %3464 = vmatmul.mubr.bf16.gmra.mrb[0].mxu0 %v3426
    %v3465 = vpop.f32.mrb[0].mxu0
    %v3466 = vadd.f32 0.0, %v3465
    %v3467 = vpop.f32.mrb[0].mxu0
    %v3468 = vpop.f32.mrb[0].mxu0
    %v3469 = vpop.f32.mrb[0].mxu0
    %3470 = vdwg.mxu0
    %v3472 = vsel %vm2119, %v2493, 0
    %v3475 = vsel %vm2507, %v539, 0
    %3477 = vmatprep.subr.bf16.mxu0 0
    %3478 = vmatpush1.bf16.msra.mxu0 %v3475
    %3479 = vmatprep.subr.bf16.mxu0 0
    %3480 = vmatpush1.bf16.msra.mxu0 0
    %3481 = vmatprep.subr.bf16.mxu0 0
    %3482 = vmatpush1.bf16.msra.mxu0 0
    %3483 = vmatprep.subr.bf16.mxu0 0
    %3484 = vmatpush1.bf16.msra.mxu0 0
    %3485 = vmatprep.subr.bf16.mxu0 0
    %3486 = vmatpush1.bf16.msra.mxu0 0
    %3487 = vmatprep.subr.bf16.mxu0 0
    %3488 = vmatpush1.bf16.msra.mxu0 0
    %3489 = vmatprep.subr.bf16.mxu0 0
    %3490 = vmatpush1.bf16.msra.mxu0 0
    %3491 = vmatprep.subr.bf16.mxu0 0
    %3492 = vmatpush1.bf16.msra.mxu0 0
    %3493 = vmatprep.subr.bf16.mxu0 0
    %3494 = vmatpush1.bf16.msra.mxu0 0
    %3495 = vmatprep.subr.bf16.mxu0 0
    %3496 = vmatpush1.bf16.msra.mxu0 0
    %3497 = vmatprep.subr.bf16.mxu0 0
    %3498 = vmatpush1.bf16.msra.mxu0 0
    %3499 = vmatprep.subr.bf16.mxu0 0
    %3500 = vmatpush1.bf16.msra.mxu0 0
    %3501 = vmatprep.subr.bf16.mxu0 0
    %3502 = vmatpush1.bf16.msra.mxu0 0
    %3503 = vmatprep.subr.bf16.mxu0 0
    %3504 = vmatpush1.bf16.msra.mxu0 0
    %3505 = vmatprep.subr.bf16.mxu0 0
    %3506 = vmatpush1.bf16.msra.mxu0 0
    %3507 = vmatprep.subr.bf16.mxu0 0
    %3508 = vmatpush1.bf16.msra.mxu0 0
    %3509 = vmatprep.mubr.bf16.mxu0 0
    %3510 = vmatmul.mubr.bf16.gmra.mrb[0].mxu0 %v3472
    %v3511 = vpop.f32.mrb[0].mxu0
    %v3512 = vadd.f32 0.0, %v3511
    %v3513 = vpop.f32.mrb[0].mxu0
    %v3514 = vpop.f32.mrb[0].mxu0
    %v3515 = vpop.f32.mrb[0].mxu0
    %3516 = vdwg.mxu0
    %v3518 = vsel %vm2119, %v2494, 0
    %v3521 = vsel %vm2507, %v540, 0
    %3523 = vmatprep.subr.bf16.mxu0 0
    %3524 = vmatpush1.bf16.msra.mxu0 %v3521
    %3525 = vmatprep.subr.bf16.mxu0 0
    %3526 = vmatpush1.bf16.msra.mxu0 0
    %3527 = vmatprep.subr.bf16.mxu0 0
    %3528 = vmatpush1.bf16.msra.mxu0 0
    %3529 = vmatprep.subr.bf16.mxu0 0
    %3530 = vmatpush1.bf16.msra.mxu0 0
    %3531 = vmatprep.subr.bf16.mxu0 0
    %3532 = vmatpush1.bf16.msra.mxu0 0
    %3533 = vmatprep.subr.bf16.mxu0 0
    %3534 = vmatpush1.bf16.msra.mxu0 0
    %3535 = vmatprep.subr.bf16.mxu0 0
    %3536 = vmatpush1.bf16.msra.mxu0 0
    %3537 = vmatprep.subr.bf16.mxu0 0
    %3538 = vmatpush1.bf16.msra.mxu0 0
    %3539 = vmatprep.subr.bf16.mxu0 0
    %3540 = vmatpush1.bf16.msra.mxu0 0
    %3541 = vmatprep.subr.bf16.mxu0 0
    %3542 = vmatpush1.bf16.msra.mxu0 0
    %3543 = vmatprep.subr.bf16.mxu0 0
    %3544 = vmatpush1.bf16.msra.mxu0 0
    %3545 = vmatprep.subr.bf16.mxu0 0
    %3546 = vmatpush1.bf16.msra.mxu0 0
    %3547 = vmatprep.subr.bf16.mxu0 0
    %3548 = vmatpush1.bf16.msra.mxu0 0
    %3549 = vmatprep.subr.bf16.mxu0 0
    %3550 = vmatpush1.bf16.msra.mxu0 0
    %3551 = vmatprep.subr.bf16.mxu0 0
    %3552 = vmatpush1.bf16.msra.mxu0 0
    %3553 = vmatprep.subr.bf16.mxu0 0
    %3554 = vmatpush1.bf16.msra.mxu0 0
    %3555 = vmatprep.mubr.bf16.mxu0 0
    %3556 = vmatmul.mubr.bf16.gmra.mrb[0].mxu0 %v3518
    %v3557 = vpop.f32.mrb[0].mxu0
    %v3558 = vadd.f32 0.0, %v3557
    %v3559 = vpop.f32.mrb[0].mxu0
    %v3560 = vpop.f32.mrb[0].mxu0
    %v3561 = vpop.f32.mrb[0].mxu0
    %3562 = vdwg.mxu0
    %v3564 = vsel %vm2119, %v2495, 0
    %v3567 = vsel %vm2507, %v541, 0
    %3569 = vmatprep.subr.bf16.mxu0 0
    %3570 = vmatpush1.bf16.msra.mxu0 %v3567
    %3571 = vmatprep.subr.bf16.mxu0 0
    %3572 = vmatpush1.bf16.msra.mxu0 0
    %3573 = vmatprep.subr.bf16.mxu0 0
    %3574 = vmatpush1.bf16.msra.mxu0 0
    %3575 = vmatprep.subr.bf16.mxu0 0
    %3576 = vmatpush1.bf16.msra.mxu0 0
    %3577 = vmatprep.subr.bf16.mxu0 0
    %3578 = vmatpush1.bf16.msra.mxu0 0
    %3579 = vmatprep.subr.bf16.mxu0 0
    %3580 = vmatpush1.bf16.msra.mxu0 0
    %3581 = vmatprep.subr.bf16.mxu0 0
    %3582 = vmatpush1.bf16.msra.mxu0 0
    %3583 = vmatprep.subr.bf16.mxu0 0
    %3584 = vmatpush1.bf16.msra.mxu0 0
    %3585 = vmatprep.subr.bf16.mxu0 0
    %3586 = vmatpush1.bf16.msra.mxu0 0
    %3587 = vmatprep.subr.bf16.mxu0 0
    %3588 = vmatpush1.bf16.msra.mxu0 0
    %3589 = vmatprep.subr.bf16.mxu0 0
    %3590 = vmatpush1.bf16.msra.mxu0 0
    %3591 = vmatprep.subr.bf16.mxu0 0
    %3592 = vmatpush1.bf16.msra.mxu0 0
    %3593 = vmatprep.subr.bf16.mxu0 0
    %3594 = vmatpush1.bf16.msra.mxu0 0
    %3595 = vmatprep.subr.bf16.mxu0 0
    %3596 = vmatpush1.bf16.msra.mxu0 0
    %3597 = vmatprep.subr.bf16.mxu0 0
    %3598 = vmatpush1.bf16.msra.mxu0 0
    %3599 = vmatprep.subr.bf16.mxu0 0
    %3600 = vmatpush1.bf16.msra.mxu0 0
    %3601 = vmatprep.mubr.bf16.mxu0 0
    %3602 = vmatmul.mubr.bf16.gmra.mrb[0].mxu0 %v3564
    %v3603 = vpop.f32.mrb[0].mxu0
    %v3604 = vadd.f32 0.0, %v3603
    %v3605 = vpop.f32.mrb[0].mxu0
    %v3606 = vpop.f32.mrb[0].mxu0
    %v3607 = vpop.f32.mrb[0].mxu0
    %3608 = vdwg.mxu0
    %v3610 = vsel %vm2119, %v2496, 0
    %v3613 = vsel %vm2507, %v542, 0
    %3615 = vmatprep.subr.bf16.mxu0 0
    %3616 = vmatpush1.bf16.msra.mxu0 %v3613
    %3617 = vmatprep.subr.bf16.mxu0 0
    %3618 = vmatpush1.bf16.msra.mxu0 0
    %3619 = vmatprep.subr.bf16.mxu0 0
    %3620 = vmatpush1.bf16.msra.mxu0 0
    %3621 = vmatprep.subr.bf16.mxu0 0
    %3622 = vmatpush1.bf16.msra.mxu0 0
    %3623 = vmatprep.subr.bf16.mxu0 0
    %3624 = vmatpush1.bf16.msra.mxu0 0
    %3625 = vmatprep.subr.bf16.mxu0 0
    %3626 = vmatpush1.bf16.msra.mxu0 0
    %3627 = vmatprep.subr.bf16.mxu0 0
    %3628 = vmatpush1.bf16.msra.mxu0 0
    %3629 = vmatprep.subr.bf16.mxu0 0
    %3630 = vmatpush1.bf16.msra.mxu0 0
    %3631 = vmatprep.subr.bf16.mxu0 0
    %3632 = vmatpush1.bf16.msra.mxu0 0
    %3633 = vmatprep.subr.bf16.mxu0 0
    %3634 = vmatpush1.bf16.msra.mxu0 0
    %3635 = vmatprep.subr.bf16.mxu0 0
    %3636 = vmatpush1.bf16.msra.mxu0 0
    %3637 = vmatprep.subr.bf16.mxu0 0
    %3638 = vmatpush1.bf16.msra.mxu0 0
    %3639 = vmatprep.subr.bf16.mxu0 0
    %3640 = vmatpush1.bf16.msra.mxu0 0
    %3641 = vmatprep.subr.bf16.mxu0 0
    %3642 = vmatpush1.bf16.msra.mxu0 0
    %3643 = vmatprep.subr.bf16.mxu0 0
    %3644 = vmatpush1.bf16.msra.mxu0 0
    %3645 = vmatprep.subr.bf16.mxu0 0
    %3646 = vmatpush1.bf16.msra.mxu0 0
    %3647 = vmatprep.mubr.bf16.mxu0 0
    %3648 = vmatmul.mubr.bf16.gmra.mrb[0].mxu0 %v3610
    %v3649 = vpop.f32.mrb[0].mxu0
    %v3650 = vadd.f32 0.0, %v3649
    %v3651 = vpop.f32.mrb[0].mxu0
    %v3652 = vpop.f32.mrb[0].mxu0
    %v3653 = vpop.f32.mrb[0].mxu0
    %3654 = vdwg.mxu0
    %v3656 = vsel %vm2119, %v2497, 0
    %v3659 = vsel %vm2507, %v543, 0
    %3661 = vmatprep.subr.bf16.mxu0 0
    %3662 = vmatpush1.bf16.msra.mxu0 %v3659
    %3663 = vmatprep.subr.bf16.mxu0 0
    %3664 = vmatpush1.bf16.msra.mxu0 0
    %3665 = vmatprep.subr.bf16.mxu0 0
    %3666 = vmatpush1.bf16.msra.mxu0 0
    %3667 = vmatprep.subr.bf16.mxu0 0
    %3668 = vmatpush1.bf16.msra.mxu0 0
    %3669 = vmatprep.subr.bf16.mxu0 0
    %3670 = vmatpush1.bf16.msra.mxu0 0
    %3671 = vmatprep.subr.bf16.mxu0 0
    %3672 = vmatpush1.bf16.msra.mxu0 0
    %3673 = vmatprep.subr.bf16.mxu0 0
    %3674 = vmatpush1.bf16.msra.mxu0 0
    %3675 = vmatprep.subr.bf16.mxu0 0
    %3676 = vmatpush1.bf16.msra.mxu0 0
    %3677 = vmatprep.subr.bf16.mxu0 0
    %3678 = vmatpush1.bf16.msra.mxu0 0
    %3679 = vmatprep.subr.bf16.mxu0 0
    %3680 = vmatpush1.bf16.msra.mxu0 0
    %3681 = vmatprep.subr.bf16.mxu0 0
    %3682 = vmatpush1.bf16.msra.mxu0 0
    %3683 = vmatprep.subr.bf16.mxu0 0
    %3684 = vmatpush1.bf16.msra.mxu0 0
    %3685 = vmatprep.subr.bf16.mxu0 0
    %3686 = vmatpush1.bf16.msra.mxu0 0
    %3687 = vmatprep.subr.bf16.mxu0 0
    %3688 = vmatpush1.bf16.msra.mxu0 0
    %3689 = vmatprep.subr.bf16.mxu0 0
    %3690 = vmatpush1.bf16.msra.mxu0 0
    %3691 = vmatprep.subr.bf16.mxu0 0
    %3692 = vmatpush1.bf16.msra.mxu0 0
    %3693 = vmatprep.mubr.bf16.mxu0 0
    %3694 = vmatmul.mubr.bf16.gmra.mrb[0].mxu0 %v3656
    %v3695 = vpop.f32.mrb[0].mxu0
    %v3696 = vadd.f32 0.0, %v3695
    %v3697 = vpop.f32.mrb[0].mxu0
    %v3698 = vpop.f32.mrb[0].mxu0
    %v3699 = vpop.f32.mrb[0].mxu0
    %3700 = vdwg.mxu0
    %v3702 = vsel %vm2119, %v2498, 0
    %v3705 = vsel %vm2507, %v544, 0
    %3707 = vmatprep.subr.bf16.mxu0 0
    %3708 = vmatpush1.bf16.msra.mxu0 %v3705
    %3709 = vmatprep.subr.bf16.mxu0 0
    %3710 = vmatpush1.bf16.msra.mxu0 0
    %3711 = vmatprep.subr.bf16.mxu0 0
    %3712 = vmatpush1.bf16.msra.mxu0 0
    %3713 = vmatprep.subr.bf16.mxu0 0
    %3714 = vmatpush1.bf16.msra.mxu0 0
    %3715 = vmatprep.subr.bf16.mxu0 0
    %3716 = vmatpush1.bf16.msra.mxu0 0
    %3717 = vmatprep.subr.bf16.mxu0 0
    %3718 = vmatpush1.bf16.msra.mxu0 0
    %3719 = vmatprep.subr.bf16.mxu0 0
    %3720 = vmatpush1.bf16.msra.mxu0 0
    %3721 = vmatprep.subr.bf16.mxu0 0
    %3722 = vmatpush1.bf16.msra.mxu0 0
    %3723 = vmatprep.subr.bf16.mxu0 0
    %3724 = vmatpush1.bf16.msra.mxu0 0
    %3725 = vmatprep.subr.bf16.mxu0 0
    %3726 = vmatpush1.bf16.msra.mxu0 0
    %3727 = vmatprep.subr.bf16.mxu0 0
    %3728 = vmatpush1.bf16.msra.mxu0 0
    %3729 = vmatprep.subr.bf16.mxu0 0
    %3730 = vmatpush1.bf16.msra.mxu0 0
    %3731 = vmatprep.subr.bf16.mxu0 0
    %3732 = vmatpush1.bf16.msra.mxu0 0
    %3733 = vmatprep.subr.bf16.mxu0 0
    %3734 = vmatpush1.bf16.msra.mxu0 0
    %3735 = vmatprep.subr.bf16.mxu0 0
    %3736 = vmatpush1.bf16.msra.mxu0 0
    %3737 = vmatprep.subr.bf16.mxu0 0
    %3738 = vmatpush1.bf16.msra.mxu0 0
    %3739 = vmatprep.mubr.bf16.mxu0 0
    %3740 = vmatmul.mubr.bf16.gmra.mrb[0].mxu0 %v3702
    %v3741 = vpop.f32.mrb[0].mxu0
    %v3742 = vadd.f32 0.0, %v3741
    %v3743 = vpop.f32.mrb[0].mxu0
    %v3744 = vpop.f32.mrb[0].mxu0
    %v3745 = vpop.f32.mrb[0].mxu0
    %3746 = vdwg.mxu0
    %v3748 = vsel %vm2119, %v2499, 0
    %v3751 = vsel %vm2507, %v545, 0
    %3753 = vmatprep.subr.bf16.mxu0 0
    %3754 = vmatpush1.bf16.msra.mxu0 %v3751
    %3755 = vmatprep.subr.bf16.mxu0 0
    %3756 = vmatpush1.bf16.msra.mxu0 0
    %3757 = vmatprep.subr.bf16.mxu0 0
    %3758 = vmatpush1.bf16.msra.mxu0 0
    %3759 = vmatprep.subr.bf16.mxu0 0
    %3760 = vmatpush1.bf16.msra.mxu0 0
    %3761 = vmatprep.subr.bf16.mxu0 0
    %3762 = vmatpush1.bf16.msra.mxu0 0
    %3763 = vmatprep.subr.bf16.mxu0 0
    %3764 = vmatpush1.bf16.msra.mxu0 0
    %3765 = vmatprep.subr.bf16.mxu0 0
    %3766 = vmatpush1.bf16.msra.mxu0 0
    %3767 = vmatprep.subr.bf16.mxu0 0
    %3768 = vmatpush1.bf16.msra.mxu0 0
    %3769 = vmatprep.subr.bf16.mxu0 0
    %3770 = vmatpush1.bf16.msra.mxu0 0
    %3771 = vmatprep.subr.bf16.mxu0 0
    %3772 = vmatpush1.bf16.msra.mxu0 0
    %3773 = vmatprep.subr.bf16.mxu0 0
    %3774 = vmatpush1.bf16.msra.mxu0 0
    %3775 = vmatprep.subr.bf16.mxu0 0
    %3776 = vmatpush1.bf16.msra.mxu0 0
    %3777 = vmatprep.subr.bf16.mxu0 0
    %3778 = vmatpush1.bf16.msra.mxu0 0
    %3779 = vmatprep.subr.bf16.mxu0 0
    %3780 = vmatpush1.bf16.msra.mxu0 0
    %3781 = vmatprep.subr.bf16.mxu0 0
    %3782 = vmatpush1.bf16.msra.mxu0 0
    %3783 = vmatprep.subr.bf16.mxu0 0
    %3784 = vmatpush1.bf16.msra.mxu0 0
    %3785 = vmatprep.mubr.bf16.mxu0 0
    %3786 = vmatmul.mubr.bf16.gmra.mrb[0].mxu0 %v3748
    %v3787 = vpop.f32.mrb[0].mxu0
    %v3788 = vadd.f32 0.0, %v3787
    %v3789 = vpop.f32.mrb[0].mxu0
    %v3790 = vpop.f32.mrb[0].mxu0
    %v3791 = vpop.f32.mrb[0].mxu0
    %3792 = vdwg.mxu0
    %v3794 = vsel %vm2119, %v2500, 0
    %v3797 = vsel %vm2507, %v546, 0
    %3799 = vmatprep.subr.bf16.mxu0 0
    %3800 = vmatpush1.bf16.msra.mxu0 %v3797
    %3801 = vmatprep.subr.bf16.mxu0 0
    %3802 = vmatpush1.bf16.msra.mxu0 0
    %3803 = vmatprep.subr.bf16.mxu0 0
    %3804 = vmatpush1.bf16.msra.mxu0 0
    %3805 = vmatprep.subr.bf16.mxu0 0
    %3806 = vmatpush1.bf16.msra.mxu0 0
    %3807 = vmatprep.subr.bf16.mxu0 0
    %3808 = vmatpush1.bf16.msra.mxu0 0
    %3809 = vmatprep.subr.bf16.mxu0 0
    %3810 = vmatpush1.bf16.msra.mxu0 0
    %3811 = vmatprep.subr.bf16.mxu0 0
    %3812 = vmatpush1.bf16.msra.mxu0 0
    %3813 = vmatprep.subr.bf16.mxu0 0
    %3814 = vmatpush1.bf16.msra.mxu0 0
    %3815 = vmatprep.subr.bf16.mxu0 0
    %3816 = vmatpush1.bf16.msra.mxu0 0
    %3817 = vmatprep.subr.bf16.mxu0 0
    %3818 = vmatpush1.bf16.msra.mxu0 0
    %3819 = vmatprep.subr.bf16.mxu0 0
    %3820 = vmatpush1.bf16.msra.mxu0 0
    %3821 = vmatprep.subr.bf16.mxu0 0
    %3822 = vmatpush1.bf16.msra.mxu0 0
    %3823 = vmatprep.subr.bf16.mxu0 0
    %3824 = vmatpush1.bf16.msra.mxu0 0
    %3825 = vmatprep.subr.bf16.mxu0 0
    %3826 = vmatpush1.bf16.msra.mxu0 0
    %3827 = vmatprep.subr.bf16.mxu0 0
    %3828 = vmatpush1.bf16.msra.mxu0 0
    %3829 = vmatprep.subr.bf16.mxu0 0
    %3830 = vmatpush1.bf16.msra.mxu0 0
    %3831 = vmatprep.mubr.bf16.mxu0 0
    %3832 = vmatmul.mubr.bf16.gmra.mrb[0].mxu0 %v3794
    %v3833 = vpop.f32.mrb[0].mxu0
    %v3834 = vadd.f32 0.0, %v3833
    %v3835 = vpop.f32.mrb[0].mxu0
    %v3836 = vpop.f32.mrb[0].mxu0
    %v3837 = vpop.f32.mrb[0].mxu0
    %3838 = vdwg.mxu0
    %v3840 = vsel %vm2119, %v2501, 0
    %v3843 = vsel %vm2507, %v547, 0
    %3845 = vmatprep.subr.bf16.mxu0 0
    %3846 = vmatpush1.bf16.msra.mxu0 %v3843
    %3847 = vmatprep.subr.bf16.mxu0 0
    %3848 = vmatpush1.bf16.msra.mxu0 0
    %3849 = vmatprep.subr.bf16.mxu0 0
    %3850 = vmatpush1.bf16.msra.mxu0 0
    %3851 = vmatprep.subr.bf16.mxu0 0
    %3852 = vmatpush1.bf16.msra.mxu0 0
    %3853 = vmatprep.subr.bf16.mxu0 0
    %3854 = vmatpush1.bf16.msra.mxu0 0
    %3855 = vmatprep.subr.bf16.mxu0 0
    %3856 = vmatpush1.bf16.msra.mxu0 0
    %3857 = vmatprep.subr.bf16.mxu0 0
    %3858 = vmatpush1.bf16.msra.mxu0 0
    %3859 = vmatprep.subr.bf16.mxu0 0
    %3860 = vmatpush1.bf16.msra.mxu0 0
    %3861 = vmatprep.subr.bf16.mxu0 0
    %3862 = vmatpush1.bf16.msra.mxu0 0
    %3863 = vmatprep.subr.bf16.mxu0 0
    %3864 = vmatpush1.bf16.msra.mxu0 0
    %3865 = vmatprep.subr.bf16.mxu0 0
    %3866 = vmatpush1.bf16.msra.mxu0 0
    %3867 = vmatprep.subr.bf16.mxu0 0
    %3868 = vmatpush1.bf16.msra.mxu0 0
    %3869 = vmatprep.subr.bf16.mxu0 0
    %3870 = vmatpush1.bf16.msra.mxu0 0
    %3871 = vmatprep.subr.bf16.mxu0 0
    %3872 = vmatpush1.bf16.msra.mxu0 0
    %3873 = vmatprep.subr.bf16.mxu0 0
    %3874 = vmatpush1.bf16.msra.mxu0 0
    %3875 = vmatprep.subr.bf16.mxu0 0
    %3876 = vmatpush1.bf16.msra.mxu0 0
    %3877 = vmatprep.mubr.bf16.mxu0 0
    %3878 = vmatmul.mubr.bf16.gmra.mrb[0].mxu0 %v3840
    %v3879 = vpop.f32.mrb[0].mxu0
    %v3880 = vadd.f32 0.0, %v3879
    %v3881 = vpop.f32.mrb[0].mxu0
    %v3882 = vpop.f32.mrb[0].mxu0
    %v3883 = vpop.f32.mrb[0].mxu0
    %3884 = vdwg.mxu0
    %v3886 = vsel %vm2119, %v2502, 0
    %v3889 = vsel %vm2507, %v548, 0
    %3891 = vmatprep.subr.bf16.mxu0 0
    %3892 = vmatpush1.bf16.msra.mxu0 %v3889
    %3893 = vmatprep.subr.bf16.mxu0 0
    %3894 = vmatpush1.bf16.msra.mxu0 0
    %3895 = vmatprep.subr.bf16.mxu0 0
    %3896 = vmatpush1.bf16.msra.mxu0 0
    %3897 = vmatprep.subr.bf16.mxu0 0
    %3898 = vmatpush1.bf16.msra.mxu0 0
    %3899 = vmatprep.subr.bf16.mxu0 0
    %3900 = vmatpush1.bf16.msra.mxu0 0
    %3901 = vmatprep.subr.bf16.mxu0 0
    %3902 = vmatpush1.bf16.msra.mxu0 0
    %3903 = vmatprep.subr.bf16.mxu0 0
    %3904 = vmatpush1.bf16.msra.mxu0 0
    %3905 = vmatprep.subr.bf16.mxu0 0
    %3906 = vmatpush1.bf16.msra.mxu0 0
    %3907 = vmatprep.subr.bf16.mxu0 0
    %3908 = vmatpush1.bf16.msra.mxu0 0
    %3909 = vmatprep.subr.bf16.mxu0 0
    %3910 = vmatpush1.bf16.msra.mxu0 0
    %3911 = vmatprep.subr.bf16.mxu0 0
    %3912 = vmatpush1.bf16.msra.mxu0 0
    %3913 = vmatprep.subr.bf16.mxu0 0
    %3914 = vmatpush1.bf16.msra.mxu0 0
    %3915 = vmatprep.subr.bf16.mxu0 0
    %3916 = vmatpush1.bf16.msra.mxu0 0
    %3917 = vmatprep.subr.bf16.mxu0 0
    %3918 = vmatpush1.bf16.msra.mxu0 0
    %3919 = vmatprep.subr.bf16.mxu0 0
    %3920 = vmatpush1.bf16.msra.mxu0 0
    %3921 = vmatprep.subr.bf16.mxu0 0
    %3922 = vmatpush1.bf16.msra.mxu0 0
    %3923 = vmatprep.mubr.bf16.mxu0 0
    %3924 = vmatmul.mubr.bf16.gmra.mrb[0].mxu0 %v3886
    %v3925 = vpop.f32.mrb[0].mxu0
    %v3926 = vadd.f32 0.0, %v3925
    %v3927 = vpop.f32.mrb[0].mxu0
    %v3928 = vpop.f32.mrb[0].mxu0
    %v3929 = vpop.f32.mrb[0].mxu0
    %3930 = vdwg.mxu0
    %v3932 = vsel %vm2119, %v2503, 0
    %v3935 = vsel %vm2507, %v549, 0
    %3937 = vmatprep.subr.bf16.mxu0 0
    %3938 = vmatpush1.bf16.msra.mxu0 %v3935
    %3939 = vmatprep.subr.bf16.mxu0 0
    %3940 = vmatpush1.bf16.msra.mxu0 0
    %3941 = vmatprep.subr.bf16.mxu0 0
    %3942 = vmatpush1.bf16.msra.mxu0 0
    %3943 = vmatprep.subr.bf16.mxu0 0
    %3944 = vmatpush1.bf16.msra.mxu0 0
    %3945 = vmatprep.subr.bf16.mxu0 0
    %3946 = vmatpush1.bf16.msra.mxu0 0
    %3947 = vmatprep.subr.bf16.mxu0 0
    %3948 = vmatpush1.bf16.msra.mxu0 0
    %3949 = vmatprep.subr.bf16.mxu0 0
    %3950 = vmatpush1.bf16.msra.mxu0 0
    %3951 = vmatprep.subr.bf16.mxu0 0
    %3952 = vmatpush1.bf16.msra.mxu0 0
    %3953 = vmatprep.subr.bf16.mxu0 0
    %3954 = vmatpush1.bf16.msra.mxu0 0
    %3955 = vmatprep.subr.bf16.mxu0 0
    %3956 = vmatpush1.bf16.msra.mxu0 0
    %3957 = vmatprep.subr.bf16.mxu0 0
    %3958 = vmatpush1.bf16.msra.mxu0 0
    %3959 = vmatprep.subr.bf16.mxu0 0
    %3960 = vmatpush1.bf16.msra.mxu0 0
    %3961 = vmatprep.subr.bf16.mxu0 0
    %3962 = vmatpush1.bf16.msra.mxu0 0
    %3963 = vmatprep.subr.bf16.mxu0 0
    %3964 = vmatpush1.bf16.msra.mxu0 0
    %3965 = vmatprep.subr.bf16.mxu0 0
    %3966 = vmatpush1.bf16.msra.mxu0 0
    %3967 = vmatprep.subr.bf16.mxu0 0
    %3968 = vmatpush1.bf16.msra.mxu0 0
    %3969 = vmatprep.mubr.bf16.mxu0 0
    %3970 = vmatmul.mubr.bf16.gmra.mrb[0].mxu0 %v3932
    %v3971 = vpop.f32.mrb[0].mxu0
    %v3972 = vadd.f32 0.0, %v3971
    %v3973 = vpop.f32.mrb[0].mxu0
    %v3974 = vpop.f32.mrb[0].mxu0
    %v3975 = vpop.f32.mrb[0].mxu0
    %3976 = vdwg.mxu0
    %v3977 = vpack.c.bf16 %v2592, %v2546
    %v3978 = vpack.c.bf16 %v2684, %v2638
    %v3979 = vpack.c.bf16 %v2776, %v2730
    %v3980 = vpack.c.bf16 %v2868, %v2822
    %3981 = vst.msk [vmem:[#allocation2] sm:$0xff] %vm553, %v3977
    %3982 = vst.msk [vmem:[#allocation2 + $0x8] sm:$0xff] %vm553, %v3978
    %3983 = vst.msk [vmem:[#allocation2 + $0x10] sm:$0xff] %vm553, %v3979
    %3984 = vst.msk [vmem:[#allocation2 + $0x18] sm:$0xff] %vm553, %v3980
    %v3985 = vpack.c.bf16 %v2960, %v2914
    %v3986 = vpack.c.bf16 %v3052, %v3006
    %v3987 = vpack.c.bf16 %v3144, %v3098
    %v3988 = vpack.c.bf16 %v3236, %v3190
    %3993 = vrot.lane.b32.xlu0 %v3985, 16
    %v3994 = vpop.permute.xlu0 %3993
    %3995 = vrot.lane.b32.xlu0 %v3986, 16
    %v3996 = vpop.permute.xlu0 %3995
    %3997 = vrot.lane.b32.xlu0 %v3987, 16
    %v3998 = vpop.permute.xlu0 %3997
    %3999 = vrot.lane.b32.xlu0 %v3988, 16
    %v4000 = vpop.permute.xlu0 %3999
    %vm4005 = vcmask 261248
    %4006 = vst.msk [vmem:[#allocation2] sm:$0xff] %vm4005, %v3994
    %4007 = vst.msk [vmem:[#allocation2 + $0x8] sm:$0xff] %vm4005, %v3996
    %4008 = vst.msk [vmem:[#allocation2 + $0x10] sm:$0xff] %vm4005, %v3998
    %4009 = vst.msk [vmem:[#allocation2 + $0x18] sm:$0xff] %vm4005, %v4000
    %v4010 = vpack.c.bf16 %v3328, %v3282
    %v4011 = vpack.c.bf16 %v3420, %v3374
    %v4012 = vpack.c.bf16 %v3512, %v3466
    %v4013 = vpack.c.bf16 %v3604, %v3558
    %4018 = vrot.lane.b32.xlu0 %v4010, 32
    %v4019 = vpop.permute.xlu0 %4018
    %4020 = vrot.lane.b32.xlu0 %v4011, 32
    %v4021 = vpop.permute.xlu0 %4020
    %4022 = vrot.lane.b32.xlu0 %v4012, 32
    %v4023 = vpop.permute.xlu0 %4022
    %4024 = vrot.lane.b32.xlu0 %v4013, 32
    %v4025 = vpop.permute.xlu0 %4024
    %vm4030 = vcmask 392448
    %4031 = vst.msk [vmem:[#allocation2] sm:$0xff] %vm4030, %v4019
    %4032 = vst.msk [vmem:[#allocation2 + $0x8] sm:$0xff] %vm4030, %v4021
    %4033 = vst.msk [vmem:[#allocation2 + $0x10] sm:$0xff] %vm4030, %v4023
    %4034 = vst.msk [vmem:[#allocation2 + $0x18] sm:$0xff] %vm4030, %v4025
    %v4035 = vpack.c.bf16 %v3696, %v3650
    %v4036 = vpack.c.bf16 %v3788, %v3742
    %v4037 = vpack.c.bf16 %v3880, %v3834
    %v4038 = vpack.c.bf16 %v3972, %v3926
    %4043 = vrot.lane.b32.xlu0 %v4035, 48
    %v4044 = vpop.permute.xlu0 %4043
    %4045 = vrot.lane.b32.xlu0 %v4036, 48
    %v4046 = vpop.permute.xlu0 %4045
    %4047 = vrot.lane.b32.xlu0 %v4037, 48
    %v4048 = vpop.permute.xlu0 %4047
    %4049 = vrot.lane.b32.xlu0 %v4038, 48
    %v4050 = vpop.permute.xlu0 %4049
    %vm4055 = vcmask 523648
    %4056 = vst.msk [vmem:[#allocation2] sm:$0xff] %vm4055, %v4044
    %4057 = vst.msk [vmem:[#allocation2 + $0x8] sm:$0xff] %vm4055, %v4046
    %4058 = vst.msk [vmem:[#allocation2 + $0x10] sm:$0xff] %vm4055, %v4048
    %4059 = vst.msk [vmem:[#allocation2 + $0x18] sm:$0xff] %vm4055, %v4050
    %v4060 = vld [vmem:[#allocation2] sm:$0xff]
    %v4061 = vld [vmem:[#allocation2 + $0x8] sm:$0xff]
    %v4062 = vld [vmem:[#allocation2 + $0x10] sm:$0xff]
    %v4063 = vld [vmem:[#allocation2 + $0x18] sm:$0xff]
    %v4064 = vld [vmem:[%s4] sm:$0xf]
    %v4065 = vld [vmem:[%s4 + $0x4] sm:$0xf]
    %v4066 = vld [vmem:[%s4 + $0x8] sm:$0xf]
    %v4067 = vld [vmem:[%s4 + $0xc] sm:$0xf]
    %v4068 = vld [vmem:[%s4 + $0x10] sm:$0xf]
    %v4069 = vld [vmem:[%s4 + $0x14] sm:$0xf]
    %v4070 = vld [vmem:[%s4 + $0x18] sm:$0xf]
    %v4071 = vld [vmem:[%s4 + $0x1c] sm:$0xf]
    %v4072 = vld [vmem:[#allocation3] sm:$0x1]
    %v4074 = vlaneseq
    %v4075 = vshrl.u32 %v4074, 7
    %v4076 = vsub.s32 0, %v4075
    %v4077 = vrot.slane %v4072, %v4076
    %v4087 = vunpack.c.l.b16 %v4064
    %v4088 = vunpack.c.l.b16 %v4065
    %v4089 = vunpack.c.l.b16 %v4066
    %v4090 = vunpack.c.l.b16 %v4067
    %v4091 = vunpack.c.l.b16 %v4068
    %v4092 = vunpack.c.l.b16 %v4069
    %v4093 = vunpack.c.l.b16 %v4070
    %v4094 = vunpack.c.l.b16 %v4071
    %v4095 = vpack.c.b16 %v4088, %v4087
    %v4096 = vpack.c.b16 %v4090, %v4089
    %v4097 = vpack.c.b16 %v4092, %v4091
    %v4098 = vpack.c.b16 %v4094, %v4093
    %vm4103 = vcmask 523264
    %v4105 = vsel %vm4103, %v4060, 0
    %v4108 = vsel %vm4103, %v4061, 0
    %v4111 = vsel %vm4103, %v4062, 0
    %v4114 = vsel %vm4103, %v4063, 0
    %4116 = vmatprep.subr.bf16.mxu0 0
    %4117 = vmatpush1.bf16.msra.mxu0 %v4095
    %4118 = vmatprep.subr.bf16.mxu0 0
    %4119 = vmatpush1.bf16.msra.mxu0 %v4096
    %4120 = vmatprep.subr.bf16.mxu0 0
    %4121 = vmatpush1.bf16.msra.mxu0 %v4097
    %4122 = vmatprep.subr.bf16.mxu0 0
    %4123 = vmatpush1.bf16.msra.mxu0 %v4098
    %4124 = vmatprep.subr.bf16.mxu0 0
    %4125 = vmatpush1.bf16.msra.mxu0 0
    %4126 = vmatprep.subr.bf16.mxu0 0
    %4127 = vmatpush1.bf16.msra.mxu0 0
    %4128 = vmatprep.subr.bf16.mxu0 0
    %4129 = vmatpush1.bf16.msra.mxu0 0
    %4130 = vmatprep.subr.bf16.mxu0 0
    %4131 = vmatpush1.bf16.msra.mxu0 0
    %4132 = vmatprep.subr.bf16.mxu0 0
    %4133 = vmatpush1.bf16.msra.mxu0 0
    %4134 = vmatprep.subr.bf16.mxu0 0
    %4135 = vmatpush1.bf16.msra.mxu0 0
    %4136 = vmatprep.subr.bf16.mxu0 0
    %4137 = vmatpush1.bf16.msra.mxu0 0
    %4138 = vmatprep.subr.bf16.mxu0 0
    %4139 = vmatpush1.bf16.msra.mxu0 0
    %4140 = vmatprep.subr.bf16.mxu0 0
    %4141 = vmatpush1.bf16.msra.mxu0 0
    %4142 = vmatprep.subr.bf16.mxu0 0
    %4143 = vmatpush1.bf16.msra.mxu0 0
    %4144 = vmatprep.subr.bf16.mxu0 0
    %4145 = vmatpush1.bf16.msra.mxu0 0
    %4146 = vmatprep.subr.bf16.mxu0 0
    %4147 = vmatpush1.bf16.msra.mxu0 0
    %4148 = vmatprep.mubr.bf16.mxu0 0
    %4149 = vmatmul.mubr.bf16.gmra.mrb[0].mxu0 %v4105
    %v4150 = vpop.f32.mrb[0].mxu0
    %v4151 = vadd.f32 %v4077, %v4150
    %v4152 = vpop.f32.mrb[0].mxu0
    %v4153 = vpop.f32.mrb[0].mxu0
    %v4154 = vadd.f32 %v4077, %v4153
    %v4155 = vpop.f32.mrb[0].mxu0
    %4156 = vmatprep.mubr.bf16.mxu0 0
    %4157 = vmatmul.mubr.bf16.gmra.mrb[0].mxu0 %v4108
    %v4158 = vpop.f32.mrb[0].mxu0
    %v4159 = vadd.f32 %v4077, %v4158
    %v4160 = vpop.f32.mrb[0].mxu0
    %v4161 = vpop.f32.mrb[0].mxu0
    %v4162 = vadd.f32 %v4077, %v4161
    %v4163 = vpop.f32.mrb[0].mxu0
    %4164 = vmatprep.mubr.bf16.mxu0 0
    %4165 = vmatmul.mubr.bf16.gmra.mrb[0].mxu0 %v4111
    %v4166 = vpop.f32.mrb[0].mxu0
    %v4167 = vadd.f32 %v4077, %v4166
    %v4168 = vpop.f32.mrb[0].mxu0
    %v4169 = vpop.f32.mrb[0].mxu0
    %v4170 = vadd.f32 %v4077, %v4169
    %v4171 = vpop.f32.mrb[0].mxu0
    %4172 = vmatprep.mubr.bf16.mxu0 0
    %4173 = vmatmul.mubr.bf16.gmra.mrb[0].mxu0 %v4114
    %v4174 = vpop.f32.mrb[0].mxu0
    %v4175 = vadd.f32 %v4077, %v4174
    %v4176 = vpop.f32.mrb[0].mxu0
    %v4177 = vpop.f32.mrb[0].mxu0
    %v4178 = vadd.f32 %v4077, %v4177
    %v4179 = vpop.f32.mrb[0].mxu0
    %4180 = vdwg.mxu0
    %v4181 = vadd.f32 %v69, %v4151
    %v4182 = vadd.f32 %v70, %v4154
    %v4183 = vadd.f32 %v71, %v4159
    %v4184 = vadd.f32 %v72, %v4162
    %v4185 = vadd.f32 %v73, %v4167
    %v4186 = vadd.f32 %v74, %v4170
    %v4187 = vadd.f32 %v75, %v4175
    %v4188 = vadd.f32 %v76, %v4178
    %v4189 = vsel %vm77, %v4181, 0.0
    %4190 = vadd.xlane.f32.xlu0 %v4189
    %v4191 = vpop.xlane.xlu0 %4190
    %v4192 = vsel %vm77, %v4182, 0.0
    %4193 = vadd.xlane.f32.xlu0 %v4192
    %v4194 = vpop.xlane.xlu0 %4193
    %v4195 = vsel %vm77, %v4183, 0.0
    %4196 = vadd.xlane.f32.xlu0 %v4195
    %v4197 = vpop.xlane.xlu0 %4196
    %v4198 = vsel %vm77, %v4184, 0.0
    %4199 = vadd.xlane.f32.xlu0 %v4198
    %v4200 = vpop.xlane.xlu0 %4199
    %v4201 = vsel %vm77, %v4185, 0.0
    %4202 = vadd.xlane.f32.xlu0 %v4201
    %v4203 = vpop.xlane.xlu0 %4202
    %v4204 = vsel %vm77, %v4186, 0.0
    %4205 = vadd.xlane.f32.xlu0 %v4204
    %v4206 = vpop.xlane.xlu0 %4205
    %v4207 = vsel %vm77, %v4187, 0.0
    %4208 = vadd.xlane.f32.xlu0 %v4207
    %v4209 = vpop.xlane.xlu0 %4208
    %v4210 = vsel %vm77, %v4188, 0.0
    %4211 = vadd.xlane.f32.xlu0 %v4210
    %v4212 = vpop.xlane.xlu0 %4211
    %v4213 = vmul.f32 %v4191, %v102
    %v4214 = vmul.f32 %v4194, %v102
    %v4215 = vmul.f32 %v4197, %v102
    %v4216 = vmul.f32 %v4200, %v102
    %v4217 = vmul.f32 %v4203, %v102
    %v4218 = vmul.f32 %v4206, %v102
    %v4219 = vmul.f32 %v4209, %v102
    %v4220 = vmul.f32 %v4212, %v102
    %v4221 = vsub.f32 %v4181, %v4213
    %v4222 = vsub.f32 %v4182, %v4214
    %v4223 = vsub.f32 %v4183, %v4215
    %v4224 = vsub.f32 %v4184, %v4216
    %v4225 = vsub.f32 %v4185, %v4217
    %v4226 = vsub.f32 %v4186, %v4218
    %v4227 = vsub.f32 %v4187, %v4219
    %v4228 = vsub.f32 %v4188, %v4220
    %v4229 = vmul.f32 %v4221, %v4221
    %v4230 = vmul.f32 %v4222, %v4222
    %v4231 = vmul.f32 %v4223, %v4223
    %v4232 = vmul.f32 %v4224, %v4224
    %v4233 = vmul.f32 %v4225, %v4225
    %v4234 = vmul.f32 %v4226, %v4226
    %v4235 = vmul.f32 %v4227, %v4227
    %v4236 = vmul.f32 %v4228, %v4228
    %v4237 = vsel %vm77, %v4229, 0.0
    %4238 = vadd.xlane.f32.xlu0 %v4237
    %v4239 = vpop.xlane.xlu0 %4238
    %v4240 = vsel %vm77, %v4230, 0.0
    %4241 = vadd.xlane.f32.xlu0 %v4240
    %v4242 = vpop.xlane.xlu0 %4241
    %v4243 = vsel %vm77, %v4231, 0.0
    %4244 = vadd.xlane.f32.xlu0 %v4243
    %v4245 = vpop.xlane.xlu0 %4244
    %v4246 = vsel %vm77, %v4232, 0.0
    %4247 = vadd.xlane.f32.xlu0 %v4246
    %v4248 = vpop.xlane.xlu0 %4247
    %v4249 = vsel %vm77, %v4233, 0.0
    %4250 = vadd.xlane.f32.xlu0 %v4249
    %v4251 = vpop.xlane.xlu0 %4250
    %v4252 = vsel %vm77, %v4234, 0.0
    %4253 = vadd.xlane.f32.xlu0 %v4252
    %v4254 = vpop.xlane.xlu0 %4253
    %v4255 = vsel %vm77, %v4235, 0.0
    %4256 = vadd.xlane.f32.xlu0 %v4255
    %v4257 = vpop.xlane.xlu0 %4256
    %v4258 = vsel %vm77, %v4236, 0.0
    %4259 = vadd.xlane.f32.xlu0 %v4258
    %v4260 = vpop.xlane.xlu0 %4259
    %v4261 = vmul.f32 %v4239, %v102
    %v4262 = vmul.f32 %v4242, %v102
    %v4263 = vmul.f32 %v4245, %v102
    %v4264 = vmul.f32 %v4248, %v102
    %v4265 = vmul.f32 %v4251, %v102
    %v4266 = vmul.f32 %v4254, %v102
    %v4267 = vmul.f32 %v4257, %v102
    %v4268 = vmul.f32 %v4260, %v102
    %v4269 = vadd.f32 %v4261, 1e-05
    %v4270 = vadd.f32 %v4262, 1e-05
    %v4271 = vadd.f32 %v4263, 1e-05
    %v4272 = vadd.f32 %v4264, 1e-05
    %v4273 = vadd.f32 %v4265, 1e-05
    %v4274 = vadd.f32 %v4266, 1e-05
    %v4275 = vadd.f32 %v4267, 1e-05
    %v4276 = vadd.f32 %v4268, 1e-05
    %v4277 = vrsqrt.pop %v4269
    %v4278 = vrsqrt.pop %v4270
    %v4279 = vrsqrt.pop %v4271
    %v4280 = vrsqrt.pop %v4272
    %v4281 = vrsqrt.pop %v4273
    %v4282 = vrsqrt.pop %v4274
    %v4283 = vrsqrt.pop %v4275
    %v4284 = vrsqrt.pop %v4276
    %v4285 = vmul.f32 %v4221, %v4277
    %v4286 = vmul.f32 %v4222, %v4278
    %v4287 = vmul.f32 %v4223, %v4279
    %v4288 = vmul.f32 %v4224, %v4280
    %v4289 = vmul.f32 %v4225, %v4281
    %v4290 = vmul.f32 %v4226, %v4282
    %v4291 = vmul.f32 %v4227, %v4283
    %v4292 = vmul.f32 %v4228, %v4284
    %v4293 = vld [vmem:[%s6] sm:$0x1]
    %v4295 = vlaneseq
    %v4296 = vshrl.u32 %v4295, 7
    %v4297 = vsub.s32 0, %v4296
    %v4298 = vrot.slane %v4293, %v4297
    %v4300 = vmul.f32 %v4285, %v4298
    %v4301 = vmul.f32 %v4286, %v4298
    %v4302 = vmul.f32 %v4287, %v4298
    %v4303 = vmul.f32 %v4288, %v4298
    %v4304 = vmul.f32 %v4289, %v4298
    %v4305 = vmul.f32 %v4290, %v4298
    %v4306 = vmul.f32 %v4291, %v4298
    %v4307 = vmul.f32 %v4292, %v4298
    %v4308 = vld [vmem:[%s7] sm:$0x1]
    %v4310 = vlaneseq
    %v4311 = vshrl.u32 %v4310, 7
    %v4312 = vsub.s32 0, %v4311
    %v4313 = vrot.slane %v4308, %v4312
    %v4315 = vadd.f32 %v4300, %v4313
    %v4316 = vadd.f32 %v4301, %v4313
    %v4317 = vadd.f32 %v4302, %v4313
    %v4318 = vadd.f32 %v4303, %v4313
    %v4319 = vadd.f32 %v4304, %v4313
    %v4320 = vadd.f32 %v4305, %v4313
    %v4321 = vadd.f32 %v4306, %v4313
    %v4322 = vadd.f32 %v4307, %v4313
    %v4323 = vpack.c.bf16 %v4316, %v4315
    %v4324 = vpack.c.bf16 %v4318, %v4317
    %v4325 = vpack.c.bf16 %v4320, %v4319
    %v4326 = vpack.c.bf16 %v4322, %v4321
    %v4327 = vld [vmem:[#allocation6] sm:$0xf]
    %v4328 = vld [vmem:[#allocation6 + $0x4] sm:$0xf]
    %v4329 = vld [vmem:[#allocation6 + $0x8] sm:$0xf]
    %v4330 = vld [vmem:[#allocation6 + $0xc] sm:$0xf]
    %v4331 = vld [vmem:[%s9] sm:$0x1]
    %v4333 = vlaneseq
    %v4334 = vshrl.u32 %v4333, 7
    %v4335 = vsub.s32 0, %v4334
    %v4336 = vrot.slane %v4331, %v4335
    %v4342 = vunpack.c.l.b16 %v4327
    %v4343 = vunpack.c.l.b16 %v4328
    %v4344 = vunpack.c.l.b16 %v4329
    %v4345 = vunpack.c.l.b16 %v4330
    %v4346 = vpack.c.b16 %v4343, %v4342
    %v4347 = vpack.c.b16 %v4345, %v4344
    %v4351 = vsel %vm77, %v4323, 0
    %v4354 = vsel %vm77, %v4324, 0
    %v4357 = vsel %vm77, %v4325, 0
    %v4360 = vsel %vm77, %v4326, 0
    %4362 = vmatprep.subr.bf16.mxu0 0
    %4363 = vmatpush1.bf16.msra.mxu0 %v4346
    %4364 = vmatprep.subr.bf16.mxu0 0
    %4365 = vmatpush1.bf16.msra.mxu0 %v4347
    %4366 = vmatprep.subr.bf16.mxu0 0
    %4367 = vmatpush1.bf16.msra.mxu0 0
    %4368 = vmatprep.subr.bf16.mxu0 0
    %4369 = vmatpush1.bf16.msra.mxu0 0
    %4370 = vmatprep.subr.bf16.mxu0 0
    %4371 = vmatpush1.bf16.msra.mxu0 0
    %4372 = vmatprep.subr.bf16.mxu0 0
    %4373 = vmatpush1.bf16.msra.mxu0 0
    %4374 = vmatprep.subr.bf16.mxu0 0
    %4375 = vmatpush1.bf16.msra.mxu0 0
    %4376 = vmatprep.subr.bf16.mxu0 0
    %4377 = vmatpush1.bf16.msra.mxu0 0
    %4378 = vmatprep.subr.bf16.mxu0 0
    %4379 = vmatpush1.bf16.msra.mxu0 0
    %4380 = vmatprep.subr.bf16.mxu0 0
    %4381 = vmatpush1.bf16.msra.mxu0 0
    %4382 = vmatprep.subr.bf16.mxu0 0
    %4383 = vmatpush1.bf16.msra.mxu0 0
    %4384 = vmatprep.subr.bf16.mxu0 0
    %4385 = vmatpush1.bf16.msra.mxu0 0
    %4386 = vmatprep.subr.bf16.mxu0 0
    %4387 = vmatpush1.bf16.msra.mxu0 0
    %4388 = vmatprep.subr.bf16.mxu0 0
    %4389 = vmatpush1.bf16.msra.mxu0 0
    %4390 = vmatprep.subr.bf16.mxu0 0
    %4391 = vmatpush1.bf16.msra.mxu0 0
    %4392 = vmatprep.subr.bf16.mxu0 0
    %4393 = vmatpush1.bf16.msra.mxu0 0
    %4394 = vmatprep.mubr.bf16.mxu0 0
    %4395 = vmatmul.mubr.bf16.gmra.mrb[0].mxu0 %v4351
    %v4396 = vpop.f32.mrb[0].mxu0
    %v4397 = vadd.f32 %v4336, %v4396
    %v4398 = vpop.f32.mrb[0].mxu0
    %v4399 = vpop.f32.mrb[0].mxu0
    %v4400 = vadd.f32 %v4336, %v4399
    %v4401 = vpop.f32.mrb[0].mxu0
    %4402 = vmatprep.mubr.bf16.mxu0 0
    %4403 = vmatmul.mubr.bf16.gmra.mrb[0].mxu0 %v4354
    %v4404 = vpop.f32.mrb[0].mxu0
    %v4405 = vadd.f32 %v4336, %v4404
    %v4406 = vpop.f32.mrb[0].mxu0
    %v4407 = vpop.f32.mrb[0].mxu0
    %v4408 = vadd.f32 %v4336, %v4407
    %v4409 = vpop.f32.mrb[0].mxu0
    %4410 = vmatprep.mubr.bf16.mxu0 0
    %4411 = vmatmul.mubr.bf16.gmra.mrb[0].mxu0 %v4357
    %v4412 = vpop.f32.mrb[0].mxu0
    %v4413 = vadd.f32 %v4336, %v4412
    %v4414 = vpop.f32.mrb[0].mxu0
    %v4415 = vpop.f32.mrb[0].mxu0
    %v4416 = vadd.f32 %v4336, %v4415
    %v4417 = vpop.f32.mrb[0].mxu0
    %4418 = vmatprep.mubr.bf16.mxu0 0
    %4419 = vmatmul.mubr.bf16.gmra.mrb[0].mxu0 %v4360
    %v4420 = vpop.f32.mrb[0].mxu0
    %v4421 = vadd.f32 %v4336, %v4420
    %v4422 = vpop.f32.mrb[0].mxu0
    %v4423 = vpop.f32.mrb[0].mxu0
    %v4424 = vadd.f32 %v4336, %v4423
    %v4425 = vpop.f32.mrb[0].mxu0
    %4426 = vdwg.mxu0
    %v4427 = vmax.f32 %v4397, 0.0
    %v4428 = vmax.f32 %v4400, 0.0
    %v4429 = vmax.f32 %v4405, 0.0
    %v4430 = vmax.f32 %v4408, 0.0
    %v4431 = vmax.f32 %v4413, 0.0
    %v4432 = vmax.f32 %v4416, 0.0
    %v4433 = vmax.f32 %v4421, 0.0
    %v4434 = vmax.f32 %v4424, 0.0
    %v4435 = vpack.c.bf16 %v4428, %v4427
    %v4436 = vpack.c.bf16 %v4430, %v4429
    %v4437 = vpack.c.bf16 %v4432, %v4431
    %v4438 = vpack.c.bf16 %v4434, %v4433
    %v4439 = vld [vmem:[%s10] sm:$0xf]
    %v4440 = vld [vmem:[%s10 + $0x4] sm:$0xf]
    %v4441 = vld [vmem:[%s10 + $0x8] sm:$0xf]
    %v4442 = vld [vmem:[%s10 + $0xc] sm:$0xf]
    %v4443 = vld [vmem:[%s10 + $0x10] sm:$0xf]
    %v4444 = vld [vmem:[%s10 + $0x14] sm:$0xf]
    %v4445 = vld [vmem:[%s10 + $0x18] sm:$0xf]
    %v4446 = vld [vmem:[%s10 + $0x1c] sm:$0xf]
    %v4447 = vld [vmem:[%s11] sm:$0x1]
    %v4449 = vlaneseq
    %v4450 = vshrl.u32 %v4449, 7
    %v4451 = vsub.s32 0, %v4450
    %v4452 = vrot.slane %v4447, %v4451
    %v4462 = vunpack.c.l.b16 %v4439
    %v4463 = vunpack.c.l.b16 %v4440
    %v4464 = vunpack.c.l.b16 %v4441
    %v4465 = vunpack.c.l.b16 %v4442
    %v4466 = vunpack.c.l.b16 %v4443
    %v4467 = vunpack.c.l.b16 %v4444
    %v4468 = vunpack.c.l.b16 %v4445
    %v4469 = vunpack.c.l.b16 %v4446
    %v4470 = vpack.c.b16 %v4463, %v4462
    %v4471 = vpack.c.b16 %v4465, %v4464
    %v4472 = vpack.c.b16 %v4467, %v4466
    %v4473 = vpack.c.b16 %v4469, %v4468
    %v4479 = vsel %vm4103, %v4435, 0
    %v4482 = vsel %vm4103, %v4436, 0
    %v4485 = vsel %vm4103, %v4437, 0
    %v4488 = vsel %vm4103, %v4438, 0
    %4490 = vmatprep.subr.bf16.mxu0 0
    %4491 = vmatpush1.bf16.msra.mxu0 %v4470
    %4492 = vmatprep.subr.bf16.mxu0 0
    %4493 = vmatpush1.bf16.msra.mxu0 %v4471
    %4494 = vmatprep.subr.bf16.mxu0 0
    %4495 = vmatpush1.bf16.msra.mxu0 %v4472
    %4496 = vmatprep.subr.bf16.mxu0 0
    %4497 = vmatpush1.bf16.msra.mxu0 %v4473
    %4498 = vmatprep.subr.bf16.mxu0 0
    %4499 = vmatpush1.bf16.msra.mxu0 0
    %4500 = vmatprep.subr.bf16.mxu0 0
    %4501 = vmatpush1.bf16.msra.mxu0 0
    %4502 = vmatprep.subr.bf16.mxu0 0
    %4503 = vmatpush1.bf16.msra.mxu0 0
    %4504 = vmatprep.subr.bf16.mxu0 0
    %4505 = vmatpush1.bf16.msra.mxu0 0
    %4506 = vmatprep.subr.bf16.mxu0 0
    %4507 = vmatpush1.bf16.msra.mxu0 0
    %4508 = vmatprep.subr.bf16.mxu0 0
    %4509 = vmatpush1.bf16.msra.mxu0 0
    %4510 = vmatprep.subr.bf16.mxu0 0
    %4511 = vmatpush1.bf16.msra.mxu0 0
    %4512 = vmatprep.subr.bf16.mxu0 0
    %4513 = vmatpush1.bf16.msra.mxu0 0
    %4514 = vmatprep.subr.bf16.mxu0 0
    %4515 = vmatpush1.bf16.msra.mxu0 0
    %4516 = vmatprep.subr.bf16.mxu0 0
    %4517 = vmatpush1.bf16.msra.mxu0 0
    %4518 = vmatprep.subr.bf16.mxu0 0
    %4519 = vmatpush1.bf16.msra.mxu0 0
    %4520 = vmatprep.subr.bf16.mxu0 0
    %4521 = vmatpush1.bf16.msra.mxu0 0
    %4522 = vmatprep.mubr.bf16.mxu0 0
    %4523 = vmatmul.mubr.bf16.gmra.mrb[0].mxu0 %v4479
    %v4524 = vpop.f32.mrb[0].mxu0
    %v4525 = vadd.f32 %v4452, %v4524
    %v4526 = vpop.f32.mrb[0].mxu0
    %v4527 = vpop.f32.mrb[0].mxu0
    %v4528 = vadd.f32 %v4452, %v4527
    %v4529 = vpop.f32.mrb[0].mxu0
    %4530 = vmatprep.mubr.bf16.mxu0 0
    %4531 = vmatmul.mubr.bf16.gmra.mrb[0].mxu0 %v4482
    %v4532 = vpop.f32.mrb[0].mxu0
    %v4533 = vadd.f32 %v4452, %v4532
    %v4534 = vpop.f32.mrb[0].mxu0
    %v4535 = vpop.f32.mrb[0].mxu0
    %v4536 = vadd.f32 %v4452, %v4535
    %v4537 = vpop.f32.mrb[0].mxu0
    %4538 = vmatprep.mubr.bf16.mxu0 0
    %4539 = vmatmul.mubr.bf16.gmra.mrb[0].mxu0 %v4485
    %v4540 = vpop.f32.mrb[0].mxu0
    %v4541 = vadd.f32 %v4452, %v4540
    %v4542 = vpop.f32.mrb[0].mxu0
    %v4543 = vpop.f32.mrb[0].mxu0
    %v4544 = vadd.f32 %v4452, %v4543
    %v4545 = vpop.f32.mrb[0].mxu0
    %4546 = vmatprep.mubr.bf16.mxu0 0
    %4547 = vmatmul.mubr.bf16.gmra.mrb[0].mxu0 %v4488
    %v4548 = vpop.f32.mrb[0].mxu0
    %v4549 = vadd.f32 %v4452, %v4548
    %v4550 = vpop.f32.mrb[0].mxu0
    %v4551 = vpop.f32.mrb[0].mxu0
    %v4552 = vadd.f32 %v4452, %v4551
    %v4553 = vpop.f32.mrb[0].mxu0
    %4554 = vdwg.mxu0
    %v4555 = vadd.f32 %v4181, %v4525
    %v4556 = vadd.f32 %v4182, %v4528
    %v4557 = vadd.f32 %v4183, %v4533
    %v4558 = vadd.f32 %v4184, %v4536
    %v4559 = vadd.f32 %v4185, %v4541
    %v4560 = vadd.f32 %v4186, %v4544
    %v4561 = vadd.f32 %v4187, %v4549
    %v4562 = vadd.f32 %v4188, %v4552
    %4563 = vst.msk [vmem:[#allocation8] sm:$0xff] %vm77, %v4555
    %4564 = vst.msk [vmem:[#allocation8 + $0x8] sm:$0xff] %vm77, %v4556
    %4565 = vst.msk [vmem:[#allocation8 + $0x10] sm:$0xff] %vm77, %v4557
    %4566 = vst.msk [vmem:[#allocation8 + $0x18] sm:$0xff] %vm77, %v4558
    %4567 = vst.msk [vmem:[#allocation8 + $0x20] sm:$0xff] %vm77, %v4559
    %4568 = vst.msk [vmem:[#allocation8 + $0x28] sm:$0xff] %vm77, %v4560
    %4569 = vst.msk [vmem:[#allocation8 + $0x30] sm:$0xff] %vm77, %v4561
    %4570 = vst.msk [vmem:[#allocation8 + $0x38] sm:$0xff] %vm77, %v4562
    // Predicated region
    $region58: #{tpu_custom_call.1} parent=1 // pred_check
      _
    $region59: #{tpu_custom_call.1} parent=1 // pred_check_branch
      %4572 = sbr.rel (0) target = $region61
    $region60: #{tpu_custom_call.1} parent=1 // pred_region
      %s4574 = ssub.s32 1024, 1024
      %4575 = vsyncadd [#allocation5], %s4574
      %s4576 = sshll.u32 [#allocation8], 4
      %s4577 = int_to_ptr.vmem [resolvable:$true] %s4576
      %4582 = dma.vmem_to_hbm [thread:$0]  %s4577, 1024, %s12, [#allocation5], 128, 128, 8
    $region61: #{tpu_custom_call.1} parent=1 // pred_fallthru
      _
    // Predicated region
    $region62: #{tpu_custom_call.1} parent=1 // pred_check
      _
    $region63: #{tpu_custom_call.1} parent=1 // pred_check_branch
      %4584 = sbr.rel (0) target = $region65
    $region64: #{tpu_custom_call.1} parent=1 // pred_region
      %4585 = dma.done [#allocation5], 1024
    $region65: #{tpu_custom_call.1} parent=1 // pred_fallthru
      _
    %4586 = vsyncpa [#allocation4], 1
    %4587 = vsyncpa [#allocation7], 1
    %4588 = vsyncpa [#allocation5], 1

</llo_original>
